<compile_context>
chip_gen: v7x
topology: tpu7x:2x2x1
jax: 0.10.0
libtpu: 0.0.40
codegen_flags: <defaults>
</compile_context>

<pallas_src>
import functools
import math

import jax
import jax.numpy as jnp
from jax.experimental import pallas as pl
from jax.experimental.pallas import tpu as pltpu

# ---------------------------------------------------------------------------
# config (small, consistent with the module)
# ---------------------------------------------------------------------------
VOCAB_SIZE = 24          # 20 AAs + special tokens
PAD_IDX = 0              # padding token index (embedding row forced to zero)
EMB_DIM = 32             # config['embedding_dim']
FF_DIM = 64              # transformer FFN hidden dim
NUM_HEADS = 4            # transformer encoder heads
PMA_HEADS = 4            # config['PMA_num_heads']
BATCH = 2
SEQ_LEN = 8

OUT_PAD = 128            # lane-dense padded width for FFN hidden / final output

# order of rows in the packed (NV, 128) vector slab
VEC_ROW_NAMES = ["bqkv", "bo", "ln1g", "ln1b", "b1p", "b2", "ln2g", "ln2b",
                 "S", "pq_b", "pkv_b", "po_b",
                 "pln0g", "pln0b", "pln1g", "pln1b", "bfp"]


def _vec_widths(D):
    return {"bqkv": 3 * D, "bo": D, "ln1g": D, "ln1b": D, "b1p": OUT_PAD, "b2": D,
            "ln2g": D, "ln2b": D, "S": D, "pq_b": D, "pkv_b": 2 * D, "po_b": D,
            "pln0g": D, "pln0b": D, "pln1g": D, "pln1b": D, "bfp": OUT_PAD}


def _round_up(x, m):
    return (x + m - 1) // m * m


# ---------------------------------------------------------------------------
# math shared by the kernel body and the pure-JAX reference
# ---------------------------------------------------------------------------
def _mm(x, w):
    # bf16 MXU operands, f32 accumulation (no-op casts if already bf16)
    return jnp.dot(x.astype(jnp.bfloat16), w.astype(jnp.bfloat16),
                   preferred_element_type=jnp.float32)


def _layer_norm(x, gamma, beta, eps=1e-5):
    mu = jnp.mean(x, axis=-1, keepdims=True)
    var = jnp.mean((x - mu) ** 2, axis=-1, keepdims=True)
    return (x - mu) * jax.lax.rsqrt(var + eps) * gamma + beta


def _mha_heads(q, k, v, kmask_add, num_heads, scale, recip):
    """q: (B, Lq, D); k, v: (B, Lk, D); kmask_add: (B, 1, Lk) additive mask
    (0 for real tokens, -1e9 for padding).  Returns per-head contexts (B, Lq, hd)."""
    _, _, D = q.shape
    hd = D // num_heads
    q = q * jnp.float32(scale)                     # fold softmax scale into Q once
    outs = []
    for h in range(num_heads):                     # static unroll (Mosaic-safe)
        sl = slice(h * hd, (h + 1) * hd)
        s = jnp.einsum("bqd,bkd->bqk",
                       q[:, :, sl].astype(jnp.bfloat16),
                       k[:, :, sl].astype(jnp.bfloat16),
                       preferred_element_type=jnp.float32) + kmask_add
        m = jnp.max(s, axis=-1, keepdims=True)     # stable softmax, f32 elementwise
        p = jnp.exp(s - m)
        a = p * recip(jnp.sum(p, axis=-1, keepdims=True))
        outs.append(jnp.einsum("bqk,bkd->bqd",
                               a.astype(jnp.bfloat16),
                               v[:, :, sl].astype(jnp.bfloat16),
                               preferred_element_type=jnp.float32))
    return outs


def _forward_math(ids3, mask, *, emb, wqkv, bqkv, wo, bo, ln1g, ln1b,
                  w1, b1, w2, b2, ln2g, ln2b, S,
                  pq_w, pq_b, pkv_w, pkv_b, po_w, po_b,
                  pln0g, pln0b, pln1g, pln1b, wf, bf,
                  num_heads, pma_heads, recip):
    # ids3: (BT, L, 1) int32, mask: (BT, L) f32 (>0 = real token)
    BT, L, _ = ids3.shape
    V, D = emb.shape
    N = BT * L
    hd = D // num_heads

    # additive key-padding mask, computed once, shared by encoder MHA and PMA
    kmask_add = jnp.where(mask > 0, 0.0, -1e9).astype(jnp.float32)[:, None, :]

    # --- embedding lookup: in-register one-hot (iota == id) @ emb (MXU gather) ---
    iota = jax.lax.broadcasted_iota(jnp.int32, (BT, L, V), 2)
    onehot = jnp.where(ids3 == iota, 1.0, 0.0).reshape(N, V)        # (N, V) f32
    x = _mm(onehot, emb)                                            # (N, D) f32

    # --- transformer encoder layer (post-LN, ReLU FFN, key-padding-masked MHA) ---
    qkv = _mm(x, wqkv) + bqkv                                       # fused QKV (N, 3D)
    q = qkv[:, :D].reshape(BT, L, D)
    k = qkv[:, D:2 * D].reshape(BT, L, D)
    v = qkv[:, 2 * D:].reshape(BT, L, D)
    ctx_heads = _mha_heads(q, k, v, kmask_add, num_heads,
                           1.0 / math.sqrt(hd), recip)
    attn = bo                                                       # fold W_O into head loop
    for h, c in enumerate(ctx_heads):
        attn = attn + _mm(c.reshape(N, hd), wo[h * hd:(h + 1) * hd, :])
    x = _layer_norm(x + attn, ln1g, ln1b)
    hid = jnp.maximum(_mm(x, w1) + b1, 0.0)                         # (N, FF_pad) ReLU
    x = _layer_norm(x + _mm(hid, w2) + b2, ln2g, ln2b)

    # --- PMA masked-attention pooling (Set-Transformer MAB, 1 learnable seed) ---
    Q = _mm(S, pq_w) + pq_b                                         # (1, D)
    Qb = jnp.broadcast_to(Q[None], (BT, 1, D))                      # (BT, 1, D)
    kv = _mm(x, pkv_w) + pkv_b                                      # fused K/V (N, 2D)
    K = kv[:, :D].reshape(BT, L, D)
    Vv = kv[:, D:].reshape(BT, L, D)
    ctx_p = jnp.concatenate(
        _mha_heads(Qb, K, Vv, kmask_add, pma_heads,
                   1.0 / math.sqrt(D), recip), axis=-1)
    O = (Qb + ctx_p).reshape(BT, D)                                 # residual w/ projected query
    O = _layer_norm(O, pln0g, pln0b)
    O = O + jnp.maximum(_mm(O, po_w) + po_b, 0.0)                   # rFF residual
    O = _layer_norm(O, pln1g, pln1b)

    # --- final linear (wf zero-padded to a lane-dense width) ---
    return _mm(O, wf) + bf


# ---------------------------------------------------------------------------
# Pallas kernel + wrapper
# ---------------------------------------------------------------------------
def peptide_embedder_kernel(ids_ref, mask_ref, emb_ref, wqkv_ref, wo_ref, w1_ref,
                            w2_ref, pq_w_ref, pkv_w_ref, po_w_ref, wfp_ref, vecs_ref,
                            out_ref, *, num_heads, pma_heads, emb_dim):
    widths = _vec_widths(emb_dim)
    vecs = vecs_ref[...]                                            # (NV, 128) slab
    vrow = {name: vecs[i:i + 1, :widths[name]]
            for i, name in enumerate(VEC_ROW_NAMES)}
    out_ref[...] = _forward_math(
        ids_ref[...], mask_ref[...],
        emb=emb_ref[...], wqkv=wqkv_ref[...], bqkv=vrow["bqkv"],
        wo=wo_ref[...], bo=vrow["bo"], ln1g=vrow["ln1g"], ln1b=vrow["ln1b"],
        w1=w1_ref[...], b1=vrow["b1p"], w2=w2_ref[...], b2=vrow["b2"],
        ln2g=vrow["ln2g"], ln2b=vrow["ln2b"], S=vrow["S"],
        pq_w=pq_w_ref[...], pq_b=vrow["pq_b"],
        pkv_w=pkv_w_ref[...], pkv_b=vrow["pkv_b"],
        po_w=po_w_ref[...], po_b=vrow["po_b"],
        pln0g=vrow["pln0g"], pln0b=vrow["pln0b"],
        pln1g=vrow["pln1g"], pln1b=vrow["pln1b"],
        wf=wfp_ref[...], bf=vrow["bfp"],
        num_heads=num_heads, pma_heads=pma_heads,
        recip=lambda t: pl.reciprocal(t, approx=True))


def fuse_params(params):
    """Host-side (cheap, cacheable) param fusion / padding / bf16 cast."""
    D = params["emb"].shape[1]
    FF = params["w1"].shape[1]
    f = dict(params)
    f["wqkv"] = jnp.concatenate([params["wq"], params["wk"], params["wv"]], axis=1)
    f["bqkv"] = jnp.concatenate([params["bq"], params["bk"], params["bv"]], axis=1)
    f["pkv_w"] = jnp.concatenate([params["pk_w"], params["pv_w"]], axis=1)
    f["pkv_b"] = jnp.concatenate([params["pk_b"], params["pv_b"]], axis=1)
    # FFN padded to 128 lanes (exact: extra columns/rows are zero)
    f["w1p"] = jnp.zeros((D, OUT_PAD), jnp.float32).at[:, :FF].set(params["w1"])
    f["b1p"] = jnp.zeros((1, OUT_PAD), jnp.float32).at[:, :FF].set(params["b1"])
    f["w2p"] = jnp.zeros((OUT_PAD, D), jnp.float32).at[:FF, :].set(params["w2"])
    # final linear padded so the output store is a full-width vst
    f["wfp"] = jnp.zeros((D, OUT_PAD), jnp.float32).at[:, :D].set(params["wf"])
    f["bfp"] = jnp.zeros((1, OUT_PAD), jnp.float32).at[:, :D].set(params["bf"])
    # matmul operands go to the kernel as bf16 (half the DMA bytes, no in-kernel
    # weight casts); biases / LN params / seed stay f32 in the packed vector slab.
    for k in ("emb", "wqkv", "wo", "w1p", "w2p", "pq_w", "pkv_w", "po_w", "wfp"):
        f[k] = f[k].astype(jnp.bfloat16)
    return f


def pack_vectors(fused, D):
    widths = _vec_widths(D)
    vecs = jnp.zeros((len(VEC_ROW_NAMES), 128), jnp.float32)
    for i, name in enumerate(VEC_ROW_NAMES):
        w = widths[name]
        vecs = vecs.at[i, :w].set(fused[name].reshape(-1)[:w].astype(jnp.float32))
    return vecs


def peptide_embedder(input_ids, padding_mask, params, *, num_heads=NUM_HEADS,
                     pma_heads=PMA_HEADS, b_tile=256):
    """input_ids: (B, L) int; padding_mask: (B, L), nonzero = real token."""
    B, L = input_ids.shape
    V, D = params["emb"].shape

    fused = fuse_params(params)
    vecs = pack_vectors(fused, D)
    nv = len(VEC_ROW_NAMES)

    # batch tiling: pad B up to a multiple of the tile (pad rows are all-PAD, masked out)
    b_tile = max(8, min(_round_up(b_tile, 8), _round_up(B, 8)))
    b_pad = _round_up(B, b_tile)
    ids3 = jnp.full((b_pad, L, 1), PAD_IDX, jnp.int32).at[:B].set(
        input_ids.astype(jnp.int32)[:, :, None])
    mask = jnp.zeros((b_pad, L), jnp.float32).at[:B].set(
        padding_mask.astype(jnp.float32))

    def _full_spec(shape):
        nd = len(shape)
        return pl.BlockSpec(shape, lambda i, nd=nd: (0,) * nd)

    kernel = functools.partial(peptide_embedder_kernel,
                               num_heads=num_heads, pma_heads=pma_heads, emb_dim=D)

    out = pl.pallas_call(
        kernel,
        out_shape=jax.ShapeDtypeStruct((b_pad, OUT_PAD), jnp.float32),
        grid=(b_pad // b_tile,),
        in_specs=[
            pl.BlockSpec((b_tile, L, 1), lambda i: (i, 0, 0)),   # input ids
            pl.BlockSpec((b_tile, L), lambda i: (i, 0)),         # padding mask
            _full_spec((V, D)),                                  # emb (bf16)
            _full_spec((D, 3 * D)),                              # wqkv (fused, bf16)
            _full_spec((D, D)),                                  # wo (bf16)
            _full_spec((D, OUT_PAD)),                            # w1 (padded, bf16)
            _full_spec((OUT_PAD, D)),                            # w2 (padded, bf16)
            _full_spec((D, D)),                                  # pq_w (bf16)
            _full_spec((D, 2 * D)),                              # pkv_w (fused, bf16)
            _full_spec((D, D)),                                  # po_w (bf16)
            _full_spec((D, OUT_PAD)),                            # wf (padded, bf16)
            _full_spec((nv, 128)),                               # packed f32 vector slab
        ],
        out_specs=pl.BlockSpec((b_tile, OUT_PAD), lambda i: (i, 0)),
        compiler_params=pltpu.CompilerParams(
            dimension_semantics=("parallel",),                   # megacore sharding
            vmem_limit_bytes=32 * 1024 * 1024),
    )(ids3, mask, fused["emb"], fused["wqkv"], fused["wo"], fused["w1p"],
      fused["w2p"], fused["pq_w"], fused["pkv_w"], fused["po_w"], fused["wfp"], vecs)

    return out[:B, :D]


def reference_forward(input_ids, padding_mask, params, *, num_heads=NUM_HEADS,
                      pma_heads=PMA_HEADS):
    """Pure-JAX reference (same math, outside the kernel)."""
    fused = fuse_params(params)
    D = params["emb"].shape[1]
    out = _forward_math(
        input_ids.astype(jnp.int32)[:, :, None], padding_mask.astype(jnp.float32),
        emb=fused["emb"], wqkv=fused["wqkv"], bqkv=fused["bqkv"],
        wo=fused["wo"], bo=fused["bo"], ln1g=fused["ln1g"], ln1b=fused["ln1b"],
        w1=fused["w1p"], b1=fused["b1p"], w2=fused["w2p"], b2=fused["b2"],
        ln2g=fused["ln2g"], ln2b=fused["ln2b"], S=fused["S"],
        pq_w=fused["pq_w"], pq_b=fused["pq_b"],
        pkv_w=fused["pkv_w"], pkv_b=fused["pkv_b"],
        po_w=fused["po_w"], po_b=fused["po_b"],
        pln0g=fused["pln0g"], pln0b=fused["pln0b"],
        pln1g=fused["pln1g"], pln1b=fused["pln1b"],
        wf=fused["wfp"], bf=fused["bfp"],
        num_heads=num_heads, pma_heads=pma_heads, recip=lambda t: 1.0 / t)
    return out[:, :D]


# ---------------------------------------------------------------------------
# deterministic parameter init (synthetic; no checkpoint load)
# ---------------------------------------------------------------------------
def init_params(key, V=VOCAB_SIZE, D=EMB_DIM, Dff=FF_DIM, pad_idx=PAD_IDX):
    ks = iter(jax.random.split(key, 16))
    w = lambda k, shape, s=0.05: (jax.random.normal(k, shape, jnp.float32) * s)

    emb = w(next(ks), (V, D), 0.1).at[pad_idx].set(0.0)   # padding_idx row = 0

    p = {
        "emb": emb,
        "wq": w(next(ks), (D, D)), "bq": jnp.zeros((1, D), jnp.float32),
        "wk": w(next(ks), (D, D)), "bk": jnp.zeros((1, D), jnp.float32),
        "wv": w(next(ks), (D, D)), "bv": jnp.zeros((1, D), jnp.float32),
        "wo": w(next(ks), (D, D)), "bo": jnp.zeros((1, D), jnp.float32),
        "ln1g": jnp.ones((1, D), jnp.float32), "ln1b": jnp.zeros((1, D), jnp.float32),
        "w1": w(next(ks), (D, Dff)), "b1": jnp.zeros((1, Dff), jnp.float32),
        "w2": w(next(ks), (Dff, D)), "b2": jnp.zeros((1, D), jnp.float32),
        "ln2g": jnp.ones((1, D), jnp.float32), "ln2b": jnp.zeros((1, D), jnp.float32),
        "S": w(next(ks), (1, D), 0.1),
        "pq_w": w(next(ks), (D, D)), "pq_b": jnp.zeros((1, D), jnp.float32),
        "pk_w": w(next(ks), (D, D)), "pk_b": jnp.zeros((1, D), jnp.float32),
        "pv_w": w(next(ks), (D, D)), "pv_b": jnp.zeros((1, D), jnp.float32),
        "po_w": w(next(ks), (D, D)), "po_b": jnp.zeros((1, D), jnp.float32),
        "pln0g": jnp.ones((1, D), jnp.float32), "pln0b": jnp.zeros((1, D), jnp.float32),
        "pln1g": jnp.ones((1, D), jnp.float32), "pln1b": jnp.zeros((1, D), jnp.float32),
        "wf": w(next(ks), (D, D)), "bf": jnp.zeros((1, D), jnp.float32),
    }
    return p


# ---------------------------------------------------------------------------
if __name__ == "__main__":
    key = jax.random.PRNGKey(0)
    k_ids, k_params = jax.random.split(key)

    # synthetic tokenized peptides: ids in [1, V), with explicit padding at the end
    input_ids = jax.random.randint(k_ids, (BATCH, SEQ_LEN), 1, VOCAB_SIZE, dtype=jnp.int32)
    input_ids = input_ids.at[1, -2:].set(PAD_IDX)            # second sequence has 2 pad tokens
    padding_mask = (input_ids != PAD_IDX).astype(jnp.float32)

    params = init_params(k_params)

    out = peptide_embedder(input_ids, padding_mask, params)
    out = jax.block_until_ready(out)

    ref = reference_forward(input_ids, padding_mask, params)
    assert out.shape == (BATCH, EMB_DIM)
    assert jnp.allclose(out, ref, rtol=1e-2, atol=2e-2), "kernel mismatch vs reference"

    print("KERNEL_OK")
</pallas_src>

<mosaic_0001>
module attributes {stable_mosaic.version = 11 : i64} {
  func.func @peptide_embedder_kernel(%arg0: i32, %arg1: memref<8x8x1xi32, #tpu.memory_space<vmem>>, %arg2: memref<8x8xf32, #tpu.memory_space<vmem>>, %arg3: memref<24x32xbf16, #tpu.memory_space<vmem>>, %arg4: memref<32x96xbf16, #tpu.memory_space<vmem>>, %arg5: memref<32x32xbf16, #tpu.memory_space<vmem>>, %arg6: memref<32x128xbf16, #tpu.memory_space<vmem>>, %arg7: memref<128x32xbf16, #tpu.memory_space<vmem>>, %arg8: memref<32x32xbf16, #tpu.memory_space<vmem>>, %arg9: memref<32x64xbf16, #tpu.memory_space<vmem>>, %arg10: memref<32x32xbf16, #tpu.memory_space<vmem>>, %arg11: memref<32x128xbf16, #tpu.memory_space<vmem>>, %arg12: memref<17x128xf32, #tpu.memory_space<vmem>>, %arg13: memref<8x128xf32, #tpu.memory_space<vmem>>) attributes {dimension_semantics = [#tpu.dimension_semantics<parallel>], iteration_bounds = array<i64: 1>, scalar_prefetch = 0 : i64, scratch_operands = 0 : i64, tpu.core_type = #tpu.core_type<tc>, window_params = [{transform_indices = @transform_0, window_bounds = array<i64: 8, 8, 1>}, {transform_indices = @transform_1, window_bounds = array<i64: 8, 8>}, {pipeline_mode = #tpu.pipeline_mode<synchronous>, transform_indices = @transform_2, window_bounds = array<i64: 24, 32>}, {pipeline_mode = #tpu.pipeline_mode<synchronous>, transform_indices = @transform_3, window_bounds = array<i64: 32, 96>}, {pipeline_mode = #tpu.pipeline_mode<synchronous>, transform_indices = @transform_4, window_bounds = array<i64: 32, 32>}, {pipeline_mode = #tpu.pipeline_mode<synchronous>, transform_indices = @transform_5, window_bounds = array<i64: 32, 128>}, {pipeline_mode = #tpu.pipeline_mode<synchronous>, transform_indices = @transform_6, window_bounds = array<i64: 128, 32>}, {pipeline_mode = #tpu.pipeline_mode<synchronous>, transform_indices = @transform_7, window_bounds = array<i64: 32, 32>}, {pipeline_mode = #tpu.pipeline_mode<synchronous>, transform_indices = @transform_8, window_bounds = array<i64: 32, 64>}, {pipeline_mode = #tpu.pipeline_mode<synchronous>, transform_indices = @transform_9, window_bounds = array<i64: 32, 32>}, {pipeline_mode = #tpu.pipeline_mode<synchronous>, transform_indices = @transform_10, window_bounds = array<i64: 32, 128>}, {pipeline_mode = #tpu.pipeline_mode<synchronous>, transform_indices = @transform_11, window_bounds = array<i64: 17, 128>}, {transform_indices = @transform_12, window_bounds = array<i64: 8, 128>}]} {
    %c0 = arith.constant 0 : index
    %c0_0 = arith.constant 0 : index
    %0 = vector.load %arg12[%c0, %c0_0] : memref<17x128xf32, #tpu.memory_space<vmem>>, vector<17x128xf32>
    %1 = vector.extract_strided_slice %0 {offsets = [0, 0], sizes = [1, 96], strides = [1, 1]} : vector<17x128xf32> to vector<1x96xf32>
    %2 = vector.extract_strided_slice %0 {offsets = [1, 0], sizes = [1, 32], strides = [1, 1]} : vector<17x128xf32> to vector<1x32xf32>
    %3 = vector.extract_strided_slice %0 {offsets = [2, 0], sizes = [1, 32], strides = [1, 1]} : vector<17x128xf32> to vector<1x32xf32>
    %4 = vector.extract_strided_slice %0 {offsets = [3, 0], sizes = [1, 32], strides = [1, 1]} : vector<17x128xf32> to vector<1x32xf32>
    %5 = vector.extract_strided_slice %0 {offsets = [4, 0], sizes = [1, 128], strides = [1, 1]} : vector<17x128xf32> to vector<1x128xf32>
    %6 = vector.extract_strided_slice %0 {offsets = [5, 0], sizes = [1, 32], strides = [1, 1]} : vector<17x128xf32> to vector<1x32xf32>
    %7 = vector.extract_strided_slice %0 {offsets = [6, 0], sizes = [1, 32], strides = [1, 1]} : vector<17x128xf32> to vector<1x32xf32>
    %8 = vector.extract_strided_slice %0 {offsets = [7, 0], sizes = [1, 32], strides = [1, 1]} : vector<17x128xf32> to vector<1x32xf32>
    %9 = vector.extract_strided_slice %0 {offsets = [8, 0], sizes = [1, 32], strides = [1, 1]} : vector<17x128xf32> to vector<1x32xf32>
    %10 = vector.extract_strided_slice %0 {offsets = [9, 0], sizes = [1, 32], strides = [1, 1]} : vector<17x128xf32> to vector<1x32xf32>
    %11 = vector.extract_strided_slice %0 {offsets = [10, 0], sizes = [1, 64], strides = [1, 1]} : vector<17x128xf32> to vector<1x64xf32>
    %12 = vector.extract_strided_slice %0 {offsets = [11, 0], sizes = [1, 32], strides = [1, 1]} : vector<17x128xf32> to vector<1x32xf32>
    %13 = vector.extract_strided_slice %0 {offsets = [12, 0], sizes = [1, 32], strides = [1, 1]} : vector<17x128xf32> to vector<1x32xf32>
    %14 = vector.extract_strided_slice %0 {offsets = [13, 0], sizes = [1, 32], strides = [1, 1]} : vector<17x128xf32> to vector<1x32xf32>
    %15 = vector.extract_strided_slice %0 {offsets = [14, 0], sizes = [1, 32], strides = [1, 1]} : vector<17x128xf32> to vector<1x32xf32>
    %16 = vector.extract_strided_slice %0 {offsets = [15, 0], sizes = [1, 32], strides = [1, 1]} : vector<17x128xf32> to vector<1x32xf32>
    %17 = vector.extract_strided_slice %0 {offsets = [16, 0], sizes = [1, 128], strides = [1, 1]} : vector<17x128xf32> to vector<1x128xf32>
    %c0_1 = arith.constant 0 : index
    %c0_2 = arith.constant 0 : index
    %c0_3 = arith.constant 0 : index
    %18 = vector.load %arg1[%c0_1, %c0_2, %c0_3] : memref<8x8x1xi32, #tpu.memory_space<vmem>>, vector<8x8x1xi32>
    %c0_4 = arith.constant 0 : index
    %c0_5 = arith.constant 0 : index
    %19 = vector.load %arg2[%c0_4, %c0_5] : memref<8x8xf32, #tpu.memory_space<vmem>>, vector<8x8xf32>
    %c0_6 = arith.constant 0 : index
    %c0_7 = arith.constant 0 : index
    %20 = vector.load %arg3[%c0_6, %c0_7] : memref<24x32xbf16, #tpu.memory_space<vmem>>, vector<24x32xbf16>
    %c0_8 = arith.constant 0 : index
    %c0_9 = arith.constant 0 : index
    %21 = vector.load %arg4[%c0_8, %c0_9] : memref<32x96xbf16, #tpu.memory_space<vmem>>, vector<32x96xbf16>
    %c0_10 = arith.constant 0 : index
    %c0_11 = arith.constant 0 : index
    %22 = vector.load %arg5[%c0_10, %c0_11] : memref<32x32xbf16, #tpu.memory_space<vmem>>, vector<32x32xbf16>
    %c0_12 = arith.constant 0 : index
    %c0_13 = arith.constant 0 : index
    %23 = vector.load %arg6[%c0_12, %c0_13] : memref<32x128xbf16, #tpu.memory_space<vmem>>, vector<32x128xbf16>
    %c0_14 = arith.constant 0 : index
    %c0_15 = arith.constant 0 : index
    %24 = vector.load %arg7[%c0_14, %c0_15] : memref<128x32xbf16, #tpu.memory_space<vmem>>, vector<128x32xbf16>
    %c0_16 = arith.constant 0 : index
    %c0_17 = arith.constant 0 : index
    %25 = vector.load %arg8[%c0_16, %c0_17] : memref<32x32xbf16, #tpu.memory_space<vmem>>, vector<32x32xbf16>
    %c0_18 = arith.constant 0 : index
    %c0_19 = arith.constant 0 : index
    %26 = vector.load %arg9[%c0_18, %c0_19] : memref<32x64xbf16, #tpu.memory_space<vmem>>, vector<32x64xbf16>
    %c0_20 = arith.constant 0 : index
    %c0_21 = arith.constant 0 : index
    %27 = vector.load %arg10[%c0_20, %c0_21] : memref<32x32xbf16, #tpu.memory_space<vmem>>, vector<32x32xbf16>
    %c0_22 = arith.constant 0 : index
    %c0_23 = arith.constant 0 : index
    %28 = vector.load %arg11[%c0_22, %c0_23] : memref<32x128xbf16, #tpu.memory_space<vmem>>, vector<32x128xbf16>
    %cst = arith.constant 0.000000e+00 : f32
    %29 = vector.broadcast %cst : f32 to vector<8x8xf32>
    %30 = arith.cmpf ogt, %19, %29 : vector<8x8xf32>
    %cst_24 = arith.constant 0.000000e+00 : f32
    %cst_25 = arith.constant -1.000000e+09 : f32
    %31 = vector.broadcast %cst_24 : f32 to vector<8x8xf32>
    %32 = vector.broadcast %cst_25 : f32 to vector<8x8xf32>
    %33 = arith.select %30, %31, %32 : vector<8x8xi1>, vector<8x8xf32>
    %34 = vector.shape_cast %33 : vector<8x8xf32> to vector<8x1x8xf32>
    %35 = tpu.iota {dimensions = array<i32: 2>} : vector<8x8x24xi32>
    %36 = vector.broadcast %18 : vector<8x8x1xi32> to vector<8x8x24xi32>
    %37 = arith.cmpi eq, %36, %35 : vector<8x8x24xi32>
    %cst_26 = arith.constant 1.000000e+00 : f32
    %cst_27 = arith.constant 0.000000e+00 : f32
    %38 = vector.broadcast %cst_26 : f32 to vector<8x8x24xf32>
    %39 = vector.broadcast %cst_27 : f32 to vector<8x8x24xf32>
    %40 = arith.select %37, %38, %39 : vector<8x8x24xi1>, vector<8x8x24xf32>
    %41 = vector.shape_cast %40 : vector<8x8x24xf32> to vector<64x24xf32>
    %42 = arith.truncf %41 : vector<64x24xf32> to vector<64x24xbf16>
    %cst_28 = arith.constant dense<0.000000e+00> : vector<64x32xf32>
    %43 = tpu.matmul %42, %20, %cst_28 {dimension_numbers = #tpu.dot_dimension_numbers<[1], [0], [0], [1], [0, 0, 1, 1], [], []>} : vector<64x24xbf16>, vector<24x32xbf16>, vector<64x32xf32> -> vector<64x32xf32>
    %44 = arith.truncf %43 : vector<64x32xf32> to vector<64x32xbf16>
    %cst_29 = arith.constant dense<0.000000e+00> : vector<64x96xf32>
    %45 = tpu.matmul %44, %21, %cst_29 {dimension_numbers = #tpu.dot_dimension_numbers<[1], [0], [0], [1], [0, 0, 1, 1], [], []>} : vector<64x32xbf16>, vector<32x96xbf16>, vector<64x96xf32> -> vector<64x96xf32>
    %46 = vector.broadcast %1 : vector<1x96xf32> to vector<64x96xf32>
    %47 = arith.addf %45, %46 : vector<64x96xf32>
    %48 = vector.extract_strided_slice %47 {offsets = [0, 0], sizes = [64, 32], strides = [1, 1]} : vector<64x96xf32> to vector<64x32xf32>
    %49 = vector.shape_cast %48 : vector<64x32xf32> to vector<8x8x32xf32>
    %50 = vector.extract_strided_slice %47 {offsets = [0, 32], sizes = [64, 32], strides = [1, 1]} : vector<64x96xf32> to vector<64x32xf32>
    %51 = vector.shape_cast %50 : vector<64x32xf32> to vector<8x8x32xf32>
    %52 = vector.extract_strided_slice %47 {offsets = [0, 64], sizes = [64, 32], strides = [1, 1]} : vector<64x96xf32> to vector<64x32xf32>
    %53 = vector.shape_cast %52 : vector<64x32xf32> to vector<8x8x32xf32>
    %cst_30 = arith.constant 0.353553385 : f32
    %54 = vector.broadcast %cst_30 : f32 to vector<8x8x32xf32>
    %55 = arith.mulf %49, %54 : vector<8x8x32xf32>
    %56 = vector.extract_strided_slice %55 {offsets = [0, 0, 0], sizes = [8, 8, 8], strides = [1, 1, 1]} : vector<8x8x32xf32> to vector<8x8x8xf32>
    %57 = arith.truncf %56 : vector<8x8x8xf32> to vector<8x8x8xbf16>
    %58 = vector.extract_strided_slice %51 {offsets = [0, 0, 0], sizes = [8, 8, 8], strides = [1, 1, 1]} : vector<8x8x32xf32> to vector<8x8x8xf32>
    %59 = arith.truncf %58 : vector<8x8x8xf32> to vector<8x8x8xbf16>
    "tpu.trace_start"() <{level = 10 : i32, message = "bqd,bkd->bqk"}> : () -> ()
    %cst_31 = arith.constant dense<0.000000e+00> : vector<8x8x8xf32>
    %60 = tpu.matmul %57, %59, %cst_31 {dimension_numbers = #tpu.dot_dimension_numbers<[2], [2], [1], [1], [0, 0, 0, 1, 1, 1], [0], [0]>} : vector<8x8x8xbf16>, vector<8x8x8xbf16>, vector<8x8x8xf32> -> vector<8x8x8xf32>
    "tpu.trace_stop"() : () -> ()
    %61 = vector.broadcast %34 : vector<8x1x8xf32> to vector<8x8x8xf32>
    %62 = arith.addf %60, %61 : vector<8x8x8xf32>
    %cst_32 = arith.constant dense<0xFF800000> : vector<8x8xf32>
    %63 = vector.multi_reduction <maximumf>, %62, %cst_32 [2] : vector<8x8x8xf32> to vector<8x8xf32>
    %64 = vector.shape_cast %63 : vector<8x8xf32> to vector<8x8x1xf32>
    %65 = vector.broadcast %64 : vector<8x8x1xf32> to vector<8x8x8xf32>
    %66 = arith.subf %62, %65 : vector<8x8x8xf32>
    %67 = math.exp %66 : vector<8x8x8xf32>
    %cst_33 = arith.constant dense<0.000000e+00> : vector<8x8xf32>
    %68 = vector.multi_reduction <add>, %67, %cst_33 [2] : vector<8x8x8xf32> to vector<8x8xf32>
    %69 = vector.shape_cast %68 : vector<8x8xf32> to vector<8x8x1xf32>
    %70 = tpu.reciprocal %69 {approx = true} : vector<8x8x1xf32> -> vector<8x8x1xf32>
    %71 = vector.broadcast %70 : vector<8x8x1xf32> to vector<8x8x8xf32>
    %72 = arith.mulf %67, %71 : vector<8x8x8xf32>
    %73 = arith.truncf %72 : vector<8x8x8xf32> to vector<8x8x8xbf16>
    %74 = vector.extract_strided_slice %53 {offsets = [0, 0, 0], sizes = [8, 8, 8], strides = [1, 1, 1]} : vector<8x8x32xf32> to vector<8x8x8xf32>
    %75 = arith.truncf %74 : vector<8x8x8xf32> to vector<8x8x8xbf16>
    "tpu.trace_start"() <{level = 10 : i32, message = "bqk,bkd->bqd"}> : () -> ()
    %cst_34 = arith.constant dense<0.000000e+00> : vector<8x8x8xf32>
    %76 = tpu.matmul %73, %75, %cst_34 {dimension_numbers = #tpu.dot_dimension_numbers<[2], [1], [1], [2], [0, 0, 0, 1, 1, 2], [0], [0]>} : vector<8x8x8xbf16>, vector<8x8x8xbf16>, vector<8x8x8xf32> -> vector<8x8x8xf32>
    "tpu.trace_stop"() : () -> ()
    %77 = vector.extract_strided_slice %55 {offsets = [0, 0, 8], sizes = [8, 8, 8], strides = [1, 1, 1]} : vector<8x8x32xf32> to vector<8x8x8xf32>
    %78 = arith.truncf %77 : vector<8x8x8xf32> to vector<8x8x8xbf16>
    %79 = vector.extract_strided_slice %51 {offsets = [0, 0, 8], sizes = [8, 8, 8], strides = [1, 1, 1]} : vector<8x8x32xf32> to vector<8x8x8xf32>
    %80 = arith.truncf %79 : vector<8x8x8xf32> to vector<8x8x8xbf16>
    "tpu.trace_start"() <{level = 10 : i32, message = "bqd,bkd->bqk"}> : () -> ()
    %cst_35 = arith.constant dense<0.000000e+00> : vector<8x8x8xf32>
    %81 = tpu.matmul %78, %80, %cst_35 {dimension_numbers = #tpu.dot_dimension_numbers<[2], [2], [1], [1], [0, 0, 0, 1, 1, 1], [0], [0]>} : vector<8x8x8xbf16>, vector<8x8x8xbf16>, vector<8x8x8xf32> -> vector<8x8x8xf32>
    "tpu.trace_stop"() : () -> ()
    %82 = vector.broadcast %34 : vector<8x1x8xf32> to vector<8x8x8xf32>
    %83 = arith.addf %81, %82 : vector<8x8x8xf32>
    %cst_36 = arith.constant dense<0xFF800000> : vector<8x8xf32>
    %84 = vector.multi_reduction <maximumf>, %83, %cst_36 [2] : vector<8x8x8xf32> to vector<8x8xf32>
    %85 = vector.shape_cast %84 : vector<8x8xf32> to vector<8x8x1xf32>
    %86 = vector.broadcast %85 : vector<8x8x1xf32> to vector<8x8x8xf32>
    %87 = arith.subf %83, %86 : vector<8x8x8xf32>
    %88 = math.exp %87 : vector<8x8x8xf32>
    %cst_37 = arith.constant dense<0.000000e+00> : vector<8x8xf32>
    %89 = vector.multi_reduction <add>, %88, %cst_37 [2] : vector<8x8x8xf32> to vector<8x8xf32>
    %90 = vector.shape_cast %89 : vector<8x8xf32> to vector<8x8x1xf32>
    %91 = tpu.reciprocal %90 {approx = true} : vector<8x8x1xf32> -> vector<8x8x1xf32>
    %92 = vector.broadcast %91 : vector<8x8x1xf32> to vector<8x8x8xf32>
    %93 = arith.mulf %88, %92 : vector<8x8x8xf32>
    %94 = arith.truncf %93 : vector<8x8x8xf32> to vector<8x8x8xbf16>
    %95 = vector.extract_strided_slice %53 {offsets = [0, 0, 8], sizes = [8, 8, 8], strides = [1, 1, 1]} : vector<8x8x32xf32> to vector<8x8x8xf32>
    %96 = arith.truncf %95 : vector<8x8x8xf32> to vector<8x8x8xbf16>
    "tpu.trace_start"() <{level = 10 : i32, message = "bqk,bkd->bqd"}> : () -> ()
    %cst_38 = arith.constant dense<0.000000e+00> : vector<8x8x8xf32>
    %97 = tpu.matmul %94, %96, %cst_38 {dimension_numbers = #tpu.dot_dimension_numbers<[2], [1], [1], [2], [0, 0, 0, 1, 1, 2], [0], [0]>} : vector<8x8x8xbf16>, vector<8x8x8xbf16>, vector<8x8x8xf32> -> vector<8x8x8xf32>
    "tpu.trace_stop"() : () -> ()
    %98 = vector.extract_strided_slice %55 {offsets = [0, 0, 16], sizes = [8, 8, 8], strides = [1, 1, 1]} : vector<8x8x32xf32> to vector<8x8x8xf32>
    %99 = arith.truncf %98 : vector<8x8x8xf32> to vector<8x8x8xbf16>
    %100 = vector.extract_strided_slice %51 {offsets = [0, 0, 16], sizes = [8, 8, 8], strides = [1, 1, 1]} : vector<8x8x32xf32> to vector<8x8x8xf32>
    %101 = arith.truncf %100 : vector<8x8x8xf32> to vector<8x8x8xbf16>
    "tpu.trace_start"() <{level = 10 : i32, message = "bqd,bkd->bqk"}> : () -> ()
    %cst_39 = arith.constant dense<0.000000e+00> : vector<8x8x8xf32>
    %102 = tpu.matmul %99, %101, %cst_39 {dimension_numbers = #tpu.dot_dimension_numbers<[2], [2], [1], [1], [0, 0, 0, 1, 1, 1], [0], [0]>} : vector<8x8x8xbf16>, vector<8x8x8xbf16>, vector<8x8x8xf32> -> vector<8x8x8xf32>
    "tpu.trace_stop"() : () -> ()
    %103 = vector.broadcast %34 : vector<8x1x8xf32> to vector<8x8x8xf32>
    %104 = arith.addf %102, %103 : vector<8x8x8xf32>
    %cst_40 = arith.constant dense<0xFF800000> : vector<8x8xf32>
    %105 = vector.multi_reduction <maximumf>, %104, %cst_40 [2] : vector<8x8x8xf32> to vector<8x8xf32>
    %106 = vector.shape_cast %105 : vector<8x8xf32> to vector<8x8x1xf32>
    %107 = vector.broadcast %106 : vector<8x8x1xf32> to vector<8x8x8xf32>
    %108 = arith.subf %104, %107 : vector<8x8x8xf32>
    %109 = math.exp %108 : vector<8x8x8xf32>
    %cst_41 = arith.constant dense<0.000000e+00> : vector<8x8xf32>
    %110 = vector.multi_reduction <add>, %109, %cst_41 [2] : vector<8x8x8xf32> to vector<8x8xf32>
    %111 = vector.shape_cast %110 : vector<8x8xf32> to vector<8x8x1xf32>
    %112 = tpu.reciprocal %111 {approx = true} : vector<8x8x1xf32> -> vector<8x8x1xf32>
    %113 = vector.broadcast %112 : vector<8x8x1xf32> to vector<8x8x8xf32>
    %114 = arith.mulf %109, %113 : vector<8x8x8xf32>
    %115 = arith.truncf %114 : vector<8x8x8xf32> to vector<8x8x8xbf16>
    %116 = vector.extract_strided_slice %53 {offsets = [0, 0, 16], sizes = [8, 8, 8], strides = [1, 1, 1]} : vector<8x8x32xf32> to vector<8x8x8xf32>
    %117 = arith.truncf %116 : vector<8x8x8xf32> to vector<8x8x8xbf16>
    "tpu.trace_start"() <{level = 10 : i32, message = "bqk,bkd->bqd"}> : () -> ()
    %cst_42 = arith.constant dense<0.000000e+00> : vector<8x8x8xf32>
    %118 = tpu.matmul %115, %117, %cst_42 {dimension_numbers = #tpu.dot_dimension_numbers<[2], [1], [1], [2], [0, 0, 0, 1, 1, 2], [0], [0]>} : vector<8x8x8xbf16>, vector<8x8x8xbf16>, vector<8x8x8xf32> -> vector<8x8x8xf32>
    "tpu.trace_stop"() : () -> ()
    %119 = vector.extract_strided_slice %55 {offsets = [0, 0, 24], sizes = [8, 8, 8], strides = [1, 1, 1]} : vector<8x8x32xf32> to vector<8x8x8xf32>
    %120 = arith.truncf %119 : vector<8x8x8xf32> to vector<8x8x8xbf16>
    %121 = vector.extract_strided_slice %51 {offsets = [0, 0, 24], sizes = [8, 8, 8], strides = [1, 1, 1]} : vector<8x8x32xf32> to vector<8x8x8xf32>
    %122 = arith.truncf %121 : vector<8x8x8xf32> to vector<8x8x8xbf16>
    "tpu.trace_start"() <{level = 10 : i32, message = "bqd,bkd->bqk"}> : () -> ()
    %cst_43 = arith.constant dense<0.000000e+00> : vector<8x8x8xf32>
    %123 = tpu.matmul %120, %122, %cst_43 {dimension_numbers = #tpu.dot_dimension_numbers<[2], [2], [1], [1], [0, 0, 0, 1, 1, 1], [0], [0]>} : vector<8x8x8xbf16>, vector<8x8x8xbf16>, vector<8x8x8xf32> -> vector<8x8x8xf32>
    "tpu.trace_stop"() : () -> ()
    %124 = vector.broadcast %34 : vector<8x1x8xf32> to vector<8x8x8xf32>
    %125 = arith.addf %123, %124 : vector<8x8x8xf32>
    %cst_44 = arith.constant dense<0xFF800000> : vector<8x8xf32>
    %126 = vector.multi_reduction <maximumf>, %125, %cst_44 [2] : vector<8x8x8xf32> to vector<8x8xf32>
    %127 = vector.shape_cast %126 : vector<8x8xf32> to vector<8x8x1xf32>
    %128 = vector.broadcast %127 : vector<8x8x1xf32> to vector<8x8x8xf32>
    %129 = arith.subf %125, %128 : vector<8x8x8xf32>
    %130 = math.exp %129 : vector<8x8x8xf32>
    %cst_45 = arith.constant dense<0.000000e+00> : vector<8x8xf32>
    %131 = vector.multi_reduction <add>, %130, %cst_45 [2] : vector<8x8x8xf32> to vector<8x8xf32>
    %132 = vector.shape_cast %131 : vector<8x8xf32> to vector<8x8x1xf32>
    %133 = tpu.reciprocal %132 {approx = true} : vector<8x8x1xf32> -> vector<8x8x1xf32>
    %134 = vector.broadcast %133 : vector<8x8x1xf32> to vector<8x8x8xf32>
    %135 = arith.mulf %130, %134 : vector<8x8x8xf32>
    %136 = arith.truncf %135 : vector<8x8x8xf32> to vector<8x8x8xbf16>
    %137 = vector.extract_strided_slice %53 {offsets = [0, 0, 24], sizes = [8, 8, 8], strides = [1, 1, 1]} : vector<8x8x32xf32> to vector<8x8x8xf32>
    %138 = arith.truncf %137 : vector<8x8x8xf32> to vector<8x8x8xbf16>
    "tpu.trace_start"() <{level = 10 : i32, message = "bqk,bkd->bqd"}> : () -> ()
    %cst_46 = arith.constant dense<0.000000e+00> : vector<8x8x8xf32>
    %139 = tpu.matmul %136, %138, %cst_46 {dimension_numbers = #tpu.dot_dimension_numbers<[2], [1], [1], [2], [0, 0, 0, 1, 1, 2], [0], [0]>} : vector<8x8x8xbf16>, vector<8x8x8xbf16>, vector<8x8x8xf32> -> vector<8x8x8xf32>
    "tpu.trace_stop"() : () -> ()
    %140 = vector.shape_cast %76 : vector<8x8x8xf32> to vector<64x8xf32>
    %141 = vector.extract_strided_slice %22 {offsets = [0, 0], sizes = [8, 32], strides = [1, 1]} : vector<32x32xbf16> to vector<8x32xbf16>
    %142 = arith.truncf %140 : vector<64x8xf32> to vector<64x8xbf16>
    %cst_47 = arith.constant dense<0.000000e+00> : vector<64x32xf32>
    %143 = tpu.matmul %142, %141, %cst_47 {dimension_numbers = #tpu.dot_dimension_numbers<[1], [0], [0], [1], [0, 0, 1, 1], [], []>} : vector<64x8xbf16>, vector<8x32xbf16>, vector<64x32xf32> -> vector<64x32xf32>
    %144 = vector.broadcast %2 : vector<1x32xf32> to vector<64x32xf32>
    %145 = arith.addf %144, %143 : vector<64x32xf32>
    %146 = vector.shape_cast %97 : vector<8x8x8xf32> to vector<64x8xf32>
    %147 = vector.extract_strided_slice %22 {offsets = [8, 0], sizes = [8, 32], strides = [1, 1]} : vector<32x32xbf16> to vector<8x32xbf16>
    %148 = arith.truncf %146 : vector<64x8xf32> to vector<64x8xbf16>
    %cst_48 = arith.constant dense<0.000000e+00> : vector<64x32xf32>
    %149 = tpu.matmul %148, %147, %cst_48 {dimension_numbers = #tpu.dot_dimension_numbers<[1], [0], [0], [1], [0, 0, 1, 1], [], []>} : vector<64x8xbf16>, vector<8x32xbf16>, vector<64x32xf32> -> vector<64x32xf32>
    %150 = arith.addf %145, %149 : vector<64x32xf32>
    %151 = vector.shape_cast %118 : vector<8x8x8xf32> to vector<64x8xf32>
    %152 = vector.extract_strided_slice %22 {offsets = [16, 0], sizes = [8, 32], strides = [1, 1]} : vector<32x32xbf16> to vector<8x32xbf16>
    %153 = arith.truncf %151 : vector<64x8xf32> to vector<64x8xbf16>
    %cst_49 = arith.constant dense<0.000000e+00> : vector<64x32xf32>
    %154 = tpu.matmul %153, %152, %cst_49 {dimension_numbers = #tpu.dot_dimension_numbers<[1], [0], [0], [1], [0, 0, 1, 1], [], []>} : vector<64x8xbf16>, vector<8x32xbf16>, vector<64x32xf32> -> vector<64x32xf32>
    %155 = arith.addf %150, %154 : vector<64x32xf32>
    %156 = vector.shape_cast %139 : vector<8x8x8xf32> to vector<64x8xf32>
    %157 = vector.extract_strided_slice %22 {offsets = [24, 0], sizes = [8, 32], strides = [1, 1]} : vector<32x32xbf16> to vector<8x32xbf16>
    %158 = arith.truncf %156 : vector<64x8xf32> to vector<64x8xbf16>
    %cst_50 = arith.constant dense<0.000000e+00> : vector<64x32xf32>
    %159 = tpu.matmul %158, %157, %cst_50 {dimension_numbers = #tpu.dot_dimension_numbers<[1], [0], [0], [1], [0, 0, 1, 1], [], []>} : vector<64x8xbf16>, vector<8x32xbf16>, vector<64x32xf32> -> vector<64x32xf32>
    %160 = arith.addf %155, %159 : vector<64x32xf32>
    %161 = arith.addf %43, %160 : vector<64x32xf32>
    %cst_51 = arith.constant dense<0.000000e+00> : vector<64xf32>
    %162 = vector.multi_reduction <add>, %161, %cst_51 [1] : vector<64x32xf32> to vector<64xf32>
    %163 = vector.shape_cast %162 : vector<64xf32> to vector<64x1xf32>
    %cst_52 = arith.constant 3.200000e+01 : f32
    %164 = vector.broadcast %cst_52 : f32 to vector<64x1xf32>
    %165 = arith.divf %163, %164 : vector<64x1xf32>
    %166 = vector.broadcast %165 : vector<64x1xf32> to vector<64x32xf32>
    %167 = arith.subf %161, %166 : vector<64x32xf32>
    %168 = arith.mulf %167, %167 : vector<64x32xf32>
    %cst_53 = arith.constant dense<0.000000e+00> : vector<64xf32>
    %169 = vector.multi_reduction <add>, %168, %cst_53 [1] : vector<64x32xf32> to vector<64xf32>
    %170 = vector.shape_cast %169 : vector<64xf32> to vector<64x1xf32>
    %cst_54 = arith.constant 3.200000e+01 : f32
    %171 = vector.broadcast %cst_54 : f32 to vector<64x1xf32>
    %172 = arith.divf %170, %171 : vector<64x1xf32>
    %173 = vector.broadcast %165 : vector<64x1xf32> to vector<64x32xf32>
    %174 = arith.subf %161, %173 : vector<64x32xf32>
    %cst_55 = arith.constant 9.99999974E-6 : f32
    %175 = vector.broadcast %cst_55 : f32 to vector<64x1xf32>
    %176 = arith.addf %172, %175 : vector<64x1xf32>
    %177 = math.rsqrt %176 : vector<64x1xf32>
    %178 = vector.broadcast %177 : vector<64x1xf32> to vector<64x32xf32>
    %179 = arith.mulf %174, %178 : vector<64x32xf32>
    %180 = vector.broadcast %3 : vector<1x32xf32> to vector<64x32xf32>
    %181 = arith.mulf %179, %180 : vector<64x32xf32>
    %182 = vector.broadcast %4 : vector<1x32xf32> to vector<64x32xf32>
    %183 = arith.addf %181, %182 : vector<64x32xf32>
    %184 = arith.truncf %183 : vector<64x32xf32> to vector<64x32xbf16>
    %cst_56 = arith.constant dense<0.000000e+00> : vector<64x128xf32>
    %185 = tpu.matmul %184, %23, %cst_56 {dimension_numbers = #tpu.dot_dimension_numbers<[1], [0], [0], [1], [0, 0, 1, 1], [], []>} : vector<64x32xbf16>, vector<32x128xbf16>, vector<64x128xf32> -> vector<64x128xf32>
    %186 = vector.broadcast %5 : vector<1x128xf32> to vector<64x128xf32>
    %187 = arith.addf %185, %186 : vector<64x128xf32>
    %cst_57 = arith.constant 0.000000e+00 : f32
    %188 = vector.broadcast %cst_57 : f32 to vector<64x128xf32>
    %189 = arith.maximumf %187, %188 : vector<64x128xf32>
    %190 = arith.truncf %189 : vector<64x128xf32> to vector<64x128xbf16>
    %cst_58 = arith.constant dense<0.000000e+00> : vector<64x32xf32>
    %191 = tpu.matmul %190, %24, %cst_58 {dimension_numbers = #tpu.dot_dimension_numbers<[1], [0], [0], [1], [0, 0, 1, 1], [], []>} : vector<64x128xbf16>, vector<128x32xbf16>, vector<64x32xf32> -> vector<64x32xf32>
    %192 = arith.addf %183, %191 : vector<64x32xf32>
    %193 = vector.broadcast %6 : vector<1x32xf32> to vector<64x32xf32>
    %194 = arith.addf %192, %193 : vector<64x32xf32>
    %cst_59 = arith.constant dense<0.000000e+00> : vector<64xf32>
    %195 = vector.multi_reduction <add>, %194, %cst_59 [1] : vector<64x32xf32> to vector<64xf32>
    %196 = vector.shape_cast %195 : vector<64xf32> to vector<64x1xf32>
    %cst_60 = arith.constant 3.200000e+01 : f32
    %197 = vector.broadcast %cst_60 : f32 to vector<64x1xf32>
    %198 = arith.divf %196, %197 : vector<64x1xf32>
    %199 = vector.broadcast %198 : vector<64x1xf32> to vector<64x32xf32>
    %200 = arith.subf %194, %199 : vector<64x32xf32>
    %201 = arith.mulf %200, %200 : vector<64x32xf32>
    %cst_61 = arith.constant dense<0.000000e+00> : vector<64xf32>
    %202 = vector.multi_reduction <add>, %201, %cst_61 [1] : vector<64x32xf32> to vector<64xf32>
    %203 = vector.shape_cast %202 : vector<64xf32> to vector<64x1xf32>
    %cst_62 = arith.constant 3.200000e+01 : f32
    %204 = vector.broadcast %cst_62 : f32 to vector<64x1xf32>
    %205 = arith.divf %203, %204 : vector<64x1xf32>
    %206 = vector.broadcast %198 : vector<64x1xf32> to vector<64x32xf32>
    %207 = arith.subf %194, %206 : vector<64x32xf32>
    %cst_63 = arith.constant 9.99999974E-6 : f32
    %208 = vector.broadcast %cst_63 : f32 to vector<64x1xf32>
    %209 = arith.addf %205, %208 : vector<64x1xf32>
    %210 = math.rsqrt %209 : vector<64x1xf32>
    %211 = vector.broadcast %210 : vector<64x1xf32> to vector<64x32xf32>
    %212 = arith.mulf %207, %211 : vector<64x32xf32>
    %213 = vector.broadcast %7 : vector<1x32xf32> to vector<64x32xf32>
    %214 = arith.mulf %212, %213 : vector<64x32xf32>
    %215 = vector.broadcast %8 : vector<1x32xf32> to vector<64x32xf32>
    %216 = arith.addf %214, %215 : vector<64x32xf32>
    %217 = arith.truncf %9 : vector<1x32xf32> to vector<1x32xbf16>
    %cst_64 = arith.constant dense<0.000000e+00> : vector<1x32xf32>
    %218 = tpu.matmul %217, %25, %cst_64 {dimension_numbers = #tpu.dot_dimension_numbers<[1], [0], [0], [1], [0, 0, 1, 1], [], []>} : vector<1x32xbf16>, vector<32x32xbf16>, vector<1x32xf32> -> vector<1x32xf32>
    %219 = arith.addf %218, %10 : vector<1x32xf32>
    %220 = vector.shape_cast %219 : vector<1x32xf32> to vector<1x1x32xf32>
    %221 = vector.shape_cast %220 : vector<1x1x32xf32> to vector<1x1x32xf32>
    %222 = vector.broadcast %221 : vector<1x1x32xf32> to vector<8x1x32xf32>
    %223 = arith.truncf %216 : vector<64x32xf32> to vector<64x32xbf16>
    %cst_65 = arith.constant dense<0.000000e+00> : vector<64x64xf32>
    %224 = tpu.matmul %223, %26, %cst_65 {dimension_numbers = #tpu.dot_dimension_numbers<[1], [0], [0], [1], [0, 0, 1, 1], [], []>} : vector<64x32xbf16>, vector<32x64xbf16>, vector<64x64xf32> -> vector<64x64xf32>
    %225 = vector.broadcast %11 : vector<1x64xf32> to vector<64x64xf32>
    %226 = arith.addf %224, %225 : vector<64x64xf32>
    %227 = vector.extract_strided_slice %226 {offsets = [0, 0], sizes = [64, 32], strides = [1, 1]} : vector<64x64xf32> to vector<64x32xf32>
    %228 = vector.shape_cast %227 : vector<64x32xf32> to vector<8x8x32xf32>
    %229 = vector.extract_strided_slice %226 {offsets = [0, 32], sizes = [64, 32], strides = [1, 1]} : vector<64x64xf32> to vector<64x32xf32>
    %230 = vector.shape_cast %229 : vector<64x32xf32> to vector<8x8x32xf32>
    %cst_66 = arith.constant 0.176776692 : f32
    %231 = vector.broadcast %cst_66 : f32 to vector<8x1x32xf32>
    %232 = arith.mulf %222, %231 : vector<8x1x32xf32>
    %233 = vector.extract_strided_slice %232 {offsets = [0, 0, 0], sizes = [8, 1, 8], strides = [1, 1, 1]} : vector<8x1x32xf32> to vector<8x1x8xf32>
    %234 = arith.truncf %233 : vector<8x1x8xf32> to vector<8x1x8xbf16>
    %235 = vector.extract_strided_slice %228 {offsets = [0, 0, 0], sizes = [8, 8, 8], strides = [1, 1, 1]} : vector<8x8x32xf32> to vector<8x8x8xf32>
    %236 = arith.truncf %235 : vector<8x8x8xf32> to vector<8x8x8xbf16>
    "tpu.trace_start"() <{level = 10 : i32, message = "bqd,bkd->bqk"}> : () -> ()
    %cst_67 = arith.constant dense<0.000000e+00> : vector<8x1x8xf32>
    %237 = tpu.matmul %234, %236, %cst_67 {dimension_numbers = #tpu.dot_dimension_numbers<[2], [2], [1], [1], [0, 0, 0, 1, 1, 1], [0], [0]>} : vector<8x1x8xbf16>, vector<8x8x8xbf16>, vector<8x1x8xf32> -> vector<8x1x8xf32>
    "tpu.trace_stop"() : () -> ()
    %238 = arith.addf %237, %34 : vector<8x1x8xf32>
    %cst_68 = arith.constant dense<0xFF800000> : vector<8x1xf32>
    %239 = vector.multi_reduction <maximumf>, %238, %cst_68 [2] : vector<8x1x8xf32> to vector<8x1xf32>
    %240 = vector.shape_cast %239 : vector<8x1xf32> to vector<8x1x1xf32>
    %241 = vector.broadcast %240 : vector<8x1x1xf32> to vector<8x1x8xf32>
    %242 = arith.subf %238, %241 : vector<8x1x8xf32>
    %243 = math.exp %242 : vector<8x1x8xf32>
    %cst_69 = arith.constant dense<0.000000e+00> : vector<8x1xf32>
    %244 = vector.multi_reduction <add>, %243, %cst_69 [2] : vector<8x1x8xf32> to vector<8x1xf32>
    %245 = vector.shape_cast %244 : vector<8x1xf32> to vector<8x1x1xf32>
    %246 = tpu.reciprocal %245 {approx = true} : vector<8x1x1xf32> -> vector<8x1x1xf32>
    %247 = vector.broadcast %246 : vector<8x1x1xf32> to vector<8x1x8xf32>
    %248 = arith.mulf %243, %247 : vector<8x1x8xf32>
    %249 = arith.truncf %248 : vector<8x1x8xf32> to vector<8x1x8xbf16>
    %250 = vector.extract_strided_slice %230 {offsets = [0, 0, 0], sizes = [8, 8, 8], strides = [1, 1, 1]} : vector<8x8x32xf32> to vector<8x8x8xf32>
    %251 = arith.truncf %250 : vector<8x8x8xf32> to vector<8x8x8xbf16>
    "tpu.trace_start"() <{level = 10 : i32, message = "bqk,bkd->bqd"}> : () -> ()
    %cst_70 = arith.constant dense<0.000000e+00> : vector<8x1x8xf32>
    %252 = tpu.matmul %249, %251, %cst_70 {dimension_numbers = #tpu.dot_dimension_numbers<[2], [1], [1], [2], [0, 0, 0, 1, 1, 2], [0], [0]>} : vector<8x1x8xbf16>, vector<8x8x8xbf16>, vector<8x1x8xf32> -> vector<8x1x8xf32>
    "tpu.trace_stop"() : () -> ()
    %253 = vector.extract_strided_slice %232 {offsets = [0, 0, 8], sizes = [8, 1, 8], strides = [1, 1, 1]} : vector<8x1x32xf32> to vector<8x1x8xf32>
    %254 = arith.truncf %253 : vector<8x1x8xf32> to vector<8x1x8xbf16>
    %255 = vector.extract_strided_slice %228 {offsets = [0, 0, 8], sizes = [8, 8, 8], strides = [1, 1, 1]} : vector<8x8x32xf32> to vector<8x8x8xf32>
    %256 = arith.truncf %255 : vector<8x8x8xf32> to vector<8x8x8xbf16>
    "tpu.trace_start"() <{level = 10 : i32, message = "bqd,bkd->bqk"}> : () -> ()
    %cst_71 = arith.constant dense<0.000000e+00> : vector<8x1x8xf32>
    %257 = tpu.matmul %254, %256, %cst_71 {dimension_numbers = #tpu.dot_dimension_numbers<[2], [2], [1], [1], [0, 0, 0, 1, 1, 1], [0], [0]>} : vector<8x1x8xbf16>, vector<8x8x8xbf16>, vector<8x1x8xf32> -> vector<8x1x8xf32>
    "tpu.trace_stop"() : () -> ()
    %258 = arith.addf %257, %34 : vector<8x1x8xf32>
    %cst_72 = arith.constant dense<0xFF800000> : vector<8x1xf32>
    %259 = vector.multi_reduction <maximumf>, %258, %cst_72 [2] : vector<8x1x8xf32> to vector<8x1xf32>
    %260 = vector.shape_cast %259 : vector<8x1xf32> to vector<8x1x1xf32>
    %261 = vector.broadcast %260 : vector<8x1x1xf32> to vector<8x1x8xf32>
    %262 = arith.subf %258, %261 : vector<8x1x8xf32>
    %263 = math.exp %262 : vector<8x1x8xf32>
    %cst_73 = arith.constant dense<0.000000e+00> : vector<8x1xf32>
    %264 = vector.multi_reduction <add>, %263, %cst_73 [2] : vector<8x1x8xf32> to vector<8x1xf32>
    %265 = vector.shape_cast %264 : vector<8x1xf32> to vector<8x1x1xf32>
    %266 = tpu.reciprocal %265 {approx = true} : vector<8x1x1xf32> -> vector<8x1x1xf32>
    %267 = vector.broadcast %266 : vector<8x1x1xf32> to vector<8x1x8xf32>
    %268 = arith.mulf %263, %267 : vector<8x1x8xf32>
    %269 = arith.truncf %268 : vector<8x1x8xf32> to vector<8x1x8xbf16>
    %270 = vector.extract_strided_slice %230 {offsets = [0, 0, 8], sizes = [8, 8, 8], strides = [1, 1, 1]} : vector<8x8x32xf32> to vector<8x8x8xf32>
    %271 = arith.truncf %270 : vector<8x8x8xf32> to vector<8x8x8xbf16>
    "tpu.trace_start"() <{level = 10 : i32, message = "bqk,bkd->bqd"}> : () -> ()
    %cst_74 = arith.constant dense<0.000000e+00> : vector<8x1x8xf32>
    %272 = tpu.matmul %269, %271, %cst_74 {dimension_numbers = #tpu.dot_dimension_numbers<[2], [1], [1], [2], [0, 0, 0, 1, 1, 2], [0], [0]>} : vector<8x1x8xbf16>, vector<8x8x8xbf16>, vector<8x1x8xf32> -> vector<8x1x8xf32>
    "tpu.trace_stop"() : () -> ()
    %273 = vector.extract_strided_slice %232 {offsets = [0, 0, 16], sizes = [8, 1, 8], strides = [1, 1, 1]} : vector<8x1x32xf32> to vector<8x1x8xf32>
    %274 = arith.truncf %273 : vector<8x1x8xf32> to vector<8x1x8xbf16>
    %275 = vector.extract_strided_slice %228 {offsets = [0, 0, 16], sizes = [8, 8, 8], strides = [1, 1, 1]} : vector<8x8x32xf32> to vector<8x8x8xf32>
    %276 = arith.truncf %275 : vector<8x8x8xf32> to vector<8x8x8xbf16>
    "tpu.trace_start"() <{level = 10 : i32, message = "bqd,bkd->bqk"}> : () -> ()
    %cst_75 = arith.constant dense<0.000000e+00> : vector<8x1x8xf32>
    %277 = tpu.matmul %274, %276, %cst_75 {dimension_numbers = #tpu.dot_dimension_numbers<[2], [2], [1], [1], [0, 0, 0, 1, 1, 1], [0], [0]>} : vector<8x1x8xbf16>, vector<8x8x8xbf16>, vector<8x1x8xf32> -> vector<8x1x8xf32>
    "tpu.trace_stop"() : () -> ()
    %278 = arith.addf %277, %34 : vector<8x1x8xf32>
    %cst_76 = arith.constant dense<0xFF800000> : vector<8x1xf32>
    %279 = vector.multi_reduction <maximumf>, %278, %cst_76 [2] : vector<8x1x8xf32> to vector<8x1xf32>
    %280 = vector.shape_cast %279 : vector<8x1xf32> to vector<8x1x1xf32>
    %281 = vector.broadcast %280 : vector<8x1x1xf32> to vector<8x1x8xf32>
    %282 = arith.subf %278, %281 : vector<8x1x8xf32>
    %283 = math.exp %282 : vector<8x1x8xf32>
    %cst_77 = arith.constant dense<0.000000e+00> : vector<8x1xf32>
    %284 = vector.multi_reduction <add>, %283, %cst_77 [2] : vector<8x1x8xf32> to vector<8x1xf32>
    %285 = vector.shape_cast %284 : vector<8x1xf32> to vector<8x1x1xf32>
    %286 = tpu.reciprocal %285 {approx = true} : vector<8x1x1xf32> -> vector<8x1x1xf32>
    %287 = vector.broadcast %286 : vector<8x1x1xf32> to vector<8x1x8xf32>
    %288 = arith.mulf %283, %287 : vector<8x1x8xf32>
    %289 = arith.truncf %288 : vector<8x1x8xf32> to vector<8x1x8xbf16>
    %290 = vector.extract_strided_slice %230 {offsets = [0, 0, 16], sizes = [8, 8, 8], strides = [1, 1, 1]} : vector<8x8x32xf32> to vector<8x8x8xf32>
    %291 = arith.truncf %290 : vector<8x8x8xf32> to vector<8x8x8xbf16>
    "tpu.trace_start"() <{level = 10 : i32, message = "bqk,bkd->bqd"}> : () -> ()
    %cst_78 = arith.constant dense<0.000000e+00> : vector<8x1x8xf32>
    %292 = tpu.matmul %289, %291, %cst_78 {dimension_numbers = #tpu.dot_dimension_numbers<[2], [1], [1], [2], [0, 0, 0, 1, 1, 2], [0], [0]>} : vector<8x1x8xbf16>, vector<8x8x8xbf16>, vector<8x1x8xf32> -> vector<8x1x8xf32>
    "tpu.trace_stop"() : () -> ()
    %293 = vector.extract_strided_slice %232 {offsets = [0, 0, 24], sizes = [8, 1, 8], strides = [1, 1, 1]} : vector<8x1x32xf32> to vector<8x1x8xf32>
    %294 = arith.truncf %293 : vector<8x1x8xf32> to vector<8x1x8xbf16>
    %295 = vector.extract_strided_slice %228 {offsets = [0, 0, 24], sizes = [8, 8, 8], strides = [1, 1, 1]} : vector<8x8x32xf32> to vector<8x8x8xf32>
    %296 = arith.truncf %295 : vector<8x8x8xf32> to vector<8x8x8xbf16>
    "tpu.trace_start"() <{level = 10 : i32, message = "bqd,bkd->bqk"}> : () -> ()
    %cst_79 = arith.constant dense<0.000000e+00> : vector<8x1x8xf32>
    %297 = tpu.matmul %294, %296, %cst_79 {dimension_numbers = #tpu.dot_dimension_numbers<[2], [2], [1], [1], [0, 0, 0, 1, 1, 1], [0], [0]>} : vector<8x1x8xbf16>, vector<8x8x8xbf16>, vector<8x1x8xf32> -> vector<8x1x8xf32>
    "tpu.trace_stop"() : () -> ()
    %298 = arith.addf %297, %34 : vector<8x1x8xf32>
    %cst_80 = arith.constant dense<0xFF800000> : vector<8x1xf32>
    %299 = vector.multi_reduction <maximumf>, %298, %cst_80 [2] : vector<8x1x8xf32> to vector<8x1xf32>
    %300 = vector.shape_cast %299 : vector<8x1xf32> to vector<8x1x1xf32>
    %301 = vector.broadcast %300 : vector<8x1x1xf32> to vector<8x1x8xf32>
    %302 = arith.subf %298, %301 : vector<8x1x8xf32>
    %303 = math.exp %302 : vector<8x1x8xf32>
    %cst_81 = arith.constant dense<0.000000e+00> : vector<8x1xf32>
    %304 = vector.multi_reduction <add>, %303, %cst_81 [2] : vector<8x1x8xf32> to vector<8x1xf32>
    %305 = vector.shape_cast %304 : vector<8x1xf32> to vector<8x1x1xf32>
    %306 = tpu.reciprocal %305 {approx = true} : vector<8x1x1xf32> -> vector<8x1x1xf32>
    %307 = vector.broadcast %306 : vector<8x1x1xf32> to vector<8x1x8xf32>
    %308 = arith.mulf %303, %307 : vector<8x1x8xf32>
    %309 = arith.truncf %308 : vector<8x1x8xf32> to vector<8x1x8xbf16>
    %310 = vector.extract_strided_slice %230 {offsets = [0, 0, 24], sizes = [8, 8, 8], strides = [1, 1, 1]} : vector<8x8x32xf32> to vector<8x8x8xf32>
    %311 = arith.truncf %310 : vector<8x8x8xf32> to vector<8x8x8xbf16>
    "tpu.trace_start"() <{level = 10 : i32, message = "bqk,bkd->bqd"}> : () -> ()
    %cst_82 = arith.constant dense<0.000000e+00> : vector<8x1x8xf32>
    %312 = tpu.matmul %309, %311, %cst_82 {dimension_numbers = #tpu.dot_dimension_numbers<[2], [1], [1], [2], [0, 0, 0, 1, 1, 2], [0], [0]>} : vector<8x1x8xbf16>, vector<8x8x8xbf16>, vector<8x1x8xf32> -> vector<8x1x8xf32>
    "tpu.trace_stop"() : () -> ()
    %313 = tpu.concatenate %252, %272, %292, %312 in 2 : vector<8x1x8xf32>, vector<8x1x8xf32>, vector<8x1x8xf32>, vector<8x1x8xf32> -> vector<8x1x32xf32>
    %314 = arith.addf %222, %313 : vector<8x1x32xf32>
    %315 = vector.shape_cast %314 : vector<8x1x32xf32> to vector<8x32xf32>
    %cst_83 = arith.constant dense<0.000000e+00> : vector<8xf32>
    %316 = vector.multi_reduction <add>, %315, %cst_83 [1] : vector<8x32xf32> to vector<8xf32>
    %317 = vector.shape_cast %316 : vector<8xf32> to vector<8x1xf32>
    %cst_84 = arith.constant 3.200000e+01 : f32
    %318 = vector.broadcast %cst_84 : f32 to vector<8x1xf32>
    %319 = arith.divf %317, %318 : vector<8x1xf32>
    %320 = vector.broadcast %319 : vector<8x1xf32> to vector<8x32xf32>
    %321 = arith.subf %315, %320 : vector<8x32xf32>
    %322 = arith.mulf %321, %321 : vector<8x32xf32>
    %cst_85 = arith.constant dense<0.000000e+00> : vector<8xf32>
    %323 = vector.multi_reduction <add>, %322, %cst_85 [1] : vector<8x32xf32> to vector<8xf32>
    %324 = vector.shape_cast %323 : vector<8xf32> to vector<8x1xf32>
    %cst_86 = arith.constant 3.200000e+01 : f32
    %325 = vector.broadcast %cst_86 : f32 to vector<8x1xf32>
    %326 = arith.divf %324, %325 : vector<8x1xf32>
    %327 = vector.broadcast %319 : vector<8x1xf32> to vector<8x32xf32>
    %328 = arith.subf %315, %327 : vector<8x32xf32>
    %cst_87 = arith.constant 9.99999974E-6 : f32
    %329 = vector.broadcast %cst_87 : f32 to vector<8x1xf32>
    %330 = arith.addf %326, %329 : vector<8x1xf32>
    %331 = math.rsqrt %330 : vector<8x1xf32>
    %332 = vector.broadcast %331 : vector<8x1xf32> to vector<8x32xf32>
    %333 = arith.mulf %328, %332 : vector<8x32xf32>
    %334 = vector.broadcast %13 : vector<1x32xf32> to vector<8x32xf32>
    %335 = arith.mulf %333, %334 : vector<8x32xf32>
    %336 = vector.broadcast %14 : vector<1x32xf32> to vector<8x32xf32>
    %337 = arith.addf %335, %336 : vector<8x32xf32>
    %338 = arith.truncf %337 : vector<8x32xf32> to vector<8x32xbf16>
    %cst_88 = arith.constant dense<0.000000e+00> : vector<8x32xf32>
    %339 = tpu.matmul %338, %27, %cst_88 {dimension_numbers = #tpu.dot_dimension_numbers<[1], [0], [0], [1], [0, 0, 1, 1], [], []>} : vector<8x32xbf16>, vector<32x32xbf16>, vector<8x32xf32> -> vector<8x32xf32>
    %340 = vector.broadcast %12 : vector<1x32xf32> to vector<8x32xf32>
    %341 = arith.addf %339, %340 : vector<8x32xf32>
    %cst_89 = arith.constant 0.000000e+00 : f32
    %342 = vector.broadcast %cst_89 : f32 to vector<8x32xf32>
    %343 = arith.maximumf %341, %342 : vector<8x32xf32>
    %344 = arith.addf %337, %343 : vector<8x32xf32>
    %cst_90 = arith.constant dense<0.000000e+00> : vector<8xf32>
    %345 = vector.multi_reduction <add>, %344, %cst_90 [1] : vector<8x32xf32> to vector<8xf32>
    %346 = vector.shape_cast %345 : vector<8xf32> to vector<8x1xf32>
    %cst_91 = arith.constant 3.200000e+01 : f32
    %347 = vector.broadcast %cst_91 : f32 to vector<8x1xf32>
    %348 = arith.divf %346, %347 : vector<8x1xf32>
    %349 = vector.broadcast %348 : vector<8x1xf32> to vector<8x32xf32>
    %350 = arith.subf %344, %349 : vector<8x32xf32>
    %351 = arith.mulf %350, %350 : vector<8x32xf32>
    %cst_92 = arith.constant dense<0.000000e+00> : vector<8xf32>
    %352 = vector.multi_reduction <add>, %351, %cst_92 [1] : vector<8x32xf32> to vector<8xf32>
    %353 = vector.shape_cast %352 : vector<8xf32> to vector<8x1xf32>
    %cst_93 = arith.constant 3.200000e+01 : f32
    %354 = vector.broadcast %cst_93 : f32 to vector<8x1xf32>
    %355 = arith.divf %353, %354 : vector<8x1xf32>
    %356 = vector.broadcast %348 : vector<8x1xf32> to vector<8x32xf32>
    %357 = arith.subf %344, %356 : vector<8x32xf32>
    %cst_94 = arith.constant 9.99999974E-6 : f32
    %358 = vector.broadcast %cst_94 : f32 to vector<8x1xf32>
    %359 = arith.addf %355, %358 : vector<8x1xf32>
    %360 = math.rsqrt %359 : vector<8x1xf32>
    %361 = vector.broadcast %360 : vector<8x1xf32> to vector<8x32xf32>
    %362 = arith.mulf %357, %361 : vector<8x32xf32>
    %363 = vector.broadcast %15 : vector<1x32xf32> to vector<8x32xf32>
    %364 = arith.mulf %362, %363 : vector<8x32xf32>
    %365 = vector.broadcast %16 : vector<1x32xf32> to vector<8x32xf32>
    %366 = arith.addf %364, %365 : vector<8x32xf32>
    %367 = arith.truncf %366 : vector<8x32xf32> to vector<8x32xbf16>
    %cst_95 = arith.constant dense<0.000000e+00> : vector<8x128xf32>
    %368 = tpu.matmul %367, %28, %cst_95 {dimension_numbers = #tpu.dot_dimension_numbers<[1], [0], [0], [1], [0, 0, 1, 1], [], []>} : vector<8x32xbf16>, vector<32x128xbf16>, vector<8x128xf32> -> vector<8x128xf32>
    %369 = vector.broadcast %17 : vector<1x128xf32> to vector<8x128xf32>
    %370 = arith.addf %368, %369 : vector<8x128xf32>
    %c0_96 = arith.constant 0 : index
    %c0_97 = arith.constant 0 : index
    %371 = vector.load %arg13[%c0_96, %c0_97] : memref<8x128xf32, #tpu.memory_space<vmem>>, vector<8x128xf32>
    tpu.vector_store %arg13[%c0_96, %c0_97], %370 {strides = array<i32>} : memref<8x128xf32, #tpu.memory_space<vmem>>, vector<8x128xf32>,
    return
  }
  func.func @transform_0(%arg0: i32) -> (i32, i32, i32) {
    %c0_i32 = arith.constant 0 : i32
    %c0_i32_0 = arith.constant 0 : i32
    %c0_i32_1 = arith.constant 0 : i32
    return %arg0, %c0_i32, %c0_i32_0 : i32, i32, i32
  }
  func.func @transform_1(%arg0: i32) -> (i32, i32) {
    %c0_i32 = arith.constant 0 : i32
    %c0_i32_0 = arith.constant 0 : i32
    return %arg0, %c0_i32 : i32, i32
  }
  func.func @transform_2(%arg0: i32) -> (i32, i32) {
    %c0_i32 = arith.constant 0 : i32
    %c0_i32_0 = arith.constant 0 : i32
    %c0_i32_1 = arith.constant 0 : i32
    return %c0_i32, %c0_i32_0 : i32, i32
  }
  func.func @transform_3(%arg0: i32) -> (i32, i32) {
    %c0_i32 = arith.constant 0 : i32
    %c0_i32_0 = arith.constant 0 : i32
    %c0_i32_1 = arith.constant 0 : i32
    return %c0_i32, %c0_i32_0 : i32, i32
  }
  func.func @transform_4(%arg0: i32) -> (i32, i32) {
    %c0_i32 = arith.constant 0 : i32
    %c0_i32_0 = arith.constant 0 : i32
    %c0_i32_1 = arith.constant 0 : i32
    return %c0_i32, %c0_i32_0 : i32, i32
  }
  func.func @transform_5(%arg0: i32) -> (i32, i32) {
    %c0_i32 = arith.constant 0 : i32
    %c0_i32_0 = arith.constant 0 : i32
    %c0_i32_1 = arith.constant 0 : i32
    return %c0_i32, %c0_i32_0 : i32, i32
  }
  func.func @transform_6(%arg0: i32) -> (i32, i32) {
    %c0_i32 = arith.constant 0 : i32
    %c0_i32_0 = arith.constant 0 : i32
    %c0_i32_1 = arith.constant 0 : i32
    return %c0_i32, %c0_i32_0 : i32, i32
  }
  func.func @transform_7(%arg0: i32) -> (i32, i32) {
    %c0_i32 = arith.constant 0 : i32
    %c0_i32_0 = arith.constant 0 : i32
    %c0_i32_1 = arith.constant 0 : i32
    return %c0_i32, %c0_i32_0 : i32, i32
  }
  func.func @transform_8(%arg0: i32) -> (i32, i32) {
    %c0_i32 = arith.constant 0 : i32
    %c0_i32_0 = arith.constant 0 : i32
    %c0_i32_1 = arith.constant 0 : i32
    return %c0_i32, %c0_i32_0 : i32, i32
  }
  func.func @transform_9(%arg0: i32) -> (i32, i32) {
    %c0_i32 = arith.constant 0 : i32
    %c0_i32_0 = arith.constant 0 : i32
    %c0_i32_1 = arith.constant 0 : i32
    return %c0_i32, %c0_i32_0 : i32, i32
  }
  func.func @transform_10(%arg0: i32) -> (i32, i32) {
    %c0_i32 = arith.constant 0 : i32
    %c0_i32_0 = arith.constant 0 : i32
    %c0_i32_1 = arith.constant 0 : i32
    return %c0_i32, %c0_i32_0 : i32, i32
  }
  func.func @transform_11(%arg0: i32) -> (i32, i32) {
    %c0_i32 = arith.constant 0 : i32
    %c0_i32_0 = arith.constant 0 : i32
    %c0_i32_1 = arith.constant 0 : i32
    return %c0_i32, %c0_i32_0 : i32, i32
  }
  func.func @transform_12(%arg0: i32) -> (i32, i32) {
    %c0_i32 = arith.constant 0 : i32
    %c0_i32_0 = arith.constant 0 : i32
    return %arg0, %c0_i32 : i32, i32
  }
}

</mosaic_0001>

<llo_original>
// kernel: tpu_custom_call.1
$region0: #{tpu_custom_call.1}
  #allocation0 [shape = 'u32[]', space=smem, size = 0x4, offset = 0x4, fixed_abs, tag = 'smem constant byte address 0x4 - core index']
  #allocation1 [shape = 'u32[144,128]{1,0:T(1,128)}', space=vmem, size = 0x12000, scoped, tag = 'internal scratch']
  %s0 = inlined_call_operand.vmem [shape: s32[8,8,1], index: 0, kind: input, shape index: {}]
  %s1 = inlined_call_operand.hbm [shape: f32[8,8], index: 1, kind: input, shape index: {}]
  %s2 = inlined_call_operand.hbm [shape: bf16[24,32], index: 2, kind: input, shape index: {}]
  %s3 = inlined_call_operand.vmem [shape: bf16[32,96], index: 3, kind: input, shape index: {}]
  %s4 = inlined_call_operand.vmem [shape: bf16[32,32], index: 4, kind: input, shape index: {}]
  %s5 = inlined_call_operand.vmem [shape: bf16[32,128], index: 5, kind: input, shape index: {}]
  %s6 = inlined_call_operand.vmem [shape: bf16[128,32], index: 6, kind: input, shape index: {}]
  %s7 = inlined_call_operand.vmem [shape: bf16[32,32], index: 7, kind: input, shape index: {}]
  %s8 = inlined_call_operand.vmem [shape: bf16[32,64], index: 8, kind: input, shape index: {}]
  %s9 = inlined_call_operand.vmem [shape: bf16[32,32], index: 9, kind: input, shape index: {}]
  %s10 = inlined_call_operand.vmem [shape: bf16[32,128], index: 10, kind: input, shape index: {}]
  %s11 = inlined_call_operand.vmem [shape: f32[17,128], index: 11, kind: input, shape index: {}]
  %s12 = inlined_call_operand.hbm [shape: f32[8,128], index: 12, kind: output, shape index: {}]
  %s13 = sld [smem:[#allocation0]]
  $region66: #{tpu_custom_call.1} parent=0
    _
  %s15 = ssub.s32 1, %s13
  %s16 = scalar_select 0, %s15, %s13
  $region1: #{tpu_custom_call.1} parent=0
    #allocation2 [shape = 'u8[4096]{0}', space=vmem, size = 0x1000, scoped, tag = 'input window, operand 1, single buffered']
    #allocation3 [shape = 's32[1]{0}', space=sflag, size = 0x4, scoped, tag = 'scoped memory for tpu_custom_call.1']
    #allocation4 [shape = 's32[1]{0}', space=sflag, size = 0x4, scoped, tag = 'scoped memory for tpu_custom_call.1']
    #allocation5 [shape = 'u8[6144]{0}', space=vmem, size = 0x1800, scoped, tag = 'input window, operand 2, single buffered']
    #allocation6 [shape = 's32[1]{0}', space=sflag, size = 0x4, scoped, tag = 'scoped memory for tpu_custom_call.1']
    #allocation7 [shape = 'u8[4096]{0}', space=vmem, size = 0x1000, scoped, tag = 'output window, operand 0, single buffered']
    %17 = vsyncpa [#allocation3], 0
    %18 = vsyncpa [#allocation6], 0
    %19 = vsyncpa [#allocation4], 0
    // Predicated region
    $region2: #{tpu_custom_call.1} parent=1 // pred_check
      _
    $region3: #{tpu_custom_call.1} parent=1 // pred_check_branch
      %21 = sbr.rel (0) target = $region5
    $region4: #{tpu_custom_call.1} parent=1 // pred_region
      _
    $region5: #{tpu_custom_call.1} parent=1 // pred_fallthru
      _
    // Predicated region
    $region6: #{tpu_custom_call.1} parent=1 // pred_check
      _
    $region7: #{tpu_custom_call.1} parent=1 // pred_check_branch
      %23 = sbr.rel (0) target = $region9
    $region8: #{tpu_custom_call.1} parent=1 // pred_region
      %s25 = ssub.s32 128, 128
      %26 = vsyncadd [#allocation3], %s25
      %s28 = sshll.u32 [#allocation2], 4
      %s29 = int_to_ptr.vmem [resolvable:$true] %s28
      %31 = dma.hbm_to_vmem [thread:$0]  %s1, 128, %s29, [#allocation3]
    $region9: #{tpu_custom_call.1} parent=1 // pred_fallthru
      _
    // Predicated region
    $region10: #{tpu_custom_call.1} parent=1 // pred_check
      _
    $region11: #{tpu_custom_call.1} parent=1 // pred_check_branch
      %33 = sbr.rel (0) target = $region13
    $region12: #{tpu_custom_call.1} parent=1 // pred_region
      %s35 = ssub.s32 192, 192
      %36 = vsyncadd [#allocation6], %s35
      %s37 = sshll.u32 [#allocation5], 4
      %s38 = int_to_ptr.vmem [resolvable:$true] %s37
      %43 = dma.hbm_to_vmem [thread:$0]  %s2, 192, %s38, [#allocation6], 64, 64, 4
    $region13: #{tpu_custom_call.1} parent=1 // pred_fallthru
      _
    // Predicated region
    $region14: #{tpu_custom_call.1} parent=1 // pred_check
      _
    $region15: #{tpu_custom_call.1} parent=1 // pred_check_branch
      %45 = sbr.rel (0) target = $region17
    $region16: #{tpu_custom_call.1} parent=1 // pred_region
      _
    $region17: #{tpu_custom_call.1} parent=1 // pred_fallthru
      _
    // Predicated region
    $region18: #{tpu_custom_call.1} parent=1 // pred_check
      _
    $region19: #{tpu_custom_call.1} parent=1 // pred_check_branch
      %47 = sbr.rel (0) target = $region21
    $region20: #{tpu_custom_call.1} parent=1 // pred_region
      _
    $region21: #{tpu_custom_call.1} parent=1 // pred_fallthru
      _
    // Predicated region
    $region22: #{tpu_custom_call.1} parent=1 // pred_check
      _
    $region23: #{tpu_custom_call.1} parent=1 // pred_check_branch
      %49 = sbr.rel (0) target = $region25
    $region24: #{tpu_custom_call.1} parent=1 // pred_region
      _
    $region25: #{tpu_custom_call.1} parent=1 // pred_fallthru
      _
    // Predicated region
    $region26: #{tpu_custom_call.1} parent=1 // pred_check
      _
    $region27: #{tpu_custom_call.1} parent=1 // pred_check_branch
      %51 = sbr.rel (0) target = $region29
    $region28: #{tpu_custom_call.1} parent=1 // pred_region
      _
    $region29: #{tpu_custom_call.1} parent=1 // pred_fallthru
      _
    // Predicated region
    $region30: #{tpu_custom_call.1} parent=1 // pred_check
      _
    $region31: #{tpu_custom_call.1} parent=1 // pred_check_branch
      %53 = sbr.rel (0) target = $region33
    $region32: #{tpu_custom_call.1} parent=1 // pred_region
      _
    $region33: #{tpu_custom_call.1} parent=1 // pred_fallthru
      _
    // Predicated region
    $region34: #{tpu_custom_call.1} parent=1 // pred_check
      _
    $region35: #{tpu_custom_call.1} parent=1 // pred_check_branch
      %55 = sbr.rel (0) target = $region37
    $region36: #{tpu_custom_call.1} parent=1 // pred_region
      _
    $region37: #{tpu_custom_call.1} parent=1 // pred_fallthru
      _
    // Predicated region
    $region38: #{tpu_custom_call.1} parent=1 // pred_check
      _
    $region39: #{tpu_custom_call.1} parent=1 // pred_check_branch
      %57 = sbr.rel (0) target = $region41
    $region40: #{tpu_custom_call.1} parent=1 // pred_region
      _
    $region41: #{tpu_custom_call.1} parent=1 // pred_fallthru
      _
    // Predicated region
    $region42: #{tpu_custom_call.1} parent=1 // pred_check
      _
    $region43: #{tpu_custom_call.1} parent=1 // pred_check_branch
      %59 = sbr.rel (0) target = $region45
    $region44: #{tpu_custom_call.1} parent=1 // pred_region
      _
    $region45: #{tpu_custom_call.1} parent=1 // pred_fallthru
      _
    // Predicated region
    $region46: #{tpu_custom_call.1} parent=1 // pred_check
      _
    $region47: #{tpu_custom_call.1} parent=1 // pred_check_branch
      %61 = sbr.rel (0) target = $region49
    $region48: #{tpu_custom_call.1} parent=1 // pred_region
      _
    $region49: #{tpu_custom_call.1} parent=1 // pred_fallthru
      _
    // Predicated region
    $region50: #{tpu_custom_call.1} parent=1 // pred_check
      _
    $region51: #{tpu_custom_call.1} parent=1 // pred_check_branch
      %63 = sbr.rel (0) target = $region53
    $region52: #{tpu_custom_call.1} parent=1 // pred_region
      %64 = dma.done [#allocation3], 128
    $region53: #{tpu_custom_call.1} parent=1 // pred_fallthru
      _
    // Predicated region
    $region54: #{tpu_custom_call.1} parent=1 // pred_check
      _
    $region55: #{tpu_custom_call.1} parent=1 // pred_check_branch
      %66 = sbr.rel (0) target = $region57
    $region56: #{tpu_custom_call.1} parent=1 // pred_region
      %67 = dma.done [#allocation6], 192
    $region57: #{tpu_custom_call.1} parent=1 // pred_fallthru
      _
    %v69 = vld [vmem:[%s11] sm:$0xff]
    %v70 = vld [vmem:[%s11 + $0x8] sm:$0xff]
    %v71 = vld [vmem:[%s11 + $0x10] sm:$0x1]
    %v72 = vld [vmem:[%s0] sm:$0xff]
    %v73 = vld [vmem:[%s0 + $0x8] sm:$0xff]
    %v74 = vld [vmem:[%s0 + $0x10] sm:$0xff]
    %v75 = vld [vmem:[%s0 + $0x18] sm:$0xff]
    %v76 = vld [vmem:[%s0 + $0x20] sm:$0xff]
    %v77 = vld [vmem:[%s0 + $0x28] sm:$0xff]
    %v78 = vld [vmem:[%s0 + $0x30] sm:$0xff]
    %v79 = vld [vmem:[%s0 + $0x38] sm:$0xff]
    %v80 = vld [vmem:[#allocation2] sm:$0xff]
    %v81 = vld [vmem:[#allocation5] sm:$0xf]
    %v82 = vld [vmem:[#allocation5 + $0x4] sm:$0xf]
    %v83 = vld [vmem:[#allocation5 + $0x8] sm:$0xf]
    %v84 = vld [vmem:[%s3] sm:$0xf]
    %v85 = vld [vmem:[%s3 + $0x4] sm:$0xf]
    %v86 = vld [vmem:[%s3 + $0x8] sm:$0xf]
    %v87 = vld [vmem:[%s3 + $0xc] sm:$0xf]
    %v88 = vld [vmem:[%s4] sm:$0xf]
    %v89 = vld [vmem:[%s4 + $0x4] sm:$0xf]
    %v90 = vld [vmem:[%s4 + $0x8] sm:$0xf]
    %v91 = vld [vmem:[%s4 + $0xc] sm:$0xf]
    %v92 = vld [vmem:[%s5] sm:$0xf]
    %v93 = vld [vmem:[%s5 + $0x4] sm:$0xf]
    %v94 = vld [vmem:[%s5 + $0x8] sm:$0xf]
    %v95 = vld [vmem:[%s5 + $0xc] sm:$0xf]
    %v96 = vld [vmem:[%s6] sm:$0xf]
    %v97 = vld [vmem:[%s6 + $0x4] sm:$0xf]
    %v98 = vld [vmem:[%s6 + $0x8] sm:$0xf]
    %v99 = vld [vmem:[%s6 + $0xc] sm:$0xf]
    %v100 = vld [vmem:[%s6 + $0x10] sm:$0xf]
    %v101 = vld [vmem:[%s6 + $0x14] sm:$0xf]
    %v102 = vld [vmem:[%s6 + $0x18] sm:$0xf]
    %v103 = vld [vmem:[%s6 + $0x1c] sm:$0xf]
    %v104 = vld [vmem:[%s6 + $0x20] sm:$0xf]
    %v105 = vld [vmem:[%s6 + $0x24] sm:$0xf]
    %v106 = vld [vmem:[%s6 + $0x28] sm:$0xf]
    %v107 = vld [vmem:[%s6 + $0x2c] sm:$0xf]
    %v108 = vld [vmem:[%s6 + $0x30] sm:$0xf]
    %v109 = vld [vmem:[%s6 + $0x34] sm:$0xf]
    %v110 = vld [vmem:[%s6 + $0x38] sm:$0xf]
    %v111 = vld [vmem:[%s6 + $0x3c] sm:$0xf]
    %v112 = vld [vmem:[%s7] sm:$0xf]
    %v113 = vld [vmem:[%s7 + $0x4] sm:$0xf]
    %v114 = vld [vmem:[%s7 + $0x8] sm:$0xf]
    %v115 = vld [vmem:[%s7 + $0xc] sm:$0xf]
    %v116 = vld [vmem:[%s8] sm:$0xf]
    %v117 = vld [vmem:[%s8 + $0x4] sm:$0xf]
    %v118 = vld [vmem:[%s8 + $0x8] sm:$0xf]
    %v119 = vld [vmem:[%s8 + $0xc] sm:$0xf]
    %v120 = vld [vmem:[%s9] sm:$0xf]
    %v121 = vld [vmem:[%s9 + $0x4] sm:$0xf]
    %v122 = vld [vmem:[%s9 + $0x8] sm:$0xf]
    %v123 = vld [vmem:[%s9 + $0xc] sm:$0xf]
    %v124 = vld [vmem:[%s10] sm:$0xf]
    %v125 = vld [vmem:[%s10 + $0x4] sm:$0xf]
    %v126 = vld [vmem:[%s10 + $0x8] sm:$0xf]
    %v127 = vld [vmem:[%s10 + $0xc] sm:$0xf]
    %vm128 = vcmp.gt.f32.partialorder %v80, 0.0
    %v129 = vsel %vm128, 0.0, -1e+09
    %v131 = vcombine.high %v129, %v129
    %v133 = vunpack.c.l.s4 1966171168
    %v134 = vunpack.c.0.s8 %v133
    %v135 = vlaneseq
    %v136 = vshrl.u32 %v135, 7
    %v137 = vsub.s32 %v134, %v136
    %v138 = vrot.slane %v129, %v137
    %v140 = vunpack.c.l.s4 1966171168
    %v141 = vunpack.c.0.s8 %v140
    %v142 = vlaneseq
    %v143 = vshrl.u32 %v142, 7
    %v144 = vsub.s32 %v141, %v143
    %v145 = vrot.slane %v131, %v144
    %v146 = vcombine.high %v138, %v138
    %v147 = vcombine.high %v145, %v145
    %v149 = vunpack.c.l.s4 1966171168
    %v150 = vunpack.c.0.s8 %v149
    %v151 = vlaneseq
    %v152 = vshrl.u32 %v151, 7
    %v153 = vsub.s32 %v150, %v152
    %v154 = vrot.slane %v138, %v153
    %v156 = vunpack.c.l.s4 1966171168
    %v157 = vunpack.c.0.s8 %v156
    %v158 = vlaneseq
    %v159 = vshrl.u32 %v158, 7
    %v160 = vsub.s32 %v157, %v159
    %v161 = vrot.slane %v145, %v160
    %v163 = vunpack.c.l.s4 1966171168
    %v164 = vunpack.c.0.s8 %v163
    %v165 = vlaneseq
    %v166 = vshrl.u32 %v165, 7
    %v167 = vsub.s32 %v164, %v166
    %v168 = vrot.slane %v146, %v167
    %v170 = vunpack.c.l.s4 1966171168
    %v171 = vunpack.c.0.s8 %v170
    %v172 = vlaneseq
    %v173 = vshrl.u32 %v172, 7
    %v174 = vsub.s32 %v171, %v173
    %v175 = vrot.slane %v147, %v174
    %v176 = vcombine.high %v154, %v154
    %v177 = vcombine.high %v161, %v161
    %v178 = vcombine.high %v168, %v168
    %v179 = vcombine.high %v175, %v175
    %v188 = vlaneseq
    %v189 = vand.u32 %v188, 127
    %190 = vset.pattern.permute.xlu0 0
    %191 = vperm.xlu0 %190, %v72
    %v192 = vpop.permute.xlu0 %191
    %193 = vset.pattern.permute.xlu0 0
    %194 = vperm.xlu0 %193, %v73
    %v195 = vpop.permute.xlu0 %194
    %196 = vset.pattern.permute.xlu0 0
    %197 = vperm.xlu0 %196, %v74
    %v198 = vpop.permute.xlu0 %197
    %199 = vset.pattern.permute.xlu0 0
    %200 = vperm.xlu0 %199, %v75
    %v201 = vpop.permute.xlu0 %200
    %202 = vset.pattern.permute.xlu0 0
    %203 = vperm.xlu0 %202, %v76
    %v204 = vpop.permute.xlu0 %203
    %205 = vset.pattern.permute.xlu0 0
    %206 = vperm.xlu0 %205, %v77
    %v207 = vpop.permute.xlu0 %206
    %208 = vset.pattern.permute.xlu0 0
    %209 = vperm.xlu0 %208, %v78
    %v210 = vpop.permute.xlu0 %209
    %211 = vset.pattern.permute.xlu0 0
    %212 = vperm.xlu0 %211, %v79
    %v213 = vpop.permute.xlu0 %212
    %vm214 = vcmp.eq.s32.totalorder %v192, %v189
    %vm215 = vcmp.eq.s32.totalorder %v195, %v189
    %vm216 = vcmp.eq.s32.totalorder %v198, %v189
    %vm217 = vcmp.eq.s32.totalorder %v201, %v189
    %vm218 = vcmp.eq.s32.totalorder %v204, %v189
    %vm219 = vcmp.eq.s32.totalorder %v207, %v189
    %vm220 = vcmp.eq.s32.totalorder %v210, %v189
    %vm221 = vcmp.eq.s32.totalorder %v213, %v189
    %v222 = vsel %vm214, 1.0, 0.0
    %v223 = vsel %vm215, 1.0, 0.0
    %v224 = vsel %vm216, 1.0, 0.0
    %v225 = vsel %vm217, 1.0, 0.0
    %v226 = vsel %vm218, 1.0, 0.0
    %v227 = vsel %vm219, 1.0, 0.0
    %v228 = vsel %vm220, 1.0, 0.0
    %v229 = vsel %vm221, 1.0, 0.0
    %v230 = vpack.c.bf16 %v223, %v222
    %v231 = vpack.c.bf16 %v225, %v224
    %v232 = vpack.c.bf16 %v227, %v226
    %v233 = vpack.c.bf16 %v229, %v228
    %v237 = vunpack.c.l.b16 %v81
    %v238 = vunpack.c.l.b16 %v82
    %v239 = vunpack.c.l.b16 %v83
    %v240 = vpack.c.b16 %v238, %v237
    %v241 = vpack.c.b16 %v239, %v239
    %vm243 = vcmask 195584
    %v245 = vsel %vm243, %v230, 0
    %v248 = vsel %vm243, %v231, 0
    %v251 = vsel %vm243, %v232, 0
    %v254 = vsel %vm243, %v233, 0
    %vm256 = vcmask 1043456
    %v258 = vsel %vm256, %v241, 0
    %260 = vmatprep.subr.bf16.mxu0 0
    %261 = vmatpush1.bf16.msra.mxu0 %v240
    %262 = vmatprep.subr.bf16.mxu0 0
    %263 = vmatpush1.bf16.msra.mxu0 %v258
    %264 = vmatprep.subr.bf16.mxu0 0
    %265 = vmatpush1.bf16.msra.mxu0 0
    %266 = vmatprep.subr.bf16.mxu0 0
    %267 = vmatpush1.bf16.msra.mxu0 0
    %268 = vmatprep.subr.bf16.mxu0 0
    %269 = vmatpush1.bf16.msra.mxu0 0
    %270 = vmatprep.subr.bf16.mxu0 0
    %271 = vmatpush1.bf16.msra.mxu0 0
    %272 = vmatprep.subr.bf16.mxu0 0
    %273 = vmatpush1.bf16.msra.mxu0 0
    %274 = vmatprep.subr.bf16.mxu0 0
    %275 = vmatpush1.bf16.msra.mxu0 0
    %276 = vmatprep.subr.bf16.mxu0 0
    %277 = vmatpush1.bf16.msra.mxu0 0
    %278 = vmatprep.subr.bf16.mxu0 0
    %279 = vmatpush1.bf16.msra.mxu0 0
    %280 = vmatprep.subr.bf16.mxu0 0
    %281 = vmatpush1.bf16.msra.mxu0 0
    %282 = vmatprep.subr.bf16.mxu0 0
    %283 = vmatpush1.bf16.msra.mxu0 0
    %284 = vmatprep.subr.bf16.mxu0 0
    %285 = vmatpush1.bf16.msra.mxu0 0
    %286 = vmatprep.subr.bf16.mxu0 0
    %287 = vmatpush1.bf16.msra.mxu0 0
    %288 = vmatprep.subr.bf16.mxu0 0
    %289 = vmatpush1.bf16.msra.mxu0 0
    %290 = vmatprep.subr.bf16.mxu0 0
    %291 = vmatpush1.bf16.msra.mxu0 0
    %292 = vmatprep.mubr.bf16.mxu0 0
    %293 = vmatmul.mubr.bf16.gmra.mrb[0].mxu0 %v245
    %v294 = vpop.f32.mrb[0].mxu0
    %v295 = vadd.f32 0.0, %v294
    %v296 = vpop.f32.mrb[0].mxu0
    %v297 = vpop.f32.mrb[0].mxu0
    %v298 = vadd.f32 0.0, %v297
    %v299 = vpop.f32.mrb[0].mxu0
    %300 = vmatprep.mubr.bf16.mxu0 0
    %301 = vmatmul.mubr.bf16.gmra.mrb[0].mxu0 %v248
    %v302 = vpop.f32.mrb[0].mxu0
    %v303 = vadd.f32 0.0, %v302
    %v304 = vpop.f32.mrb[0].mxu0
    %v305 = vpop.f32.mrb[0].mxu0
    %v306 = vadd.f32 0.0, %v305
    %v307 = vpop.f32.mrb[0].mxu0
    %308 = vmatprep.mubr.bf16.mxu0 0
    %309 = vmatmul.mubr.bf16.gmra.mrb[0].mxu0 %v251
    %v310 = vpop.f32.mrb[0].mxu0
    %v311 = vadd.f32 0.0, %v310
    %v312 = vpop.f32.mrb[0].mxu0
    %v313 = vpop.f32.mrb[0].mxu0
    %v314 = vadd.f32 0.0, %v313
    %v315 = vpop.f32.mrb[0].mxu0
    %316 = vmatprep.mubr.bf16.mxu0 0
    %317 = vmatmul.mubr.bf16.gmra.mrb[0].mxu0 %v254
    %v318 = vpop.f32.mrb[0].mxu0
    %v319 = vadd.f32 0.0, %v318
    %v320 = vpop.f32.mrb[0].mxu0
    %v321 = vpop.f32.mrb[0].mxu0
    %v322 = vadd.f32 0.0, %v321
    %v323 = vpop.f32.mrb[0].mxu0
    %324 = vdwg.mxu0
    %v325 = vpack.c.bf16 %v298, %v295
    %v326 = vpack.c.bf16 %v306, %v303
    %v327 = vpack.c.bf16 %v314, %v311
    %v328 = vpack.c.bf16 %v322, %v319
    %v329 = vlaneseq
    %v330 = vshrl.u32 %v329, 7
    %v331 = vsub.s32 0, %v330
    %v332 = vrot.slane %v69, %v331
    %v337 = vunpack.c.l.b16 %v84
    %v338 = vunpack.c.l.b16 %v85
    %v339 = vunpack.c.l.b16 %v86
    %v340 = vunpack.c.l.b16 %v87
    %v341 = vpack.c.b16 %v338, %v337
    %v342 = vpack.c.b16 %v340, %v339
    %vm345 = vcmask 261120
    %v347 = vsel %vm345, %v325, 0
    %v350 = vsel %vm345, %v326, 0
    %v353 = vsel %vm345, %v327, 0
    %v356 = vsel %vm345, %v328, 0
    %358 = vmatprep.subr.bf16.mxu0 0
    %359 = vmatpush1.bf16.msra.mxu0 %v341
    %360 = vmatprep.subr.bf16.mxu0 0
    %361 = vmatpush1.bf16.msra.mxu0 %v342
    %362 = vmatprep.subr.bf16.mxu0 0
    %363 = vmatpush1.bf16.msra.mxu0 0
    %364 = vmatprep.subr.bf16.mxu0 0
    %365 = vmatpush1.bf16.msra.mxu0 0
    %366 = vmatprep.subr.bf16.mxu0 0
    %367 = vmatpush1.bf16.msra.mxu0 0
    %368 = vmatprep.subr.bf16.mxu0 0
    %369 = vmatpush1.bf16.msra.mxu0 0
    %370 = vmatprep.subr.bf16.mxu0 0
    %371 = vmatpush1.bf16.msra.mxu0 0
    %372 = vmatprep.subr.bf16.mxu0 0
    %373 = vmatpush1.bf16.msra.mxu0 0
    %374 = vmatprep.subr.bf16.mxu0 0
    %375 = vmatpush1.bf16.msra.mxu0 0
    %376 = vmatprep.subr.bf16.mxu0 0
    %377 = vmatpush1.bf16.msra.mxu0 0
    %378 = vmatprep.subr.bf16.mxu0 0
    %379 = vmatpush1.bf16.msra.mxu0 0
    %380 = vmatprep.subr.bf16.mxu0 0
    %381 = vmatpush1.bf16.msra.mxu0 0
    %382 = vmatprep.subr.bf16.mxu0 0
    %383 = vmatpush1.bf16.msra.mxu0 0
    %384 = vmatprep.subr.bf16.mxu0 0
    %385 = vmatpush1.bf16.msra.mxu0 0
    %386 = vmatprep.subr.bf16.mxu0 0
    %387 = vmatpush1.bf16.msra.mxu0 0
    %388 = vmatprep.subr.bf16.mxu0 0
    %389 = vmatpush1.bf16.msra.mxu0 0
    %390 = vmatprep.mubr.bf16.mxu0 0
    %391 = vmatmul.mubr.bf16.gmra.mrb[0].mxu0 %v347
    %v392 = vpop.f32.mrb[0].mxu0
    %v393 = vadd.f32 %v332, %v392
    %v394 = vpop.f32.mrb[0].mxu0
    %v395 = vpop.f32.mrb[0].mxu0
    %v396 = vadd.f32 %v332, %v395
    %v397 = vpop.f32.mrb[0].mxu0
    %398 = vmatprep.mubr.bf16.mxu0 0
    %399 = vmatmul.mubr.bf16.gmra.mrb[0].mxu0 %v350
    %v400 = vpop.f32.mrb[0].mxu0
    %v401 = vadd.f32 %v332, %v400
    %v402 = vpop.f32.mrb[0].mxu0
    %v403 = vpop.f32.mrb[0].mxu0
    %v404 = vadd.f32 %v332, %v403
    %v405 = vpop.f32.mrb[0].mxu0
    %406 = vmatprep.mubr.bf16.mxu0 0
    %407 = vmatmul.mubr.bf16.gmra.mrb[0].mxu0 %v353
    %v408 = vpop.f32.mrb[0].mxu0
    %v409 = vadd.f32 %v332, %v408
    %v410 = vpop.f32.mrb[0].mxu0
    %v411 = vpop.f32.mrb[0].mxu0
    %v412 = vadd.f32 %v332, %v411
    %v413 = vpop.f32.mrb[0].mxu0
    %414 = vmatprep.mubr.bf16.mxu0 0
    %415 = vmatmul.mubr.bf16.gmra.mrb[0].mxu0 %v356
    %v416 = vpop.f32.mrb[0].mxu0
    %v417 = vadd.f32 %v332, %v416
    %v418 = vpop.f32.mrb[0].mxu0
    %v419 = vpop.f32.mrb[0].mxu0
    %v420 = vadd.f32 %v332, %v419
    %v421 = vpop.f32.mrb[0].mxu0
    %422 = vdwg.mxu0
    %v423 = vmul.f32 %v393, 0.35355338
    %v424 = vmul.f32 %v396, 0.35355338
    %v425 = vmul.f32 %v401, 0.35355338
    %v426 = vmul.f32 %v404, 0.35355338
    %v427 = vmul.f32 %v409, 0.35355338
    %v428 = vmul.f32 %v412, 0.35355338
    %v429 = vmul.f32 %v417, 0.35355338
    %v430 = vmul.f32 %v420, 0.35355338
    %v431 = vpack.c.bf16 %v423, %v423
    %v432 = vpack.c.bf16 %v424, %v424
    %v433 = vpack.c.bf16 %v425, %v425
    %v434 = vpack.c.bf16 %v426, %v426
    %v435 = vpack.c.bf16 %v427, %v427
    %v436 = vpack.c.bf16 %v428, %v428
    %v437 = vpack.c.bf16 %v429, %v429
    %v438 = vpack.c.bf16 %v430, %v430
    %v439 = vpack.c.bf16 %v393, %v393
    %v440 = vpack.c.bf16 %v396, %v396
    %v441 = vpack.c.bf16 %v401, %v401
    %v442 = vpack.c.bf16 %v404, %v404
    %v443 = vpack.c.bf16 %v409, %v409
    %v444 = vpack.c.bf16 %v412, %v412
    %v445 = vpack.c.bf16 %v417, %v417
    %v446 = vpack.c.bf16 %v420, %v420
    %v447 = vlaneseq
    %v448 = vshrl.u32 %v447, 7
    %v449 = vsub.s32 0, %v448
    %v450 = vrot.slane %v154, %v449
    %v451 = vlaneseq
    %v452 = vshrl.u32 %v451, 7
    %v453 = vsub.s32 0, %v452
    %v454 = vrot.slane %v168, %v453
    %v455 = vlaneseq
    %v456 = vshrl.u32 %v455, 7
    %v457 = vsub.s32 0, %v456
    %v458 = vrot.slane %v176, %v457
    %v459 = vlaneseq
    %v460 = vshrl.u32 %v459, 7
    %v461 = vsub.s32 0, %v460
    %v462 = vrot.slane %v178, %v461
    %v463 = vlaneseq
    %v464 = vshrl.u32 %v463, 7
    %v465 = vsub.s32 0, %v464
    %v466 = vrot.slane %v161, %v465
    %v467 = vlaneseq
    %v468 = vshrl.u32 %v467, 7
    %v469 = vsub.s32 0, %v468
    %v470 = vrot.slane %v175, %v469
    %v471 = vlaneseq
    %v472 = vshrl.u32 %v471, 7
    %v473 = vsub.s32 0, %v472
    %v474 = vrot.slane %v177, %v473
    %v475 = vlaneseq
    %v476 = vshrl.u32 %v475, 7
    %v477 = vsub.s32 0, %v476
    %v478 = vrot.slane %v179, %v477
    %488 = vrot.lane.b32.xlu0 %v439, 96
    %v489 = vpop.permute.xlu0 %488
    %vm490 = vcmask 64512
    %v492 = vsel %vm490, %v431, 0
    %v495 = vsel %vm490, %v489, 0
    %497 = vmatprep.subr.bf16.mxu0 0
    %498 = vmatpush1.bf16.xpose.msra.mxu0 %v495
    %499 = vmatprep.subr.bf16.mxu0 0
    %500 = vmatpush1.bf16.xpose.msra.mxu0 0
    %501 = vmatprep.subr.bf16.mxu0 0
    %502 = vmatpush1.bf16.xpose.msra.mxu0 0
    %503 = vmatprep.subr.bf16.mxu0 0
    %504 = vmatpush1.bf16.xpose.msra.mxu0 0
    %505 = vmatprep.subr.bf16.mxu0 0
    %506 = vmatpush1.bf16.xpose.msra.mxu0 0
    %507 = vmatprep.subr.bf16.mxu0 0
    %508 = vmatpush1.bf16.xpose.msra.mxu0 0
    %509 = vmatprep.subr.bf16.mxu0 0
    %510 = vmatpush1.bf16.xpose.msra.mxu0 0
    %511 = vmatprep.subr.bf16.mxu0 0
    %512 = vmatpush1.bf16.xpose.msra.mxu0 0
    %513 = vmatprep.subr.bf16.mxu0 0
    %514 = vmatpush1.bf16.xpose.msra.mxu0 0
    %515 = vmatprep.subr.bf16.mxu0 0
    %516 = vmatpush1.bf16.xpose.msra.mxu0 0
    %517 = vmatprep.subr.bf16.mxu0 0
    %518 = vmatpush1.bf16.xpose.msra.mxu0 0
    %519 = vmatprep.subr.bf16.mxu0 0
    %520 = vmatpush1.bf16.xpose.msra.mxu0 0
    %521 = vmatprep.subr.bf16.mxu0 0
    %522 = vmatpush1.bf16.xpose.msra.mxu0 0
    %523 = vmatprep.subr.bf16.mxu0 0
    %524 = vmatpush1.bf16.xpose.msra.mxu0 0
    %525 = vmatprep.subr.bf16.mxu0 0
    %526 = vmatpush1.bf16.xpose.msra.mxu0 0
    %527 = vmatprep.subr.bf16.mxu0 0
    %528 = vmatpush1.bf16.xpose.msra.mxu0 0
    %529 = vmatprep.mubr.bf16.mxu0 0
    %530 = vmatmul.mubr.bf16.gmra.mrb[0].mxu0 %v492
    %v531 = vpop.f32.mrb[0].mxu0
    %v532 = vadd.f32 %v450, %v531
    %v533 = vpop.f32.mrb[0].mxu0
    %v534 = vpop.f32.mrb[0].mxu0
    %v535 = vpop.f32.mrb[0].mxu0
    %536 = vdwg.mxu0
    %538 = vrot.lane.b32.xlu0 %v440, 96
    %v539 = vpop.permute.xlu0 %538
    %v541 = vsel %vm490, %v432, 0
    %v544 = vsel %vm490, %v539, 0
    %546 = vmatprep.subr.bf16.mxu0 0
    %547 = vmatpush1.bf16.xpose.msra.mxu0 %v544
    %548 = vmatprep.subr.bf16.mxu0 0
    %549 = vmatpush1.bf16.xpose.msra.mxu0 0
    %550 = vmatprep.subr.bf16.mxu0 0
    %551 = vmatpush1.bf16.xpose.msra.mxu0 0
    %552 = vmatprep.subr.bf16.mxu0 0
    %553 = vmatpush1.bf16.xpose.msra.mxu0 0
    %554 = vmatprep.subr.bf16.mxu0 0
    %555 = vmatpush1.bf16.xpose.msra.mxu0 0
    %556 = vmatprep.subr.bf16.mxu0 0
    %557 = vmatpush1.bf16.xpose.msra.mxu0 0
    %558 = vmatprep.subr.bf16.mxu0 0
    %559 = vmatpush1.bf16.xpose.msra.mxu0 0
    %560 = vmatprep.subr.bf16.mxu0 0
    %561 = vmatpush1.bf16.xpose.msra.mxu0 0
    %562 = vmatprep.subr.bf16.mxu0 0
    %563 = vmatpush1.bf16.xpose.msra.mxu0 0
    %564 = vmatprep.subr.bf16.mxu0 0
    %565 = vmatpush1.bf16.xpose.msra.mxu0 0
    %566 = vmatprep.subr.bf16.mxu0 0
    %567 = vmatpush1.bf16.xpose.msra.mxu0 0
    %568 = vmatprep.subr.bf16.mxu0 0
    %569 = vmatpush1.bf16.xpose.msra.mxu0 0
    %570 = vmatprep.subr.bf16.mxu0 0
    %571 = vmatpush1.bf16.xpose.msra.mxu0 0
    %572 = vmatprep.subr.bf16.mxu0 0
    %573 = vmatpush1.bf16.xpose.msra.mxu0 0
    %574 = vmatprep.subr.bf16.mxu0 0
    %575 = vmatpush1.bf16.xpose.msra.mxu0 0
    %576 = vmatprep.subr.bf16.mxu0 0
    %577 = vmatpush1.bf16.xpose.msra.mxu0 0
    %578 = vmatprep.mubr.bf16.mxu0 0
    %579 = vmatmul.mubr.bf16.gmra.mrb[0].mxu0 %v541
    %v580 = vpop.f32.mrb[0].mxu0
    %v581 = vadd.f32 %v454, %v580
    %v582 = vpop.f32.mrb[0].mxu0
    %v583 = vpop.f32.mrb[0].mxu0
    %v584 = vpop.f32.mrb[0].mxu0
    %585 = vdwg.mxu0
    %587 = vrot.lane.b32.xlu0 %v441, 96
    %v588 = vpop.permute.xlu0 %587
    %v590 = vsel %vm490, %v433, 0
    %v593 = vsel %vm490, %v588, 0
    %595 = vmatprep.subr.bf16.mxu0 0
    %596 = vmatpush1.bf16.xpose.msra.mxu0 %v593
    %597 = vmatprep.subr.bf16.mxu0 0
    %598 = vmatpush1.bf16.xpose.msra.mxu0 0
    %599 = vmatprep.subr.bf16.mxu0 0
    %600 = vmatpush1.bf16.xpose.msra.mxu0 0
    %601 = vmatprep.subr.bf16.mxu0 0
    %602 = vmatpush1.bf16.xpose.msra.mxu0 0
    %603 = vmatprep.subr.bf16.mxu0 0
    %604 = vmatpush1.bf16.xpose.msra.mxu0 0
    %605 = vmatprep.subr.bf16.mxu0 0
    %606 = vmatpush1.bf16.xpose.msra.mxu0 0
    %607 = vmatprep.subr.bf16.mxu0 0
    %608 = vmatpush1.bf16.xpose.msra.mxu0 0
    %609 = vmatprep.subr.bf16.mxu0 0
    %610 = vmatpush1.bf16.xpose.msra.mxu0 0
    %611 = vmatprep.subr.bf16.mxu0 0
    %612 = vmatpush1.bf16.xpose.msra.mxu0 0
    %613 = vmatprep.subr.bf16.mxu0 0
    %614 = vmatpush1.bf16.xpose.msra.mxu0 0
    %615 = vmatprep.subr.bf16.mxu0 0
    %616 = vmatpush1.bf16.xpose.msra.mxu0 0
    %617 = vmatprep.subr.bf16.mxu0 0
    %618 = vmatpush1.bf16.xpose.msra.mxu0 0
    %619 = vmatprep.subr.bf16.mxu0 0
    %620 = vmatpush1.bf16.xpose.msra.mxu0 0
    %621 = vmatprep.subr.bf16.mxu0 0
    %622 = vmatpush1.bf16.xpose.msra.mxu0 0
    %623 = vmatprep.subr.bf16.mxu0 0
    %624 = vmatpush1.bf16.xpose.msra.mxu0 0
    %625 = vmatprep.subr.bf16.mxu0 0
    %626 = vmatpush1.bf16.xpose.msra.mxu0 0
    %627 = vmatprep.mubr.bf16.mxu0 0
    %628 = vmatmul.mubr.bf16.gmra.mrb[0].mxu0 %v590
    %v629 = vpop.f32.mrb[0].mxu0
    %v630 = vadd.f32 %v458, %v629
    %v631 = vpop.f32.mrb[0].mxu0
    %v632 = vpop.f32.mrb[0].mxu0
    %v633 = vpop.f32.mrb[0].mxu0
    %634 = vdwg.mxu0
    %636 = vrot.lane.b32.xlu0 %v442, 96
    %v637 = vpop.permute.xlu0 %636
    %v639 = vsel %vm490, %v434, 0
    %v642 = vsel %vm490, %v637, 0
    %644 = vmatprep.subr.bf16.mxu0 0
    %645 = vmatpush1.bf16.xpose.msra.mxu0 %v642
    %646 = vmatprep.subr.bf16.mxu0 0
    %647 = vmatpush1.bf16.xpose.msra.mxu0 0
    %648 = vmatprep.subr.bf16.mxu0 0
    %649 = vmatpush1.bf16.xpose.msra.mxu0 0
    %650 = vmatprep.subr.bf16.mxu0 0
    %651 = vmatpush1.bf16.xpose.msra.mxu0 0
    %652 = vmatprep.subr.bf16.mxu0 0
    %653 = vmatpush1.bf16.xpose.msra.mxu0 0
    %654 = vmatprep.subr.bf16.mxu0 0
    %655 = vmatpush1.bf16.xpose.msra.mxu0 0
    %656 = vmatprep.subr.bf16.mxu0 0
    %657 = vmatpush1.bf16.xpose.msra.mxu0 0
    %658 = vmatprep.subr.bf16.mxu0 0
    %659 = vmatpush1.bf16.xpose.msra.mxu0 0
    %660 = vmatprep.subr.bf16.mxu0 0
    %661 = vmatpush1.bf16.xpose.msra.mxu0 0
    %662 = vmatprep.subr.bf16.mxu0 0
    %663 = vmatpush1.bf16.xpose.msra.mxu0 0
    %664 = vmatprep.subr.bf16.mxu0 0
    %665 = vmatpush1.bf16.xpose.msra.mxu0 0
    %666 = vmatprep.subr.bf16.mxu0 0
    %667 = vmatpush1.bf16.xpose.msra.mxu0 0
    %668 = vmatprep.subr.bf16.mxu0 0
    %669 = vmatpush1.bf16.xpose.msra.mxu0 0
    %670 = vmatprep.subr.bf16.mxu0 0
    %671 = vmatpush1.bf16.xpose.msra.mxu0 0
    %672 = vmatprep.subr.bf16.mxu0 0
    %673 = vmatpush1.bf16.xpose.msra.mxu0 0
    %674 = vmatprep.subr.bf16.mxu0 0
    %675 = vmatpush1.bf16.xpose.msra.mxu0 0
    %676 = vmatprep.mubr.bf16.mxu0 0
    %677 = vmatmul.mubr.bf16.gmra.mrb[0].mxu0 %v639
    %v678 = vpop.f32.mrb[0].mxu0
    %v679 = vadd.f32 %v462, %v678
    %v680 = vpop.f32.mrb[0].mxu0
    %v681 = vpop.f32.mrb[0].mxu0
    %v682 = vpop.f32.mrb[0].mxu0
    %683 = vdwg.mxu0
    %685 = vrot.lane.b32.xlu0 %v443, 96
    %v686 = vpop.permute.xlu0 %685
    %v688 = vsel %vm490, %v435, 0
    %v691 = vsel %vm490, %v686, 0
    %693 = vmatprep.subr.bf16.mxu0 0
    %694 = vmatpush1.bf16.xpose.msra.mxu0 %v691
    %695 = vmatprep.subr.bf16.mxu0 0
    %696 = vmatpush1.bf16.xpose.msra.mxu0 0
    %697 = vmatprep.subr.bf16.mxu0 0
    %698 = vmatpush1.bf16.xpose.msra.mxu0 0
    %699 = vmatprep.subr.bf16.mxu0 0
    %700 = vmatpush1.bf16.xpose.msra.mxu0 0
    %701 = vmatprep.subr.bf16.mxu0 0
    %702 = vmatpush1.bf16.xpose.msra.mxu0 0
    %703 = vmatprep.subr.bf16.mxu0 0
    %704 = vmatpush1.bf16.xpose.msra.mxu0 0
    %705 = vmatprep.subr.bf16.mxu0 0
    %706 = vmatpush1.bf16.xpose.msra.mxu0 0
    %707 = vmatprep.subr.bf16.mxu0 0
    %708 = vmatpush1.bf16.xpose.msra.mxu0 0
    %709 = vmatprep.subr.bf16.mxu0 0
    %710 = vmatpush1.bf16.xpose.msra.mxu0 0
    %711 = vmatprep.subr.bf16.mxu0 0
    %712 = vmatpush1.bf16.xpose.msra.mxu0 0
    %713 = vmatprep.subr.bf16.mxu0 0
    %714 = vmatpush1.bf16.xpose.msra.mxu0 0
    %715 = vmatprep.subr.bf16.mxu0 0
    %716 = vmatpush1.bf16.xpose.msra.mxu0 0
    %717 = vmatprep.subr.bf16.mxu0 0
    %718 = vmatpush1.bf16.xpose.msra.mxu0 0
    %719 = vmatprep.subr.bf16.mxu0 0
    %720 = vmatpush1.bf16.xpose.msra.mxu0 0
    %721 = vmatprep.subr.bf16.mxu0 0
    %722 = vmatpush1.bf16.xpose.msra.mxu0 0
    %723 = vmatprep.subr.bf16.mxu0 0
    %724 = vmatpush1.bf16.xpose.msra.mxu0 0
    %725 = vmatprep.mubr.bf16.mxu0 0
    %726 = vmatmul.mubr.bf16.gmra.mrb[0].mxu0 %v688
    %v727 = vpop.f32.mrb[0].mxu0
    %v728 = vadd.f32 %v466, %v727
    %v729 = vpop.f32.mrb[0].mxu0
    %v730 = vpop.f32.mrb[0].mxu0
    %v731 = vpop.f32.mrb[0].mxu0
    %732 = vdwg.mxu0
    %734 = vrot.lane.b32.xlu0 %v444, 96
    %v735 = vpop.permute.xlu0 %734
    %v737 = vsel %vm490, %v436, 0
    %v740 = vsel %vm490, %v735, 0
    %742 = vmatprep.subr.bf16.mxu0 0
    %743 = vmatpush1.bf16.xpose.msra.mxu0 %v740
    %744 = vmatprep.subr.bf16.mxu0 0
    %745 = vmatpush1.bf16.xpose.msra.mxu0 0
    %746 = vmatprep.subr.bf16.mxu0 0
    %747 = vmatpush1.bf16.xpose.msra.mxu0 0
    %748 = vmatprep.subr.bf16.mxu0 0
    %749 = vmatpush1.bf16.xpose.msra.mxu0 0
    %750 = vmatprep.subr.bf16.mxu0 0
    %751 = vmatpush1.bf16.xpose.msra.mxu0 0
    %752 = vmatprep.subr.bf16.mxu0 0
    %753 = vmatpush1.bf16.xpose.msra.mxu0 0
    %754 = vmatprep.subr.bf16.mxu0 0
    %755 = vmatpush1.bf16.xpose.msra.mxu0 0
    %756 = vmatprep.subr.bf16.mxu0 0
    %757 = vmatpush1.bf16.xpose.msra.mxu0 0
    %758 = vmatprep.subr.bf16.mxu0 0
    %759 = vmatpush1.bf16.xpose.msra.mxu0 0
    %760 = vmatprep.subr.bf16.mxu0 0
    %761 = vmatpush1.bf16.xpose.msra.mxu0 0
    %762 = vmatprep.subr.bf16.mxu0 0
    %763 = vmatpush1.bf16.xpose.msra.mxu0 0
    %764 = vmatprep.subr.bf16.mxu0 0
    %765 = vmatpush1.bf16.xpose.msra.mxu0 0
    %766 = vmatprep.subr.bf16.mxu0 0
    %767 = vmatpush1.bf16.xpose.msra.mxu0 0
    %768 = vmatprep.subr.bf16.mxu0 0
    %769 = vmatpush1.bf16.xpose.msra.mxu0 0
    %770 = vmatprep.subr.bf16.mxu0 0
    %771 = vmatpush1.bf16.xpose.msra.mxu0 0
    %772 = vmatprep.subr.bf16.mxu0 0
    %773 = vmatpush1.bf16.xpose.msra.mxu0 0
    %774 = vmatprep.mubr.bf16.mxu0 0
    %775 = vmatmul.mubr.bf16.gmra.mrb[0].mxu0 %v737
    %v776 = vpop.f32.mrb[0].mxu0
    %v777 = vadd.f32 %v470, %v776
    %v778 = vpop.f32.mrb[0].mxu0
    %v779 = vpop.f32.mrb[0].mxu0
    %v780 = vpop.f32.mrb[0].mxu0
    %781 = vdwg.mxu0
    %783 = vrot.lane.b32.xlu0 %v445, 96
    %v784 = vpop.permute.xlu0 %783
    %v786 = vsel %vm490, %v437, 0
    %v789 = vsel %vm490, %v784, 0
    %791 = vmatprep.subr.bf16.mxu0 0
    %792 = vmatpush1.bf16.xpose.msra.mxu0 %v789
    %793 = vmatprep.subr.bf16.mxu0 0
    %794 = vmatpush1.bf16.xpose.msra.mxu0 0
    %795 = vmatprep.subr.bf16.mxu0 0
    %796 = vmatpush1.bf16.xpose.msra.mxu0 0
    %797 = vmatprep.subr.bf16.mxu0 0
    %798 = vmatpush1.bf16.xpose.msra.mxu0 0
    %799 = vmatprep.subr.bf16.mxu0 0
    %800 = vmatpush1.bf16.xpose.msra.mxu0 0
    %801 = vmatprep.subr.bf16.mxu0 0
    %802 = vmatpush1.bf16.xpose.msra.mxu0 0
    %803 = vmatprep.subr.bf16.mxu0 0
    %804 = vmatpush1.bf16.xpose.msra.mxu0 0
    %805 = vmatprep.subr.bf16.mxu0 0
    %806 = vmatpush1.bf16.xpose.msra.mxu0 0
    %807 = vmatprep.subr.bf16.mxu0 0
    %808 = vmatpush1.bf16.xpose.msra.mxu0 0
    %809 = vmatprep.subr.bf16.mxu0 0
    %810 = vmatpush1.bf16.xpose.msra.mxu0 0
    %811 = vmatprep.subr.bf16.mxu0 0
    %812 = vmatpush1.bf16.xpose.msra.mxu0 0
    %813 = vmatprep.subr.bf16.mxu0 0
    %814 = vmatpush1.bf16.xpose.msra.mxu0 0
    %815 = vmatprep.subr.bf16.mxu0 0
    %816 = vmatpush1.bf16.xpose.msra.mxu0 0
    %817 = vmatprep.subr.bf16.mxu0 0
    %818 = vmatpush1.bf16.xpose.msra.mxu0 0
    %819 = vmatprep.subr.bf16.mxu0 0
    %820 = vmatpush1.bf16.xpose.msra.mxu0 0
    %821 = vmatprep.subr.bf16.mxu0 0
    %822 = vmatpush1.bf16.xpose.msra.mxu0 0
    %823 = vmatprep.mubr.bf16.mxu0 0
    %824 = vmatmul.mubr.bf16.gmra.mrb[0].mxu0 %v786
    %v825 = vpop.f32.mrb[0].mxu0
    %v826 = vadd.f32 %v474, %v825
    %v827 = vpop.f32.mrb[0].mxu0
    %v828 = vpop.f32.mrb[0].mxu0
    %v829 = vpop.f32.mrb[0].mxu0
    %830 = vdwg.mxu0
    %832 = vrot.lane.b32.xlu0 %v446, 96
    %v833 = vpop.permute.xlu0 %832
    %v835 = vsel %vm490, %v438, 0
    %v838 = vsel %vm490, %v833, 0
    %840 = vmatprep.subr.bf16.mxu0 0
    %841 = vmatpush1.bf16.xpose.msra.mxu0 %v838
    %842 = vmatprep.subr.bf16.mxu0 0
    %843 = vmatpush1.bf16.xpose.msra.mxu0 0
    %844 = vmatprep.subr.bf16.mxu0 0
    %845 = vmatpush1.bf16.xpose.msra.mxu0 0
    %846 = vmatprep.subr.bf16.mxu0 0
    %847 = vmatpush1.bf16.xpose.msra.mxu0 0
    %848 = vmatprep.subr.bf16.mxu0 0
    %849 = vmatpush1.bf16.xpose.msra.mxu0 0
    %850 = vmatprep.subr.bf16.mxu0 0
    %851 = vmatpush1.bf16.xpose.msra.mxu0 0
    %852 = vmatprep.subr.bf16.mxu0 0
    %853 = vmatpush1.bf16.xpose.msra.mxu0 0
    %854 = vmatprep.subr.bf16.mxu0 0
    %855 = vmatpush1.bf16.xpose.msra.mxu0 0
    %856 = vmatprep.subr.bf16.mxu0 0
    %857 = vmatpush1.bf16.xpose.msra.mxu0 0
    %858 = vmatprep.subr.bf16.mxu0 0
    %859 = vmatpush1.bf16.xpose.msra.mxu0 0
    %860 = vmatprep.subr.bf16.mxu0 0
    %861 = vmatpush1.bf16.xpose.msra.mxu0 0
    %862 = vmatprep.subr.bf16.mxu0 0
    %863 = vmatpush1.bf16.xpose.msra.mxu0 0
    %864 = vmatprep.subr.bf16.mxu0 0
    %865 = vmatpush1.bf16.xpose.msra.mxu0 0
    %866 = vmatprep.subr.bf16.mxu0 0
    %867 = vmatpush1.bf16.xpose.msra.mxu0 0
    %868 = vmatprep.subr.bf16.mxu0 0
    %869 = vmatpush1.bf16.xpose.msra.mxu0 0
    %870 = vmatprep.subr.bf16.mxu0 0
    %871 = vmatpush1.bf16.xpose.msra.mxu0 0
    %872 = vmatprep.mubr.bf16.mxu0 0
    %873 = vmatmul.mubr.bf16.gmra.mrb[0].mxu0 %v835
    %v874 = vpop.f32.mrb[0].mxu0
    %v875 = vadd.f32 %v478, %v874
    %v876 = vpop.f32.mrb[0].mxu0
    %v877 = vpop.f32.mrb[0].mxu0
    %v878 = vpop.f32.mrb[0].mxu0
    %879 = vdwg.mxu0
    %v880 = vsel %vm490, %v532, -inf
    %881 = vmax.xlane.f32.xlu0 %v880
    %v882 = vpop.xlane.xlu0 %881
    %v883 = vsel %vm490, %v581, -inf
    %884 = vmax.xlane.f32.xlu0 %v883
    %v885 = vpop.xlane.xlu0 %884
    %v886 = vsel %vm490, %v630, -inf
    %887 = vmax.xlane.f32.xlu0 %v886
    %v888 = vpop.xlane.xlu0 %887
    %v889 = vsel %vm490, %v679, -inf
    %890 = vmax.xlane.f32.xlu0 %v889
    %v891 = vpop.xlane.xlu0 %890
    %v892 = vsel %vm490, %v728, -inf
    %893 = vmax.xlane.f32.xlu0 %v892
    %v894 = vpop.xlane.xlu0 %893
    %v895 = vsel %vm490, %v777, -inf
    %896 = vmax.xlane.f32.xlu0 %v895
    %v897 = vpop.xlane.xlu0 %896
    %v898 = vsel %vm490, %v826, -inf
    %899 = vmax.xlane.f32.xlu0 %v898
    %v900 = vpop.xlane.xlu0 %899
    %v901 = vsel %vm490, %v875, -inf
    %902 = vmax.xlane.f32.xlu0 %v901
    %v903 = vpop.xlane.xlu0 %902
    %v904 = vsub.f32 %v532, %v882
    %v905 = vsub.f32 %v581, %v885
    %v906 = vsub.f32 %v630, %v888
    %v907 = vsub.f32 %v679, %v891
    %v908 = vsub.f32 %v728, %v894
    %v909 = vsub.f32 %v777, %v897
    %v910 = vsub.f32 %v826, %v900
    %v911 = vsub.f32 %v875, %v903
    %v912 = vmul.f32 %v904, 1.442695
    %v913 = vpow.pop %v912
    %v914 = vmul.f32 %v905, 1.442695
    %v915 = vpow.pop %v914
    %v916 = vmul.f32 %v906, 1.442695
    %v917 = vpow.pop %v916
    %v918 = vmul.f32 %v907, 1.442695
    %v919 = vpow.pop %v918
    %v920 = vmul.f32 %v908, 1.442695
    %v921 = vpow.pop %v920
    %v922 = vmul.f32 %v909, 1.442695
    %v923 = vpow.pop %v922
    %v924 = vmul.f32 %v910, 1.442695
    %v925 = vpow.pop %v924
    %v926 = vmul.f32 %v911, 1.442695
    %v927 = vpow.pop %v926
    %v928 = vsel %vm490, %v913, 0.0
    %929 = vadd.xlane.f32.xlu0 %v928
    %v930 = vpop.xlane.xlu0 %929
    %v931 = vsel %vm490, %v915, 0.0
    %932 = vadd.xlane.f32.xlu0 %v931
    %v933 = vpop.xlane.xlu0 %932
    %v934 = vsel %vm490, %v917, 0.0
    %935 = vadd.xlane.f32.xlu0 %v934
    %v936 = vpop.xlane.xlu0 %935
    %v937 = vsel %vm490, %v919, 0.0
    %938 = vadd.xlane.f32.xlu0 %v937
    %v939 = vpop.xlane.xlu0 %938
    %v940 = vsel %vm490, %v921, 0.0
    %941 = vadd.xlane.f32.xlu0 %v940
    %v942 = vpop.xlane.xlu0 %941
    %v943 = vsel %vm490, %v923, 0.0
    %944 = vadd.xlane.f32.xlu0 %v943
    %v945 = vpop.xlane.xlu0 %944
    %v946 = vsel %vm490, %v925, 0.0
    %947 = vadd.xlane.f32.xlu0 %v946
    %v948 = vpop.xlane.xlu0 %947
    %v949 = vsel %vm490, %v927, 0.0
    %950 = vadd.xlane.f32.xlu0 %v949
    %v951 = vpop.xlane.xlu0 %950
    %v952 = vrcp.pop %v930
    %v953 = vrcp.pop %v933
    %v954 = vrcp.pop %v936
    %v955 = vrcp.pop %v939
    %v956 = vrcp.pop %v942
    %v957 = vrcp.pop %v945
    %v958 = vrcp.pop %v948
    %v959 = vrcp.pop %v951
    %v960 = vmul.f32 %v913, %v952
    %v961 = vmul.f32 %v915, %v953
    %v962 = vmul.f32 %v917, %v954
    %v963 = vmul.f32 %v919, %v955
    %v964 = vmul.f32 %v921, %v956
    %v965 = vmul.f32 %v923, %v957
    %v966 = vmul.f32 %v925, %v958
    %v967 = vmul.f32 %v927, %v959
    %v968 = vpack.c.bf16 %v960, %v960
    %v969 = vpack.c.bf16 %v961, %v961
    %v970 = vpack.c.bf16 %v962, %v962
    %v971 = vpack.c.bf16 %v963, %v963
    %v972 = vpack.c.bf16 %v964, %v964
    %v973 = vpack.c.bf16 %v965, %v965
    %v974 = vpack.c.bf16 %v966, %v966
    %v975 = vpack.c.bf16 %v967, %v967
    %976 = vrot.lane.b32.xlu0 %v439, 64
    %v977 = vpop.permute.xlu0 %976
    %v979 = vsel %vm490, %v968, 0
    %v982 = vsel %vm256, %v977, 0
    %984 = vmatprep.subr.bf16.mxu0 0
    %985 = vmatpush1.bf16.msra.mxu0 %v982
    %986 = vmatprep.subr.bf16.mxu0 0
    %987 = vmatpush1.bf16.msra.mxu0 0
    %988 = vmatprep.subr.bf16.mxu0 0
    %989 = vmatpush1.bf16.msra.mxu0 0
    %990 = vmatprep.subr.bf16.mxu0 0
    %991 = vmatpush1.bf16.msra.mxu0 0
    %992 = vmatprep.subr.bf16.mxu0 0
    %993 = vmatpush1.bf16.msra.mxu0 0
    %994 = vmatprep.subr.bf16.mxu0 0
    %995 = vmatpush1.bf16.msra.mxu0 0
    %996 = vmatprep.subr.bf16.mxu0 0
    %997 = vmatpush1.bf16.msra.mxu0 0
    %998 = vmatprep.subr.bf16.mxu0 0
    %999 = vmatpush1.bf16.msra.mxu0 0
    %1000 = vmatprep.subr.bf16.mxu0 0
    %1001 = vmatpush1.bf16.msra.mxu0 0
    %1002 = vmatprep.subr.bf16.mxu0 0
    %1003 = vmatpush1.bf16.msra.mxu0 0
    %1004 = vmatprep.subr.bf16.mxu0 0
    %1005 = vmatpush1.bf16.msra.mxu0 0
    %1006 = vmatprep.subr.bf16.mxu0 0
    %1007 = vmatpush1.bf16.msra.mxu0 0
    %1008 = vmatprep.subr.bf16.mxu0 0
    %1009 = vmatpush1.bf16.msra.mxu0 0
    %1010 = vmatprep.subr.bf16.mxu0 0
    %1011 = vmatpush1.bf16.msra.mxu0 0
    %1012 = vmatprep.subr.bf16.mxu0 0
    %1013 = vmatpush1.bf16.msra.mxu0 0
    %1014 = vmatprep.subr.bf16.mxu0 0
    %1015 = vmatpush1.bf16.msra.mxu0 0
    %1016 = vmatprep.mubr.bf16.mxu0 0
    %1017 = vmatmul.mubr.bf16.gmra.mrb[0].mxu0 %v979
    %v1018 = vpop.f32.mrb[0].mxu0
    %v1019 = vadd.f32 0.0, %v1018
    %v1020 = vpop.f32.mrb[0].mxu0
    %v1021 = vpop.f32.mrb[0].mxu0
    %v1022 = vpop.f32.mrb[0].mxu0
    %1023 = vdwg.mxu0
    %1024 = vrot.lane.b32.xlu0 %v440, 64
    %v1025 = vpop.permute.xlu0 %1024
    %v1027 = vsel %vm490, %v969, 0
    %v1030 = vsel %vm256, %v1025, 0
    %1032 = vmatprep.subr.bf16.mxu0 0
    %1033 = vmatpush1.bf16.msra.mxu0 %v1030
    %1034 = vmatprep.subr.bf16.mxu0 0
    %1035 = vmatpush1.bf16.msra.mxu0 0
    %1036 = vmatprep.subr.bf16.mxu0 0
    %1037 = vmatpush1.bf16.msra.mxu0 0
    %1038 = vmatprep.subr.bf16.mxu0 0
    %1039 = vmatpush1.bf16.msra.mxu0 0
    %1040 = vmatprep.subr.bf16.mxu0 0
    %1041 = vmatpush1.bf16.msra.mxu0 0
    %1042 = vmatprep.subr.bf16.mxu0 0
    %1043 = vmatpush1.bf16.msra.mxu0 0
    %1044 = vmatprep.subr.bf16.mxu0 0
    %1045 = vmatpush1.bf16.msra.mxu0 0
    %1046 = vmatprep.subr.bf16.mxu0 0
    %1047 = vmatpush1.bf16.msra.mxu0 0
    %1048 = vmatprep.subr.bf16.mxu0 0
    %1049 = vmatpush1.bf16.msra.mxu0 0
    %1050 = vmatprep.subr.bf16.mxu0 0
    %1051 = vmatpush1.bf16.msra.mxu0 0
    %1052 = vmatprep.subr.bf16.mxu0 0
    %1053 = vmatpush1.bf16.msra.mxu0 0
    %1054 = vmatprep.subr.bf16.mxu0 0
    %1055 = vmatpush1.bf16.msra.mxu0 0
    %1056 = vmatprep.subr.bf16.mxu0 0
    %1057 = vmatpush1.bf16.msra.mxu0 0
    %1058 = vmatprep.subr.bf16.mxu0 0
    %1059 = vmatpush1.bf16.msra.mxu0 0
    %1060 = vmatprep.subr.bf16.mxu0 0
    %1061 = vmatpush1.bf16.msra.mxu0 0
    %1062 = vmatprep.subr.bf16.mxu0 0
    %1063 = vmatpush1.bf16.msra.mxu0 0
    %1064 = vmatprep.mubr.bf16.mxu0 0
    %1065 = vmatmul.mubr.bf16.gmra.mrb[0].mxu0 %v1027
    %v1066 = vpop.f32.mrb[0].mxu0
    %v1067 = vadd.f32 0.0, %v1066
    %v1068 = vpop.f32.mrb[0].mxu0
    %v1069 = vpop.f32.mrb[0].mxu0
    %v1070 = vpop.f32.mrb[0].mxu0
    %1071 = vdwg.mxu0
    %1072 = vrot.lane.b32.xlu0 %v441, 64
    %v1073 = vpop.permute.xlu0 %1072
    %v1075 = vsel %vm490, %v970, 0
    %v1078 = vsel %vm256, %v1073, 0
    %1080 = vmatprep.subr.bf16.mxu0 0
    %1081 = vmatpush1.bf16.msra.mxu0 %v1078
    %1082 = vmatprep.subr.bf16.mxu0 0
    %1083 = vmatpush1.bf16.msra.mxu0 0
    %1084 = vmatprep.subr.bf16.mxu0 0
    %1085 = vmatpush1.bf16.msra.mxu0 0
    %1086 = vmatprep.subr.bf16.mxu0 0
    %1087 = vmatpush1.bf16.msra.mxu0 0
    %1088 = vmatprep.subr.bf16.mxu0 0
    %1089 = vmatpush1.bf16.msra.mxu0 0
    %1090 = vmatprep.subr.bf16.mxu0 0
    %1091 = vmatpush1.bf16.msra.mxu0 0
    %1092 = vmatprep.subr.bf16.mxu0 0
    %1093 = vmatpush1.bf16.msra.mxu0 0
    %1094 = vmatprep.subr.bf16.mxu0 0
    %1095 = vmatpush1.bf16.msra.mxu0 0
    %1096 = vmatprep.subr.bf16.mxu0 0
    %1097 = vmatpush1.bf16.msra.mxu0 0
    %1098 = vmatprep.subr.bf16.mxu0 0
    %1099 = vmatpush1.bf16.msra.mxu0 0
    %1100 = vmatprep.subr.bf16.mxu0 0
    %1101 = vmatpush1.bf16.msra.mxu0 0
    %1102 = vmatprep.subr.bf16.mxu0 0
    %1103 = vmatpush1.bf16.msra.mxu0 0
    %1104 = vmatprep.subr.bf16.mxu0 0
    %1105 = vmatpush1.bf16.msra.mxu0 0
    %1106 = vmatprep.subr.bf16.mxu0 0
    %1107 = vmatpush1.bf16.msra.mxu0 0
    %1108 = vmatprep.subr.bf16.mxu0 0
    %1109 = vmatpush1.bf16.msra.mxu0 0
    %1110 = vmatprep.subr.bf16.mxu0 0
    %1111 = vmatpush1.bf16.msra.mxu0 0
    %1112 = vmatprep.mubr.bf16.mxu0 0
    %1113 = vmatmul.mubr.bf16.gmra.mrb[0].mxu0 %v1075
    %v1114 = vpop.f32.mrb[0].mxu0
    %v1115 = vadd.f32 0.0, %v1114
    %v1116 = vpop.f32.mrb[0].mxu0
    %v1117 = vpop.f32.mrb[0].mxu0
    %v1118 = vpop.f32.mrb[0].mxu0
    %1119 = vdwg.mxu0
    %1120 = vrot.lane.b32.xlu0 %v442, 64
    %v1121 = vpop.permute.xlu0 %1120
    %v1123 = vsel %vm490, %v971, 0
    %v1126 = vsel %vm256, %v1121, 0
    %1128 = vmatprep.subr.bf16.mxu0 0
    %1129 = vmatpush1.bf16.msra.mxu0 %v1126
    %1130 = vmatprep.subr.bf16.mxu0 0
    %1131 = vmatpush1.bf16.msra.mxu0 0
    %1132 = vmatprep.subr.bf16.mxu0 0
    %1133 = vmatpush1.bf16.msra.mxu0 0
    %1134 = vmatprep.subr.bf16.mxu0 0
    %1135 = vmatpush1.bf16.msra.mxu0 0
    %1136 = vmatprep.subr.bf16.mxu0 0
    %1137 = vmatpush1.bf16.msra.mxu0 0
    %1138 = vmatprep.subr.bf16.mxu0 0
    %1139 = vmatpush1.bf16.msra.mxu0 0
    %1140 = vmatprep.subr.bf16.mxu0 0
    %1141 = vmatpush1.bf16.msra.mxu0 0
    %1142 = vmatprep.subr.bf16.mxu0 0
    %1143 = vmatpush1.bf16.msra.mxu0 0
    %1144 = vmatprep.subr.bf16.mxu0 0
    %1145 = vmatpush1.bf16.msra.mxu0 0
    %1146 = vmatprep.subr.bf16.mxu0 0
    %1147 = vmatpush1.bf16.msra.mxu0 0
    %1148 = vmatprep.subr.bf16.mxu0 0
    %1149 = vmatpush1.bf16.msra.mxu0 0
    %1150 = vmatprep.subr.bf16.mxu0 0
    %1151 = vmatpush1.bf16.msra.mxu0 0
    %1152 = vmatprep.subr.bf16.mxu0 0
    %1153 = vmatpush1.bf16.msra.mxu0 0
    %1154 = vmatprep.subr.bf16.mxu0 0
    %1155 = vmatpush1.bf16.msra.mxu0 0
    %1156 = vmatprep.subr.bf16.mxu0 0
    %1157 = vmatpush1.bf16.msra.mxu0 0
    %1158 = vmatprep.subr.bf16.mxu0 0
    %1159 = vmatpush1.bf16.msra.mxu0 0
    %1160 = vmatprep.mubr.bf16.mxu0 0
    %1161 = vmatmul.mubr.bf16.gmra.mrb[0].mxu0 %v1123
    %v1162 = vpop.f32.mrb[0].mxu0
    %v1163 = vadd.f32 0.0, %v1162
    %v1164 = vpop.f32.mrb[0].mxu0
    %v1165 = vpop.f32.mrb[0].mxu0
    %v1166 = vpop.f32.mrb[0].mxu0
    %1167 = vdwg.mxu0
    %1168 = vrot.lane.b32.xlu0 %v443, 64
    %v1169 = vpop.permute.xlu0 %1168
    %v1171 = vsel %vm490, %v972, 0
    %v1174 = vsel %vm256, %v1169, 0
    %1176 = vmatprep.subr.bf16.mxu0 0
    %1177 = vmatpush1.bf16.msra.mxu0 %v1174
    %1178 = vmatprep.subr.bf16.mxu0 0
    %1179 = vmatpush1.bf16.msra.mxu0 0
    %1180 = vmatprep.subr.bf16.mxu0 0
    %1181 = vmatpush1.bf16.msra.mxu0 0
    %1182 = vmatprep.subr.bf16.mxu0 0
    %1183 = vmatpush1.bf16.msra.mxu0 0
    %1184 = vmatprep.subr.bf16.mxu0 0
    %1185 = vmatpush1.bf16.msra.mxu0 0
    %1186 = vmatprep.subr.bf16.mxu0 0
    %1187 = vmatpush1.bf16.msra.mxu0 0
    %1188 = vmatprep.subr.bf16.mxu0 0
    %1189 = vmatpush1.bf16.msra.mxu0 0
    %1190 = vmatprep.subr.bf16.mxu0 0
    %1191 = vmatpush1.bf16.msra.mxu0 0
    %1192 = vmatprep.subr.bf16.mxu0 0
    %1193 = vmatpush1.bf16.msra.mxu0 0
    %1194 = vmatprep.subr.bf16.mxu0 0
    %1195 = vmatpush1.bf16.msra.mxu0 0
    %1196 = vmatprep.subr.bf16.mxu0 0
    %1197 = vmatpush1.bf16.msra.mxu0 0
    %1198 = vmatprep.subr.bf16.mxu0 0
    %1199 = vmatpush1.bf16.msra.mxu0 0
    %1200 = vmatprep.subr.bf16.mxu0 0
    %1201 = vmatpush1.bf16.msra.mxu0 0
    %1202 = vmatprep.subr.bf16.mxu0 0
    %1203 = vmatpush1.bf16.msra.mxu0 0
    %1204 = vmatprep.subr.bf16.mxu0 0
    %1205 = vmatpush1.bf16.msra.mxu0 0
    %1206 = vmatprep.subr.bf16.mxu0 0
    %1207 = vmatpush1.bf16.msra.mxu0 0
    %1208 = vmatprep.mubr.bf16.mxu0 0
    %1209 = vmatmul.mubr.bf16.gmra.mrb[0].mxu0 %v1171
    %v1210 = vpop.f32.mrb[0].mxu0
    %v1211 = vadd.f32 0.0, %v1210
    %v1212 = vpop.f32.mrb[0].mxu0
    %v1213 = vpop.f32.mrb[0].mxu0
    %v1214 = vpop.f32.mrb[0].mxu0
    %1215 = vdwg.mxu0
    %1216 = vrot.lane.b32.xlu0 %v444, 64
    %v1217 = vpop.permute.xlu0 %1216
    %v1219 = vsel %vm490, %v973, 0
    %v1222 = vsel %vm256, %v1217, 0
    %1224 = vmatprep.subr.bf16.mxu0 0
    %1225 = vmatpush1.bf16.msra.mxu0 %v1222
    %1226 = vmatprep.subr.bf16.mxu0 0
    %1227 = vmatpush1.bf16.msra.mxu0 0
    %1228 = vmatprep.subr.bf16.mxu0 0
    %1229 = vmatpush1.bf16.msra.mxu0 0
    %1230 = vmatprep.subr.bf16.mxu0 0
    %1231 = vmatpush1.bf16.msra.mxu0 0
    %1232 = vmatprep.subr.bf16.mxu0 0
    %1233 = vmatpush1.bf16.msra.mxu0 0
    %1234 = vmatprep.subr.bf16.mxu0 0
    %1235 = vmatpush1.bf16.msra.mxu0 0
    %1236 = vmatprep.subr.bf16.mxu0 0
    %1237 = vmatpush1.bf16.msra.mxu0 0
    %1238 = vmatprep.subr.bf16.mxu0 0
    %1239 = vmatpush1.bf16.msra.mxu0 0
    %1240 = vmatprep.subr.bf16.mxu0 0
    %1241 = vmatpush1.bf16.msra.mxu0 0
    %1242 = vmatprep.subr.bf16.mxu0 0
    %1243 = vmatpush1.bf16.msra.mxu0 0
    %1244 = vmatprep.subr.bf16.mxu0 0
    %1245 = vmatpush1.bf16.msra.mxu0 0
    %1246 = vmatprep.subr.bf16.mxu0 0
    %1247 = vmatpush1.bf16.msra.mxu0 0
    %1248 = vmatprep.subr.bf16.mxu0 0
    %1249 = vmatpush1.bf16.msra.mxu0 0
    %1250 = vmatprep.subr.bf16.mxu0 0
    %1251 = vmatpush1.bf16.msra.mxu0 0
    %1252 = vmatprep.subr.bf16.mxu0 0
    %1253 = vmatpush1.bf16.msra.mxu0 0
    %1254 = vmatprep.subr.bf16.mxu0 0
    %1255 = vmatpush1.bf16.msra.mxu0 0
    %1256 = vmatprep.mubr.bf16.mxu0 0
    %1257 = vmatmul.mubr.bf16.gmra.mrb[0].mxu0 %v1219
    %v1258 = vpop.f32.mrb[0].mxu0
    %v1259 = vadd.f32 0.0, %v1258
    %v1260 = vpop.f32.mrb[0].mxu0
    %v1261 = vpop.f32.mrb[0].mxu0
    %v1262 = vpop.f32.mrb[0].mxu0
    %1263 = vdwg.mxu0
    %1264 = vrot.lane.b32.xlu0 %v445, 64
    %v1265 = vpop.permute.xlu0 %1264
    %v1267 = vsel %vm490, %v974, 0
    %v1270 = vsel %vm256, %v1265, 0
    %1272 = vmatprep.subr.bf16.mxu0 0
    %1273 = vmatpush1.bf16.msra.mxu0 %v1270
    %1274 = vmatprep.subr.bf16.mxu0 0
    %1275 = vmatpush1.bf16.msra.mxu0 0
    %1276 = vmatprep.subr.bf16.mxu0 0
    %1277 = vmatpush1.bf16.msra.mxu0 0
    %1278 = vmatprep.subr.bf16.mxu0 0
    %1279 = vmatpush1.bf16.msra.mxu0 0
    %1280 = vmatprep.subr.bf16.mxu0 0
    %1281 = vmatpush1.bf16.msra.mxu0 0
    %1282 = vmatprep.subr.bf16.mxu0 0
    %1283 = vmatpush1.bf16.msra.mxu0 0
    %1284 = vmatprep.subr.bf16.mxu0 0
    %1285 = vmatpush1.bf16.msra.mxu0 0
    %1286 = vmatprep.subr.bf16.mxu0 0
    %1287 = vmatpush1.bf16.msra.mxu0 0
    %1288 = vmatprep.subr.bf16.mxu0 0
    %1289 = vmatpush1.bf16.msra.mxu0 0
    %1290 = vmatprep.subr.bf16.mxu0 0
    %1291 = vmatpush1.bf16.msra.mxu0 0
    %1292 = vmatprep.subr.bf16.mxu0 0
    %1293 = vmatpush1.bf16.msra.mxu0 0
    %1294 = vmatprep.subr.bf16.mxu0 0
    %1295 = vmatpush1.bf16.msra.mxu0 0
    %1296 = vmatprep.subr.bf16.mxu0 0
    %1297 = vmatpush1.bf16.msra.mxu0 0
    %1298 = vmatprep.subr.bf16.mxu0 0
    %1299 = vmatpush1.bf16.msra.mxu0 0
    %1300 = vmatprep.subr.bf16.mxu0 0
    %1301 = vmatpush1.bf16.msra.mxu0 0
    %1302 = vmatprep.subr.bf16.mxu0 0
    %1303 = vmatpush1.bf16.msra.mxu0 0
    %1304 = vmatprep.mubr.bf16.mxu0 0
    %1305 = vmatmul.mubr.bf16.gmra.mrb[0].mxu0 %v1267
    %v1306 = vpop.f32.mrb[0].mxu0
    %v1307 = vadd.f32 0.0, %v1306
    %v1308 = vpop.f32.mrb[0].mxu0
    %v1309 = vpop.f32.mrb[0].mxu0
    %v1310 = vpop.f32.mrb[0].mxu0
    %1311 = vdwg.mxu0
    %1312 = vrot.lane.b32.xlu0 %v446, 64
    %v1313 = vpop.permute.xlu0 %1312
    %v1315 = vsel %vm490, %v975, 0
    %v1318 = vsel %vm256, %v1313, 0
    %1320 = vmatprep.subr.bf16.mxu0 0
    %1321 = vmatpush1.bf16.msra.mxu0 %v1318
    %1322 = vmatprep.subr.bf16.mxu0 0
    %1323 = vmatpush1.bf16.msra.mxu0 0
    %1324 = vmatprep.subr.bf16.mxu0 0
    %1325 = vmatpush1.bf16.msra.mxu0 0
    %1326 = vmatprep.subr.bf16.mxu0 0
    %1327 = vmatpush1.bf16.msra.mxu0 0
    %1328 = vmatprep.subr.bf16.mxu0 0
    %1329 = vmatpush1.bf16.msra.mxu0 0
    %1330 = vmatprep.subr.bf16.mxu0 0
    %1331 = vmatpush1.bf16.msra.mxu0 0
    %1332 = vmatprep.subr.bf16.mxu0 0
    %1333 = vmatpush1.bf16.msra.mxu0 0
    %1334 = vmatprep.subr.bf16.mxu0 0
    %1335 = vmatpush1.bf16.msra.mxu0 0
    %1336 = vmatprep.subr.bf16.mxu0 0
    %1337 = vmatpush1.bf16.msra.mxu0 0
    %1338 = vmatprep.subr.bf16.mxu0 0
    %1339 = vmatpush1.bf16.msra.mxu0 0
    %1340 = vmatprep.subr.bf16.mxu0 0
    %1341 = vmatpush1.bf16.msra.mxu0 0
    %1342 = vmatprep.subr.bf16.mxu0 0
    %1343 = vmatpush1.bf16.msra.mxu0 0
    %1344 = vmatprep.subr.bf16.mxu0 0
    %1345 = vmatpush1.bf16.msra.mxu0 0
    %1346 = vmatprep.subr.bf16.mxu0 0
    %1347 = vmatpush1.bf16.msra.mxu0 0
    %1348 = vmatprep.subr.bf16.mxu0 0
    %1349 = vmatpush1.bf16.msra.mxu0 0
    %1350 = vmatprep.subr.bf16.mxu0 0
    %1351 = vmatpush1.bf16.msra.mxu0 0
    %1352 = vmatprep.mubr.bf16.mxu0 0
    %1353 = vmatmul.mubr.bf16.gmra.mrb[0].mxu0 %v1315
    %v1354 = vpop.f32.mrb[0].mxu0
    %v1355 = vadd.f32 0.0, %v1354
    %v1356 = vpop.f32.mrb[0].mxu0
    %v1357 = vpop.f32.mrb[0].mxu0
    %v1358 = vpop.f32.mrb[0].mxu0
    %1359 = vdwg.mxu0
    %1361 = vrot.lane.b32.xlu0 %v431, 120
    %v1362 = vpop.permute.xlu0 %1361
    %1363 = vrot.lane.b32.xlu0 %v439, 88
    %v1364 = vpop.permute.xlu0 %1363
    %v1366 = vsel %vm490, %v1362, 0
    %v1369 = vsel %vm490, %v1364, 0
    %1371 = vmatprep.subr.bf16.mxu0 0
    %1372 = vmatpush1.bf16.xpose.msra.mxu0 %v1369
    %1373 = vmatprep.subr.bf16.mxu0 0
    %1374 = vmatpush1.bf16.xpose.msra.mxu0 0
    %1375 = vmatprep.subr.bf16.mxu0 0
    %1376 = vmatpush1.bf16.xpose.msra.mxu0 0
    %1377 = vmatprep.subr.bf16.mxu0 0
    %1378 = vmatpush1.bf16.xpose.msra.mxu0 0
    %1379 = vmatprep.subr.bf16.mxu0 0
    %1380 = vmatpush1.bf16.xpose.msra.mxu0 0
    %1381 = vmatprep.subr.bf16.mxu0 0
    %1382 = vmatpush1.bf16.xpose.msra.mxu0 0
    %1383 = vmatprep.subr.bf16.mxu0 0
    %1384 = vmatpush1.bf16.xpose.msra.mxu0 0
    %1385 = vmatprep.subr.bf16.mxu0 0
    %1386 = vmatpush1.bf16.xpose.msra.mxu0 0
    %1387 = vmatprep.subr.bf16.mxu0 0
    %1388 = vmatpush1.bf16.xpose.msra.mxu0 0
    %1389 = vmatprep.subr.bf16.mxu0 0
    %1390 = vmatpush1.bf16.xpose.msra.mxu0 0
    %1391 = vmatprep.subr.bf16.mxu0 0
    %1392 = vmatpush1.bf16.xpose.msra.mxu0 0
    %1393 = vmatprep.subr.bf16.mxu0 0
    %1394 = vmatpush1.bf16.xpose.msra.mxu0 0
    %1395 = vmatprep.subr.bf16.mxu0 0
    %1396 = vmatpush1.bf16.xpose.msra.mxu0 0
    %1397 = vmatprep.subr.bf16.mxu0 0
    %1398 = vmatpush1.bf16.xpose.msra.mxu0 0
    %1399 = vmatprep.subr.bf16.mxu0 0
    %1400 = vmatpush1.bf16.xpose.msra.mxu0 0
    %1401 = vmatprep.subr.bf16.mxu0 0
    %1402 = vmatpush1.bf16.xpose.msra.mxu0 0
    %1403 = vmatprep.mubr.bf16.mxu0 0
    %1404 = vmatmul.mubr.bf16.gmra.mrb[0].mxu0 %v1366
    %v1405 = vpop.f32.mrb[0].mxu0
    %v1406 = vadd.f32 %v450, %v1405
    %v1407 = vpop.f32.mrb[0].mxu0
    %v1408 = vpop.f32.mrb[0].mxu0
    %v1409 = vpop.f32.mrb[0].mxu0
    %1410 = vdwg.mxu0
    %1412 = vrot.lane.b32.xlu0 %v432, 120
    %v1413 = vpop.permute.xlu0 %1412
    %1414 = vrot.lane.b32.xlu0 %v440, 88
    %v1415 = vpop.permute.xlu0 %1414
    %v1417 = vsel %vm490, %v1413, 0
    %v1420 = vsel %vm490, %v1415, 0
    %1422 = vmatprep.subr.bf16.mxu0 0
    %1423 = vmatpush1.bf16.xpose.msra.mxu0 %v1420
    %1424 = vmatprep.subr.bf16.mxu0 0
    %1425 = vmatpush1.bf16.xpose.msra.mxu0 0
    %1426 = vmatprep.subr.bf16.mxu0 0
    %1427 = vmatpush1.bf16.xpose.msra.mxu0 0
    %1428 = vmatprep.subr.bf16.mxu0 0
    %1429 = vmatpush1.bf16.xpose.msra.mxu0 0
    %1430 = vmatprep.subr.bf16.mxu0 0
    %1431 = vmatpush1.bf16.xpose.msra.mxu0 0
    %1432 = vmatprep.subr.bf16.mxu0 0
    %1433 = vmatpush1.bf16.xpose.msra.mxu0 0
    %1434 = vmatprep.subr.bf16.mxu0 0
    %1435 = vmatpush1.bf16.xpose.msra.mxu0 0
    %1436 = vmatprep.subr.bf16.mxu0 0
    %1437 = vmatpush1.bf16.xpose.msra.mxu0 0
    %1438 = vmatprep.subr.bf16.mxu0 0
    %1439 = vmatpush1.bf16.xpose.msra.mxu0 0
    %1440 = vmatprep.subr.bf16.mxu0 0
    %1441 = vmatpush1.bf16.xpose.msra.mxu0 0
    %1442 = vmatprep.subr.bf16.mxu0 0
    %1443 = vmatpush1.bf16.xpose.msra.mxu0 0
    %1444 = vmatprep.subr.bf16.mxu0 0
    %1445 = vmatpush1.bf16.xpose.msra.mxu0 0
    %1446 = vmatprep.subr.bf16.mxu0 0
    %1447 = vmatpush1.bf16.xpose.msra.mxu0 0
    %1448 = vmatprep.subr.bf16.mxu0 0
    %1449 = vmatpush1.bf16.xpose.msra.mxu0 0
    %1450 = vmatprep.subr.bf16.mxu0 0
    %1451 = vmatpush1.bf16.xpose.msra.mxu0 0
    %1452 = vmatprep.subr.bf16.mxu0 0
    %1453 = vmatpush1.bf16.xpose.msra.mxu0 0
    %1454 = vmatprep.mubr.bf16.mxu0 0
    %1455 = vmatmul.mubr.bf16.gmra.mrb[0].mxu0 %v1417
    %v1456 = vpop.f32.mrb[0].mxu0
    %v1457 = vadd.f32 %v454, %v1456
    %v1458 = vpop.f32.mrb[0].mxu0
    %v1459 = vpop.f32.mrb[0].mxu0
    %v1460 = vpop.f32.mrb[0].mxu0
    %1461 = vdwg.mxu0
    %1463 = vrot.lane.b32.xlu0 %v433, 120
    %v1464 = vpop.permute.xlu0 %1463
    %1465 = vrot.lane.b32.xlu0 %v441, 88
    %v1466 = vpop.permute.xlu0 %1465
    %v1468 = vsel %vm490, %v1464, 0
    %v1471 = vsel %vm490, %v1466, 0
    %1473 = vmatprep.subr.bf16.mxu0 0
    %1474 = vmatpush1.bf16.xpose.msra.mxu0 %v1471
    %1475 = vmatprep.subr.bf16.mxu0 0
    %1476 = vmatpush1.bf16.xpose.msra.mxu0 0
    %1477 = vmatprep.subr.bf16.mxu0 0
    %1478 = vmatpush1.bf16.xpose.msra.mxu0 0
    %1479 = vmatprep.subr.bf16.mxu0 0
    %1480 = vmatpush1.bf16.xpose.msra.mxu0 0
    %1481 = vmatprep.subr.bf16.mxu0 0
    %1482 = vmatpush1.bf16.xpose.msra.mxu0 0
    %1483 = vmatprep.subr.bf16.mxu0 0
    %1484 = vmatpush1.bf16.xpose.msra.mxu0 0
    %1485 = vmatprep.subr.bf16.mxu0 0
    %1486 = vmatpush1.bf16.xpose.msra.mxu0 0
    %1487 = vmatprep.subr.bf16.mxu0 0
    %1488 = vmatpush1.bf16.xpose.msra.mxu0 0
    %1489 = vmatprep.subr.bf16.mxu0 0
    %1490 = vmatpush1.bf16.xpose.msra.mxu0 0
    %1491 = vmatprep.subr.bf16.mxu0 0
    %1492 = vmatpush1.bf16.xpose.msra.mxu0 0
    %1493 = vmatprep.subr.bf16.mxu0 0
    %1494 = vmatpush1.bf16.xpose.msra.mxu0 0
    %1495 = vmatprep.subr.bf16.mxu0 0
    %1496 = vmatpush1.bf16.xpose.msra.mxu0 0
    %1497 = vmatprep.subr.bf16.mxu0 0
    %1498 = vmatpush1.bf16.xpose.msra.mxu0 0
    %1499 = vmatprep.subr.bf16.mxu0 0
    %1500 = vmatpush1.bf16.xpose.msra.mxu0 0
    %1501 = vmatprep.subr.bf16.mxu0 0
    %1502 = vmatpush1.bf16.xpose.msra.mxu0 0
    %1503 = vmatprep.subr.bf16.mxu0 0
    %1504 = vmatpush1.bf16.xpose.msra.mxu0 0
    %1505 = vmatprep.mubr.bf16.mxu0 0
    %1506 = vmatmul.mubr.bf16.gmra.mrb[0].mxu0 %v1468
    %v1507 = vpop.f32.mrb[0].mxu0
    %v1508 = vadd.f32 %v458, %v1507
    %v1509 = vpop.f32.mrb[0].mxu0
    %v1510 = vpop.f32.mrb[0].mxu0
    %v1511 = vpop.f32.mrb[0].mxu0
    %1512 = vdwg.mxu0
    %1514 = vrot.lane.b32.xlu0 %v434, 120
    %v1515 = vpop.permute.xlu0 %1514
    %1516 = vrot.lane.b32.xlu0 %v442, 88
    %v1517 = vpop.permute.xlu0 %1516
    %v1519 = vsel %vm490, %v1515, 0
    %v1522 = vsel %vm490, %v1517, 0
    %1524 = vmatprep.subr.bf16.mxu0 0
    %1525 = vmatpush1.bf16.xpose.msra.mxu0 %v1522
    %1526 = vmatprep.subr.bf16.mxu0 0
    %1527 = vmatpush1.bf16.xpose.msra.mxu0 0
    %1528 = vmatprep.subr.bf16.mxu0 0
    %1529 = vmatpush1.bf16.xpose.msra.mxu0 0
    %1530 = vmatprep.subr.bf16.mxu0 0
    %1531 = vmatpush1.bf16.xpose.msra.mxu0 0
    %1532 = vmatprep.subr.bf16.mxu0 0
    %1533 = vmatpush1.bf16.xpose.msra.mxu0 0
    %1534 = vmatprep.subr.bf16.mxu0 0
    %1535 = vmatpush1.bf16.xpose.msra.mxu0 0
    %1536 = vmatprep.subr.bf16.mxu0 0
    %1537 = vmatpush1.bf16.xpose.msra.mxu0 0
    %1538 = vmatprep.subr.bf16.mxu0 0
    %1539 = vmatpush1.bf16.xpose.msra.mxu0 0
    %1540 = vmatprep.subr.bf16.mxu0 0
    %1541 = vmatpush1.bf16.xpose.msra.mxu0 0
    %1542 = vmatprep.subr.bf16.mxu0 0
    %1543 = vmatpush1.bf16.xpose.msra.mxu0 0
    %1544 = vmatprep.subr.bf16.mxu0 0
    %1545 = vmatpush1.bf16.xpose.msra.mxu0 0
    %1546 = vmatprep.subr.bf16.mxu0 0
    %1547 = vmatpush1.bf16.xpose.msra.mxu0 0
    %1548 = vmatprep.subr.bf16.mxu0 0
    %1549 = vmatpush1.bf16.xpose.msra.mxu0 0
    %1550 = vmatprep.subr.bf16.mxu0 0
    %1551 = vmatpush1.bf16.xpose.msra.mxu0 0
    %1552 = vmatprep.subr.bf16.mxu0 0
    %1553 = vmatpush1.bf16.xpose.msra.mxu0 0
    %1554 = vmatprep.subr.bf16.mxu0 0
    %1555 = vmatpush1.bf16.xpose.msra.mxu0 0
    %1556 = vmatprep.mubr.bf16.mxu0 0
    %1557 = vmatmul.mubr.bf16.gmra.mrb[0].mxu0 %v1519
    %v1558 = vpop.f32.mrb[0].mxu0
    %v1559 = vadd.f32 %v462, %v1558
    %v1560 = vpop.f32.mrb[0].mxu0
    %v1561 = vpop.f32.mrb[0].mxu0
    %v1562 = vpop.f32.mrb[0].mxu0
    %1563 = vdwg.mxu0
    %1565 = vrot.lane.b32.xlu0 %v435, 120
    %v1566 = vpop.permute.xlu0 %1565
    %1567 = vrot.lane.b32.xlu0 %v443, 88
    %v1568 = vpop.permute.xlu0 %1567
    %v1570 = vsel %vm490, %v1566, 0
    %v1573 = vsel %vm490, %v1568, 0
    %1575 = vmatprep.subr.bf16.mxu0 0
    %1576 = vmatpush1.bf16.xpose.msra.mxu0 %v1573
    %1577 = vmatprep.subr.bf16.mxu0 0
    %1578 = vmatpush1.bf16.xpose.msra.mxu0 0
    %1579 = vmatprep.subr.bf16.mxu0 0
    %1580 = vmatpush1.bf16.xpose.msra.mxu0 0
    %1581 = vmatprep.subr.bf16.mxu0 0
    %1582 = vmatpush1.bf16.xpose.msra.mxu0 0
    %1583 = vmatprep.subr.bf16.mxu0 0
    %1584 = vmatpush1.bf16.xpose.msra.mxu0 0
    %1585 = vmatprep.subr.bf16.mxu0 0
    %1586 = vmatpush1.bf16.xpose.msra.mxu0 0
    %1587 = vmatprep.subr.bf16.mxu0 0
    %1588 = vmatpush1.bf16.xpose.msra.mxu0 0
    %1589 = vmatprep.subr.bf16.mxu0 0
    %1590 = vmatpush1.bf16.xpose.msra.mxu0 0
    %1591 = vmatprep.subr.bf16.mxu0 0
    %1592 = vmatpush1.bf16.xpose.msra.mxu0 0
    %1593 = vmatprep.subr.bf16.mxu0 0
    %1594 = vmatpush1.bf16.xpose.msra.mxu0 0
    %1595 = vmatprep.subr.bf16.mxu0 0
    %1596 = vmatpush1.bf16.xpose.msra.mxu0 0
    %1597 = vmatprep.subr.bf16.mxu0 0
    %1598 = vmatpush1.bf16.xpose.msra.mxu0 0
    %1599 = vmatprep.subr.bf16.mxu0 0
    %1600 = vmatpush1.bf16.xpose.msra.mxu0 0
    %1601 = vmatprep.subr.bf16.mxu0 0
    %1602 = vmatpush1.bf16.xpose.msra.mxu0 0
    %1603 = vmatprep.subr.bf16.mxu0 0
    %1604 = vmatpush1.bf16.xpose.msra.mxu0 0
    %1605 = vmatprep.subr.bf16.mxu0 0
    %1606 = vmatpush1.bf16.xpose.msra.mxu0 0
    %1607 = vmatprep.mubr.bf16.mxu0 0
    %1608 = vmatmul.mubr.bf16.gmra.mrb[0].mxu0 %v1570
    %v1609 = vpop.f32.mrb[0].mxu0
    %v1610 = vadd.f32 %v466, %v1609
    %v1611 = vpop.f32.mrb[0].mxu0
    %v1612 = vpop.f32.mrb[0].mxu0
    %v1613 = vpop.f32.mrb[0].mxu0
    %1614 = vdwg.mxu0
    %1616 = vrot.lane.b32.xlu0 %v436, 120
    %v1617 = vpop.permute.xlu0 %1616
    %1618 = vrot.lane.b32.xlu0 %v444, 88
    %v1619 = vpop.permute.xlu0 %1618
    %v1621 = vsel %vm490, %v1617, 0
    %v1624 = vsel %vm490, %v1619, 0
    %1626 = vmatprep.subr.bf16.mxu0 0
    %1627 = vmatpush1.bf16.xpose.msra.mxu0 %v1624
    %1628 = vmatprep.subr.bf16.mxu0 0
    %1629 = vmatpush1.bf16.xpose.msra.mxu0 0
    %1630 = vmatprep.subr.bf16.mxu0 0
    %1631 = vmatpush1.bf16.xpose.msra.mxu0 0
    %1632 = vmatprep.subr.bf16.mxu0 0
    %1633 = vmatpush1.bf16.xpose.msra.mxu0 0
    %1634 = vmatprep.subr.bf16.mxu0 0
    %1635 = vmatpush1.bf16.xpose.msra.mxu0 0
    %1636 = vmatprep.subr.bf16.mxu0 0
    %1637 = vmatpush1.bf16.xpose.msra.mxu0 0
    %1638 = vmatprep.subr.bf16.mxu0 0
    %1639 = vmatpush1.bf16.xpose.msra.mxu0 0
    %1640 = vmatprep.subr.bf16.mxu0 0
    %1641 = vmatpush1.bf16.xpose.msra.mxu0 0
    %1642 = vmatprep.subr.bf16.mxu0 0
    %1643 = vmatpush1.bf16.xpose.msra.mxu0 0
    %1644 = vmatprep.subr.bf16.mxu0 0
    %1645 = vmatpush1.bf16.xpose.msra.mxu0 0
    %1646 = vmatprep.subr.bf16.mxu0 0
    %1647 = vmatpush1.bf16.xpose.msra.mxu0 0
    %1648 = vmatprep.subr.bf16.mxu0 0
    %1649 = vmatpush1.bf16.xpose.msra.mxu0 0
    %1650 = vmatprep.subr.bf16.mxu0 0
    %1651 = vmatpush1.bf16.xpose.msra.mxu0 0
    %1652 = vmatprep.subr.bf16.mxu0 0
    %1653 = vmatpush1.bf16.xpose.msra.mxu0 0
    %1654 = vmatprep.subr.bf16.mxu0 0
    %1655 = vmatpush1.bf16.xpose.msra.mxu0 0
    %1656 = vmatprep.subr.bf16.mxu0 0
    %1657 = vmatpush1.bf16.xpose.msra.mxu0 0
    %1658 = vmatprep.mubr.bf16.mxu0 0
    %1659 = vmatmul.mubr.bf16.gmra.mrb[0].mxu0 %v1621
    %v1660 = vpop.f32.mrb[0].mxu0
    %v1661 = vadd.f32 %v470, %v1660
    %v1662 = vpop.f32.mrb[0].mxu0
    %v1663 = vpop.f32.mrb[0].mxu0
    %v1664 = vpop.f32.mrb[0].mxu0
    %1665 = vdwg.mxu0
    %1667 = vrot.lane.b32.xlu0 %v437, 120
    %v1668 = vpop.permute.xlu0 %1667
    %1669 = vrot.lane.b32.xlu0 %v445, 88
    %v1670 = vpop.permute.xlu0 %1669
    %v1672 = vsel %vm490, %v1668, 0
    %v1675 = vsel %vm490, %v1670, 0
    %1677 = vmatprep.subr.bf16.mxu0 0
    %1678 = vmatpush1.bf16.xpose.msra.mxu0 %v1675
    %1679 = vmatprep.subr.bf16.mxu0 0
    %1680 = vmatpush1.bf16.xpose.msra.mxu0 0
    %1681 = vmatprep.subr.bf16.mxu0 0
    %1682 = vmatpush1.bf16.xpose.msra.mxu0 0
    %1683 = vmatprep.subr.bf16.mxu0 0
    %1684 = vmatpush1.bf16.xpose.msra.mxu0 0
    %1685 = vmatprep.subr.bf16.mxu0 0
    %1686 = vmatpush1.bf16.xpose.msra.mxu0 0
    %1687 = vmatprep.subr.bf16.mxu0 0
    %1688 = vmatpush1.bf16.xpose.msra.mxu0 0
    %1689 = vmatprep.subr.bf16.mxu0 0
    %1690 = vmatpush1.bf16.xpose.msra.mxu0 0
    %1691 = vmatprep.subr.bf16.mxu0 0
    %1692 = vmatpush1.bf16.xpose.msra.mxu0 0
    %1693 = vmatprep.subr.bf16.mxu0 0
    %1694 = vmatpush1.bf16.xpose.msra.mxu0 0
    %1695 = vmatprep.subr.bf16.mxu0 0
    %1696 = vmatpush1.bf16.xpose.msra.mxu0 0
    %1697 = vmatprep.subr.bf16.mxu0 0
    %1698 = vmatpush1.bf16.xpose.msra.mxu0 0
    %1699 = vmatprep.subr.bf16.mxu0 0
    %1700 = vmatpush1.bf16.xpose.msra.mxu0 0
    %1701 = vmatprep.subr.bf16.mxu0 0
    %1702 = vmatpush1.bf16.xpose.msra.mxu0 0
    %1703 = vmatprep.subr.bf16.mxu0 0
    %1704 = vmatpush1.bf16.xpose.msra.mxu0 0
    %1705 = vmatprep.subr.bf16.mxu0 0
    %1706 = vmatpush1.bf16.xpose.msra.mxu0 0
    %1707 = vmatprep.subr.bf16.mxu0 0
    %1708 = vmatpush1.bf16.xpose.msra.mxu0 0
    %1709 = vmatprep.mubr.bf16.mxu0 0
    %1710 = vmatmul.mubr.bf16.gmra.mrb[0].mxu0 %v1672
    %v1711 = vpop.f32.mrb[0].mxu0
    %v1712 = vadd.f32 %v474, %v1711
    %v1713 = vpop.f32.mrb[0].mxu0
    %v1714 = vpop.f32.mrb[0].mxu0
    %v1715 = vpop.f32.mrb[0].mxu0
    %1716 = vdwg.mxu0
    %1718 = vrot.lane.b32.xlu0 %v438, 120
    %v1719 = vpop.permute.xlu0 %1718
    %1720 = vrot.lane.b32.xlu0 %v446, 88
    %v1721 = vpop.permute.xlu0 %1720
    %v1723 = vsel %vm490, %v1719, 0
    %v1726 = vsel %vm490, %v1721, 0
    %1728 = vmatprep.subr.bf16.mxu0 0
    %1729 = vmatpush1.bf16.xpose.msra.mxu0 %v1726
    %1730 = vmatprep.subr.bf16.mxu0 0
    %1731 = vmatpush1.bf16.xpose.msra.mxu0 0
    %1732 = vmatprep.subr.bf16.mxu0 0
    %1733 = vmatpush1.bf16.xpose.msra.mxu0 0
    %1734 = vmatprep.subr.bf16.mxu0 0
    %1735 = vmatpush1.bf16.xpose.msra.mxu0 0
    %1736 = vmatprep.subr.bf16.mxu0 0
    %1737 = vmatpush1.bf16.xpose.msra.mxu0 0
    %1738 = vmatprep.subr.bf16.mxu0 0
    %1739 = vmatpush1.bf16.xpose.msra.mxu0 0
    %1740 = vmatprep.subr.bf16.mxu0 0
    %1741 = vmatpush1.bf16.xpose.msra.mxu0 0
    %1742 = vmatprep.subr.bf16.mxu0 0
    %1743 = vmatpush1.bf16.xpose.msra.mxu0 0
    %1744 = vmatprep.subr.bf16.mxu0 0
    %1745 = vmatpush1.bf16.xpose.msra.mxu0 0
    %1746 = vmatprep.subr.bf16.mxu0 0
    %1747 = vmatpush1.bf16.xpose.msra.mxu0 0
    %1748 = vmatprep.subr.bf16.mxu0 0
    %1749 = vmatpush1.bf16.xpose.msra.mxu0 0
    %1750 = vmatprep.subr.bf16.mxu0 0
    %1751 = vmatpush1.bf16.xpose.msra.mxu0 0
    %1752 = vmatprep.subr.bf16.mxu0 0
    %1753 = vmatpush1.bf16.xpose.msra.mxu0 0
    %1754 = vmatprep.subr.bf16.mxu0 0
    %1755 = vmatpush1.bf16.xpose.msra.mxu0 0
    %1756 = vmatprep.subr.bf16.mxu0 0
    %1757 = vmatpush1.bf16.xpose.msra.mxu0 0
    %1758 = vmatprep.subr.bf16.mxu0 0
    %1759 = vmatpush1.bf16.xpose.msra.mxu0 0
    %1760 = vmatprep.mubr.bf16.mxu0 0
    %1761 = vmatmul.mubr.bf16.gmra.mrb[0].mxu0 %v1723
    %v1762 = vpop.f32.mrb[0].mxu0
    %v1763 = vadd.f32 %v478, %v1762
    %v1764 = vpop.f32.mrb[0].mxu0
    %v1765 = vpop.f32.mrb[0].mxu0
    %v1766 = vpop.f32.mrb[0].mxu0
    %1767 = vdwg.mxu0
    %v1768 = vsel %vm490, %v1406, -inf
    %1769 = vmax.xlane.f32.xlu0 %v1768
    %v1770 = vpop.xlane.xlu0 %1769
    %v1771 = vsel %vm490, %v1457, -inf
    %1772 = vmax.xlane.f32.xlu0 %v1771
    %v1773 = vpop.xlane.xlu0 %1772
    %v1774 = vsel %vm490, %v1508, -inf
    %1775 = vmax.xlane.f32.xlu0 %v1774
    %v1776 = vpop.xlane.xlu0 %1775
    %v1777 = vsel %vm490, %v1559, -inf
    %1778 = vmax.xlane.f32.xlu0 %v1777
    %v1779 = vpop.xlane.xlu0 %1778
    %v1780 = vsel %vm490, %v1610, -inf
    %1781 = vmax.xlane.f32.xlu0 %v1780
    %v1782 = vpop.xlane.xlu0 %1781
    %v1783 = vsel %vm490, %v1661, -inf
    %1784 = vmax.xlane.f32.xlu0 %v1783
    %v1785 = vpop.xlane.xlu0 %1784
    %v1786 = vsel %vm490, %v1712, -inf
    %1787 = vmax.xlane.f32.xlu0 %v1786
    %v1788 = vpop.xlane.xlu0 %1787
    %v1789 = vsel %vm490, %v1763, -inf
    %1790 = vmax.xlane.f32.xlu0 %v1789
    %v1791 = vpop.xlane.xlu0 %1790
    %v1792 = vsub.f32 %v1406, %v1770
    %v1793 = vsub.f32 %v1457, %v1773
    %v1794 = vsub.f32 %v1508, %v1776
    %v1795 = vsub.f32 %v1559, %v1779
    %v1796 = vsub.f32 %v1610, %v1782
    %v1797 = vsub.f32 %v1661, %v1785
    %v1798 = vsub.f32 %v1712, %v1788
    %v1799 = vsub.f32 %v1763, %v1791
    %v1800 = vmul.f32 %v1792, 1.442695
    %v1801 = vpow.pop %v1800
    %v1802 = vmul.f32 %v1793, 1.442695
    %v1803 = vpow.pop %v1802
    %v1804 = vmul.f32 %v1794, 1.442695
    %v1805 = vpow.pop %v1804
    %v1806 = vmul.f32 %v1795, 1.442695
    %v1807 = vpow.pop %v1806
    %v1808 = vmul.f32 %v1796, 1.442695
    %v1809 = vpow.pop %v1808
    %v1810 = vmul.f32 %v1797, 1.442695
    %v1811 = vpow.pop %v1810
    %v1812 = vmul.f32 %v1798, 1.442695
    %v1813 = vpow.pop %v1812
    %v1814 = vmul.f32 %v1799, 1.442695
    %v1815 = vpow.pop %v1814
    %v1816 = vsel %vm490, %v1801, 0.0
    %1817 = vadd.xlane.f32.xlu0 %v1816
    %v1818 = vpop.xlane.xlu0 %1817
    %v1819 = vsel %vm490, %v1803, 0.0
    %1820 = vadd.xlane.f32.xlu0 %v1819
    %v1821 = vpop.xlane.xlu0 %1820
    %v1822 = vsel %vm490, %v1805, 0.0
    %1823 = vadd.xlane.f32.xlu0 %v1822
    %v1824 = vpop.xlane.xlu0 %1823
    %v1825 = vsel %vm490, %v1807, 0.0
    %1826 = vadd.xlane.f32.xlu0 %v1825
    %v1827 = vpop.xlane.xlu0 %1826
    %v1828 = vsel %vm490, %v1809, 0.0
    %1829 = vadd.xlane.f32.xlu0 %v1828
    %v1830 = vpop.xlane.xlu0 %1829
    %v1831 = vsel %vm490, %v1811, 0.0
    %1832 = vadd.xlane.f32.xlu0 %v1831
    %v1833 = vpop.xlane.xlu0 %1832
    %v1834 = vsel %vm490, %v1813, 0.0
    %1835 = vadd.xlane.f32.xlu0 %v1834
    %v1836 = vpop.xlane.xlu0 %1835
    %v1837 = vsel %vm490, %v1815, 0.0
    %1838 = vadd.xlane.f32.xlu0 %v1837
    %v1839 = vpop.xlane.xlu0 %1838
    %v1840 = vrcp.pop %v1818
    %v1841 = vrcp.pop %v1821
    %v1842 = vrcp.pop %v1824
    %v1843 = vrcp.pop %v1827
    %v1844 = vrcp.pop %v1830
    %v1845 = vrcp.pop %v1833
    %v1846 = vrcp.pop %v1836
    %v1847 = vrcp.pop %v1839
    %v1848 = vmul.f32 %v1801, %v1840
    %v1849 = vmul.f32 %v1803, %v1841
    %v1850 = vmul.f32 %v1805, %v1842
    %v1851 = vmul.f32 %v1807, %v1843
    %v1852 = vmul.f32 %v1809, %v1844
    %v1853 = vmul.f32 %v1811, %v1845
    %v1854 = vmul.f32 %v1813, %v1846
    %v1855 = vmul.f32 %v1815, %v1847
    %v1856 = vpack.c.bf16 %v1848, %v1848
    %v1857 = vpack.c.bf16 %v1849, %v1849
    %v1858 = vpack.c.bf16 %v1850, %v1850
    %v1859 = vpack.c.bf16 %v1851, %v1851
    %v1860 = vpack.c.bf16 %v1852, %v1852
    %v1861 = vpack.c.bf16 %v1853, %v1853
    %v1862 = vpack.c.bf16 %v1854, %v1854
    %v1863 = vpack.c.bf16 %v1855, %v1855
    %1864 = vrot.lane.b32.xlu0 %v439, 56
    %v1865 = vpop.permute.xlu0 %1864
    %v1867 = vsel %vm490, %v1856, 0
    %v1870 = vsel %vm256, %v1865, 0
    %1872 = vmatprep.subr.bf16.mxu0 0
    %1873 = vmatpush1.bf16.msra.mxu0 %v1870
    %1874 = vmatprep.subr.bf16.mxu0 0
    %1875 = vmatpush1.bf16.msra.mxu0 0
    %1876 = vmatprep.subr.bf16.mxu0 0
    %1877 = vmatpush1.bf16.msra.mxu0 0
    %1878 = vmatprep.subr.bf16.mxu0 0
    %1879 = vmatpush1.bf16.msra.mxu0 0
    %1880 = vmatprep.subr.bf16.mxu0 0
    %1881 = vmatpush1.bf16.msra.mxu0 0
    %1882 = vmatprep.subr.bf16.mxu0 0
    %1883 = vmatpush1.bf16.msra.mxu0 0
    %1884 = vmatprep.subr.bf16.mxu0 0
    %1885 = vmatpush1.bf16.msra.mxu0 0
    %1886 = vmatprep.subr.bf16.mxu0 0
    %1887 = vmatpush1.bf16.msra.mxu0 0
    %1888 = vmatprep.subr.bf16.mxu0 0
    %1889 = vmatpush1.bf16.msra.mxu0 0
    %1890 = vmatprep.subr.bf16.mxu0 0
    %1891 = vmatpush1.bf16.msra.mxu0 0
    %1892 = vmatprep.subr.bf16.mxu0 0
    %1893 = vmatpush1.bf16.msra.mxu0 0
    %1894 = vmatprep.subr.bf16.mxu0 0
    %1895 = vmatpush1.bf16.msra.mxu0 0
    %1896 = vmatprep.subr.bf16.mxu0 0
    %1897 = vmatpush1.bf16.msra.mxu0 0
    %1898 = vmatprep.subr.bf16.mxu0 0
    %1899 = vmatpush1.bf16.msra.mxu0 0
    %1900 = vmatprep.subr.bf16.mxu0 0
    %1901 = vmatpush1.bf16.msra.mxu0 0
    %1902 = vmatprep.subr.bf16.mxu0 0
    %1903 = vmatpush1.bf16.msra.mxu0 0
    %1904 = vmatprep.mubr.bf16.mxu0 0
    %1905 = vmatmul.mubr.bf16.gmra.mrb[0].mxu0 %v1867
    %v1906 = vpop.f32.mrb[0].mxu0
    %v1907 = vadd.f32 0.0, %v1906
    %v1908 = vpop.f32.mrb[0].mxu0
    %v1909 = vpop.f32.mrb[0].mxu0
    %v1910 = vpop.f32.mrb[0].mxu0
    %1911 = vdwg.mxu0
    %1912 = vrot.lane.b32.xlu0 %v440, 56
    %v1913 = vpop.permute.xlu0 %1912
    %v1915 = vsel %vm490, %v1857, 0
    %v1918 = vsel %vm256, %v1913, 0
    %1920 = vmatprep.subr.bf16.mxu0 0
    %1921 = vmatpush1.bf16.msra.mxu0 %v1918
    %1922 = vmatprep.subr.bf16.mxu0 0
    %1923 = vmatpush1.bf16.msra.mxu0 0
    %1924 = vmatprep.subr.bf16.mxu0 0
    %1925 = vmatpush1.bf16.msra.mxu0 0
    %1926 = vmatprep.subr.bf16.mxu0 0
    %1927 = vmatpush1.bf16.msra.mxu0 0
    %1928 = vmatprep.subr.bf16.mxu0 0
    %1929 = vmatpush1.bf16.msra.mxu0 0
    %1930 = vmatprep.subr.bf16.mxu0 0
    %1931 = vmatpush1.bf16.msra.mxu0 0
    %1932 = vmatprep.subr.bf16.mxu0 0
    %1933 = vmatpush1.bf16.msra.mxu0 0
    %1934 = vmatprep.subr.bf16.mxu0 0
    %1935 = vmatpush1.bf16.msra.mxu0 0
    %1936 = vmatprep.subr.bf16.mxu0 0
    %1937 = vmatpush1.bf16.msra.mxu0 0
    %1938 = vmatprep.subr.bf16.mxu0 0
    %1939 = vmatpush1.bf16.msra.mxu0 0
    %1940 = vmatprep.subr.bf16.mxu0 0
    %1941 = vmatpush1.bf16.msra.mxu0 0
    %1942 = vmatprep.subr.bf16.mxu0 0
    %1943 = vmatpush1.bf16.msra.mxu0 0
    %1944 = vmatprep.subr.bf16.mxu0 0
    %1945 = vmatpush1.bf16.msra.mxu0 0
    %1946 = vmatprep.subr.bf16.mxu0 0
    %1947 = vmatpush1.bf16.msra.mxu0 0
    %1948 = vmatprep.subr.bf16.mxu0 0
    %1949 = vmatpush1.bf16.msra.mxu0 0
    %1950 = vmatprep.subr.bf16.mxu0 0
    %1951 = vmatpush1.bf16.msra.mxu0 0
    %1952 = vmatprep.mubr.bf16.mxu0 0
    %1953 = vmatmul.mubr.bf16.gmra.mrb[0].mxu0 %v1915
    %v1954 = vpop.f32.mrb[0].mxu0
    %v1955 = vadd.f32 0.0, %v1954
    %v1956 = vpop.f32.mrb[0].mxu0
    %v1957 = vpop.f32.mrb[0].mxu0
    %v1958 = vpop.f32.mrb[0].mxu0
    %1959 = vdwg.mxu0
    %1960 = vrot.lane.b32.xlu0 %v441, 56
    %v1961 = vpop.permute.xlu0 %1960
    %v1963 = vsel %vm490, %v1858, 0
    %v1966 = vsel %vm256, %v1961, 0
    %1968 = vmatprep.subr.bf16.mxu0 0
    %1969 = vmatpush1.bf16.msra.mxu0 %v1966
    %1970 = vmatprep.subr.bf16.mxu0 0
    %1971 = vmatpush1.bf16.msra.mxu0 0
    %1972 = vmatprep.subr.bf16.mxu0 0
    %1973 = vmatpush1.bf16.msra.mxu0 0
    %1974 = vmatprep.subr.bf16.mxu0 0
    %1975 = vmatpush1.bf16.msra.mxu0 0
    %1976 = vmatprep.subr.bf16.mxu0 0
    %1977 = vmatpush1.bf16.msra.mxu0 0
    %1978 = vmatprep.subr.bf16.mxu0 0
    %1979 = vmatpush1.bf16.msra.mxu0 0
    %1980 = vmatprep.subr.bf16.mxu0 0
    %1981 = vmatpush1.bf16.msra.mxu0 0
    %1982 = vmatprep.subr.bf16.mxu0 0
    %1983 = vmatpush1.bf16.msra.mxu0 0
    %1984 = vmatprep.subr.bf16.mxu0 0
    %1985 = vmatpush1.bf16.msra.mxu0 0
    %1986 = vmatprep.subr.bf16.mxu0 0
    %1987 = vmatpush1.bf16.msra.mxu0 0
    %1988 = vmatprep.subr.bf16.mxu0 0
    %1989 = vmatpush1.bf16.msra.mxu0 0
    %1990 = vmatprep.subr.bf16.mxu0 0
    %1991 = vmatpush1.bf16.msra.mxu0 0
    %1992 = vmatprep.subr.bf16.mxu0 0
    %1993 = vmatpush1.bf16.msra.mxu0 0
    %1994 = vmatprep.subr.bf16.mxu0 0
    %1995 = vmatpush1.bf16.msra.mxu0 0
    %1996 = vmatprep.subr.bf16.mxu0 0
    %1997 = vmatpush1.bf16.msra.mxu0 0
    %1998 = vmatprep.subr.bf16.mxu0 0
    %1999 = vmatpush1.bf16.msra.mxu0 0
    %2000 = vmatprep.mubr.bf16.mxu0 0
    %2001 = vmatmul.mubr.bf16.gmra.mrb[0].mxu0 %v1963
    %v2002 = vpop.f32.mrb[0].mxu0
    %v2003 = vadd.f32 0.0, %v2002
    %v2004 = vpop.f32.mrb[0].mxu0
    %v2005 = vpop.f32.mrb[0].mxu0
    %v2006 = vpop.f32.mrb[0].mxu0
    %2007 = vdwg.mxu0
    %2008 = vrot.lane.b32.xlu0 %v442, 56
    %v2009 = vpop.permute.xlu0 %2008
    %v2011 = vsel %vm490, %v1859, 0
    %v2014 = vsel %vm256, %v2009, 0
    %2016 = vmatprep.subr.bf16.mxu0 0
    %2017 = vmatpush1.bf16.msra.mxu0 %v2014
    %2018 = vmatprep.subr.bf16.mxu0 0
    %2019 = vmatpush1.bf16.msra.mxu0 0
    %2020 = vmatprep.subr.bf16.mxu0 0
    %2021 = vmatpush1.bf16.msra.mxu0 0
    %2022 = vmatprep.subr.bf16.mxu0 0
    %2023 = vmatpush1.bf16.msra.mxu0 0
    %2024 = vmatprep.subr.bf16.mxu0 0
    %2025 = vmatpush1.bf16.msra.mxu0 0
    %2026 = vmatprep.subr.bf16.mxu0 0
    %2027 = vmatpush1.bf16.msra.mxu0 0
    %2028 = vmatprep.subr.bf16.mxu0 0
    %2029 = vmatpush1.bf16.msra.mxu0 0
    %2030 = vmatprep.subr.bf16.mxu0 0
    %2031 = vmatpush1.bf16.msra.mxu0 0
    %2032 = vmatprep.subr.bf16.mxu0 0
    %2033 = vmatpush1.bf16.msra.mxu0 0
    %2034 = vmatprep.subr.bf16.mxu0 0
    %2035 = vmatpush1.bf16.msra.mxu0 0
    %2036 = vmatprep.subr.bf16.mxu0 0
    %2037 = vmatpush1.bf16.msra.mxu0 0
    %2038 = vmatprep.subr.bf16.mxu0 0
    %2039 = vmatpush1.bf16.msra.mxu0 0
    %2040 = vmatprep.subr.bf16.mxu0 0
    %2041 = vmatpush1.bf16.msra.mxu0 0
    %2042 = vmatprep.subr.bf16.mxu0 0
    %2043 = vmatpush1.bf16.msra.mxu0 0
    %2044 = vmatprep.subr.bf16.mxu0 0
    %2045 = vmatpush1.bf16.msra.mxu0 0
    %2046 = vmatprep.subr.bf16.mxu0 0
    %2047 = vmatpush1.bf16.msra.mxu0 0
    %2048 = vmatprep.mubr.bf16.mxu0 0
    %2049 = vmatmul.mubr.bf16.gmra.mrb[0].mxu0 %v2011
    %v2050 = vpop.f32.mrb[0].mxu0
    %v2051 = vadd.f32 0.0, %v2050
    %v2052 = vpop.f32.mrb[0].mxu0
    %v2053 = vpop.f32.mrb[0].mxu0
    %v2054 = vpop.f32.mrb[0].mxu0
    %2055 = vdwg.mxu0
    %2056 = vrot.lane.b32.xlu0 %v443, 56
    %v2057 = vpop.permute.xlu0 %2056
    %v2059 = vsel %vm490, %v1860, 0
    %v2062 = vsel %vm256, %v2057, 0
    %2064 = vmatprep.subr.bf16.mxu0 0
    %2065 = vmatpush1.bf16.msra.mxu0 %v2062
    %2066 = vmatprep.subr.bf16.mxu0 0
    %2067 = vmatpush1.bf16.msra.mxu0 0
    %2068 = vmatprep.subr.bf16.mxu0 0
    %2069 = vmatpush1.bf16.msra.mxu0 0
    %2070 = vmatprep.subr.bf16.mxu0 0
    %2071 = vmatpush1.bf16.msra.mxu0 0
    %2072 = vmatprep.subr.bf16.mxu0 0
    %2073 = vmatpush1.bf16.msra.mxu0 0
    %2074 = vmatprep.subr.bf16.mxu0 0
    %2075 = vmatpush1.bf16.msra.mxu0 0
    %2076 = vmatprep.subr.bf16.mxu0 0
    %2077 = vmatpush1.bf16.msra.mxu0 0
    %2078 = vmatprep.subr.bf16.mxu0 0
    %2079 = vmatpush1.bf16.msra.mxu0 0
    %2080 = vmatprep.subr.bf16.mxu0 0
    %2081 = vmatpush1.bf16.msra.mxu0 0
    %2082 = vmatprep.subr.bf16.mxu0 0
    %2083 = vmatpush1.bf16.msra.mxu0 0
    %2084 = vmatprep.subr.bf16.mxu0 0
    %2085 = vmatpush1.bf16.msra.mxu0 0
    %2086 = vmatprep.subr.bf16.mxu0 0
    %2087 = vmatpush1.bf16.msra.mxu0 0
    %2088 = vmatprep.subr.bf16.mxu0 0
    %2089 = vmatpush1.bf16.msra.mxu0 0
    %2090 = vmatprep.subr.bf16.mxu0 0
    %2091 = vmatpush1.bf16.msra.mxu0 0
    %2092 = vmatprep.subr.bf16.mxu0 0
    %2093 = vmatpush1.bf16.msra.mxu0 0
    %2094 = vmatprep.subr.bf16.mxu0 0
    %2095 = vmatpush1.bf16.msra.mxu0 0
    %2096 = vmatprep.mubr.bf16.mxu0 0
    %2097 = vmatmul.mubr.bf16.gmra.mrb[0].mxu0 %v2059
    %v2098 = vpop.f32.mrb[0].mxu0
    %v2099 = vadd.f32 0.0, %v2098
    %v2100 = vpop.f32.mrb[0].mxu0
    %v2101 = vpop.f32.mrb[0].mxu0
    %v2102 = vpop.f32.mrb[0].mxu0
    %2103 = vdwg.mxu0
    %2104 = vrot.lane.b32.xlu0 %v444, 56
    %v2105 = vpop.permute.xlu0 %2104
    %v2107 = vsel %vm490, %v1861, 0
    %v2110 = vsel %vm256, %v2105, 0
    %2112 = vmatprep.subr.bf16.mxu0 0
    %2113 = vmatpush1.bf16.msra.mxu0 %v2110
    %2114 = vmatprep.subr.bf16.mxu0 0
    %2115 = vmatpush1.bf16.msra.mxu0 0
    %2116 = vmatprep.subr.bf16.mxu0 0
    %2117 = vmatpush1.bf16.msra.mxu0 0
    %2118 = vmatprep.subr.bf16.mxu0 0
    %2119 = vmatpush1.bf16.msra.mxu0 0
    %2120 = vmatprep.subr.bf16.mxu0 0
    %2121 = vmatpush1.bf16.msra.mxu0 0
    %2122 = vmatprep.subr.bf16.mxu0 0
    %2123 = vmatpush1.bf16.msra.mxu0 0
    %2124 = vmatprep.subr.bf16.mxu0 0
    %2125 = vmatpush1.bf16.msra.mxu0 0
    %2126 = vmatprep.subr.bf16.mxu0 0
    %2127 = vmatpush1.bf16.msra.mxu0 0
    %2128 = vmatprep.subr.bf16.mxu0 0
    %2129 = vmatpush1.bf16.msra.mxu0 0
    %2130 = vmatprep.subr.bf16.mxu0 0
    %2131 = vmatpush1.bf16.msra.mxu0 0
    %2132 = vmatprep.subr.bf16.mxu0 0
    %2133 = vmatpush1.bf16.msra.mxu0 0
    %2134 = vmatprep.subr.bf16.mxu0 0
    %2135 = vmatpush1.bf16.msra.mxu0 0
    %2136 = vmatprep.subr.bf16.mxu0 0
    %2137 = vmatpush1.bf16.msra.mxu0 0
    %2138 = vmatprep.subr.bf16.mxu0 0
    %2139 = vmatpush1.bf16.msra.mxu0 0
    %2140 = vmatprep.subr.bf16.mxu0 0
    %2141 = vmatpush1.bf16.msra.mxu0 0
    %2142 = vmatprep.subr.bf16.mxu0 0
    %2143 = vmatpush1.bf16.msra.mxu0 0
    %2144 = vmatprep.mubr.bf16.mxu0 0
    %2145 = vmatmul.mubr.bf16.gmra.mrb[0].mxu0 %v2107
    %v2146 = vpop.f32.mrb[0].mxu0
    %v2147 = vadd.f32 0.0, %v2146
    %v2148 = vpop.f32.mrb[0].mxu0
    %v2149 = vpop.f32.mrb[0].mxu0
    %v2150 = vpop.f32.mrb[0].mxu0
    %2151 = vdwg.mxu0
    %2152 = vrot.lane.b32.xlu0 %v445, 56
    %v2153 = vpop.permute.xlu0 %2152
    %v2155 = vsel %vm490, %v1862, 0
    %v2158 = vsel %vm256, %v2153, 0
    %2160 = vmatprep.subr.bf16.mxu0 0
    %2161 = vmatpush1.bf16.msra.mxu0 %v2158
    %2162 = vmatprep.subr.bf16.mxu0 0
    %2163 = vmatpush1.bf16.msra.mxu0 0
    %2164 = vmatprep.subr.bf16.mxu0 0
    %2165 = vmatpush1.bf16.msra.mxu0 0
    %2166 = vmatprep.subr.bf16.mxu0 0
    %2167 = vmatpush1.bf16.msra.mxu0 0
    %2168 = vmatprep.subr.bf16.mxu0 0
    %2169 = vmatpush1.bf16.msra.mxu0 0
    %2170 = vmatprep.subr.bf16.mxu0 0
    %2171 = vmatpush1.bf16.msra.mxu0 0
    %2172 = vmatprep.subr.bf16.mxu0 0
    %2173 = vmatpush1.bf16.msra.mxu0 0
    %2174 = vmatprep.subr.bf16.mxu0 0
    %2175 = vmatpush1.bf16.msra.mxu0 0
    %2176 = vmatprep.subr.bf16.mxu0 0
    %2177 = vmatpush1.bf16.msra.mxu0 0
    %2178 = vmatprep.subr.bf16.mxu0 0
    %2179 = vmatpush1.bf16.msra.mxu0 0
    %2180 = vmatprep.subr.bf16.mxu0 0
    %2181 = vmatpush1.bf16.msra.mxu0 0
    %2182 = vmatprep.subr.bf16.mxu0 0
    %2183 = vmatpush1.bf16.msra.mxu0 0
    %2184 = vmatprep.subr.bf16.mxu0 0
    %2185 = vmatpush1.bf16.msra.mxu0 0
    %2186 = vmatprep.subr.bf16.mxu0 0
    %2187 = vmatpush1.bf16.msra.mxu0 0
    %2188 = vmatprep.subr.bf16.mxu0 0
    %2189 = vmatpush1.bf16.msra.mxu0 0
    %2190 = vmatprep.subr.bf16.mxu0 0
    %2191 = vmatpush1.bf16.msra.mxu0 0
    %2192 = vmatprep.mubr.bf16.mxu0 0
    %2193 = vmatmul.mubr.bf16.gmra.mrb[0].mxu0 %v2155
    %v2194 = vpop.f32.mrb[0].mxu0
    %v2195 = vadd.f32 0.0, %v2194
    %v2196 = vpop.f32.mrb[0].mxu0
    %v2197 = vpop.f32.mrb[0].mxu0
    %v2198 = vpop.f32.mrb[0].mxu0
    %2199 = vdwg.mxu0
    %2200 = vrot.lane.b32.xlu0 %v446, 56
    %v2201 = vpop.permute.xlu0 %2200
    %v2203 = vsel %vm490, %v1863, 0
    %v2206 = vsel %vm256, %v2201, 0
    %2208 = vmatprep.subr.bf16.mxu0 0
    %2209 = vmatpush1.bf16.msra.mxu0 %v2206
    %2210 = vmatprep.subr.bf16.mxu0 0
    %2211 = vmatpush1.bf16.msra.mxu0 0
    %2212 = vmatprep.subr.bf16.mxu0 0
    %2213 = vmatpush1.bf16.msra.mxu0 0
    %2214 = vmatprep.subr.bf16.mxu0 0
    %2215 = vmatpush1.bf16.msra.mxu0 0
    %2216 = vmatprep.subr.bf16.mxu0 0
    %2217 = vmatpush1.bf16.msra.mxu0 0
    %2218 = vmatprep.subr.bf16.mxu0 0
    %2219 = vmatpush1.bf16.msra.mxu0 0
    %2220 = vmatprep.subr.bf16.mxu0 0
    %2221 = vmatpush1.bf16.msra.mxu0 0
    %2222 = vmatprep.subr.bf16.mxu0 0
    %2223 = vmatpush1.bf16.msra.mxu0 0
    %2224 = vmatprep.subr.bf16.mxu0 0
    %2225 = vmatpush1.bf16.msra.mxu0 0
    %2226 = vmatprep.subr.bf16.mxu0 0
    %2227 = vmatpush1.bf16.msra.mxu0 0
    %2228 = vmatprep.subr.bf16.mxu0 0
    %2229 = vmatpush1.bf16.msra.mxu0 0
    %2230 = vmatprep.subr.bf16.mxu0 0
    %2231 = vmatpush1.bf16.msra.mxu0 0
    %2232 = vmatprep.subr.bf16.mxu0 0
    %2233 = vmatpush1.bf16.msra.mxu0 0
    %2234 = vmatprep.subr.bf16.mxu0 0
    %2235 = vmatpush1.bf16.msra.mxu0 0
    %2236 = vmatprep.subr.bf16.mxu0 0
    %2237 = vmatpush1.bf16.msra.mxu0 0
    %2238 = vmatprep.subr.bf16.mxu0 0
    %2239 = vmatpush1.bf16.msra.mxu0 0
    %2240 = vmatprep.mubr.bf16.mxu0 0
    %2241 = vmatmul.mubr.bf16.gmra.mrb[0].mxu0 %v2203
    %v2242 = vpop.f32.mrb[0].mxu0
    %v2243 = vadd.f32 0.0, %v2242
    %v2244 = vpop.f32.mrb[0].mxu0
    %v2245 = vpop.f32.mrb[0].mxu0
    %v2246 = vpop.f32.mrb[0].mxu0
    %2247 = vdwg.mxu0
    %2248 = vrot.lane.b32.xlu0 %v431, 112
    %v2249 = vpop.permute.xlu0 %2248
    %2250 = vrot.lane.b32.xlu0 %v439, 80
    %v2251 = vpop.permute.xlu0 %2250
    %v2253 = vsel %vm490, %v2249, 0
    %v2256 = vsel %vm490, %v2251, 0
    %2258 = vmatprep.subr.bf16.mxu0 0
    %2259 = vmatpush1.bf16.xpose.msra.mxu0 %v2256
    %2260 = vmatprep.subr.bf16.mxu0 0
    %2261 = vmatpush1.bf16.xpose.msra.mxu0 0
    %2262 = vmatprep.subr.bf16.mxu0 0
    %2263 = vmatpush1.bf16.xpose.msra.mxu0 0
    %2264 = vmatprep.subr.bf16.mxu0 0
    %2265 = vmatpush1.bf16.xpose.msra.mxu0 0
    %2266 = vmatprep.subr.bf16.mxu0 0
    %2267 = vmatpush1.bf16.xpose.msra.mxu0 0
    %2268 = vmatprep.subr.bf16.mxu0 0
    %2269 = vmatpush1.bf16.xpose.msra.mxu0 0
    %2270 = vmatprep.subr.bf16.mxu0 0
    %2271 = vmatpush1.bf16.xpose.msra.mxu0 0
    %2272 = vmatprep.subr.bf16.mxu0 0
    %2273 = vmatpush1.bf16.xpose.msra.mxu0 0
    %2274 = vmatprep.subr.bf16.mxu0 0
    %2275 = vmatpush1.bf16.xpose.msra.mxu0 0
    %2276 = vmatprep.subr.bf16.mxu0 0
    %2277 = vmatpush1.bf16.xpose.msra.mxu0 0
    %2278 = vmatprep.subr.bf16.mxu0 0
    %2279 = vmatpush1.bf16.xpose.msra.mxu0 0
    %2280 = vmatprep.subr.bf16.mxu0 0
    %2281 = vmatpush1.bf16.xpose.msra.mxu0 0
    %2282 = vmatprep.subr.bf16.mxu0 0
    %2283 = vmatpush1.bf16.xpose.msra.mxu0 0
    %2284 = vmatprep.subr.bf16.mxu0 0
    %2285 = vmatpush1.bf16.xpose.msra.mxu0 0
    %2286 = vmatprep.subr.bf16.mxu0 0
    %2287 = vmatpush1.bf16.xpose.msra.mxu0 0
    %2288 = vmatprep.subr.bf16.mxu0 0
    %2289 = vmatpush1.bf16.xpose.msra.mxu0 0
    %2290 = vmatprep.mubr.bf16.mxu0 0
    %2291 = vmatmul.mubr.bf16.gmra.mrb[0].mxu0 %v2253
    %v2292 = vpop.f32.mrb[0].mxu0
    %v2293 = vadd.f32 %v450, %v2292
    %v2294 = vpop.f32.mrb[0].mxu0
    %v2295 = vpop.f32.mrb[0].mxu0
    %v2296 = vpop.f32.mrb[0].mxu0
    %2297 = vdwg.mxu0
    %2298 = vrot.lane.b32.xlu0 %v432, 112
    %v2299 = vpop.permute.xlu0 %2298
    %2300 = vrot.lane.b32.xlu0 %v440, 80
    %v2301 = vpop.permute.xlu0 %2300
    %v2303 = vsel %vm490, %v2299, 0
    %v2306 = vsel %vm490, %v2301, 0
    %2308 = vmatprep.subr.bf16.mxu0 0
    %2309 = vmatpush1.bf16.xpose.msra.mxu0 %v2306
    %2310 = vmatprep.subr.bf16.mxu0 0
    %2311 = vmatpush1.bf16.xpose.msra.mxu0 0
    %2312 = vmatprep.subr.bf16.mxu0 0
    %2313 = vmatpush1.bf16.xpose.msra.mxu0 0
    %2314 = vmatprep.subr.bf16.mxu0 0
    %2315 = vmatpush1.bf16.xpose.msra.mxu0 0
    %2316 = vmatprep.subr.bf16.mxu0 0
    %2317 = vmatpush1.bf16.xpose.msra.mxu0 0
    %2318 = vmatprep.subr.bf16.mxu0 0
    %2319 = vmatpush1.bf16.xpose.msra.mxu0 0
    %2320 = vmatprep.subr.bf16.mxu0 0
    %2321 = vmatpush1.bf16.xpose.msra.mxu0 0
    %2322 = vmatprep.subr.bf16.mxu0 0
    %2323 = vmatpush1.bf16.xpose.msra.mxu0 0
    %2324 = vmatprep.subr.bf16.mxu0 0
    %2325 = vmatpush1.bf16.xpose.msra.mxu0 0
    %2326 = vmatprep.subr.bf16.mxu0 0
    %2327 = vmatpush1.bf16.xpose.msra.mxu0 0
    %2328 = vmatprep.subr.bf16.mxu0 0
    %2329 = vmatpush1.bf16.xpose.msra.mxu0 0
    %2330 = vmatprep.subr.bf16.mxu0 0
    %2331 = vmatpush1.bf16.xpose.msra.mxu0 0
    %2332 = vmatprep.subr.bf16.mxu0 0
    %2333 = vmatpush1.bf16.xpose.msra.mxu0 0
    %2334 = vmatprep.subr.bf16.mxu0 0
    %2335 = vmatpush1.bf16.xpose.msra.mxu0 0
    %2336 = vmatprep.subr.bf16.mxu0 0
    %2337 = vmatpush1.bf16.xpose.msra.mxu0 0
    %2338 = vmatprep.subr.bf16.mxu0 0
    %2339 = vmatpush1.bf16.xpose.msra.mxu0 0
    %2340 = vmatprep.mubr.bf16.mxu0 0
    %2341 = vmatmul.mubr.bf16.gmra.mrb[0].mxu0 %v2303
    %v2342 = vpop.f32.mrb[0].mxu0
    %v2343 = vadd.f32 %v454, %v2342
    %v2344 = vpop.f32.mrb[0].mxu0
    %v2345 = vpop.f32.mrb[0].mxu0
    %v2346 = vpop.f32.mrb[0].mxu0
    %2347 = vdwg.mxu0
    %2348 = vrot.lane.b32.xlu0 %v433, 112
    %v2349 = vpop.permute.xlu0 %2348
    %2350 = vrot.lane.b32.xlu0 %v441, 80
    %v2351 = vpop.permute.xlu0 %2350
    %v2353 = vsel %vm490, %v2349, 0
    %v2356 = vsel %vm490, %v2351, 0
    %2358 = vmatprep.subr.bf16.mxu0 0
    %2359 = vmatpush1.bf16.xpose.msra.mxu0 %v2356
    %2360 = vmatprep.subr.bf16.mxu0 0
    %2361 = vmatpush1.bf16.xpose.msra.mxu0 0
    %2362 = vmatprep.subr.bf16.mxu0 0
    %2363 = vmatpush1.bf16.xpose.msra.mxu0 0
    %2364 = vmatprep.subr.bf16.mxu0 0
    %2365 = vmatpush1.bf16.xpose.msra.mxu0 0
    %2366 = vmatprep.subr.bf16.mxu0 0
    %2367 = vmatpush1.bf16.xpose.msra.mxu0 0
    %2368 = vmatprep.subr.bf16.mxu0 0
    %2369 = vmatpush1.bf16.xpose.msra.mxu0 0
    %2370 = vmatprep.subr.bf16.mxu0 0
    %2371 = vmatpush1.bf16.xpose.msra.mxu0 0
    %2372 = vmatprep.subr.bf16.mxu0 0
    %2373 = vmatpush1.bf16.xpose.msra.mxu0 0
    %2374 = vmatprep.subr.bf16.mxu0 0
    %2375 = vmatpush1.bf16.xpose.msra.mxu0 0
    %2376 = vmatprep.subr.bf16.mxu0 0
    %2377 = vmatpush1.bf16.xpose.msra.mxu0 0
    %2378 = vmatprep.subr.bf16.mxu0 0
    %2379 = vmatpush1.bf16.xpose.msra.mxu0 0
    %2380 = vmatprep.subr.bf16.mxu0 0
    %2381 = vmatpush1.bf16.xpose.msra.mxu0 0
    %2382 = vmatprep.subr.bf16.mxu0 0
    %2383 = vmatpush1.bf16.xpose.msra.mxu0 0
    %2384 = vmatprep.subr.bf16.mxu0 0
    %2385 = vmatpush1.bf16.xpose.msra.mxu0 0
    %2386 = vmatprep.subr.bf16.mxu0 0
    %2387 = vmatpush1.bf16.xpose.msra.mxu0 0
    %2388 = vmatprep.subr.bf16.mxu0 0
    %2389 = vmatpush1.bf16.xpose.msra.mxu0 0
    %2390 = vmatprep.mubr.bf16.mxu0 0
    %2391 = vmatmul.mubr.bf16.gmra.mrb[0].mxu0 %v2353
    %v2392 = vpop.f32.mrb[0].mxu0
    %v2393 = vadd.f32 %v458, %v2392
    %v2394 = vpop.f32.mrb[0].mxu0
    %v2395 = vpop.f32.mrb[0].mxu0
    %v2396 = vpop.f32.mrb[0].mxu0
    %2397 = vdwg.mxu0
    %2398 = vrot.lane.b32.xlu0 %v434, 112
    %v2399 = vpop.permute.xlu0 %2398
    %2400 = vrot.lane.b32.xlu0 %v442, 80
    %v2401 = vpop.permute.xlu0 %2400
    %v2403 = vsel %vm490, %v2399, 0
    %v2406 = vsel %vm490, %v2401, 0
    %2408 = vmatprep.subr.bf16.mxu0 0
    %2409 = vmatpush1.bf16.xpose.msra.mxu0 %v2406
    %2410 = vmatprep.subr.bf16.mxu0 0
    %2411 = vmatpush1.bf16.xpose.msra.mxu0 0
    %2412 = vmatprep.subr.bf16.mxu0 0
    %2413 = vmatpush1.bf16.xpose.msra.mxu0 0
    %2414 = vmatprep.subr.bf16.mxu0 0
    %2415 = vmatpush1.bf16.xpose.msra.mxu0 0
    %2416 = vmatprep.subr.bf16.mxu0 0
    %2417 = vmatpush1.bf16.xpose.msra.mxu0 0
    %2418 = vmatprep.subr.bf16.mxu0 0
    %2419 = vmatpush1.bf16.xpose.msra.mxu0 0
    %2420 = vmatprep.subr.bf16.mxu0 0
    %2421 = vmatpush1.bf16.xpose.msra.mxu0 0
    %2422 = vmatprep.subr.bf16.mxu0 0
    %2423 = vmatpush1.bf16.xpose.msra.mxu0 0
    %2424 = vmatprep.subr.bf16.mxu0 0
    %2425 = vmatpush1.bf16.xpose.msra.mxu0 0
    %2426 = vmatprep.subr.bf16.mxu0 0
    %2427 = vmatpush1.bf16.xpose.msra.mxu0 0
    %2428 = vmatprep.subr.bf16.mxu0 0
    %2429 = vmatpush1.bf16.xpose.msra.mxu0 0
    %2430 = vmatprep.subr.bf16.mxu0 0
    %2431 = vmatpush1.bf16.xpose.msra.mxu0 0
    %2432 = vmatprep.subr.bf16.mxu0 0
    %2433 = vmatpush1.bf16.xpose.msra.mxu0 0
    %2434 = vmatprep.subr.bf16.mxu0 0
    %2435 = vmatpush1.bf16.xpose.msra.mxu0 0
    %2436 = vmatprep.subr.bf16.mxu0 0
    %2437 = vmatpush1.bf16.xpose.msra.mxu0 0
    %2438 = vmatprep.subr.bf16.mxu0 0
    %2439 = vmatpush1.bf16.xpose.msra.mxu0 0
    %2440 = vmatprep.mubr.bf16.mxu0 0
    %2441 = vmatmul.mubr.bf16.gmra.mrb[0].mxu0 %v2403
    %v2442 = vpop.f32.mrb[0].mxu0
    %v2443 = vadd.f32 %v462, %v2442
    %v2444 = vpop.f32.mrb[0].mxu0
    %v2445 = vpop.f32.mrb[0].mxu0
    %v2446 = vpop.f32.mrb[0].mxu0
    %2447 = vdwg.mxu0
    %2448 = vrot.lane.b32.xlu0 %v435, 112
    %v2449 = vpop.permute.xlu0 %2448
    %2450 = vrot.lane.b32.xlu0 %v443, 80
    %v2451 = vpop.permute.xlu0 %2450
    %v2453 = vsel %vm490, %v2449, 0
    %v2456 = vsel %vm490, %v2451, 0
    %2458 = vmatprep.subr.bf16.mxu0 0
    %2459 = vmatpush1.bf16.xpose.msra.mxu0 %v2456
    %2460 = vmatprep.subr.bf16.mxu0 0
    %2461 = vmatpush1.bf16.xpose.msra.mxu0 0
    %2462 = vmatprep.subr.bf16.mxu0 0
    %2463 = vmatpush1.bf16.xpose.msra.mxu0 0
    %2464 = vmatprep.subr.bf16.mxu0 0
    %2465 = vmatpush1.bf16.xpose.msra.mxu0 0
    %2466 = vmatprep.subr.bf16.mxu0 0
    %2467 = vmatpush1.bf16.xpose.msra.mxu0 0
    %2468 = vmatprep.subr.bf16.mxu0 0
    %2469 = vmatpush1.bf16.xpose.msra.mxu0 0
    %2470 = vmatprep.subr.bf16.mxu0 0
    %2471 = vmatpush1.bf16.xpose.msra.mxu0 0
    %2472 = vmatprep.subr.bf16.mxu0 0
    %2473 = vmatpush1.bf16.xpose.msra.mxu0 0
    %2474 = vmatprep.subr.bf16.mxu0 0
    %2475 = vmatpush1.bf16.xpose.msra.mxu0 0
    %2476 = vmatprep.subr.bf16.mxu0 0
    %2477 = vmatpush1.bf16.xpose.msra.mxu0 0
    %2478 = vmatprep.subr.bf16.mxu0 0
    %2479 = vmatpush1.bf16.xpose.msra.mxu0 0
    %2480 = vmatprep.subr.bf16.mxu0 0
    %2481 = vmatpush1.bf16.xpose.msra.mxu0 0
    %2482 = vmatprep.subr.bf16.mxu0 0
    %2483 = vmatpush1.bf16.xpose.msra.mxu0 0
    %2484 = vmatprep.subr.bf16.mxu0 0
    %2485 = vmatpush1.bf16.xpose.msra.mxu0 0
    %2486 = vmatprep.subr.bf16.mxu0 0
    %2487 = vmatpush1.bf16.xpose.msra.mxu0 0
    %2488 = vmatprep.subr.bf16.mxu0 0
    %2489 = vmatpush1.bf16.xpose.msra.mxu0 0
    %2490 = vmatprep.mubr.bf16.mxu0 0
    %2491 = vmatmul.mubr.bf16.gmra.mrb[0].mxu0 %v2453
    %v2492 = vpop.f32.mrb[0].mxu0
    %v2493 = vadd.f32 %v466, %v2492
    %v2494 = vpop.f32.mrb[0].mxu0
    %v2495 = vpop.f32.mrb[0].mxu0
    %v2496 = vpop.f32.mrb[0].mxu0
    %2497 = vdwg.mxu0
    %2498 = vrot.lane.b32.xlu0 %v436, 112
    %v2499 = vpop.permute.xlu0 %2498
    %2500 = vrot.lane.b32.xlu0 %v444, 80
    %v2501 = vpop.permute.xlu0 %2500
    %v2503 = vsel %vm490, %v2499, 0
    %v2506 = vsel %vm490, %v2501, 0
    %2508 = vmatprep.subr.bf16.mxu0 0
    %2509 = vmatpush1.bf16.xpose.msra.mxu0 %v2506
    %2510 = vmatprep.subr.bf16.mxu0 0
    %2511 = vmatpush1.bf16.xpose.msra.mxu0 0
    %2512 = vmatprep.subr.bf16.mxu0 0
    %2513 = vmatpush1.bf16.xpose.msra.mxu0 0
    %2514 = vmatprep.subr.bf16.mxu0 0
    %2515 = vmatpush1.bf16.xpose.msra.mxu0 0
    %2516 = vmatprep.subr.bf16.mxu0 0
    %2517 = vmatpush1.bf16.xpose.msra.mxu0 0
    %2518 = vmatprep.subr.bf16.mxu0 0
    %2519 = vmatpush1.bf16.xpose.msra.mxu0 0
    %2520 = vmatprep.subr.bf16.mxu0 0
    %2521 = vmatpush1.bf16.xpose.msra.mxu0 0
    %2522 = vmatprep.subr.bf16.mxu0 0
    %2523 = vmatpush1.bf16.xpose.msra.mxu0 0
    %2524 = vmatprep.subr.bf16.mxu0 0
    %2525 = vmatpush1.bf16.xpose.msra.mxu0 0
    %2526 = vmatprep.subr.bf16.mxu0 0
    %2527 = vmatpush1.bf16.xpose.msra.mxu0 0
    %2528 = vmatprep.subr.bf16.mxu0 0
    %2529 = vmatpush1.bf16.xpose.msra.mxu0 0
    %2530 = vmatprep.subr.bf16.mxu0 0
    %2531 = vmatpush1.bf16.xpose.msra.mxu0 0
    %2532 = vmatprep.subr.bf16.mxu0 0
    %2533 = vmatpush1.bf16.xpose.msra.mxu0 0
    %2534 = vmatprep.subr.bf16.mxu0 0
    %2535 = vmatpush1.bf16.xpose.msra.mxu0 0
    %2536 = vmatprep.subr.bf16.mxu0 0
    %2537 = vmatpush1.bf16.xpose.msra.mxu0 0
    %2538 = vmatprep.subr.bf16.mxu0 0
    %2539 = vmatpush1.bf16.xpose.msra.mxu0 0
    %2540 = vmatprep.mubr.bf16.mxu0 0
    %2541 = vmatmul.mubr.bf16.gmra.mrb[0].mxu0 %v2503
    %v2542 = vpop.f32.mrb[0].mxu0
    %v2543 = vadd.f32 %v470, %v2542
    %v2544 = vpop.f32.mrb[0].mxu0
    %v2545 = vpop.f32.mrb[0].mxu0
    %v2546 = vpop.f32.mrb[0].mxu0
    %2547 = vdwg.mxu0
    %2548 = vrot.lane.b32.xlu0 %v437, 112
    %v2549 = vpop.permute.xlu0 %2548
    %2550 = vrot.lane.b32.xlu0 %v445, 80
    %v2551 = vpop.permute.xlu0 %2550
    %v2553 = vsel %vm490, %v2549, 0
    %v2556 = vsel %vm490, %v2551, 0
    %2558 = vmatprep.subr.bf16.mxu0 0
    %2559 = vmatpush1.bf16.xpose.msra.mxu0 %v2556
    %2560 = vmatprep.subr.bf16.mxu0 0
    %2561 = vmatpush1.bf16.xpose.msra.mxu0 0
    %2562 = vmatprep.subr.bf16.mxu0 0
    %2563 = vmatpush1.bf16.xpose.msra.mxu0 0
    %2564 = vmatprep.subr.bf16.mxu0 0
    %2565 = vmatpush1.bf16.xpose.msra.mxu0 0
    %2566 = vmatprep.subr.bf16.mxu0 0
    %2567 = vmatpush1.bf16.xpose.msra.mxu0 0
    %2568 = vmatprep.subr.bf16.mxu0 0
    %2569 = vmatpush1.bf16.xpose.msra.mxu0 0
    %2570 = vmatprep.subr.bf16.mxu0 0
    %2571 = vmatpush1.bf16.xpose.msra.mxu0 0
    %2572 = vmatprep.subr.bf16.mxu0 0
    %2573 = vmatpush1.bf16.xpose.msra.mxu0 0
    %2574 = vmatprep.subr.bf16.mxu0 0
    %2575 = vmatpush1.bf16.xpose.msra.mxu0 0
    %2576 = vmatprep.subr.bf16.mxu0 0
    %2577 = vmatpush1.bf16.xpose.msra.mxu0 0
    %2578 = vmatprep.subr.bf16.mxu0 0
    %2579 = vmatpush1.bf16.xpose.msra.mxu0 0
    %2580 = vmatprep.subr.bf16.mxu0 0
    %2581 = vmatpush1.bf16.xpose.msra.mxu0 0
    %2582 = vmatprep.subr.bf16.mxu0 0
    %2583 = vmatpush1.bf16.xpose.msra.mxu0 0
    %2584 = vmatprep.subr.bf16.mxu0 0
    %2585 = vmatpush1.bf16.xpose.msra.mxu0 0
    %2586 = vmatprep.subr.bf16.mxu0 0
    %2587 = vmatpush1.bf16.xpose.msra.mxu0 0
    %2588 = vmatprep.subr.bf16.mxu0 0
    %2589 = vmatpush1.bf16.xpose.msra.mxu0 0
    %2590 = vmatprep.mubr.bf16.mxu0 0
    %2591 = vmatmul.mubr.bf16.gmra.mrb[0].mxu0 %v2553
    %v2592 = vpop.f32.mrb[0].mxu0
    %v2593 = vadd.f32 %v474, %v2592
    %v2594 = vpop.f32.mrb[0].mxu0
    %v2595 = vpop.f32.mrb[0].mxu0
    %v2596 = vpop.f32.mrb[0].mxu0
    %2597 = vdwg.mxu0
    %2598 = vrot.lane.b32.xlu0 %v438, 112
    %v2599 = vpop.permute.xlu0 %2598
    %2600 = vrot.lane.b32.xlu0 %v446, 80
    %v2601 = vpop.permute.xlu0 %2600
    %v2603 = vsel %vm490, %v2599, 0
    %v2606 = vsel %vm490, %v2601, 0
    %2608 = vmatprep.subr.bf16.mxu0 0
    %2609 = vmatpush1.bf16.xpose.msra.mxu0 %v2606
    %2610 = vmatprep.subr.bf16.mxu0 0
    %2611 = vmatpush1.bf16.xpose.msra.mxu0 0
    %2612 = vmatprep.subr.bf16.mxu0 0
    %2613 = vmatpush1.bf16.xpose.msra.mxu0 0
    %2614 = vmatprep.subr.bf16.mxu0 0
    %2615 = vmatpush1.bf16.xpose.msra.mxu0 0
    %2616 = vmatprep.subr.bf16.mxu0 0
    %2617 = vmatpush1.bf16.xpose.msra.mxu0 0
    %2618 = vmatprep.subr.bf16.mxu0 0
    %2619 = vmatpush1.bf16.xpose.msra.mxu0 0
    %2620 = vmatprep.subr.bf16.mxu0 0
    %2621 = vmatpush1.bf16.xpose.msra.mxu0 0
    %2622 = vmatprep.subr.bf16.mxu0 0
    %2623 = vmatpush1.bf16.xpose.msra.mxu0 0
    %2624 = vmatprep.subr.bf16.mxu0 0
    %2625 = vmatpush1.bf16.xpose.msra.mxu0 0
    %2626 = vmatprep.subr.bf16.mxu0 0
    %2627 = vmatpush1.bf16.xpose.msra.mxu0 0
    %2628 = vmatprep.subr.bf16.mxu0 0
    %2629 = vmatpush1.bf16.xpose.msra.mxu0 0
    %2630 = vmatprep.subr.bf16.mxu0 0
    %2631 = vmatpush1.bf16.xpose.msra.mxu0 0
    %2632 = vmatprep.subr.bf16.mxu0 0
    %2633 = vmatpush1.bf16.xpose.msra.mxu0 0
    %2634 = vmatprep.subr.bf16.mxu0 0
    %2635 = vmatpush1.bf16.xpose.msra.mxu0 0
    %2636 = vmatprep.subr.bf16.mxu0 0
    %2637 = vmatpush1.bf16.xpose.msra.mxu0 0
    %2638 = vmatprep.subr.bf16.mxu0 0
    %2639 = vmatpush1.bf16.xpose.msra.mxu0 0
    %2640 = vmatprep.mubr.bf16.mxu0 0
    %2641 = vmatmul.mubr.bf16.gmra.mrb[0].mxu0 %v2603
    %v2642 = vpop.f32.mrb[0].mxu0
    %v2643 = vadd.f32 %v478, %v2642
    %v2644 = vpop.f32.mrb[0].mxu0
    %v2645 = vpop.f32.mrb[0].mxu0
    %v2646 = vpop.f32.mrb[0].mxu0
    %2647 = vdwg.mxu0
    %v2648 = vsel %vm490, %v2293, -inf
    %2649 = vmax.xlane.f32.xlu0 %v2648
    %v2650 = vpop.xlane.xlu0 %2649
    %v2651 = vsel %vm490, %v2343, -inf
    %2652 = vmax.xlane.f32.xlu0 %v2651
    %v2653 = vpop.xlane.xlu0 %2652
    %v2654 = vsel %vm490, %v2393, -inf
    %2655 = vmax.xlane.f32.xlu0 %v2654
    %v2656 = vpop.xlane.xlu0 %2655
    %v2657 = vsel %vm490, %v2443, -inf
    %2658 = vmax.xlane.f32.xlu0 %v2657
    %v2659 = vpop.xlane.xlu0 %2658
    %v2660 = vsel %vm490, %v2493, -inf
    %2661 = vmax.xlane.f32.xlu0 %v2660
    %v2662 = vpop.xlane.xlu0 %2661
    %v2663 = vsel %vm490, %v2543, -inf
    %2664 = vmax.xlane.f32.xlu0 %v2663
    %v2665 = vpop.xlane.xlu0 %2664
    %v2666 = vsel %vm490, %v2593, -inf
    %2667 = vmax.xlane.f32.xlu0 %v2666
    %v2668 = vpop.xlane.xlu0 %2667
    %v2669 = vsel %vm490, %v2643, -inf
    %2670 = vmax.xlane.f32.xlu0 %v2669
    %v2671 = vpop.xlane.xlu0 %2670
    %v2672 = vsub.f32 %v2293, %v2650
    %v2673 = vsub.f32 %v2343, %v2653
    %v2674 = vsub.f32 %v2393, %v2656
    %v2675 = vsub.f32 %v2443, %v2659
    %v2676 = vsub.f32 %v2493, %v2662
    %v2677 = vsub.f32 %v2543, %v2665
    %v2678 = vsub.f32 %v2593, %v2668
    %v2679 = vsub.f32 %v2643, %v2671
    %v2680 = vmul.f32 %v2672, 1.442695
    %v2681 = vpow.pop %v2680
    %v2682 = vmul.f32 %v2673, 1.442695
    %v2683 = vpow.pop %v2682
    %v2684 = vmul.f32 %v2674, 1.442695
    %v2685 = vpow.pop %v2684
    %v2686 = vmul.f32 %v2675, 1.442695
    %v2687 = vpow.pop %v2686
    %v2688 = vmul.f32 %v2676, 1.442695
    %v2689 = vpow.pop %v2688
    %v2690 = vmul.f32 %v2677, 1.442695
    %v2691 = vpow.pop %v2690
    %v2692 = vmul.f32 %v2678, 1.442695
    %v2693 = vpow.pop %v2692
    %v2694 = vmul.f32 %v2679, 1.442695
    %v2695 = vpow.pop %v2694
    %v2696 = vsel %vm490, %v2681, 0.0
    %2697 = vadd.xlane.f32.xlu0 %v2696
    %v2698 = vpop.xlane.xlu0 %2697
    %v2699 = vsel %vm490, %v2683, 0.0
    %2700 = vadd.xlane.f32.xlu0 %v2699
    %v2701 = vpop.xlane.xlu0 %2700
    %v2702 = vsel %vm490, %v2685, 0.0
    %2703 = vadd.xlane.f32.xlu0 %v2702
    %v2704 = vpop.xlane.xlu0 %2703
    %v2705 = vsel %vm490, %v2687, 0.0
    %2706 = vadd.xlane.f32.xlu0 %v2705
    %v2707 = vpop.xlane.xlu0 %2706
    %v2708 = vsel %vm490, %v2689, 0.0
    %2709 = vadd.xlane.f32.xlu0 %v2708
    %v2710 = vpop.xlane.xlu0 %2709
    %v2711 = vsel %vm490, %v2691, 0.0
    %2712 = vadd.xlane.f32.xlu0 %v2711
    %v2713 = vpop.xlane.xlu0 %2712
    %v2714 = vsel %vm490, %v2693, 0.0
    %2715 = vadd.xlane.f32.xlu0 %v2714
    %v2716 = vpop.xlane.xlu0 %2715
    %v2717 = vsel %vm490, %v2695, 0.0
    %2718 = vadd.xlane.f32.xlu0 %v2717
    %v2719 = vpop.xlane.xlu0 %2718
    %v2720 = vrcp.pop %v2698
    %v2721 = vrcp.pop %v2701
    %v2722 = vrcp.pop %v2704
    %v2723 = vrcp.pop %v2707
    %v2724 = vrcp.pop %v2710
    %v2725 = vrcp.pop %v2713
    %v2726 = vrcp.pop %v2716
    %v2727 = vrcp.pop %v2719
    %v2728 = vmul.f32 %v2681, %v2720
    %v2729 = vmul.f32 %v2683, %v2721
    %v2730 = vmul.f32 %v2685, %v2722
    %v2731 = vmul.f32 %v2687, %v2723
    %v2732 = vmul.f32 %v2689, %v2724
    %v2733 = vmul.f32 %v2691, %v2725
    %v2734 = vmul.f32 %v2693, %v2726
    %v2735 = vmul.f32 %v2695, %v2727
    %v2736 = vpack.c.bf16 %v2728, %v2728
    %v2737 = vpack.c.bf16 %v2729, %v2729
    %v2738 = vpack.c.bf16 %v2730, %v2730
    %v2739 = vpack.c.bf16 %v2731, %v2731
    %v2740 = vpack.c.bf16 %v2732, %v2732
    %v2741 = vpack.c.bf16 %v2733, %v2733
    %v2742 = vpack.c.bf16 %v2734, %v2734
    %v2743 = vpack.c.bf16 %v2735, %v2735
    %2744 = vrot.lane.b32.xlu0 %v439, 48
    %v2745 = vpop.permute.xlu0 %2744
    %v2747 = vsel %vm490, %v2736, 0
    %v2750 = vsel %vm256, %v2745, 0
    %2752 = vmatprep.subr.bf16.mxu0 0
    %2753 = vmatpush1.bf16.msra.mxu0 %v2750
    %2754 = vmatprep.subr.bf16.mxu0 0
    %2755 = vmatpush1.bf16.msra.mxu0 0
    %2756 = vmatprep.subr.bf16.mxu0 0
    %2757 = vmatpush1.bf16.msra.mxu0 0
    %2758 = vmatprep.subr.bf16.mxu0 0
    %2759 = vmatpush1.bf16.msra.mxu0 0
    %2760 = vmatprep.subr.bf16.mxu0 0
    %2761 = vmatpush1.bf16.msra.mxu0 0
    %2762 = vmatprep.subr.bf16.mxu0 0
    %2763 = vmatpush1.bf16.msra.mxu0 0
    %2764 = vmatprep.subr.bf16.mxu0 0
    %2765 = vmatpush1.bf16.msra.mxu0 0
    %2766 = vmatprep.subr.bf16.mxu0 0
    %2767 = vmatpush1.bf16.msra.mxu0 0
    %2768 = vmatprep.subr.bf16.mxu0 0
    %2769 = vmatpush1.bf16.msra.mxu0 0
    %2770 = vmatprep.subr.bf16.mxu0 0
    %2771 = vmatpush1.bf16.msra.mxu0 0
    %2772 = vmatprep.subr.bf16.mxu0 0
    %2773 = vmatpush1.bf16.msra.mxu0 0
    %2774 = vmatprep.subr.bf16.mxu0 0
    %2775 = vmatpush1.bf16.msra.mxu0 0
    %2776 = vmatprep.subr.bf16.mxu0 0
    %2777 = vmatpush1.bf16.msra.mxu0 0
    %2778 = vmatprep.subr.bf16.mxu0 0
    %2779 = vmatpush1.bf16.msra.mxu0 0
    %2780 = vmatprep.subr.bf16.mxu0 0
    %2781 = vmatpush1.bf16.msra.mxu0 0
    %2782 = vmatprep.subr.bf16.mxu0 0
    %2783 = vmatpush1.bf16.msra.mxu0 0
    %2784 = vmatprep.mubr.bf16.mxu0 0
    %2785 = vmatmul.mubr.bf16.gmra.mrb[0].mxu0 %v2747
    %v2786 = vpop.f32.mrb[0].mxu0
    %v2787 = vadd.f32 0.0, %v2786
    %v2788 = vpop.f32.mrb[0].mxu0
    %v2789 = vpop.f32.mrb[0].mxu0
    %v2790 = vpop.f32.mrb[0].mxu0
    %2791 = vdwg.mxu0
    %2792 = vrot.lane.b32.xlu0 %v440, 48
    %v2793 = vpop.permute.xlu0 %2792
    %v2795 = vsel %vm490, %v2737, 0
    %v2798 = vsel %vm256, %v2793, 0
    %2800 = vmatprep.subr.bf16.mxu0 0
    %2801 = vmatpush1.bf16.msra.mxu0 %v2798
    %2802 = vmatprep.subr.bf16.mxu0 0
    %2803 = vmatpush1.bf16.msra.mxu0 0
    %2804 = vmatprep.subr.bf16.mxu0 0
    %2805 = vmatpush1.bf16.msra.mxu0 0
    %2806 = vmatprep.subr.bf16.mxu0 0
    %2807 = vmatpush1.bf16.msra.mxu0 0
    %2808 = vmatprep.subr.bf16.mxu0 0
    %2809 = vmatpush1.bf16.msra.mxu0 0
    %2810 = vmatprep.subr.bf16.mxu0 0
    %2811 = vmatpush1.bf16.msra.mxu0 0
    %2812 = vmatprep.subr.bf16.mxu0 0
    %2813 = vmatpush1.bf16.msra.mxu0 0
    %2814 = vmatprep.subr.bf16.mxu0 0
    %2815 = vmatpush1.bf16.msra.mxu0 0
    %2816 = vmatprep.subr.bf16.mxu0 0
    %2817 = vmatpush1.bf16.msra.mxu0 0
    %2818 = vmatprep.subr.bf16.mxu0 0
    %2819 = vmatpush1.bf16.msra.mxu0 0
    %2820 = vmatprep.subr.bf16.mxu0 0
    %2821 = vmatpush1.bf16.msra.mxu0 0
    %2822 = vmatprep.subr.bf16.mxu0 0
    %2823 = vmatpush1.bf16.msra.mxu0 0
    %2824 = vmatprep.subr.bf16.mxu0 0
    %2825 = vmatpush1.bf16.msra.mxu0 0
    %2826 = vmatprep.subr.bf16.mxu0 0
    %2827 = vmatpush1.bf16.msra.mxu0 0
    %2828 = vmatprep.subr.bf16.mxu0 0
    %2829 = vmatpush1.bf16.msra.mxu0 0
    %2830 = vmatprep.subr.bf16.mxu0 0
    %2831 = vmatpush1.bf16.msra.mxu0 0
    %2832 = vmatprep.mubr.bf16.mxu0 0
    %2833 = vmatmul.mubr.bf16.gmra.mrb[0].mxu0 %v2795
    %v2834 = vpop.f32.mrb[0].mxu0
    %v2835 = vadd.f32 0.0, %v2834
    %v2836 = vpop.f32.mrb[0].mxu0
    %v2837 = vpop.f32.mrb[0].mxu0
    %v2838 = vpop.f32.mrb[0].mxu0
    %2839 = vdwg.mxu0
    %2840 = vrot.lane.b32.xlu0 %v441, 48
    %v2841 = vpop.permute.xlu0 %2840
    %v2843 = vsel %vm490, %v2738, 0
    %v2846 = vsel %vm256, %v2841, 0
    %2848 = vmatprep.subr.bf16.mxu0 0
    %2849 = vmatpush1.bf16.msra.mxu0 %v2846
    %2850 = vmatprep.subr.bf16.mxu0 0
    %2851 = vmatpush1.bf16.msra.mxu0 0
    %2852 = vmatprep.subr.bf16.mxu0 0
    %2853 = vmatpush1.bf16.msra.mxu0 0
    %2854 = vmatprep.subr.bf16.mxu0 0
    %2855 = vmatpush1.bf16.msra.mxu0 0
    %2856 = vmatprep.subr.bf16.mxu0 0
    %2857 = vmatpush1.bf16.msra.mxu0 0
    %2858 = vmatprep.subr.bf16.mxu0 0
    %2859 = vmatpush1.bf16.msra.mxu0 0
    %2860 = vmatprep.subr.bf16.mxu0 0
    %2861 = vmatpush1.bf16.msra.mxu0 0
    %2862 = vmatprep.subr.bf16.mxu0 0
    %2863 = vmatpush1.bf16.msra.mxu0 0
    %2864 = vmatprep.subr.bf16.mxu0 0
    %2865 = vmatpush1.bf16.msra.mxu0 0
    %2866 = vmatprep.subr.bf16.mxu0 0
    %2867 = vmatpush1.bf16.msra.mxu0 0
    %2868 = vmatprep.subr.bf16.mxu0 0
    %2869 = vmatpush1.bf16.msra.mxu0 0
    %2870 = vmatprep.subr.bf16.mxu0 0
    %2871 = vmatpush1.bf16.msra.mxu0 0
    %2872 = vmatprep.subr.bf16.mxu0 0
    %2873 = vmatpush1.bf16.msra.mxu0 0
    %2874 = vmatprep.subr.bf16.mxu0 0
    %2875 = vmatpush1.bf16.msra.mxu0 0
    %2876 = vmatprep.subr.bf16.mxu0 0
    %2877 = vmatpush1.bf16.msra.mxu0 0
    %2878 = vmatprep.subr.bf16.mxu0 0
    %2879 = vmatpush1.bf16.msra.mxu0 0
    %2880 = vmatprep.mubr.bf16.mxu0 0
    %2881 = vmatmul.mubr.bf16.gmra.mrb[0].mxu0 %v2843
    %v2882 = vpop.f32.mrb[0].mxu0
    %v2883 = vadd.f32 0.0, %v2882
    %v2884 = vpop.f32.mrb[0].mxu0
    %v2885 = vpop.f32.mrb[0].mxu0
    %v2886 = vpop.f32.mrb[0].mxu0
    %2887 = vdwg.mxu0
    %2888 = vrot.lane.b32.xlu0 %v442, 48
    %v2889 = vpop.permute.xlu0 %2888
    %v2891 = vsel %vm490, %v2739, 0
    %v2894 = vsel %vm256, %v2889, 0
    %2896 = vmatprep.subr.bf16.mxu0 0
    %2897 = vmatpush1.bf16.msra.mxu0 %v2894
    %2898 = vmatprep.subr.bf16.mxu0 0
    %2899 = vmatpush1.bf16.msra.mxu0 0
    %2900 = vmatprep.subr.bf16.mxu0 0
    %2901 = vmatpush1.bf16.msra.mxu0 0
    %2902 = vmatprep.subr.bf16.mxu0 0
    %2903 = vmatpush1.bf16.msra.mxu0 0
    %2904 = vmatprep.subr.bf16.mxu0 0
    %2905 = vmatpush1.bf16.msra.mxu0 0
    %2906 = vmatprep.subr.bf16.mxu0 0
    %2907 = vmatpush1.bf16.msra.mxu0 0
    %2908 = vmatprep.subr.bf16.mxu0 0
    %2909 = vmatpush1.bf16.msra.mxu0 0
    %2910 = vmatprep.subr.bf16.mxu0 0
    %2911 = vmatpush1.bf16.msra.mxu0 0
    %2912 = vmatprep.subr.bf16.mxu0 0
    %2913 = vmatpush1.bf16.msra.mxu0 0
    %2914 = vmatprep.subr.bf16.mxu0 0
    %2915 = vmatpush1.bf16.msra.mxu0 0
    %2916 = vmatprep.subr.bf16.mxu0 0
    %2917 = vmatpush1.bf16.msra.mxu0 0
    %2918 = vmatprep.subr.bf16.mxu0 0
    %2919 = vmatpush1.bf16.msra.mxu0 0
    %2920 = vmatprep.subr.bf16.mxu0 0
    %2921 = vmatpush1.bf16.msra.mxu0 0
    %2922 = vmatprep.subr.bf16.mxu0 0
    %2923 = vmatpush1.bf16.msra.mxu0 0
    %2924 = vmatprep.subr.bf16.mxu0 0
    %2925 = vmatpush1.bf16.msra.mxu0 0
    %2926 = vmatprep.subr.bf16.mxu0 0
    %2927 = vmatpush1.bf16.msra.mxu0 0
    %2928 = vmatprep.mubr.bf16.mxu0 0
    %2929 = vmatmul.mubr.bf16.gmra.mrb[0].mxu0 %v2891
    %v2930 = vpop.f32.mrb[0].mxu0
    %v2931 = vadd.f32 0.0, %v2930
    %v2932 = vpop.f32.mrb[0].mxu0
    %v2933 = vpop.f32.mrb[0].mxu0
    %v2934 = vpop.f32.mrb[0].mxu0
    %2935 = vdwg.mxu0
    %2936 = vrot.lane.b32.xlu0 %v443, 48
    %v2937 = vpop.permute.xlu0 %2936
    %v2939 = vsel %vm490, %v2740, 0
    %v2942 = vsel %vm256, %v2937, 0
    %2944 = vmatprep.subr.bf16.mxu0 0
    %2945 = vmatpush1.bf16.msra.mxu0 %v2942
    %2946 = vmatprep.subr.bf16.mxu0 0
    %2947 = vmatpush1.bf16.msra.mxu0 0
    %2948 = vmatprep.subr.bf16.mxu0 0
    %2949 = vmatpush1.bf16.msra.mxu0 0
    %2950 = vmatprep.subr.bf16.mxu0 0
    %2951 = vmatpush1.bf16.msra.mxu0 0
    %2952 = vmatprep.subr.bf16.mxu0 0
    %2953 = vmatpush1.bf16.msra.mxu0 0
    %2954 = vmatprep.subr.bf16.mxu0 0
    %2955 = vmatpush1.bf16.msra.mxu0 0
    %2956 = vmatprep.subr.bf16.mxu0 0
    %2957 = vmatpush1.bf16.msra.mxu0 0
    %2958 = vmatprep.subr.bf16.mxu0 0
    %2959 = vmatpush1.bf16.msra.mxu0 0
    %2960 = vmatprep.subr.bf16.mxu0 0
    %2961 = vmatpush1.bf16.msra.mxu0 0
    %2962 = vmatprep.subr.bf16.mxu0 0
    %2963 = vmatpush1.bf16.msra.mxu0 0
    %2964 = vmatprep.subr.bf16.mxu0 0
    %2965 = vmatpush1.bf16.msra.mxu0 0
    %2966 = vmatprep.subr.bf16.mxu0 0
    %2967 = vmatpush1.bf16.msra.mxu0 0
    %2968 = vmatprep.subr.bf16.mxu0 0
    %2969 = vmatpush1.bf16.msra.mxu0 0
    %2970 = vmatprep.subr.bf16.mxu0 0
    %2971 = vmatpush1.bf16.msra.mxu0 0
    %2972 = vmatprep.subr.bf16.mxu0 0
    %2973 = vmatpush1.bf16.msra.mxu0 0
    %2974 = vmatprep.subr.bf16.mxu0 0
    %2975 = vmatpush1.bf16.msra.mxu0 0
    %2976 = vmatprep.mubr.bf16.mxu0 0
    %2977 = vmatmul.mubr.bf16.gmra.mrb[0].mxu0 %v2939
    %v2978 = vpop.f32.mrb[0].mxu0
    %v2979 = vadd.f32 0.0, %v2978
    %v2980 = vpop.f32.mrb[0].mxu0
    %v2981 = vpop.f32.mrb[0].mxu0
    %v2982 = vpop.f32.mrb[0].mxu0
    %2983 = vdwg.mxu0
    %2984 = vrot.lane.b32.xlu0 %v444, 48
    %v2985 = vpop.permute.xlu0 %2984
    %v2987 = vsel %vm490, %v2741, 0
    %v2990 = vsel %vm256, %v2985, 0
    %2992 = vmatprep.subr.bf16.mxu0 0
    %2993 = vmatpush1.bf16.msra.mxu0 %v2990
    %2994 = vmatprep.subr.bf16.mxu0 0
    %2995 = vmatpush1.bf16.msra.mxu0 0
    %2996 = vmatprep.subr.bf16.mxu0 0
    %2997 = vmatpush1.bf16.msra.mxu0 0
    %2998 = vmatprep.subr.bf16.mxu0 0
    %2999 = vmatpush1.bf16.msra.mxu0 0
    %3000 = vmatprep.subr.bf16.mxu0 0
    %3001 = vmatpush1.bf16.msra.mxu0 0
    %3002 = vmatprep.subr.bf16.mxu0 0
    %3003 = vmatpush1.bf16.msra.mxu0 0
    %3004 = vmatprep.subr.bf16.mxu0 0
    %3005 = vmatpush1.bf16.msra.mxu0 0
    %3006 = vmatprep.subr.bf16.mxu0 0
    %3007 = vmatpush1.bf16.msra.mxu0 0
    %3008 = vmatprep.subr.bf16.mxu0 0
    %3009 = vmatpush1.bf16.msra.mxu0 0
    %3010 = vmatprep.subr.bf16.mxu0 0
    %3011 = vmatpush1.bf16.msra.mxu0 0
    %3012 = vmatprep.subr.bf16.mxu0 0
    %3013 = vmatpush1.bf16.msra.mxu0 0
    %3014 = vmatprep.subr.bf16.mxu0 0
    %3015 = vmatpush1.bf16.msra.mxu0 0
    %3016 = vmatprep.subr.bf16.mxu0 0
    %3017 = vmatpush1.bf16.msra.mxu0 0
    %3018 = vmatprep.subr.bf16.mxu0 0
    %3019 = vmatpush1.bf16.msra.mxu0 0
    %3020 = vmatprep.subr.bf16.mxu0 0
    %3021 = vmatpush1.bf16.msra.mxu0 0
    %3022 = vmatprep.subr.bf16.mxu0 0
    %3023 = vmatpush1.bf16.msra.mxu0 0
    %3024 = vmatprep.mubr.bf16.mxu0 0
    %3025 = vmatmul.mubr.bf16.gmra.mrb[0].mxu0 %v2987
    %v3026 = vpop.f32.mrb[0].mxu0
    %v3027 = vadd.f32 0.0, %v3026
    %v3028 = vpop.f32.mrb[0].mxu0
    %v3029 = vpop.f32.mrb[0].mxu0
    %v3030 = vpop.f32.mrb[0].mxu0
    %3031 = vdwg.mxu0
    %3032 = vrot.lane.b32.xlu0 %v445, 48
    %v3033 = vpop.permute.xlu0 %3032
    %v3035 = vsel %vm490, %v2742, 0
    %v3038 = vsel %vm256, %v3033, 0
    %3040 = vmatprep.subr.bf16.mxu0 0
    %3041 = vmatpush1.bf16.msra.mxu0 %v3038
    %3042 = vmatprep.subr.bf16.mxu0 0
    %3043 = vmatpush1.bf16.msra.mxu0 0
    %3044 = vmatprep.subr.bf16.mxu0 0
    %3045 = vmatpush1.bf16.msra.mxu0 0
    %3046 = vmatprep.subr.bf16.mxu0 0
    %3047 = vmatpush1.bf16.msra.mxu0 0
    %3048 = vmatprep.subr.bf16.mxu0 0
    %3049 = vmatpush1.bf16.msra.mxu0 0
    %3050 = vmatprep.subr.bf16.mxu0 0
    %3051 = vmatpush1.bf16.msra.mxu0 0
    %3052 = vmatprep.subr.bf16.mxu0 0
    %3053 = vmatpush1.bf16.msra.mxu0 0
    %3054 = vmatprep.subr.bf16.mxu0 0
    %3055 = vmatpush1.bf16.msra.mxu0 0
    %3056 = vmatprep.subr.bf16.mxu0 0
    %3057 = vmatpush1.bf16.msra.mxu0 0
    %3058 = vmatprep.subr.bf16.mxu0 0
    %3059 = vmatpush1.bf16.msra.mxu0 0
    %3060 = vmatprep.subr.bf16.mxu0 0
    %3061 = vmatpush1.bf16.msra.mxu0 0
    %3062 = vmatprep.subr.bf16.mxu0 0
    %3063 = vmatpush1.bf16.msra.mxu0 0
    %3064 = vmatprep.subr.bf16.mxu0 0
    %3065 = vmatpush1.bf16.msra.mxu0 0
    %3066 = vmatprep.subr.bf16.mxu0 0
    %3067 = vmatpush1.bf16.msra.mxu0 0
    %3068 = vmatprep.subr.bf16.mxu0 0
    %3069 = vmatpush1.bf16.msra.mxu0 0
    %3070 = vmatprep.subr.bf16.mxu0 0
    %3071 = vmatpush1.bf16.msra.mxu0 0
    %3072 = vmatprep.mubr.bf16.mxu0 0
    %3073 = vmatmul.mubr.bf16.gmra.mrb[0].mxu0 %v3035
    %v3074 = vpop.f32.mrb[0].mxu0
    %v3075 = vadd.f32 0.0, %v3074
    %v3076 = vpop.f32.mrb[0].mxu0
    %v3077 = vpop.f32.mrb[0].mxu0
    %v3078 = vpop.f32.mrb[0].mxu0
    %3079 = vdwg.mxu0
    %3080 = vrot.lane.b32.xlu0 %v446, 48
    %v3081 = vpop.permute.xlu0 %3080
    %v3083 = vsel %vm490, %v2743, 0
    %v3086 = vsel %vm256, %v3081, 0
    %3088 = vmatprep.subr.bf16.mxu0 0
    %3089 = vmatpush1.bf16.msra.mxu0 %v3086
    %3090 = vmatprep.subr.bf16.mxu0 0
    %3091 = vmatpush1.bf16.msra.mxu0 0
    %3092 = vmatprep.subr.bf16.mxu0 0
    %3093 = vmatpush1.bf16.msra.mxu0 0
    %3094 = vmatprep.subr.bf16.mxu0 0
    %3095 = vmatpush1.bf16.msra.mxu0 0
    %3096 = vmatprep.subr.bf16.mxu0 0
    %3097 = vmatpush1.bf16.msra.mxu0 0
    %3098 = vmatprep.subr.bf16.mxu0 0
    %3099 = vmatpush1.bf16.msra.mxu0 0
    %3100 = vmatprep.subr.bf16.mxu0 0
    %3101 = vmatpush1.bf16.msra.mxu0 0
    %3102 = vmatprep.subr.bf16.mxu0 0
    %3103 = vmatpush1.bf16.msra.mxu0 0
    %3104 = vmatprep.subr.bf16.mxu0 0
    %3105 = vmatpush1.bf16.msra.mxu0 0
    %3106 = vmatprep.subr.bf16.mxu0 0
    %3107 = vmatpush1.bf16.msra.mxu0 0
    %3108 = vmatprep.subr.bf16.mxu0 0
    %3109 = vmatpush1.bf16.msra.mxu0 0
    %3110 = vmatprep.subr.bf16.mxu0 0
    %3111 = vmatpush1.bf16.msra.mxu0 0
    %3112 = vmatprep.subr.bf16.mxu0 0
    %3113 = vmatpush1.bf16.msra.mxu0 0
    %3114 = vmatprep.subr.bf16.mxu0 0
    %3115 = vmatpush1.bf16.msra.mxu0 0
    %3116 = vmatprep.subr.bf16.mxu0 0
    %3117 = vmatpush1.bf16.msra.mxu0 0
    %3118 = vmatprep.subr.bf16.mxu0 0
    %3119 = vmatpush1.bf16.msra.mxu0 0
    %3120 = vmatprep.mubr.bf16.mxu0 0
    %3121 = vmatmul.mubr.bf16.gmra.mrb[0].mxu0 %v3083
    %v3122 = vpop.f32.mrb[0].mxu0
    %v3123 = vadd.f32 0.0, %v3122
    %v3124 = vpop.f32.mrb[0].mxu0
    %v3125 = vpop.f32.mrb[0].mxu0
    %v3126 = vpop.f32.mrb[0].mxu0
    %3127 = vdwg.mxu0
    %3128 = vrot.lane.b32.xlu0 %v431, 104
    %v3129 = vpop.permute.xlu0 %3128
    %3130 = vrot.lane.b32.xlu0 %v439, 72
    %v3131 = vpop.permute.xlu0 %3130
    %v3133 = vsel %vm490, %v3129, 0
    %v3136 = vsel %vm490, %v3131, 0
    %3138 = vmatprep.subr.bf16.mxu0 0
    %3139 = vmatpush1.bf16.xpose.msra.mxu0 %v3136
    %3140 = vmatprep.subr.bf16.mxu0 0
    %3141 = vmatpush1.bf16.xpose.msra.mxu0 0
    %3142 = vmatprep.subr.bf16.mxu0 0
    %3143 = vmatpush1.bf16.xpose.msra.mxu0 0
    %3144 = vmatprep.subr.bf16.mxu0 0
    %3145 = vmatpush1.bf16.xpose.msra.mxu0 0
    %3146 = vmatprep.subr.bf16.mxu0 0
    %3147 = vmatpush1.bf16.xpose.msra.mxu0 0
    %3148 = vmatprep.subr.bf16.mxu0 0
    %3149 = vmatpush1.bf16.xpose.msra.mxu0 0
    %3150 = vmatprep.subr.bf16.mxu0 0
    %3151 = vmatpush1.bf16.xpose.msra.mxu0 0
    %3152 = vmatprep.subr.bf16.mxu0 0
    %3153 = vmatpush1.bf16.xpose.msra.mxu0 0
    %3154 = vmatprep.subr.bf16.mxu0 0
    %3155 = vmatpush1.bf16.xpose.msra.mxu0 0
    %3156 = vmatprep.subr.bf16.mxu0 0
    %3157 = vmatpush1.bf16.xpose.msra.mxu0 0
    %3158 = vmatprep.subr.bf16.mxu0 0
    %3159 = vmatpush1.bf16.xpose.msra.mxu0 0
    %3160 = vmatprep.subr.bf16.mxu0 0
    %3161 = vmatpush1.bf16.xpose.msra.mxu0 0
    %3162 = vmatprep.subr.bf16.mxu0 0
    %3163 = vmatpush1.bf16.xpose.msra.mxu0 0
    %3164 = vmatprep.subr.bf16.mxu0 0
    %3165 = vmatpush1.bf16.xpose.msra.mxu0 0
    %3166 = vmatprep.subr.bf16.mxu0 0
    %3167 = vmatpush1.bf16.xpose.msra.mxu0 0
    %3168 = vmatprep.subr.bf16.mxu0 0
    %3169 = vmatpush1.bf16.xpose.msra.mxu0 0
    %3170 = vmatprep.mubr.bf16.mxu0 0
    %3171 = vmatmul.mubr.bf16.gmra.mrb[0].mxu0 %v3133
    %v3172 = vpop.f32.mrb[0].mxu0
    %v3173 = vadd.f32 %v450, %v3172
    %v3174 = vpop.f32.mrb[0].mxu0
    %v3175 = vpop.f32.mrb[0].mxu0
    %v3176 = vpop.f32.mrb[0].mxu0
    %3177 = vdwg.mxu0
    %3178 = vrot.lane.b32.xlu0 %v432, 104
    %v3179 = vpop.permute.xlu0 %3178
    %3180 = vrot.lane.b32.xlu0 %v440, 72
    %v3181 = vpop.permute.xlu0 %3180
    %v3183 = vsel %vm490, %v3179, 0
    %v3186 = vsel %vm490, %v3181, 0
    %3188 = vmatprep.subr.bf16.mxu0 0
    %3189 = vmatpush1.bf16.xpose.msra.mxu0 %v3186
    %3190 = vmatprep.subr.bf16.mxu0 0
    %3191 = vmatpush1.bf16.xpose.msra.mxu0 0
    %3192 = vmatprep.subr.bf16.mxu0 0
    %3193 = vmatpush1.bf16.xpose.msra.mxu0 0
    %3194 = vmatprep.subr.bf16.mxu0 0
    %3195 = vmatpush1.bf16.xpose.msra.mxu0 0
    %3196 = vmatprep.subr.bf16.mxu0 0
    %3197 = vmatpush1.bf16.xpose.msra.mxu0 0
    %3198 = vmatprep.subr.bf16.mxu0 0
    %3199 = vmatpush1.bf16.xpose.msra.mxu0 0
    %3200 = vmatprep.subr.bf16.mxu0 0
    %3201 = vmatpush1.bf16.xpose.msra.mxu0 0
    %3202 = vmatprep.subr.bf16.mxu0 0
    %3203 = vmatpush1.bf16.xpose.msra.mxu0 0
    %3204 = vmatprep.subr.bf16.mxu0 0
    %3205 = vmatpush1.bf16.xpose.msra.mxu0 0
    %3206 = vmatprep.subr.bf16.mxu0 0
    %3207 = vmatpush1.bf16.xpose.msra.mxu0 0
    %3208 = vmatprep.subr.bf16.mxu0 0
    %3209 = vmatpush1.bf16.xpose.msra.mxu0 0
    %3210 = vmatprep.subr.bf16.mxu0 0
    %3211 = vmatpush1.bf16.xpose.msra.mxu0 0
    %3212 = vmatprep.subr.bf16.mxu0 0
    %3213 = vmatpush1.bf16.xpose.msra.mxu0 0
    %3214 = vmatprep.subr.bf16.mxu0 0
    %3215 = vmatpush1.bf16.xpose.msra.mxu0 0
    %3216 = vmatprep.subr.bf16.mxu0 0
    %3217 = vmatpush1.bf16.xpose.msra.mxu0 0
    %3218 = vmatprep.subr.bf16.mxu0 0
    %3219 = vmatpush1.bf16.xpose.msra.mxu0 0
    %3220 = vmatprep.mubr.bf16.mxu0 0
    %3221 = vmatmul.mubr.bf16.gmra.mrb[0].mxu0 %v3183
    %v3222 = vpop.f32.mrb[0].mxu0
    %v3223 = vadd.f32 %v454, %v3222
    %v3224 = vpop.f32.mrb[0].mxu0
    %v3225 = vpop.f32.mrb[0].mxu0
    %v3226 = vpop.f32.mrb[0].mxu0
    %3227 = vdwg.mxu0
    %3228 = vrot.lane.b32.xlu0 %v433, 104
    %v3229 = vpop.permute.xlu0 %3228
    %3230 = vrot.lane.b32.xlu0 %v441, 72
    %v3231 = vpop.permute.xlu0 %3230
    %v3233 = vsel %vm490, %v3229, 0
    %v3236 = vsel %vm490, %v3231, 0
    %3238 = vmatprep.subr.bf16.mxu0 0
    %3239 = vmatpush1.bf16.xpose.msra.mxu0 %v3236
    %3240 = vmatprep.subr.bf16.mxu0 0
    %3241 = vmatpush1.bf16.xpose.msra.mxu0 0
    %3242 = vmatprep.subr.bf16.mxu0 0
    %3243 = vmatpush1.bf16.xpose.msra.mxu0 0
    %3244 = vmatprep.subr.bf16.mxu0 0
    %3245 = vmatpush1.bf16.xpose.msra.mxu0 0
    %3246 = vmatprep.subr.bf16.mxu0 0
    %3247 = vmatpush1.bf16.xpose.msra.mxu0 0
    %3248 = vmatprep.subr.bf16.mxu0 0
    %3249 = vmatpush1.bf16.xpose.msra.mxu0 0
    %3250 = vmatprep.subr.bf16.mxu0 0
    %3251 = vmatpush1.bf16.xpose.msra.mxu0 0
    %3252 = vmatprep.subr.bf16.mxu0 0
    %3253 = vmatpush1.bf16.xpose.msra.mxu0 0
    %3254 = vmatprep.subr.bf16.mxu0 0
    %3255 = vmatpush1.bf16.xpose.msra.mxu0 0
    %3256 = vmatprep.subr.bf16.mxu0 0
    %3257 = vmatpush1.bf16.xpose.msra.mxu0 0
    %3258 = vmatprep.subr.bf16.mxu0 0
    %3259 = vmatpush1.bf16.xpose.msra.mxu0 0
    %3260 = vmatprep.subr.bf16.mxu0 0
    %3261 = vmatpush1.bf16.xpose.msra.mxu0 0
    %3262 = vmatprep.subr.bf16.mxu0 0
    %3263 = vmatpush1.bf16.xpose.msra.mxu0 0
    %3264 = vmatprep.subr.bf16.mxu0 0
    %3265 = vmatpush1.bf16.xpose.msra.mxu0 0
    %3266 = vmatprep.subr.bf16.mxu0 0
    %3267 = vmatpush1.bf16.xpose.msra.mxu0 0
    %3268 = vmatprep.subr.bf16.mxu0 0
    %3269 = vmatpush1.bf16.xpose.msra.mxu0 0
    %3270 = vmatprep.mubr.bf16.mxu0 0
    %3271 = vmatmul.mubr.bf16.gmra.mrb[0].mxu0 %v3233
    %v3272 = vpop.f32.mrb[0].mxu0
    %v3273 = vadd.f32 %v458, %v3272
    %v3274 = vpop.f32.mrb[0].mxu0
    %v3275 = vpop.f32.mrb[0].mxu0
    %v3276 = vpop.f32.mrb[0].mxu0
    %3277 = vdwg.mxu0
    %3278 = vrot.lane.b32.xlu0 %v434, 104
    %v3279 = vpop.permute.xlu0 %3278
    %3280 = vrot.lane.b32.xlu0 %v442, 72
    %v3281 = vpop.permute.xlu0 %3280
    %v3283 = vsel %vm490, %v3279, 0
    %v3286 = vsel %vm490, %v3281, 0
    %3288 = vmatprep.subr.bf16.mxu0 0
    %3289 = vmatpush1.bf16.xpose.msra.mxu0 %v3286
    %3290 = vmatprep.subr.bf16.mxu0 0
    %3291 = vmatpush1.bf16.xpose.msra.mxu0 0
    %3292 = vmatprep.subr.bf16.mxu0 0
    %3293 = vmatpush1.bf16.xpose.msra.mxu0 0
    %3294 = vmatprep.subr.bf16.mxu0 0
    %3295 = vmatpush1.bf16.xpose.msra.mxu0 0
    %3296 = vmatprep.subr.bf16.mxu0 0
    %3297 = vmatpush1.bf16.xpose.msra.mxu0 0
    %3298 = vmatprep.subr.bf16.mxu0 0
    %3299 = vmatpush1.bf16.xpose.msra.mxu0 0
    %3300 = vmatprep.subr.bf16.mxu0 0
    %3301 = vmatpush1.bf16.xpose.msra.mxu0 0
    %3302 = vmatprep.subr.bf16.mxu0 0
    %3303 = vmatpush1.bf16.xpose.msra.mxu0 0
    %3304 = vmatprep.subr.bf16.mxu0 0
    %3305 = vmatpush1.bf16.xpose.msra.mxu0 0
    %3306 = vmatprep.subr.bf16.mxu0 0
    %3307 = vmatpush1.bf16.xpose.msra.mxu0 0
    %3308 = vmatprep.subr.bf16.mxu0 0
    %3309 = vmatpush1.bf16.xpose.msra.mxu0 0
    %3310 = vmatprep.subr.bf16.mxu0 0
    %3311 = vmatpush1.bf16.xpose.msra.mxu0 0
    %3312 = vmatprep.subr.bf16.mxu0 0
    %3313 = vmatpush1.bf16.xpose.msra.mxu0 0
    %3314 = vmatprep.subr.bf16.mxu0 0
    %3315 = vmatpush1.bf16.xpose.msra.mxu0 0
    %3316 = vmatprep.subr.bf16.mxu0 0
    %3317 = vmatpush1.bf16.xpose.msra.mxu0 0
    %3318 = vmatprep.subr.bf16.mxu0 0
    %3319 = vmatpush1.bf16.xpose.msra.mxu0 0
    %3320 = vmatprep.mubr.bf16.mxu0 0
    %3321 = vmatmul.mubr.bf16.gmra.mrb[0].mxu0 %v3283
    %v3322 = vpop.f32.mrb[0].mxu0
    %v3323 = vadd.f32 %v462, %v3322
    %v3324 = vpop.f32.mrb[0].mxu0
    %v3325 = vpop.f32.mrb[0].mxu0
    %v3326 = vpop.f32.mrb[0].mxu0
    %3327 = vdwg.mxu0
    %3328 = vrot.lane.b32.xlu0 %v435, 104
    %v3329 = vpop.permute.xlu0 %3328
    %3330 = vrot.lane.b32.xlu0 %v443, 72
    %v3331 = vpop.permute.xlu0 %3330
    %v3333 = vsel %vm490, %v3329, 0
    %v3336 = vsel %vm490, %v3331, 0
    %3338 = vmatprep.subr.bf16.mxu0 0
    %3339 = vmatpush1.bf16.xpose.msra.mxu0 %v3336
    %3340 = vmatprep.subr.bf16.mxu0 0
    %3341 = vmatpush1.bf16.xpose.msra.mxu0 0
    %3342 = vmatprep.subr.bf16.mxu0 0
    %3343 = vmatpush1.bf16.xpose.msra.mxu0 0
    %3344 = vmatprep.subr.bf16.mxu0 0
    %3345 = vmatpush1.bf16.xpose.msra.mxu0 0
    %3346 = vmatprep.subr.bf16.mxu0 0
    %3347 = vmatpush1.bf16.xpose.msra.mxu0 0
    %3348 = vmatprep.subr.bf16.mxu0 0
    %3349 = vmatpush1.bf16.xpose.msra.mxu0 0
    %3350 = vmatprep.subr.bf16.mxu0 0
    %3351 = vmatpush1.bf16.xpose.msra.mxu0 0
    %3352 = vmatprep.subr.bf16.mxu0 0
    %3353 = vmatpush1.bf16.xpose.msra.mxu0 0
    %3354 = vmatprep.subr.bf16.mxu0 0
    %3355 = vmatpush1.bf16.xpose.msra.mxu0 0
    %3356 = vmatprep.subr.bf16.mxu0 0
    %3357 = vmatpush1.bf16.xpose.msra.mxu0 0
    %3358 = vmatprep.subr.bf16.mxu0 0
    %3359 = vmatpush1.bf16.xpose.msra.mxu0 0
    %3360 = vmatprep.subr.bf16.mxu0 0
    %3361 = vmatpush1.bf16.xpose.msra.mxu0 0
    %3362 = vmatprep.subr.bf16.mxu0 0
    %3363 = vmatpush1.bf16.xpose.msra.mxu0 0
    %3364 = vmatprep.subr.bf16.mxu0 0
    %3365 = vmatpush1.bf16.xpose.msra.mxu0 0
    %3366 = vmatprep.subr.bf16.mxu0 0
    %3367 = vmatpush1.bf16.xpose.msra.mxu0 0
    %3368 = vmatprep.subr.bf16.mxu0 0
    %3369 = vmatpush1.bf16.xpose.msra.mxu0 0
    %3370 = vmatprep.mubr.bf16.mxu0 0
    %3371 = vmatmul.mubr.bf16.gmra.mrb[0].mxu0 %v3333
    %v3372 = vpop.f32.mrb[0].mxu0
    %v3373 = vadd.f32 %v466, %v3372
    %v3374 = vpop.f32.mrb[0].mxu0
    %v3375 = vpop.f32.mrb[0].mxu0
    %v3376 = vpop.f32.mrb[0].mxu0
    %3377 = vdwg.mxu0
    %3378 = vrot.lane.b32.xlu0 %v436, 104
    %v3379 = vpop.permute.xlu0 %3378
    %3380 = vrot.lane.b32.xlu0 %v444, 72
    %v3381 = vpop.permute.xlu0 %3380
    %v3383 = vsel %vm490, %v3379, 0
    %v3386 = vsel %vm490, %v3381, 0
    %3388 = vmatprep.subr.bf16.mxu0 0
    %3389 = vmatpush1.bf16.xpose.msra.mxu0 %v3386
    %3390 = vmatprep.subr.bf16.mxu0 0
    %3391 = vmatpush1.bf16.xpose.msra.mxu0 0
    %3392 = vmatprep.subr.bf16.mxu0 0
    %3393 = vmatpush1.bf16.xpose.msra.mxu0 0
    %3394 = vmatprep.subr.bf16.mxu0 0
    %3395 = vmatpush1.bf16.xpose.msra.mxu0 0
    %3396 = vmatprep.subr.bf16.mxu0 0
    %3397 = vmatpush1.bf16.xpose.msra.mxu0 0
    %3398 = vmatprep.subr.bf16.mxu0 0
    %3399 = vmatpush1.bf16.xpose.msra.mxu0 0
    %3400 = vmatprep.subr.bf16.mxu0 0
    %3401 = vmatpush1.bf16.xpose.msra.mxu0 0
    %3402 = vmatprep.subr.bf16.mxu0 0
    %3403 = vmatpush1.bf16.xpose.msra.mxu0 0
    %3404 = vmatprep.subr.bf16.mxu0 0
    %3405 = vmatpush1.bf16.xpose.msra.mxu0 0
    %3406 = vmatprep.subr.bf16.mxu0 0
    %3407 = vmatpush1.bf16.xpose.msra.mxu0 0
    %3408 = vmatprep.subr.bf16.mxu0 0
    %3409 = vmatpush1.bf16.xpose.msra.mxu0 0
    %3410 = vmatprep.subr.bf16.mxu0 0
    %3411 = vmatpush1.bf16.xpose.msra.mxu0 0
    %3412 = vmatprep.subr.bf16.mxu0 0
    %3413 = vmatpush1.bf16.xpose.msra.mxu0 0
    %3414 = vmatprep.subr.bf16.mxu0 0
    %3415 = vmatpush1.bf16.xpose.msra.mxu0 0
    %3416 = vmatprep.subr.bf16.mxu0 0
    %3417 = vmatpush1.bf16.xpose.msra.mxu0 0
    %3418 = vmatprep.subr.bf16.mxu0 0
    %3419 = vmatpush1.bf16.xpose.msra.mxu0 0
    %3420 = vmatprep.mubr.bf16.mxu0 0
    %3421 = vmatmul.mubr.bf16.gmra.mrb[0].mxu0 %v3383
    %v3422 = vpop.f32.mrb[0].mxu0
    %v3423 = vadd.f32 %v470, %v3422
    %v3424 = vpop.f32.mrb[0].mxu0
    %v3425 = vpop.f32.mrb[0].mxu0
    %v3426 = vpop.f32.mrb[0].mxu0
    %3427 = vdwg.mxu0
    %3428 = vrot.lane.b32.xlu0 %v437, 104
    %v3429 = vpop.permute.xlu0 %3428
    %3430 = vrot.lane.b32.xlu0 %v445, 72
    %v3431 = vpop.permute.xlu0 %3430
    %v3433 = vsel %vm490, %v3429, 0
    %v3436 = vsel %vm490, %v3431, 0
    %3438 = vmatprep.subr.bf16.mxu0 0
    %3439 = vmatpush1.bf16.xpose.msra.mxu0 %v3436
    %3440 = vmatprep.subr.bf16.mxu0 0
    %3441 = vmatpush1.bf16.xpose.msra.mxu0 0
    %3442 = vmatprep.subr.bf16.mxu0 0
    %3443 = vmatpush1.bf16.xpose.msra.mxu0 0
    %3444 = vmatprep.subr.bf16.mxu0 0
    %3445 = vmatpush1.bf16.xpose.msra.mxu0 0
    %3446 = vmatprep.subr.bf16.mxu0 0
    %3447 = vmatpush1.bf16.xpose.msra.mxu0 0
    %3448 = vmatprep.subr.bf16.mxu0 0
    %3449 = vmatpush1.bf16.xpose.msra.mxu0 0
    %3450 = vmatprep.subr.bf16.mxu0 0
    %3451 = vmatpush1.bf16.xpose.msra.mxu0 0
    %3452 = vmatprep.subr.bf16.mxu0 0
    %3453 = vmatpush1.bf16.xpose.msra.mxu0 0
    %3454 = vmatprep.subr.bf16.mxu0 0
    %3455 = vmatpush1.bf16.xpose.msra.mxu0 0
    %3456 = vmatprep.subr.bf16.mxu0 0
    %3457 = vmatpush1.bf16.xpose.msra.mxu0 0
    %3458 = vmatprep.subr.bf16.mxu0 0
    %3459 = vmatpush1.bf16.xpose.msra.mxu0 0
    %3460 = vmatprep.subr.bf16.mxu0 0
    %3461 = vmatpush1.bf16.xpose.msra.mxu0 0
    %3462 = vmatprep.subr.bf16.mxu0 0
    %3463 = vmatpush1.bf16.xpose.msra.mxu0 0
    %3464 = vmatprep.subr.bf16.mxu0 0
    %3465 = vmatpush1.bf16.xpose.msra.mxu0 0
    %3466 = vmatprep.subr.bf16.mxu0 0
    %3467 = vmatpush1.bf16.xpose.msra.mxu0 0
    %3468 = vmatprep.subr.bf16.mxu0 0
    %3469 = vmatpush1.bf16.xpose.msra.mxu0 0
    %3470 = vmatprep.mubr.bf16.mxu0 0
    %3471 = vmatmul.mubr.bf16.gmra.mrb[0].mxu0 %v3433
    %v3472 = vpop.f32.mrb[0].mxu0
    %v3473 = vadd.f32 %v474, %v3472
    %v3474 = vpop.f32.mrb[0].mxu0
    %v3475 = vpop.f32.mrb[0].mxu0
    %v3476 = vpop.f32.mrb[0].mxu0
    %3477 = vdwg.mxu0
    %3478 = vrot.lane.b32.xlu0 %v438, 104
    %v3479 = vpop.permute.xlu0 %3478
    %3480 = vrot.lane.b32.xlu0 %v446, 72
    %v3481 = vpop.permute.xlu0 %3480
    %v3483 = vsel %vm490, %v3479, 0
    %v3486 = vsel %vm490, %v3481, 0
    %3488 = vmatprep.subr.bf16.mxu0 0
    %3489 = vmatpush1.bf16.xpose.msra.mxu0 %v3486
    %3490 = vmatprep.subr.bf16.mxu0 0
    %3491 = vmatpush1.bf16.xpose.msra.mxu0 0
    %3492 = vmatprep.subr.bf16.mxu0 0
    %3493 = vmatpush1.bf16.xpose.msra.mxu0 0
    %3494 = vmatprep.subr.bf16.mxu0 0
    %3495 = vmatpush1.bf16.xpose.msra.mxu0 0
    %3496 = vmatprep.subr.bf16.mxu0 0
    %3497 = vmatpush1.bf16.xpose.msra.mxu0 0
    %3498 = vmatprep.subr.bf16.mxu0 0
    %3499 = vmatpush1.bf16.xpose.msra.mxu0 0
    %3500 = vmatprep.subr.bf16.mxu0 0
    %3501 = vmatpush1.bf16.xpose.msra.mxu0 0
    %3502 = vmatprep.subr.bf16.mxu0 0
    %3503 = vmatpush1.bf16.xpose.msra.mxu0 0
    %3504 = vmatprep.subr.bf16.mxu0 0
    %3505 = vmatpush1.bf16.xpose.msra.mxu0 0
    %3506 = vmatprep.subr.bf16.mxu0 0
    %3507 = vmatpush1.bf16.xpose.msra.mxu0 0
    %3508 = vmatprep.subr.bf16.mxu0 0
    %3509 = vmatpush1.bf16.xpose.msra.mxu0 0
    %3510 = vmatprep.subr.bf16.mxu0 0
    %3511 = vmatpush1.bf16.xpose.msra.mxu0 0
    %3512 = vmatprep.subr.bf16.mxu0 0
    %3513 = vmatpush1.bf16.xpose.msra.mxu0 0
    %3514 = vmatprep.subr.bf16.mxu0 0
    %3515 = vmatpush1.bf16.xpose.msra.mxu0 0
    %3516 = vmatprep.subr.bf16.mxu0 0
    %3517 = vmatpush1.bf16.xpose.msra.mxu0 0
    %3518 = vmatprep.subr.bf16.mxu0 0
    %3519 = vmatpush1.bf16.xpose.msra.mxu0 0
    %3520 = vmatprep.mubr.bf16.mxu0 0
    %3521 = vmatmul.mubr.bf16.gmra.mrb[0].mxu0 %v3483
    %v3522 = vpop.f32.mrb[0].mxu0
    %v3523 = vadd.f32 %v478, %v3522
    %v3524 = vpop.f32.mrb[0].mxu0
    %v3525 = vpop.f32.mrb[0].mxu0
    %v3526 = vpop.f32.mrb[0].mxu0
    %3527 = vdwg.mxu0
    %v3528 = vsel %vm490, %v3173, -inf
    %3529 = vmax.xlane.f32.xlu0 %v3528
    %v3530 = vpop.xlane.xlu0 %3529
    %v3531 = vsel %vm490, %v3223, -inf
    %3532 = vmax.xlane.f32.xlu0 %v3531
    %v3533 = vpop.xlane.xlu0 %3532
    %v3534 = vsel %vm490, %v3273, -inf
    %3535 = vmax.xlane.f32.xlu0 %v3534
    %v3536 = vpop.xlane.xlu0 %3535
    %v3537 = vsel %vm490, %v3323, -inf
    %3538 = vmax.xlane.f32.xlu0 %v3537
    %v3539 = vpop.xlane.xlu0 %3538
    %v3540 = vsel %vm490, %v3373, -inf
    %3541 = vmax.xlane.f32.xlu0 %v3540
    %v3542 = vpop.xlane.xlu0 %3541
    %v3543 = vsel %vm490, %v3423, -inf
    %3544 = vmax.xlane.f32.xlu0 %v3543
    %v3545 = vpop.xlane.xlu0 %3544
    %v3546 = vsel %vm490, %v3473, -inf
    %3547 = vmax.xlane.f32.xlu0 %v3546
    %v3548 = vpop.xlane.xlu0 %3547
    %v3549 = vsel %vm490, %v3523, -inf
    %3550 = vmax.xlane.f32.xlu0 %v3549
    %v3551 = vpop.xlane.xlu0 %3550
    %v3552 = vsub.f32 %v3173, %v3530
    %v3553 = vsub.f32 %v3223, %v3533
    %v3554 = vsub.f32 %v3273, %v3536
    %v3555 = vsub.f32 %v3323, %v3539
    %v3556 = vsub.f32 %v3373, %v3542
    %v3557 = vsub.f32 %v3423, %v3545
    %v3558 = vsub.f32 %v3473, %v3548
    %v3559 = vsub.f32 %v3523, %v3551
    %v3560 = vmul.f32 %v3552, 1.442695
    %v3561 = vpow.pop %v3560
    %v3562 = vmul.f32 %v3553, 1.442695
    %v3563 = vpow.pop %v3562
    %v3564 = vmul.f32 %v3554, 1.442695
    %v3565 = vpow.pop %v3564
    %v3566 = vmul.f32 %v3555, 1.442695
    %v3567 = vpow.pop %v3566
    %v3568 = vmul.f32 %v3556, 1.442695
    %v3569 = vpow.pop %v3568
    %v3570 = vmul.f32 %v3557, 1.442695
    %v3571 = vpow.pop %v3570
    %v3572 = vmul.f32 %v3558, 1.442695
    %v3573 = vpow.pop %v3572
    %v3574 = vmul.f32 %v3559, 1.442695
    %v3575 = vpow.pop %v3574
    %v3576 = vsel %vm490, %v3561, 0.0
    %3577 = vadd.xlane.f32.xlu0 %v3576
    %v3578 = vpop.xlane.xlu0 %3577
    %v3579 = vsel %vm490, %v3563, 0.0
    %3580 = vadd.xlane.f32.xlu0 %v3579
    %v3581 = vpop.xlane.xlu0 %3580
    %v3582 = vsel %vm490, %v3565, 0.0
    %3583 = vadd.xlane.f32.xlu0 %v3582
    %v3584 = vpop.xlane.xlu0 %3583
    %v3585 = vsel %vm490, %v3567, 0.0
    %3586 = vadd.xlane.f32.xlu0 %v3585
    %v3587 = vpop.xlane.xlu0 %3586
    %v3588 = vsel %vm490, %v3569, 0.0
    %3589 = vadd.xlane.f32.xlu0 %v3588
    %v3590 = vpop.xlane.xlu0 %3589
    %v3591 = vsel %vm490, %v3571, 0.0
    %3592 = vadd.xlane.f32.xlu0 %v3591
    %v3593 = vpop.xlane.xlu0 %3592
    %v3594 = vsel %vm490, %v3573, 0.0
    %3595 = vadd.xlane.f32.xlu0 %v3594
    %v3596 = vpop.xlane.xlu0 %3595
    %v3597 = vsel %vm490, %v3575, 0.0
    %3598 = vadd.xlane.f32.xlu0 %v3597
    %v3599 = vpop.xlane.xlu0 %3598
    %v3600 = vrcp.pop %v3578
    %v3601 = vrcp.pop %v3581
    %v3602 = vrcp.pop %v3584
    %v3603 = vrcp.pop %v3587
    %v3604 = vrcp.pop %v3590
    %v3605 = vrcp.pop %v3593
    %v3606 = vrcp.pop %v3596
    %v3607 = vrcp.pop %v3599
    %v3608 = vmul.f32 %v3561, %v3600
    %v3609 = vmul.f32 %v3563, %v3601
    %v3610 = vmul.f32 %v3565, %v3602
    %v3611 = vmul.f32 %v3567, %v3603
    %v3612 = vmul.f32 %v3569, %v3604
    %v3613 = vmul.f32 %v3571, %v3605
    %v3614 = vmul.f32 %v3573, %v3606
    %v3615 = vmul.f32 %v3575, %v3607
    %v3616 = vpack.c.bf16 %v3608, %v3608
    %v3617 = vpack.c.bf16 %v3609, %v3609
    %v3618 = vpack.c.bf16 %v3610, %v3610
    %v3619 = vpack.c.bf16 %v3611, %v3611
    %v3620 = vpack.c.bf16 %v3612, %v3612
    %v3621 = vpack.c.bf16 %v3613, %v3613
    %v3622 = vpack.c.bf16 %v3614, %v3614
    %v3623 = vpack.c.bf16 %v3615, %v3615
    %3624 = vrot.lane.b32.xlu0 %v439, 40
    %v3625 = vpop.permute.xlu0 %3624
    %v3627 = vsel %vm490, %v3616, 0
    %v3630 = vsel %vm256, %v3625, 0
    %3632 = vmatprep.subr.bf16.mxu0 0
    %3633 = vmatpush1.bf16.msra.mxu0 %v3630
    %3634 = vmatprep.subr.bf16.mxu0 0
    %3635 = vmatpush1.bf16.msra.mxu0 0
    %3636 = vmatprep.subr.bf16.mxu0 0
    %3637 = vmatpush1.bf16.msra.mxu0 0
    %3638 = vmatprep.subr.bf16.mxu0 0
    %3639 = vmatpush1.bf16.msra.mxu0 0
    %3640 = vmatprep.subr.bf16.mxu0 0
    %3641 = vmatpush1.bf16.msra.mxu0 0
    %3642 = vmatprep.subr.bf16.mxu0 0
    %3643 = vmatpush1.bf16.msra.mxu0 0
    %3644 = vmatprep.subr.bf16.mxu0 0
    %3645 = vmatpush1.bf16.msra.mxu0 0
    %3646 = vmatprep.subr.bf16.mxu0 0
    %3647 = vmatpush1.bf16.msra.mxu0 0
    %3648 = vmatprep.subr.bf16.mxu0 0
    %3649 = vmatpush1.bf16.msra.mxu0 0
    %3650 = vmatprep.subr.bf16.mxu0 0
    %3651 = vmatpush1.bf16.msra.mxu0 0
    %3652 = vmatprep.subr.bf16.mxu0 0
    %3653 = vmatpush1.bf16.msra.mxu0 0
    %3654 = vmatprep.subr.bf16.mxu0 0
    %3655 = vmatpush1.bf16.msra.mxu0 0
    %3656 = vmatprep.subr.bf16.mxu0 0
    %3657 = vmatpush1.bf16.msra.mxu0 0
    %3658 = vmatprep.subr.bf16.mxu0 0
    %3659 = vmatpush1.bf16.msra.mxu0 0
    %3660 = vmatprep.subr.bf16.mxu0 0
    %3661 = vmatpush1.bf16.msra.mxu0 0
    %3662 = vmatprep.subr.bf16.mxu0 0
    %3663 = vmatpush1.bf16.msra.mxu0 0
    %3664 = vmatprep.mubr.bf16.mxu0 0
    %3665 = vmatmul.mubr.bf16.gmra.mrb[0].mxu0 %v3627
    %v3666 = vpop.f32.mrb[0].mxu0
    %v3667 = vadd.f32 0.0, %v3666
    %v3668 = vpop.f32.mrb[0].mxu0
    %v3669 = vpop.f32.mrb[0].mxu0
    %v3670 = vpop.f32.mrb[0].mxu0
    %3671 = vdwg.mxu0
    %3672 = vrot.lane.b32.xlu0 %v440, 40
    %v3673 = vpop.permute.xlu0 %3672
    %v3675 = vsel %vm490, %v3617, 0
    %v3678 = vsel %vm256, %v3673, 0
    %3680 = vmatprep.subr.bf16.mxu0 0
    %3681 = vmatpush1.bf16.msra.mxu0 %v3678
    %3682 = vmatprep.subr.bf16.mxu0 0
    %3683 = vmatpush1.bf16.msra.mxu0 0
    %3684 = vmatprep.subr.bf16.mxu0 0
    %3685 = vmatpush1.bf16.msra.mxu0 0
    %3686 = vmatprep.subr.bf16.mxu0 0
    %3687 = vmatpush1.bf16.msra.mxu0 0
    %3688 = vmatprep.subr.bf16.mxu0 0
    %3689 = vmatpush1.bf16.msra.mxu0 0
    %3690 = vmatprep.subr.bf16.mxu0 0
    %3691 = vmatpush1.bf16.msra.mxu0 0
    %3692 = vmatprep.subr.bf16.mxu0 0
    %3693 = vmatpush1.bf16.msra.mxu0 0
    %3694 = vmatprep.subr.bf16.mxu0 0
    %3695 = vmatpush1.bf16.msra.mxu0 0
    %3696 = vmatprep.subr.bf16.mxu0 0
    %3697 = vmatpush1.bf16.msra.mxu0 0
    %3698 = vmatprep.subr.bf16.mxu0 0
    %3699 = vmatpush1.bf16.msra.mxu0 0
    %3700 = vmatprep.subr.bf16.mxu0 0
    %3701 = vmatpush1.bf16.msra.mxu0 0
    %3702 = vmatprep.subr.bf16.mxu0 0
    %3703 = vmatpush1.bf16.msra.mxu0 0
    %3704 = vmatprep.subr.bf16.mxu0 0
    %3705 = vmatpush1.bf16.msra.mxu0 0
    %3706 = vmatprep.subr.bf16.mxu0 0
    %3707 = vmatpush1.bf16.msra.mxu0 0
    %3708 = vmatprep.subr.bf16.mxu0 0
    %3709 = vmatpush1.bf16.msra.mxu0 0
    %3710 = vmatprep.subr.bf16.mxu0 0
    %3711 = vmatpush1.bf16.msra.mxu0 0
    %3712 = vmatprep.mubr.bf16.mxu0 0
    %3713 = vmatmul.mubr.bf16.gmra.mrb[0].mxu0 %v3675
    %v3714 = vpop.f32.mrb[0].mxu0
    %v3715 = vadd.f32 0.0, %v3714
    %v3716 = vpop.f32.mrb[0].mxu0
    %v3717 = vpop.f32.mrb[0].mxu0
    %v3718 = vpop.f32.mrb[0].mxu0
    %3719 = vdwg.mxu0
    %3720 = vrot.lane.b32.xlu0 %v441, 40
    %v3721 = vpop.permute.xlu0 %3720
    %v3723 = vsel %vm490, %v3618, 0
    %v3726 = vsel %vm256, %v3721, 0
    %3728 = vmatprep.subr.bf16.mxu0 0
    %3729 = vmatpush1.bf16.msra.mxu0 %v3726
    %3730 = vmatprep.subr.bf16.mxu0 0
    %3731 = vmatpush1.bf16.msra.mxu0 0
    %3732 = vmatprep.subr.bf16.mxu0 0
    %3733 = vmatpush1.bf16.msra.mxu0 0
    %3734 = vmatprep.subr.bf16.mxu0 0
    %3735 = vmatpush1.bf16.msra.mxu0 0
    %3736 = vmatprep.subr.bf16.mxu0 0
    %3737 = vmatpush1.bf16.msra.mxu0 0
    %3738 = vmatprep.subr.bf16.mxu0 0
    %3739 = vmatpush1.bf16.msra.mxu0 0
    %3740 = vmatprep.subr.bf16.mxu0 0
    %3741 = vmatpush1.bf16.msra.mxu0 0
    %3742 = vmatprep.subr.bf16.mxu0 0
    %3743 = vmatpush1.bf16.msra.mxu0 0
    %3744 = vmatprep.subr.bf16.mxu0 0
    %3745 = vmatpush1.bf16.msra.mxu0 0
    %3746 = vmatprep.subr.bf16.mxu0 0
    %3747 = vmatpush1.bf16.msra.mxu0 0
    %3748 = vmatprep.subr.bf16.mxu0 0
    %3749 = vmatpush1.bf16.msra.mxu0 0
    %3750 = vmatprep.subr.bf16.mxu0 0
    %3751 = vmatpush1.bf16.msra.mxu0 0
    %3752 = vmatprep.subr.bf16.mxu0 0
    %3753 = vmatpush1.bf16.msra.mxu0 0
    %3754 = vmatprep.subr.bf16.mxu0 0
    %3755 = vmatpush1.bf16.msra.mxu0 0
    %3756 = vmatprep.subr.bf16.mxu0 0
    %3757 = vmatpush1.bf16.msra.mxu0 0
    %3758 = vmatprep.subr.bf16.mxu0 0
    %3759 = vmatpush1.bf16.msra.mxu0 0
    %3760 = vmatprep.mubr.bf16.mxu0 0
    %3761 = vmatmul.mubr.bf16.gmra.mrb[0].mxu0 %v3723
    %v3762 = vpop.f32.mrb[0].mxu0
    %v3763 = vadd.f32 0.0, %v3762
    %v3764 = vpop.f32.mrb[0].mxu0
    %v3765 = vpop.f32.mrb[0].mxu0
    %v3766 = vpop.f32.mrb[0].mxu0
    %3767 = vdwg.mxu0
    %3768 = vrot.lane.b32.xlu0 %v442, 40
    %v3769 = vpop.permute.xlu0 %3768
    %v3771 = vsel %vm490, %v3619, 0
    %v3774 = vsel %vm256, %v3769, 0
    %3776 = vmatprep.subr.bf16.mxu0 0
    %3777 = vmatpush1.bf16.msra.mxu0 %v3774
    %3778 = vmatprep.subr.bf16.mxu0 0
    %3779 = vmatpush1.bf16.msra.mxu0 0
    %3780 = vmatprep.subr.bf16.mxu0 0
    %3781 = vmatpush1.bf16.msra.mxu0 0
    %3782 = vmatprep.subr.bf16.mxu0 0
    %3783 = vmatpush1.bf16.msra.mxu0 0
    %3784 = vmatprep.subr.bf16.mxu0 0
    %3785 = vmatpush1.bf16.msra.mxu0 0
    %3786 = vmatprep.subr.bf16.mxu0 0
    %3787 = vmatpush1.bf16.msra.mxu0 0
    %3788 = vmatprep.subr.bf16.mxu0 0
    %3789 = vmatpush1.bf16.msra.mxu0 0
    %3790 = vmatprep.subr.bf16.mxu0 0
    %3791 = vmatpush1.bf16.msra.mxu0 0
    %3792 = vmatprep.subr.bf16.mxu0 0
    %3793 = vmatpush1.bf16.msra.mxu0 0
    %3794 = vmatprep.subr.bf16.mxu0 0
    %3795 = vmatpush1.bf16.msra.mxu0 0
    %3796 = vmatprep.subr.bf16.mxu0 0
    %3797 = vmatpush1.bf16.msra.mxu0 0
    %3798 = vmatprep.subr.bf16.mxu0 0
    %3799 = vmatpush1.bf16.msra.mxu0 0
    %3800 = vmatprep.subr.bf16.mxu0 0
    %3801 = vmatpush1.bf16.msra.mxu0 0
    %3802 = vmatprep.subr.bf16.mxu0 0
    %3803 = vmatpush1.bf16.msra.mxu0 0
    %3804 = vmatprep.subr.bf16.mxu0 0
    %3805 = vmatpush1.bf16.msra.mxu0 0
    %3806 = vmatprep.subr.bf16.mxu0 0
    %3807 = vmatpush1.bf16.msra.mxu0 0
    %3808 = vmatprep.mubr.bf16.mxu0 0
    %3809 = vmatmul.mubr.bf16.gmra.mrb[0].mxu0 %v3771
    %v3810 = vpop.f32.mrb[0].mxu0
    %v3811 = vadd.f32 0.0, %v3810
    %v3812 = vpop.f32.mrb[0].mxu0
    %v3813 = vpop.f32.mrb[0].mxu0
    %v3814 = vpop.f32.mrb[0].mxu0
    %3815 = vdwg.mxu0
    %3816 = vrot.lane.b32.xlu0 %v443, 40
    %v3817 = vpop.permute.xlu0 %3816
    %v3819 = vsel %vm490, %v3620, 0
    %v3822 = vsel %vm256, %v3817, 0
    %3824 = vmatprep.subr.bf16.mxu0 0
    %3825 = vmatpush1.bf16.msra.mxu0 %v3822
    %3826 = vmatprep.subr.bf16.mxu0 0
    %3827 = vmatpush1.bf16.msra.mxu0 0
    %3828 = vmatprep.subr.bf16.mxu0 0
    %3829 = vmatpush1.bf16.msra.mxu0 0
    %3830 = vmatprep.subr.bf16.mxu0 0
    %3831 = vmatpush1.bf16.msra.mxu0 0
    %3832 = vmatprep.subr.bf16.mxu0 0
    %3833 = vmatpush1.bf16.msra.mxu0 0
    %3834 = vmatprep.subr.bf16.mxu0 0
    %3835 = vmatpush1.bf16.msra.mxu0 0
    %3836 = vmatprep.subr.bf16.mxu0 0
    %3837 = vmatpush1.bf16.msra.mxu0 0
    %3838 = vmatprep.subr.bf16.mxu0 0
    %3839 = vmatpush1.bf16.msra.mxu0 0
    %3840 = vmatprep.subr.bf16.mxu0 0
    %3841 = vmatpush1.bf16.msra.mxu0 0
    %3842 = vmatprep.subr.bf16.mxu0 0
    %3843 = vmatpush1.bf16.msra.mxu0 0
    %3844 = vmatprep.subr.bf16.mxu0 0
    %3845 = vmatpush1.bf16.msra.mxu0 0
    %3846 = vmatprep.subr.bf16.mxu0 0
    %3847 = vmatpush1.bf16.msra.mxu0 0
    %3848 = vmatprep.subr.bf16.mxu0 0
    %3849 = vmatpush1.bf16.msra.mxu0 0
    %3850 = vmatprep.subr.bf16.mxu0 0
    %3851 = vmatpush1.bf16.msra.mxu0 0
    %3852 = vmatprep.subr.bf16.mxu0 0
    %3853 = vmatpush1.bf16.msra.mxu0 0
    %3854 = vmatprep.subr.bf16.mxu0 0
    %3855 = vmatpush1.bf16.msra.mxu0 0
    %3856 = vmatprep.mubr.bf16.mxu0 0
    %3857 = vmatmul.mubr.bf16.gmra.mrb[0].mxu0 %v3819
    %v3858 = vpop.f32.mrb[0].mxu0
    %v3859 = vadd.f32 0.0, %v3858
    %v3860 = vpop.f32.mrb[0].mxu0
    %v3861 = vpop.f32.mrb[0].mxu0
    %v3862 = vpop.f32.mrb[0].mxu0
    %3863 = vdwg.mxu0
    %3864 = vrot.lane.b32.xlu0 %v444, 40
    %v3865 = vpop.permute.xlu0 %3864
    %v3867 = vsel %vm490, %v3621, 0
    %v3870 = vsel %vm256, %v3865, 0
    %3872 = vmatprep.subr.bf16.mxu0 0
    %3873 = vmatpush1.bf16.msra.mxu0 %v3870
    %3874 = vmatprep.subr.bf16.mxu0 0
    %3875 = vmatpush1.bf16.msra.mxu0 0
    %3876 = vmatprep.subr.bf16.mxu0 0
    %3877 = vmatpush1.bf16.msra.mxu0 0
    %3878 = vmatprep.subr.bf16.mxu0 0
    %3879 = vmatpush1.bf16.msra.mxu0 0
    %3880 = vmatprep.subr.bf16.mxu0 0
    %3881 = vmatpush1.bf16.msra.mxu0 0
    %3882 = vmatprep.subr.bf16.mxu0 0
    %3883 = vmatpush1.bf16.msra.mxu0 0
    %3884 = vmatprep.subr.bf16.mxu0 0
    %3885 = vmatpush1.bf16.msra.mxu0 0
    %3886 = vmatprep.subr.bf16.mxu0 0
    %3887 = vmatpush1.bf16.msra.mxu0 0
    %3888 = vmatprep.subr.bf16.mxu0 0
    %3889 = vmatpush1.bf16.msra.mxu0 0
    %3890 = vmatprep.subr.bf16.mxu0 0
    %3891 = vmatpush1.bf16.msra.mxu0 0
    %3892 = vmatprep.subr.bf16.mxu0 0
    %3893 = vmatpush1.bf16.msra.mxu0 0
    %3894 = vmatprep.subr.bf16.mxu0 0
    %3895 = vmatpush1.bf16.msra.mxu0 0
    %3896 = vmatprep.subr.bf16.mxu0 0
    %3897 = vmatpush1.bf16.msra.mxu0 0
    %3898 = vmatprep.subr.bf16.mxu0 0
    %3899 = vmatpush1.bf16.msra.mxu0 0
    %3900 = vmatprep.subr.bf16.mxu0 0
    %3901 = vmatpush1.bf16.msra.mxu0 0
    %3902 = vmatprep.subr.bf16.mxu0 0
    %3903 = vmatpush1.bf16.msra.mxu0 0
    %3904 = vmatprep.mubr.bf16.mxu0 0
    %3905 = vmatmul.mubr.bf16.gmra.mrb[0].mxu0 %v3867
    %v3906 = vpop.f32.mrb[0].mxu0
    %v3907 = vadd.f32 0.0, %v3906
    %v3908 = vpop.f32.mrb[0].mxu0
    %v3909 = vpop.f32.mrb[0].mxu0
    %v3910 = vpop.f32.mrb[0].mxu0
    %3911 = vdwg.mxu0
    %3912 = vrot.lane.b32.xlu0 %v445, 40
    %v3913 = vpop.permute.xlu0 %3912
    %v3915 = vsel %vm490, %v3622, 0
    %v3918 = vsel %vm256, %v3913, 0
    %3920 = vmatprep.subr.bf16.mxu0 0
    %3921 = vmatpush1.bf16.msra.mxu0 %v3918
    %3922 = vmatprep.subr.bf16.mxu0 0
    %3923 = vmatpush1.bf16.msra.mxu0 0
    %3924 = vmatprep.subr.bf16.mxu0 0
    %3925 = vmatpush1.bf16.msra.mxu0 0
    %3926 = vmatprep.subr.bf16.mxu0 0
    %3927 = vmatpush1.bf16.msra.mxu0 0
    %3928 = vmatprep.subr.bf16.mxu0 0
    %3929 = vmatpush1.bf16.msra.mxu0 0
    %3930 = vmatprep.subr.bf16.mxu0 0
    %3931 = vmatpush1.bf16.msra.mxu0 0
    %3932 = vmatprep.subr.bf16.mxu0 0
    %3933 = vmatpush1.bf16.msra.mxu0 0
    %3934 = vmatprep.subr.bf16.mxu0 0
    %3935 = vmatpush1.bf16.msra.mxu0 0
    %3936 = vmatprep.subr.bf16.mxu0 0
    %3937 = vmatpush1.bf16.msra.mxu0 0
    %3938 = vmatprep.subr.bf16.mxu0 0
    %3939 = vmatpush1.bf16.msra.mxu0 0
    %3940 = vmatprep.subr.bf16.mxu0 0
    %3941 = vmatpush1.bf16.msra.mxu0 0
    %3942 = vmatprep.subr.bf16.mxu0 0
    %3943 = vmatpush1.bf16.msra.mxu0 0
    %3944 = vmatprep.subr.bf16.mxu0 0
    %3945 = vmatpush1.bf16.msra.mxu0 0
    %3946 = vmatprep.subr.bf16.mxu0 0
    %3947 = vmatpush1.bf16.msra.mxu0 0
    %3948 = vmatprep.subr.bf16.mxu0 0
    %3949 = vmatpush1.bf16.msra.mxu0 0
    %3950 = vmatprep.subr.bf16.mxu0 0
    %3951 = vmatpush1.bf16.msra.mxu0 0
    %3952 = vmatprep.mubr.bf16.mxu0 0
    %3953 = vmatmul.mubr.bf16.gmra.mrb[0].mxu0 %v3915
    %v3954 = vpop.f32.mrb[0].mxu0
    %v3955 = vadd.f32 0.0, %v3954
    %v3956 = vpop.f32.mrb[0].mxu0
    %v3957 = vpop.f32.mrb[0].mxu0
    %v3958 = vpop.f32.mrb[0].mxu0
    %3959 = vdwg.mxu0
    %3960 = vrot.lane.b32.xlu0 %v446, 40
    %v3961 = vpop.permute.xlu0 %3960
    %v3963 = vsel %vm490, %v3623, 0
    %v3966 = vsel %vm256, %v3961, 0
    %3968 = vmatprep.subr.bf16.mxu0 0
    %3969 = vmatpush1.bf16.msra.mxu0 %v3966
    %3970 = vmatprep.subr.bf16.mxu0 0
    %3971 = vmatpush1.bf16.msra.mxu0 0
    %3972 = vmatprep.subr.bf16.mxu0 0
    %3973 = vmatpush1.bf16.msra.mxu0 0
    %3974 = vmatprep.subr.bf16.mxu0 0
    %3975 = vmatpush1.bf16.msra.mxu0 0
    %3976 = vmatprep.subr.bf16.mxu0 0
    %3977 = vmatpush1.bf16.msra.mxu0 0
    %3978 = vmatprep.subr.bf16.mxu0 0
    %3979 = vmatpush1.bf16.msra.mxu0 0
    %3980 = vmatprep.subr.bf16.mxu0 0
    %3981 = vmatpush1.bf16.msra.mxu0 0
    %3982 = vmatprep.subr.bf16.mxu0 0
    %3983 = vmatpush1.bf16.msra.mxu0 0
    %3984 = vmatprep.subr.bf16.mxu0 0
    %3985 = vmatpush1.bf16.msra.mxu0 0
    %3986 = vmatprep.subr.bf16.mxu0 0
    %3987 = vmatpush1.bf16.msra.mxu0 0
    %3988 = vmatprep.subr.bf16.mxu0 0
    %3989 = vmatpush1.bf16.msra.mxu0 0
    %3990 = vmatprep.subr.bf16.mxu0 0
    %3991 = vmatpush1.bf16.msra.mxu0 0
    %3992 = vmatprep.subr.bf16.mxu0 0
    %3993 = vmatpush1.bf16.msra.mxu0 0
    %3994 = vmatprep.subr.bf16.mxu0 0
    %3995 = vmatpush1.bf16.msra.mxu0 0
    %3996 = vmatprep.subr.bf16.mxu0 0
    %3997 = vmatpush1.bf16.msra.mxu0 0
    %3998 = vmatprep.subr.bf16.mxu0 0
    %3999 = vmatpush1.bf16.msra.mxu0 0
    %4000 = vmatprep.mubr.bf16.mxu0 0
    %4001 = vmatmul.mubr.bf16.gmra.mrb[0].mxu0 %v3963
    %v4002 = vpop.f32.mrb[0].mxu0
    %v4003 = vadd.f32 0.0, %v4002
    %v4004 = vpop.f32.mrb[0].mxu0
    %v4005 = vpop.f32.mrb[0].mxu0
    %v4006 = vpop.f32.mrb[0].mxu0
    %4007 = vdwg.mxu0
    %v4008 = vpack.c.bf16 %v1067, %v1019
    %v4009 = vpack.c.bf16 %v1163, %v1115
    %v4010 = vpack.c.bf16 %v1259, %v1211
    %v4011 = vpack.c.bf16 %v1355, %v1307
    %v4013 = vsel %vm490, %v4008, 0
    %v4016 = vsel %vm490, %v4009, 0
    %v4019 = vsel %vm490, %v4010, 0
    %v4022 = vsel %vm490, %v4011, 0
    %v4025 = vsel %vm256, %v88, 0
    %4027 = vmatprep.subr.bf16.mxu0 0
    %4028 = vmatpush1.bf16.msra.mxu0 %v4025
    %4029 = vmatprep.subr.bf16.mxu0 0
    %4030 = vmatpush1.bf16.msra.mxu0 0
    %4031 = vmatprep.subr.bf16.mxu0 0
    %4032 = vmatpush1.bf16.msra.mxu0 0
    %4033 = vmatprep.subr.bf16.mxu0 0
    %4034 = vmatpush1.bf16.msra.mxu0 0
    %4035 = vmatprep.subr.bf16.mxu0 0
    %4036 = vmatpush1.bf16.msra.mxu0 0
    %4037 = vmatprep.subr.bf16.mxu0 0
    %4038 = vmatpush1.bf16.msra.mxu0 0
    %4039 = vmatprep.subr.bf16.mxu0 0
    %4040 = vmatpush1.bf16.msra.mxu0 0
    %4041 = vmatprep.subr.bf16.mxu0 0
    %4042 = vmatpush1.bf16.msra.mxu0 0
    %4043 = vmatprep.subr.bf16.mxu0 0
    %4044 = vmatpush1.bf16.msra.mxu0 0
    %4045 = vmatprep.subr.bf16.mxu0 0
    %4046 = vmatpush1.bf16.msra.mxu0 0
    %4047 = vmatprep.subr.bf16.mxu0 0
    %4048 = vmatpush1.bf16.msra.mxu0 0
    %4049 = vmatprep.subr.bf16.mxu0 0
    %4050 = vmatpush1.bf16.msra.mxu0 0
    %4051 = vmatprep.subr.bf16.mxu0 0
    %4052 = vmatpush1.bf16.msra.mxu0 0
    %4053 = vmatprep.subr.bf16.mxu0 0
    %4054 = vmatpush1.bf16.msra.mxu0 0
    %4055 = vmatprep.subr.bf16.mxu0 0
    %4056 = vmatpush1.bf16.msra.mxu0 0
    %4057 = vmatprep.subr.bf16.mxu0 0
    %4058 = vmatpush1.bf16.msra.mxu0 0
    %4059 = vmatprep.mubr.bf16.mxu0 0
    %4060 = vmatmul.mubr.bf16.gmra.mrb[0].mxu0 %v4013
    %v4061 = vpop.f32.mrb[0].mxu0
    %v4062 = vadd.f32 0.0, %v4061
    %v4063 = vpop.f32.mrb[0].mxu0
    %v4064 = vpop.f32.mrb[0].mxu0
    %v4065 = vadd.f32 0.0, %v4064
    %v4066 = vpop.f32.mrb[0].mxu0
    %4067 = vmatprep.mubr.bf16.mxu0 0
    %4068 = vmatmul.mubr.bf16.gmra.mrb[0].mxu0 %v4016
    %v4069 = vpop.f32.mrb[0].mxu0
    %v4070 = vadd.f32 0.0, %v4069
    %v4071 = vpop.f32.mrb[0].mxu0
    %v4072 = vpop.f32.mrb[0].mxu0
    %v4073 = vadd.f32 0.0, %v4072
    %v4074 = vpop.f32.mrb[0].mxu0
    %4075 = vmatprep.mubr.bf16.mxu0 0
    %4076 = vmatmul.mubr.bf16.gmra.mrb[0].mxu0 %v4019
    %v4077 = vpop.f32.mrb[0].mxu0
    %v4078 = vadd.f32 0.0, %v4077
    %v4079 = vpop.f32.mrb[0].mxu0
    %v4080 = vpop.f32.mrb[0].mxu0
    %v4081 = vadd.f32 0.0, %v4080
    %v4082 = vpop.f32.mrb[0].mxu0
    %4083 = vmatprep.mubr.bf16.mxu0 0
    %4084 = vmatmul.mubr.bf16.gmra.mrb[0].mxu0 %v4022
    %v4085 = vpop.f32.mrb[0].mxu0
    %v4086 = vadd.f32 0.0, %v4085
    %v4087 = vpop.f32.mrb[0].mxu0
    %v4088 = vpop.f32.mrb[0].mxu0
    %v4089 = vadd.f32 0.0, %v4088
    %v4090 = vpop.f32.mrb[0].mxu0
    %4091 = vdwg.mxu0
    %v4092 = vlaneseq
    %v4093 = vshrl.u32 %v4092, 7
    %v4094 = vsub.s32 1, %v4093
    %v4095 = vrot.slane %v69, %v4094
    %v4096 = vadd.f32 %v4095, %v4062
    %v4097 = vadd.f32 %v4095, %v4065
    %v4098 = vadd.f32 %v4095, %v4070
    %v4099 = vadd.f32 %v4095, %v4073
    %v4100 = vadd.f32 %v4095, %v4078
    %v4101 = vadd.f32 %v4095, %v4081
    %v4102 = vadd.f32 %v4095, %v4086
    %v4103 = vadd.f32 %v4095, %v4089
    %v4104 = vpack.c.bf16 %v1955, %v1907
    %v4105 = vpack.c.bf16 %v2051, %v2003
    %v4106 = vpack.c.bf16 %v2147, %v2099
    %v4107 = vpack.c.bf16 %v2243, %v2195
    %v4109 = vsel %vm490, %v4104, 0
    %v4112 = vsel %vm490, %v4105, 0
    %v4115 = vsel %vm490, %v4106, 0
    %v4118 = vsel %vm490, %v4107, 0
    %v4121 = vsel %vm256, %v89, 0
    %4123 = vmatprep.subr.bf16.mxu0 0
    %4124 = vmatpush1.bf16.msra.mxu0 %v4121
    %4125 = vmatprep.subr.bf16.mxu0 0
    %4126 = vmatpush1.bf16.msra.mxu0 0
    %4127 = vmatprep.subr.bf16.mxu0 0
    %4128 = vmatpush1.bf16.msra.mxu0 0
    %4129 = vmatprep.subr.bf16.mxu0 0
    %4130 = vmatpush1.bf16.msra.mxu0 0
    %4131 = vmatprep.subr.bf16.mxu0 0
    %4132 = vmatpush1.bf16.msra.mxu0 0
    %4133 = vmatprep.subr.bf16.mxu0 0
    %4134 = vmatpush1.bf16.msra.mxu0 0
    %4135 = vmatprep.subr.bf16.mxu0 0
    %4136 = vmatpush1.bf16.msra.mxu0 0
    %4137 = vmatprep.subr.bf16.mxu0 0
    %4138 = vmatpush1.bf16.msra.mxu0 0
    %4139 = vmatprep.subr.bf16.mxu0 0
    %4140 = vmatpush1.bf16.msra.mxu0 0
    %4141 = vmatprep.subr.bf16.mxu0 0
    %4142 = vmatpush1.bf16.msra.mxu0 0
    %4143 = vmatprep.subr.bf16.mxu0 0
    %4144 = vmatpush1.bf16.msra.mxu0 0
    %4145 = vmatprep.subr.bf16.mxu0 0
    %4146 = vmatpush1.bf16.msra.mxu0 0
    %4147 = vmatprep.subr.bf16.mxu0 0
    %4148 = vmatpush1.bf16.msra.mxu0 0
    %4149 = vmatprep.subr.bf16.mxu0 0
    %4150 = vmatpush1.bf16.msra.mxu0 0
    %4151 = vmatprep.subr.bf16.mxu0 0
    %4152 = vmatpush1.bf16.msra.mxu0 0
    %4153 = vmatprep.subr.bf16.mxu0 0
    %4154 = vmatpush1.bf16.msra.mxu0 0
    %4155 = vmatprep.mubr.bf16.mxu0 0
    %4156 = vmatmul.mubr.bf16.gmra.mrb[0].mxu0 %v4109
    %v4157 = vpop.f32.mrb[0].mxu0
    %v4158 = vadd.f32 0.0, %v4157
    %v4159 = vpop.f32.mrb[0].mxu0
    %v4160 = vpop.f32.mrb[0].mxu0
    %v4161 = vadd.f32 0.0, %v4160
    %v4162 = vpop.f32.mrb[0].mxu0
    %4163 = vmatprep.mubr.bf16.mxu0 0
    %4164 = vmatmul.mubr.bf16.gmra.mrb[0].mxu0 %v4112
    %v4165 = vpop.f32.mrb[0].mxu0
    %v4166 = vadd.f32 0.0, %v4165
    %v4167 = vpop.f32.mrb[0].mxu0
    %v4168 = vpop.f32.mrb[0].mxu0
    %v4169 = vadd.f32 0.0, %v4168
    %v4170 = vpop.f32.mrb[0].mxu0
    %4171 = vmatprep.mubr.bf16.mxu0 0
    %4172 = vmatmul.mubr.bf16.gmra.mrb[0].mxu0 %v4115
    %v4173 = vpop.f32.mrb[0].mxu0
    %v4174 = vadd.f32 0.0, %v4173
    %v4175 = vpop.f32.mrb[0].mxu0
    %v4176 = vpop.f32.mrb[0].mxu0
    %v4177 = vadd.f32 0.0, %v4176
    %v4178 = vpop.f32.mrb[0].mxu0
    %4179 = vmatprep.mubr.bf16.mxu0 0
    %4180 = vmatmul.mubr.bf16.gmra.mrb[0].mxu0 %v4118
    %v4181 = vpop.f32.mrb[0].mxu0
    %v4182 = vadd.f32 0.0, %v4181
    %v4183 = vpop.f32.mrb[0].mxu0
    %v4184 = vpop.f32.mrb[0].mxu0
    %v4185 = vadd.f32 0.0, %v4184
    %v4186 = vpop.f32.mrb[0].mxu0
    %4187 = vdwg.mxu0
    %v4188 = vadd.f32 %v4096, %v4158
    %v4189 = vadd.f32 %v4097, %v4161
    %v4190 = vadd.f32 %v4098, %v4166
    %v4191 = vadd.f32 %v4099, %v4169
    %v4192 = vadd.f32 %v4100, %v4174
    %v4193 = vadd.f32 %v4101, %v4177
    %v4194 = vadd.f32 %v4102, %v4182
    %v4195 = vadd.f32 %v4103, %v4185
    %v4196 = vpack.c.bf16 %v2835, %v2787
    %v4197 = vpack.c.bf16 %v2931, %v2883
    %v4198 = vpack.c.bf16 %v3027, %v2979
    %v4199 = vpack.c.bf16 %v3123, %v3075
    %v4201 = vsel %vm490, %v4196, 0
    %v4204 = vsel %vm490, %v4197, 0
    %v4207 = vsel %vm490, %v4198, 0
    %v4210 = vsel %vm490, %v4199, 0
    %v4213 = vsel %vm256, %v90, 0
    %4215 = vmatprep.subr.bf16.mxu0 0
    %4216 = vmatpush1.bf16.msra.mxu0 %v4213
    %4217 = vmatprep.subr.bf16.mxu0 0
    %4218 = vmatpush1.bf16.msra.mxu0 0
    %4219 = vmatprep.subr.bf16.mxu0 0
    %4220 = vmatpush1.bf16.msra.mxu0 0
    %4221 = vmatprep.subr.bf16.mxu0 0
    %4222 = vmatpush1.bf16.msra.mxu0 0
    %4223 = vmatprep.subr.bf16.mxu0 0
    %4224 = vmatpush1.bf16.msra.mxu0 0
    %4225 = vmatprep.subr.bf16.mxu0 0
    %4226 = vmatpush1.bf16.msra.mxu0 0
    %4227 = vmatprep.subr.bf16.mxu0 0
    %4228 = vmatpush1.bf16.msra.mxu0 0
    %4229 = vmatprep.subr.bf16.mxu0 0
    %4230 = vmatpush1.bf16.msra.mxu0 0
    %4231 = vmatprep.subr.bf16.mxu0 0
    %4232 = vmatpush1.bf16.msra.mxu0 0
    %4233 = vmatprep.subr.bf16.mxu0 0
    %4234 = vmatpush1.bf16.msra.mxu0 0
    %4235 = vmatprep.subr.bf16.mxu0 0
    %4236 = vmatpush1.bf16.msra.mxu0 0
    %4237 = vmatprep.subr.bf16.mxu0 0
    %4238 = vmatpush1.bf16.msra.mxu0 0
    %4239 = vmatprep.subr.bf16.mxu0 0
    %4240 = vmatpush1.bf16.msra.mxu0 0
    %4241 = vmatprep.subr.bf16.mxu0 0
    %4242 = vmatpush1.bf16.msra.mxu0 0
    %4243 = vmatprep.subr.bf16.mxu0 0
    %4244 = vmatpush1.bf16.msra.mxu0 0
    %4245 = vmatprep.subr.bf16.mxu0 0
    %4246 = vmatpush1.bf16.msra.mxu0 0
    %4247 = vmatprep.mubr.bf16.mxu0 0
    %4248 = vmatmul.mubr.bf16.gmra.mrb[0].mxu0 %v4201
    %v4249 = vpop.f32.mrb[0].mxu0
    %v4250 = vadd.f32 0.0, %v4249
    %v4251 = vpop.f32.mrb[0].mxu0
    %v4252 = vpop.f32.mrb[0].mxu0
    %v4253 = vadd.f32 0.0, %v4252
    %v4254 = vpop.f32.mrb[0].mxu0
    %4255 = vmatprep.mubr.bf16.mxu0 0
    %4256 = vmatmul.mubr.bf16.gmra.mrb[0].mxu0 %v4204
    %v4257 = vpop.f32.mrb[0].mxu0
    %v4258 = vadd.f32 0.0, %v4257
    %v4259 = vpop.f32.mrb[0].mxu0
    %v4260 = vpop.f32.mrb[0].mxu0
    %v4261 = vadd.f32 0.0, %v4260
    %v4262 = vpop.f32.mrb[0].mxu0
    %4263 = vmatprep.mubr.bf16.mxu0 0
    %4264 = vmatmul.mubr.bf16.gmra.mrb[0].mxu0 %v4207
    %v4265 = vpop.f32.mrb[0].mxu0
    %v4266 = vadd.f32 0.0, %v4265
    %v4267 = vpop.f32.mrb[0].mxu0
    %v4268 = vpop.f32.mrb[0].mxu0
    %v4269 = vadd.f32 0.0, %v4268
    %v4270 = vpop.f32.mrb[0].mxu0
    %4271 = vmatprep.mubr.bf16.mxu0 0
    %4272 = vmatmul.mubr.bf16.gmra.mrb[0].mxu0 %v4210
    %v4273 = vpop.f32.mrb[0].mxu0
    %v4274 = vadd.f32 0.0, %v4273
    %v4275 = vpop.f32.mrb[0].mxu0
    %v4276 = vpop.f32.mrb[0].mxu0
    %v4277 = vadd.f32 0.0, %v4276
    %v4278 = vpop.f32.mrb[0].mxu0
    %4279 = vdwg.mxu0
    %v4280 = vadd.f32 %v4188, %v4250
    %v4281 = vadd.f32 %v4189, %v4253
    %v4282 = vadd.f32 %v4190, %v4258
    %v4283 = vadd.f32 %v4191, %v4261
    %v4284 = vadd.f32 %v4192, %v4266
    %v4285 = vadd.f32 %v4193, %v4269
    %v4286 = vadd.f32 %v4194, %v4274
    %v4287 = vadd.f32 %v4195, %v4277
    %v4288 = vpack.c.bf16 %v3715, %v3667
    %v4289 = vpack.c.bf16 %v3811, %v3763
    %v4290 = vpack.c.bf16 %v3907, %v3859
    %v4291 = vpack.c.bf16 %v4003, %v3955
    %v4293 = vsel %vm490, %v4288, 0
    %v4296 = vsel %vm490, %v4289, 0
    %v4299 = vsel %vm490, %v4290, 0
    %v4302 = vsel %vm490, %v4291, 0
    %v4305 = vsel %vm256, %v91, 0
    %4307 = vmatprep.subr.bf16.mxu0 0
    %4308 = vmatpush1.bf16.msra.mxu0 %v4305
    %4309 = vmatprep.subr.bf16.mxu0 0
    %4310 = vmatpush1.bf16.msra.mxu0 0
    %4311 = vmatprep.subr.bf16.mxu0 0
    %4312 = vmatpush1.bf16.msra.mxu0 0
    %4313 = vmatprep.subr.bf16.mxu0 0
    %4314 = vmatpush1.bf16.msra.mxu0 0
    %4315 = vmatprep.subr.bf16.mxu0 0
    %4316 = vmatpush1.bf16.msra.mxu0 0
    %4317 = vmatprep.subr.bf16.mxu0 0
    %4318 = vmatpush1.bf16.msra.mxu0 0
    %4319 = vmatprep.subr.bf16.mxu0 0
    %4320 = vmatpush1.bf16.msra.mxu0 0
    %4321 = vmatprep.subr.bf16.mxu0 0
    %4322 = vmatpush1.bf16.msra.mxu0 0
    %4323 = vmatprep.subr.bf16.mxu0 0
    %4324 = vmatpush1.bf16.msra.mxu0 0
    %4325 = vmatprep.subr.bf16.mxu0 0
    %4326 = vmatpush1.bf16.msra.mxu0 0
    %4327 = vmatprep.subr.bf16.mxu0 0
    %4328 = vmatpush1.bf16.msra.mxu0 0
    %4329 = vmatprep.subr.bf16.mxu0 0
    %4330 = vmatpush1.bf16.msra.mxu0 0
    %4331 = vmatprep.subr.bf16.mxu0 0
    %4332 = vmatpush1.bf16.msra.mxu0 0
    %4333 = vmatprep.subr.bf16.mxu0 0
    %4334 = vmatpush1.bf16.msra.mxu0 0
    %4335 = vmatprep.subr.bf16.mxu0 0
    %4336 = vmatpush1.bf16.msra.mxu0 0
    %4337 = vmatprep.subr.bf16.mxu0 0
    %4338 = vmatpush1.bf16.msra.mxu0 0
    %4339 = vmatprep.mubr.bf16.mxu0 0
    %4340 = vmatmul.mubr.bf16.gmra.mrb[0].mxu0 %v4293
    %v4341 = vpop.f32.mrb[0].mxu0
    %v4342 = vadd.f32 0.0, %v4341
    %v4343 = vpop.f32.mrb[0].mxu0
    %v4344 = vpop.f32.mrb[0].mxu0
    %v4345 = vadd.f32 0.0, %v4344
    %v4346 = vpop.f32.mrb[0].mxu0
    %4347 = vmatprep.mubr.bf16.mxu0 0
    %4348 = vmatmul.mubr.bf16.gmra.mrb[0].mxu0 %v4296
    %v4349 = vpop.f32.mrb[0].mxu0
    %v4350 = vadd.f32 0.0, %v4349
    %v4351 = vpop.f32.mrb[0].mxu0
    %v4352 = vpop.f32.mrb[0].mxu0
    %v4353 = vadd.f32 0.0, %v4352
    %v4354 = vpop.f32.mrb[0].mxu0
    %4355 = vmatprep.mubr.bf16.mxu0 0
    %4356 = vmatmul.mubr.bf16.gmra.mrb[0].mxu0 %v4299
    %v4357 = vpop.f32.mrb[0].mxu0
    %v4358 = vadd.f32 0.0, %v4357
    %v4359 = vpop.f32.mrb[0].mxu0
    %v4360 = vpop.f32.mrb[0].mxu0
    %v4361 = vadd.f32 0.0, %v4360
    %v4362 = vpop.f32.mrb[0].mxu0
    %4363 = vmatprep.mubr.bf16.mxu0 0
    %4364 = vmatmul.mubr.bf16.gmra.mrb[0].mxu0 %v4302
    %v4365 = vpop.f32.mrb[0].mxu0
    %v4366 = vadd.f32 0.0, %v4365
    %v4367 = vpop.f32.mrb[0].mxu0
    %v4368 = vpop.f32.mrb[0].mxu0
    %v4369 = vadd.f32 0.0, %v4368
    %v4370 = vpop.f32.mrb[0].mxu0
    %4371 = vdwg.mxu0
    %v4372 = vadd.f32 %v4280, %v4342
    %v4373 = vadd.f32 %v4281, %v4345
    %v4374 = vadd.f32 %v4282, %v4350
    %v4375 = vadd.f32 %v4283, %v4353
    %v4376 = vadd.f32 %v4284, %v4358
    %v4377 = vadd.f32 %v4285, %v4361
    %v4378 = vadd.f32 %v4286, %v4366
    %v4379 = vadd.f32 %v4287, %v4369
    %v4380 = vadd.f32 %v295, %v4372
    %v4381 = vadd.f32 %v298, %v4373
    %v4382 = vadd.f32 %v303, %v4374
    %v4383 = vadd.f32 %v306, %v4375
    %v4384 = vadd.f32 %v311, %v4376
    %v4385 = vadd.f32 %v314, %v4377
    %v4386 = vadd.f32 %v319, %v4378
    %v4387 = vadd.f32 %v322, %v4379
    %v4388 = vsel %vm345, %v4380, 0.0
    %4389 = vadd.xlane.f32.xlu0 %v4388
    %v4390 = vpop.xlane.xlu0 %4389
    %v4391 = vsel %vm345, %v4381, 0.0
    %4392 = vadd.xlane.f32.xlu0 %v4391
    %v4393 = vpop.xlane.xlu0 %4392
    %v4394 = vsel %vm345, %v4382, 0.0
    %4395 = vadd.xlane.f32.xlu0 %v4394
    %v4396 = vpop.xlane.xlu0 %4395
    %v4397 = vsel %vm345, %v4383, 0.0
    %4398 = vadd.xlane.f32.xlu0 %v4397
    %v4399 = vpop.xlane.xlu0 %4398
    %v4400 = vsel %vm345, %v4384, 0.0
    %4401 = vadd.xlane.f32.xlu0 %v4400
    %v4402 = vpop.xlane.xlu0 %4401
    %v4403 = vsel %vm345, %v4385, 0.0
    %4404 = vadd.xlane.f32.xlu0 %v4403
    %v4405 = vpop.xlane.xlu0 %4404
    %v4406 = vsel %vm345, %v4386, 0.0
    %4407 = vadd.xlane.f32.xlu0 %v4406
    %v4408 = vpop.xlane.xlu0 %4407
    %v4409 = vsel %vm345, %v4387, 0.0
    %4410 = vadd.xlane.f32.xlu0 %v4409
    %v4411 = vpop.xlane.xlu0 %4410
    %v4412 = vrcp.pop 32.0
    %v4413 = vmul.f32 %v4390, %v4412
    %v4414 = vmul.f32 %v4393, %v4412
    %v4415 = vmul.f32 %v4396, %v4412
    %v4416 = vmul.f32 %v4399, %v4412
    %v4417 = vmul.f32 %v4402, %v4412
    %v4418 = vmul.f32 %v4405, %v4412
    %v4419 = vmul.f32 %v4408, %v4412
    %v4420 = vmul.f32 %v4411, %v4412
    %v4421 = vsub.f32 %v4380, %v4413
    %v4422 = vsub.f32 %v4381, %v4414
    %v4423 = vsub.f32 %v4382, %v4415
    %v4424 = vsub.f32 %v4383, %v4416
    %v4425 = vsub.f32 %v4384, %v4417
    %v4426 = vsub.f32 %v4385, %v4418
    %v4427 = vsub.f32 %v4386, %v4419
    %v4428 = vsub.f32 %v4387, %v4420
    %v4429 = vmul.f32 %v4421, %v4421
    %v4430 = vmul.f32 %v4422, %v4422
    %v4431 = vmul.f32 %v4423, %v4423
    %v4432 = vmul.f32 %v4424, %v4424
    %v4433 = vmul.f32 %v4425, %v4425
    %v4434 = vmul.f32 %v4426, %v4426
    %v4435 = vmul.f32 %v4427, %v4427
    %v4436 = vmul.f32 %v4428, %v4428
    %v4437 = vsel %vm345, %v4429, 0.0
    %4438 = vadd.xlane.f32.xlu0 %v4437
    %v4439 = vpop.xlane.xlu0 %4438
    %v4440 = vsel %vm345, %v4430, 0.0
    %4441 = vadd.xlane.f32.xlu0 %v4440
    %v4442 = vpop.xlane.xlu0 %4441
    %v4443 = vsel %vm345, %v4431, 0.0
    %4444 = vadd.xlane.f32.xlu0 %v4443
    %v4445 = vpop.xlane.xlu0 %4444
    %v4446 = vsel %vm345, %v4432, 0.0
    %4447 = vadd.xlane.f32.xlu0 %v4446
    %v4448 = vpop.xlane.xlu0 %4447
    %v4449 = vsel %vm345, %v4433, 0.0
    %4450 = vadd.xlane.f32.xlu0 %v4449
    %v4451 = vpop.xlane.xlu0 %4450
    %v4452 = vsel %vm345, %v4434, 0.0
    %4453 = vadd.xlane.f32.xlu0 %v4452
    %v4454 = vpop.xlane.xlu0 %4453
    %v4455 = vsel %vm345, %v4435, 0.0
    %4456 = vadd.xlane.f32.xlu0 %v4455
    %v4457 = vpop.xlane.xlu0 %4456
    %v4458 = vsel %vm345, %v4436, 0.0
    %4459 = vadd.xlane.f32.xlu0 %v4458
    %v4460 = vpop.xlane.xlu0 %4459
    %v4461 = vmul.f32 %v4439, %v4412
    %v4462 = vmul.f32 %v4442, %v4412
    %v4463 = vmul.f32 %v4445, %v4412
    %v4464 = vmul.f32 %v4448, %v4412
    %v4465 = vmul.f32 %v4451, %v4412
    %v4466 = vmul.f32 %v4454, %v4412
    %v4467 = vmul.f32 %v4457, %v4412
    %v4468 = vmul.f32 %v4460, %v4412
    %v4469 = vadd.f32 %v4461, 1e-05
    %v4470 = vadd.f32 %v4462, 1e-05
    %v4471 = vadd.f32 %v4463, 1e-05
    %v4472 = vadd.f32 %v4464, 1e-05
    %v4473 = vadd.f32 %v4465, 1e-05
    %v4474 = vadd.f32 %v4466, 1e-05
    %v4475 = vadd.f32 %v4467, 1e-05
    %v4476 = vadd.f32 %v4468, 1e-05
    %v4477 = vrsqrt.pop %v4469
    %v4478 = vrsqrt.pop %v4470
    %v4479 = vrsqrt.pop %v4471
    %v4480 = vrsqrt.pop %v4472
    %v4481 = vrsqrt.pop %v4473
    %v4482 = vrsqrt.pop %v4474
    %v4483 = vrsqrt.pop %v4475
    %v4484 = vrsqrt.pop %v4476
    %v4485 = vmul.f32 %v4421, %v4477
    %v4486 = vmul.f32 %v4422, %v4478
    %v4487 = vmul.f32 %v4423, %v4479
    %v4488 = vmul.f32 %v4424, %v4480
    %v4489 = vmul.f32 %v4425, %v4481
    %v4490 = vmul.f32 %v4426, %v4482
    %v4491 = vmul.f32 %v4427, %v4483
    %v4492 = vmul.f32 %v4428, %v4484
    %v4493 = vlaneseq
    %v4494 = vshrl.u32 %v4493, 7
    %v4495 = vsub.s32 2, %v4494
    %v4496 = vrot.slane %v69, %v4495
    %v4497 = vmul.f32 %v4485, %v4496
    %v4498 = vmul.f32 %v4486, %v4496
    %v4499 = vmul.f32 %v4487, %v4496
    %v4500 = vmul.f32 %v4488, %v4496
    %v4501 = vmul.f32 %v4489, %v4496
    %v4502 = vmul.f32 %v4490, %v4496
    %v4503 = vmul.f32 %v4491, %v4496
    %v4504 = vmul.f32 %v4492, %v4496
    %v4505 = vlaneseq
    %v4506 = vshrl.u32 %v4505, 7
    %v4507 = vsub.s32 3, %v4506
    %v4508 = vrot.slane %v69, %v4507
    %v4509 = vadd.f32 %v4497, %v4508
    %v4510 = vadd.f32 %v4498, %v4508
    %v4511 = vadd.f32 %v4499, %v4508
    %v4512 = vadd.f32 %v4500, %v4508
    %v4513 = vadd.f32 %v4501, %v4508
    %v4514 = vadd.f32 %v4502, %v4508
    %v4515 = vadd.f32 %v4503, %v4508
    %v4516 = vadd.f32 %v4504, %v4508
    %v4517 = vpack.c.bf16 %v4510, %v4509
    %v4518 = vpack.c.bf16 %v4512, %v4511
    %v4519 = vpack.c.bf16 %v4514, %v4513
    %v4520 = vpack.c.bf16 %v4516, %v4515
    %v4521 = vlaneseq
    %v4522 = vshrl.u32 %v4521, 7
    %v4523 = vsub.s32 4, %v4522
    %v4524 = vrot.slane %v69, %v4523
    %v4529 = vunpack.c.l.b16 %v92
    %v4530 = vunpack.c.l.b16 %v93
    %v4531 = vunpack.c.l.b16 %v94
    %v4532 = vunpack.c.l.b16 %v95
    %v4533 = vpack.c.b16 %v4530, %v4529
    %v4534 = vpack.c.b16 %v4532, %v4531
    %v4538 = vsel %vm345, %v4517, 0
    %v4541 = vsel %vm345, %v4518, 0
    %v4544 = vsel %vm345, %v4519, 0
    %v4547 = vsel %vm345, %v4520, 0
    %4549 = vmatprep.subr.bf16.mxu0 0
    %4550 = vmatpush1.bf16.msra.mxu0 %v4533
    %4551 = vmatprep.subr.bf16.mxu0 0
    %4552 = vmatpush1.bf16.msra.mxu0 %v4534
    %4553 = vmatprep.subr.bf16.mxu0 0
    %4554 = vmatpush1.bf16.msra.mxu0 0
    %4555 = vmatprep.subr.bf16.mxu0 0
    %4556 = vmatpush1.bf16.msra.mxu0 0
    %4557 = vmatprep.subr.bf16.mxu0 0
    %4558 = vmatpush1.bf16.msra.mxu0 0
    %4559 = vmatprep.subr.bf16.mxu0 0
    %4560 = vmatpush1.bf16.msra.mxu0 0
    %4561 = vmatprep.subr.bf16.mxu0 0
    %4562 = vmatpush1.bf16.msra.mxu0 0
    %4563 = vmatprep.subr.bf16.mxu0 0
    %4564 = vmatpush1.bf16.msra.mxu0 0
    %4565 = vmatprep.subr.bf16.mxu0 0
    %4566 = vmatpush1.bf16.msra.mxu0 0
    %4567 = vmatprep.subr.bf16.mxu0 0
    %4568 = vmatpush1.bf16.msra.mxu0 0
    %4569 = vmatprep.subr.bf16.mxu0 0
    %4570 = vmatpush1.bf16.msra.mxu0 0
    %4571 = vmatprep.subr.bf16.mxu0 0
    %4572 = vmatpush1.bf16.msra.mxu0 0
    %4573 = vmatprep.subr.bf16.mxu0 0
    %4574 = vmatpush1.bf16.msra.mxu0 0
    %4575 = vmatprep.subr.bf16.mxu0 0
    %4576 = vmatpush1.bf16.msra.mxu0 0
    %4577 = vmatprep.subr.bf16.mxu0 0
    %4578 = vmatpush1.bf16.msra.mxu0 0
    %4579 = vmatprep.subr.bf16.mxu0 0
    %4580 = vmatpush1.bf16.msra.mxu0 0
    %4581 = vmatprep.mubr.bf16.mxu0 0
    %4582 = vmatmul.mubr.bf16.gmra.mrb[0].mxu0 %v4538
    %v4583 = vpop.f32.mrb[0].mxu0
    %v4584 = vadd.f32 %v4524, %v4583
    %v4585 = vpop.f32.mrb[0].mxu0
    %v4586 = vpop.f32.mrb[0].mxu0
    %v4587 = vadd.f32 %v4524, %v4586
    %v4588 = vpop.f32.mrb[0].mxu0
    %4589 = vmatprep.mubr.bf16.mxu0 0
    %4590 = vmatmul.mubr.bf16.gmra.mrb[0].mxu0 %v4541
    %v4591 = vpop.f32.mrb[0].mxu0
    %v4592 = vadd.f32 %v4524, %v4591
    %v4593 = vpop.f32.mrb[0].mxu0
    %v4594 = vpop.f32.mrb[0].mxu0
    %v4595 = vadd.f32 %v4524, %v4594
    %v4596 = vpop.f32.mrb[0].mxu0
    %4597 = vmatprep.mubr.bf16.mxu0 0
    %4598 = vmatmul.mubr.bf16.gmra.mrb[0].mxu0 %v4544
    %v4599 = vpop.f32.mrb[0].mxu0
    %v4600 = vadd.f32 %v4524, %v4599
    %v4601 = vpop.f32.mrb[0].mxu0
    %v4602 = vpop.f32.mrb[0].mxu0
    %v4603 = vadd.f32 %v4524, %v4602
    %v4604 = vpop.f32.mrb[0].mxu0
    %4605 = vmatprep.mubr.bf16.mxu0 0
    %4606 = vmatmul.mubr.bf16.gmra.mrb[0].mxu0 %v4547
    %v4607 = vpop.f32.mrb[0].mxu0
    %v4608 = vadd.f32 %v4524, %v4607
    %v4609 = vpop.f32.mrb[0].mxu0
    %v4610 = vpop.f32.mrb[0].mxu0
    %v4611 = vadd.f32 %v4524, %v4610
    %v4612 = vpop.f32.mrb[0].mxu0
    %4613 = vdwg.mxu0
    %v4614 = vmax.f32 %v4584, 0.0
    %v4615 = vmax.f32 %v4587, 0.0
    %v4616 = vmax.f32 %v4592, 0.0
    %v4617 = vmax.f32 %v4595, 0.0
    %v4618 = vmax.f32 %v4600, 0.0
    %v4619 = vmax.f32 %v4603, 0.0
    %v4620 = vmax.f32 %v4608, 0.0
    %v4621 = vmax.f32 %v4611, 0.0
    %v4622 = vpack.c.bf16 %v4615, %v4614
    %v4623 = vpack.c.bf16 %v4617, %v4616
    %v4624 = vpack.c.bf16 %v4619, %v4618
    %v4625 = vpack.c.bf16 %v4621, %v4620
    %v4642 = vunpack.c.l.b16 %v96
    %v4643 = vunpack.c.l.b16 %v97
    %v4644 = vunpack.c.l.b16 %v98
    %v4645 = vunpack.c.l.b16 %v99
    %v4646 = vunpack.c.l.b16 %v100
    %v4647 = vunpack.c.l.b16 %v101
    %v4648 = vunpack.c.l.b16 %v102
    %v4649 = vunpack.c.l.b16 %v103
    %v4650 = vunpack.c.l.b16 %v104
    %v4651 = vunpack.c.l.b16 %v105
    %v4652 = vunpack.c.l.b16 %v106
    %v4653 = vunpack.c.l.b16 %v107
    %v4654 = vunpack.c.l.b16 %v108
    %v4655 = vunpack.c.l.b16 %v109
    %v4656 = vunpack.c.l.b16 %v110
    %v4657 = vunpack.c.l.b16 %v111
    %v4658 = vpack.c.b16 %v4643, %v4642
    %v4659 = vpack.c.b16 %v4645, %v4644
    %v4660 = vpack.c.b16 %v4647, %v4646
    %v4661 = vpack.c.b16 %v4649, %v4648
    %v4662 = vpack.c.b16 %v4651, %v4650
    %v4663 = vpack.c.b16 %v4653, %v4652
    %v4664 = vpack.c.b16 %v4655, %v4654
    %v4665 = vpack.c.b16 %v4657, %v4656
    %4674 = vmatprep.subr.bf16.mxu0 0
    %4675 = vmatpush1.bf16.msra.mxu0 %v4658
    %4676 = vmatprep.subr.bf16.mxu0 0
    %4677 = vmatpush1.bf16.msra.mxu0 %v4659
    %4678 = vmatprep.subr.bf16.mxu0 0
    %4679 = vmatpush1.bf16.msra.mxu0 %v4660
    %4680 = vmatprep.subr.bf16.mxu0 0
    %4681 = vmatpush1.bf16.msra.mxu0 %v4661
    %4682 = vmatprep.subr.bf16.mxu0 0
    %4683 = vmatpush1.bf16.msra.mxu0 %v4662
    %4684 = vmatprep.subr.bf16.mxu0 0
    %4685 = vmatpush1.bf16.msra.mxu0 %v4663
    %4686 = vmatprep.subr.bf16.mxu0 0
    %4687 = vmatpush1.bf16.msra.mxu0 %v4664
    %4688 = vmatprep.subr.bf16.mxu0 0
    %4689 = vmatpush1.bf16.msra.mxu0 %v4665
    %4690 = vmatprep.subr.bf16.mxu0 0
    %4691 = vmatpush1.bf16.msra.mxu0 0
    %4692 = vmatprep.subr.bf16.mxu0 0
    %4693 = vmatpush1.bf16.msra.mxu0 0
    %4694 = vmatprep.subr.bf16.mxu0 0
    %4695 = vmatpush1.bf16.msra.mxu0 0
    %4696 = vmatprep.subr.bf16.mxu0 0
    %4697 = vmatpush1.bf16.msra.mxu0 0
    %4698 = vmatprep.subr.bf16.mxu0 0
    %4699 = vmatpush1.bf16.msra.mxu0 0
    %4700 = vmatprep.subr.bf16.mxu0 0
    %4701 = vmatpush1.bf16.msra.mxu0 0
    %4702 = vmatprep.subr.bf16.mxu0 0
    %4703 = vmatpush1.bf16.msra.mxu0 0
    %4704 = vmatprep.subr.bf16.mxu0 0
    %4705 = vmatpush1.bf16.msra.mxu0 0
    %4706 = vmatprep.mubr.bf16.mxu0 0
    %4707 = vmatmul.mubr.bf16.gmra.mrb[0].mxu0 %v4622
    %v4708 = vpop.f32.mrb[0].mxu0
    %v4709 = vadd.f32 0.0, %v4708
    %v4710 = vpop.f32.mrb[0].mxu0
    %v4711 = vpop.f32.mrb[0].mxu0
    %v4712 = vadd.f32 0.0, %v4711
    %v4713 = vpop.f32.mrb[0].mxu0
    %4714 = vmatprep.mubr.bf16.mxu0 0
    %4715 = vmatmul.mubr.bf16.gmra.mrb[0].mxu0 %v4623
    %v4716 = vpop.f32.mrb[0].mxu0
    %v4717 = vadd.f32 0.0, %v4716
    %v4718 = vpop.f32.mrb[0].mxu0
    %v4719 = vpop.f32.mrb[0].mxu0
    %v4720 = vadd.f32 0.0, %v4719
    %v4721 = vpop.f32.mrb[0].mxu0
    %4722 = vmatprep.mubr.bf16.mxu0 0
    %4723 = vmatmul.mubr.bf16.gmra.mrb[0].mxu0 %v4624
    %v4724 = vpop.f32.mrb[0].mxu0
    %v4725 = vadd.f32 0.0, %v4724
    %v4726 = vpop.f32.mrb[0].mxu0
    %v4727 = vpop.f32.mrb[0].mxu0
    %v4728 = vadd.f32 0.0, %v4727
    %v4729 = vpop.f32.mrb[0].mxu0
    %4730 = vmatprep.mubr.bf16.mxu0 0
    %4731 = vmatmul.mubr.bf16.gmra.mrb[0].mxu0 %v4625
    %v4732 = vpop.f32.mrb[0].mxu0
    %v4733 = vadd.f32 0.0, %v4732
    %v4734 = vpop.f32.mrb[0].mxu0
    %v4735 = vpop.f32.mrb[0].mxu0
    %v4736 = vadd.f32 0.0, %v4735
    %v4737 = vpop.f32.mrb[0].mxu0
    %4738 = vdwg.mxu0
    %v4739 = vadd.f32 %v4509, %v4709
    %v4740 = vadd.f32 %v4510, %v4712
    %v4741 = vadd.f32 %v4511, %v4717
    %v4742 = vadd.f32 %v4512, %v4720
    %v4743 = vadd.f32 %v4513, %v4725
    %v4744 = vadd.f32 %v4514, %v4728
    %v4745 = vadd.f32 %v4515, %v4733
    %v4746 = vadd.f32 %v4516, %v4736
    %v4747 = vlaneseq
    %v4748 = vshrl.u32 %v4747, 7
    %v4749 = vsub.s32 5, %v4748
    %v4750 = vrot.slane %v69, %v4749
    %v4751 = vadd.f32 %v4739, %v4750
    %v4752 = vadd.f32 %v4740, %v4750
    %v4753 = vadd.f32 %v4741, %v4750
    %v4754 = vadd.f32 %v4742, %v4750
    %v4755 = vadd.f32 %v4743, %v4750
    %v4756 = vadd.f32 %v4744, %v4750
    %v4757 = vadd.f32 %v4745, %v4750
    %v4758 = vadd.f32 %v4746, %v4750
    %v4759 = vsel %vm345, %v4751, 0.0
    %4760 = vadd.xlane.f32.xlu0 %v4759
    %v4761 = vpop.xlane.xlu0 %4760
    %v4762 = vsel %vm345, %v4752, 0.0
    %4763 = vadd.xlane.f32.xlu0 %v4762
    %v4764 = vpop.xlane.xlu0 %4763
    %v4765 = vsel %vm345, %v4753, 0.0
    %4766 = vadd.xlane.f32.xlu0 %v4765
    %v4767 = vpop.xlane.xlu0 %4766
    %v4768 = vsel %vm345, %v4754, 0.0
    %4769 = vadd.xlane.f32.xlu0 %v4768
    %v4770 = vpop.xlane.xlu0 %4769
    %v4771 = vsel %vm345, %v4755, 0.0
    %4772 = vadd.xlane.f32.xlu0 %v4771
    %v4773 = vpop.xlane.xlu0 %4772
    %v4774 = vsel %vm345, %v4756, 0.0
    %4775 = vadd.xlane.f32.xlu0 %v4774
    %v4776 = vpop.xlane.xlu0 %4775
    %v4777 = vsel %vm345, %v4757, 0.0
    %4778 = vadd.xlane.f32.xlu0 %v4777
    %v4779 = vpop.xlane.xlu0 %4778
    %v4780 = vsel %vm345, %v4758, 0.0
    %4781 = vadd.xlane.f32.xlu0 %v4780
    %v4782 = vpop.xlane.xlu0 %4781
    %v4783 = vmul.f32 %v4761, %v4412
    %v4784 = vmul.f32 %v4764, %v4412
    %v4785 = vmul.f32 %v4767, %v4412
    %v4786 = vmul.f32 %v4770, %v4412
    %v4787 = vmul.f32 %v4773, %v4412
    %v4788 = vmul.f32 %v4776, %v4412
    %v4789 = vmul.f32 %v4779, %v4412
    %v4790 = vmul.f32 %v4782, %v4412
    %v4791 = vsub.f32 %v4751, %v4783
    %v4792 = vsub.f32 %v4752, %v4784
    %v4793 = vsub.f32 %v4753, %v4785
    %v4794 = vsub.f32 %v4754, %v4786
    %v4795 = vsub.f32 %v4755, %v4787
    %v4796 = vsub.f32 %v4756, %v4788
    %v4797 = vsub.f32 %v4757, %v4789
    %v4798 = vsub.f32 %v4758, %v4790
    %v4799 = vmul.f32 %v4791, %v4791
    %v4800 = vmul.f32 %v4792, %v4792
    %v4801 = vmul.f32 %v4793, %v4793
    %v4802 = vmul.f32 %v4794, %v4794
    %v4803 = vmul.f32 %v4795, %v4795
    %v4804 = vmul.f32 %v4796, %v4796
    %v4805 = vmul.f32 %v4797, %v4797
    %v4806 = vmul.f32 %v4798, %v4798
    %v4807 = vsel %vm345, %v4799, 0.0
    %4808 = vadd.xlane.f32.xlu0 %v4807
    %v4809 = vpop.xlane.xlu0 %4808
    %v4810 = vsel %vm345, %v4800, 0.0
    %4811 = vadd.xlane.f32.xlu0 %v4810
    %v4812 = vpop.xlane.xlu0 %4811
    %v4813 = vsel %vm345, %v4801, 0.0
    %4814 = vadd.xlane.f32.xlu0 %v4813
    %v4815 = vpop.xlane.xlu0 %4814
    %v4816 = vsel %vm345, %v4802, 0.0
    %4817 = vadd.xlane.f32.xlu0 %v4816
    %v4818 = vpop.xlane.xlu0 %4817
    %v4819 = vsel %vm345, %v4803, 0.0
    %4820 = vadd.xlane.f32.xlu0 %v4819
    %v4821 = vpop.xlane.xlu0 %4820
    %v4822 = vsel %vm345, %v4804, 0.0
    %4823 = vadd.xlane.f32.xlu0 %v4822
    %v4824 = vpop.xlane.xlu0 %4823
    %v4825 = vsel %vm345, %v4805, 0.0
    %4826 = vadd.xlane.f32.xlu0 %v4825
    %v4827 = vpop.xlane.xlu0 %4826
    %v4828 = vsel %vm345, %v4806, 0.0
    %4829 = vadd.xlane.f32.xlu0 %v4828
    %v4830 = vpop.xlane.xlu0 %4829
    %v4831 = vmul.f32 %v4809, %v4412
    %v4832 = vmul.f32 %v4812, %v4412
    %v4833 = vmul.f32 %v4815, %v4412
    %v4834 = vmul.f32 %v4818, %v4412
    %v4835 = vmul.f32 %v4821, %v4412
    %v4836 = vmul.f32 %v4824, %v4412
    %v4837 = vmul.f32 %v4827, %v4412
    %v4838 = vmul.f32 %v4830, %v4412
    %v4839 = vadd.f32 %v4831, 1e-05
    %v4840 = vadd.f32 %v4832, 1e-05
    %v4841 = vadd.f32 %v4833, 1e-05
    %v4842 = vadd.f32 %v4834, 1e-05
    %v4843 = vadd.f32 %v4835, 1e-05
    %v4844 = vadd.f32 %v4836, 1e-05
    %v4845 = vadd.f32 %v4837, 1e-05
    %v4846 = vadd.f32 %v4838, 1e-05
    %v4847 = vrsqrt.pop %v4839
    %v4848 = vrsqrt.pop %v4840
    %v4849 = vrsqrt.pop %v4841
    %v4850 = vrsqrt.pop %v4842
    %v4851 = vrsqrt.pop %v4843
    %v4852 = vrsqrt.pop %v4844
    %v4853 = vrsqrt.pop %v4845
    %v4854 = vrsqrt.pop %v4846
    %v4855 = vmul.f32 %v4791, %v4847
    %v4856 = vmul.f32 %v4792, %v4848
    %v4857 = vmul.f32 %v4793, %v4849
    %v4858 = vmul.f32 %v4794, %v4850
    %v4859 = vmul.f32 %v4795, %v4851
    %v4860 = vmul.f32 %v4796, %v4852
    %v4861 = vmul.f32 %v4797, %v4853
    %v4862 = vmul.f32 %v4798, %v4854
    %v4863 = vlaneseq
    %v4864 = vshrl.u32 %v4863, 7
    %v4865 = vsub.s32 6, %v4864
    %v4866 = vrot.slane %v69, %v4865
    %v4867 = vmul.f32 %v4855, %v4866
    %v4868 = vmul.f32 %v4856, %v4866
    %v4869 = vmul.f32 %v4857, %v4866
    %v4870 = vmul.f32 %v4858, %v4866
    %v4871 = vmul.f32 %v4859, %v4866
    %v4872 = vmul.f32 %v4860, %v4866
    %v4873 = vmul.f32 %v4861, %v4866
    %v4874 = vmul.f32 %v4862, %v4866
    %v4875 = vlaneseq
    %v4876 = vshrl.u32 %v4875, 7
    %v4877 = vsub.s32 7, %v4876
    %v4878 = vrot.slane %v69, %v4877
    %v4879 = vadd.f32 %v4867, %v4878
    %v4880 = vadd.f32 %v4868, %v4878
    %v4881 = vadd.f32 %v4869, %v4878
    %v4882 = vadd.f32 %v4870, %v4878
    %v4883 = vadd.f32 %v4871, %v4878
    %v4884 = vadd.f32 %v4872, %v4878
    %v4885 = vadd.f32 %v4873, %v4878
    %v4886 = vadd.f32 %v4874, %v4878
    %v4887 = vpack.c.bf16 %v70, %v70
    %v4892 = vunpack.c.l.b16 %v112
    %v4893 = vunpack.c.l.b16 %v113
    %v4894 = vunpack.c.l.b16 %v114
    %v4895 = vunpack.c.l.b16 %v115
    %v4896 = vpack.c.b16 %v4893, %v4892
    %v4897 = vpack.c.b16 %v4895, %v4894
    %v4901 = vrot.slane %v70, 1
    %v4904 = vsel %vm345, %v4887, 0
    %4906 = vmatprep.subr.bf16.mxu0 0
    %4907 = vmatpush1.bf16.msra.mxu0 %v4896
    %4908 = vmatprep.subr.bf16.mxu0 0
    %4909 = vmatpush1.bf16.msra.mxu0 %v4897
    %4910 = vmatprep.subr.bf16.mxu0 0
    %4911 = vmatpush1.bf16.msra.mxu0 0
    %4912 = vmatprep.subr.bf16.mxu0 0
    %4913 = vmatpush1.bf16.msra.mxu0 0
    %4914 = vmatprep.subr.bf16.mxu0 0
    %4915 = vmatpush1.bf16.msra.mxu0 0
    %4916 = vmatprep.subr.bf16.mxu0 0
    %4917 = vmatpush1.bf16.msra.mxu0 0
    %4918 = vmatprep.subr.bf16.mxu0 0
    %4919 = vmatpush1.bf16.msra.mxu0 0
    %4920 = vmatprep.subr.bf16.mxu0 0
    %4921 = vmatpush1.bf16.msra.mxu0 0
    %4922 = vmatprep.subr.bf16.mxu0 0
    %4923 = vmatpush1.bf16.msra.mxu0 0
    %4924 = vmatprep.subr.bf16.mxu0 0
    %4925 = vmatpush1.bf16.msra.mxu0 0
    %4926 = vmatprep.subr.bf16.mxu0 0
    %4927 = vmatpush1.bf16.msra.mxu0 0
    %4928 = vmatprep.subr.bf16.mxu0 0
    %4929 = vmatpush1.bf16.msra.mxu0 0
    %4930 = vmatprep.subr.bf16.mxu0 0
    %4931 = vmatpush1.bf16.msra.mxu0 0
    %4932 = vmatprep.subr.bf16.mxu0 0
    %4933 = vmatpush1.bf16.msra.mxu0 0
    %4934 = vmatprep.subr.bf16.mxu0 0
    %4935 = vmatpush1.bf16.msra.mxu0 0
    %4936 = vmatprep.subr.bf16.mxu0 0
    %4937 = vmatpush1.bf16.msra.mxu0 0
    %4938 = vmatprep.mubr.bf16.mxu0 0
    %4939 = vmatmul.mubr.bf16.gmra.mrb[0].mxu0 %v4904
    %v4940 = vpop.f32.mrb[0].mxu0
    %v4941 = vadd.f32 %v4901, %v4940
    %v4942 = vpop.f32.mrb[0].mxu0
    %v4943 = vpop.f32.mrb[0].mxu0
    %v4944 = vpop.f32.mrb[0].mxu0
    %4945 = vdwg.mxu0
    %v4946 = vpack.c.bf16 %v4880, %v4879
    %v4947 = vpack.c.bf16 %v4882, %v4881
    %v4948 = vpack.c.bf16 %v4884, %v4883
    %v4949 = vpack.c.bf16 %v4886, %v4885
    %v4950 = vlaneseq
    %v4951 = vshrl.u32 %v4950, 7
    %v4952 = vsub.s32 2, %v4951
    %v4953 = vrot.slane %v70, %v4952
    %v4958 = vunpack.c.l.b16 %v116
    %v4959 = vunpack.c.l.b16 %v117
    %v4960 = vunpack.c.l.b16 %v118
    %v4961 = vunpack.c.l.b16 %v119
    %v4962 = vpack.c.b16 %v4959, %v4958
    %v4963 = vpack.c.b16 %v4961, %v4960
    %v4967 = vsel %vm345, %v4946, 0
    %v4970 = vsel %vm345, %v4947, 0
    %v4973 = vsel %vm345, %v4948, 0
    %v4976 = vsel %vm345, %v4949, 0
    %4978 = vmatprep.subr.bf16.mxu0 0
    %4979 = vmatpush1.bf16.msra.mxu0 %v4962
    %4980 = vmatprep.subr.bf16.mxu0 0
    %4981 = vmatpush1.bf16.msra.mxu0 %v4963
    %4982 = vmatprep.subr.bf16.mxu0 0
    %4983 = vmatpush1.bf16.msra.mxu0 0
    %4984 = vmatprep.subr.bf16.mxu0 0
    %4985 = vmatpush1.bf16.msra.mxu0 0
    %4986 = vmatprep.subr.bf16.mxu0 0
    %4987 = vmatpush1.bf16.msra.mxu0 0
    %4988 = vmatprep.subr.bf16.mxu0 0
    %4989 = vmatpush1.bf16.msra.mxu0 0
    %4990 = vmatprep.subr.bf16.mxu0 0
    %4991 = vmatpush1.bf16.msra.mxu0 0
    %4992 = vmatprep.subr.bf16.mxu0 0
    %4993 = vmatpush1.bf16.msra.mxu0 0
    %4994 = vmatprep.subr.bf16.mxu0 0
    %4995 = vmatpush1.bf16.msra.mxu0 0
    %4996 = vmatprep.subr.bf16.mxu0 0
    %4997 = vmatpush1.bf16.msra.mxu0 0
    %4998 = vmatprep.subr.bf16.mxu0 0
    %4999 = vmatpush1.bf16.msra.mxu0 0
    %5000 = vmatprep.subr.bf16.mxu0 0
    %5001 = vmatpush1.bf16.msra.mxu0 0
    %5002 = vmatprep.subr.bf16.mxu0 0
    %5003 = vmatpush1.bf16.msra.mxu0 0
    %5004 = vmatprep.subr.bf16.mxu0 0
    %5005 = vmatpush1.bf16.msra.mxu0 0
    %5006 = vmatprep.subr.bf16.mxu0 0
    %5007 = vmatpush1.bf16.msra.mxu0 0
    %5008 = vmatprep.subr.bf16.mxu0 0
    %5009 = vmatpush1.bf16.msra.mxu0 0
    %5010 = vmatprep.mubr.bf16.mxu0 0
    %5011 = vmatmul.mubr.bf16.gmra.mrb[0].mxu0 %v4967
    %v5012 = vpop.f32.mrb[0].mxu0
    %v5013 = vadd.f32 %v4953, %v5012
    %v5014 = vpop.f32.mrb[0].mxu0
    %v5015 = vpop.f32.mrb[0].mxu0
    %v5016 = vadd.f32 %v4953, %v5015
    %v5017 = vpop.f32.mrb[0].mxu0
    %5018 = vmatprep.mubr.bf16.mxu0 0
    %5019 = vmatmul.mubr.bf16.gmra.mrb[0].mxu0 %v4970
    %v5020 = vpop.f32.mrb[0].mxu0
    %v5021 = vadd.f32 %v4953, %v5020
    %v5022 = vpop.f32.mrb[0].mxu0
    %v5023 = vpop.f32.mrb[0].mxu0
    %v5024 = vadd.f32 %v4953, %v5023
    %v5025 = vpop.f32.mrb[0].mxu0
    %5026 = vmatprep.mubr.bf16.mxu0 0
    %5027 = vmatmul.mubr.bf16.gmra.mrb[0].mxu0 %v4973
    %v5028 = vpop.f32.mrb[0].mxu0
    %v5029 = vadd.f32 %v4953, %v5028
    %v5030 = vpop.f32.mrb[0].mxu0
    %v5031 = vpop.f32.mrb[0].mxu0
    %v5032 = vadd.f32 %v4953, %v5031
    %v5033 = vpop.f32.mrb[0].mxu0
    %5034 = vmatprep.mubr.bf16.mxu0 0
    %5035 = vmatmul.mubr.bf16.gmra.mrb[0].mxu0 %v4976
    %v5036 = vpop.f32.mrb[0].mxu0
    %v5037 = vadd.f32 %v4953, %v5036
    %v5038 = vpop.f32.mrb[0].mxu0
    %v5039 = vpop.f32.mrb[0].mxu0
    %v5040 = vadd.f32 %v4953, %v5039
    %v5041 = vpop.f32.mrb[0].mxu0
    %5042 = vdwg.mxu0
    %v5043 = vmul.f32 %v4941, 0.17677669
    %v5044 = vpack.c.bf16 %v5043, %v5043
    %v5045 = vpack.c.bf16 %v5013, %v5013
    %v5046 = vpack.c.bf16 %v5016, %v5016
    %v5047 = vpack.c.bf16 %v5021, %v5021
    %v5048 = vpack.c.bf16 %v5024, %v5024
    %v5049 = vpack.c.bf16 %v5029, %v5029
    %v5050 = vpack.c.bf16 %v5032, %v5032
    %v5051 = vpack.c.bf16 %v5037, %v5037
    %v5052 = vpack.c.bf16 %v5040, %v5040
    %v5054 = vsel %vm490, %v5044, 0
    %v5057 = vsel %vm490, %v5045, 0
    %5059 = vmatprep.subr.bf16.mxu0 0
    %5060 = vmatpush1.bf16.xpose.msra.mxu0 %v5057
    %5061 = vmatprep.subr.bf16.mxu0 0
    %5062 = vmatpush1.bf16.xpose.msra.mxu0 0
    %5063 = vmatprep.subr.bf16.mxu0 0
    %5064 = vmatpush1.bf16.xpose.msra.mxu0 0
    %5065 = vmatprep.subr.bf16.mxu0 0
    %5066 = vmatpush1.bf16.xpose.msra.mxu0 0
    %5067 = vmatprep.subr.bf16.mxu0 0
    %5068 = vmatpush1.bf16.xpose.msra.mxu0 0
    %5069 = vmatprep.subr.bf16.mxu0 0
    %5070 = vmatpush1.bf16.xpose.msra.mxu0 0
    %5071 = vmatprep.subr.bf16.mxu0 0
    %5072 = vmatpush1.bf16.xpose.msra.mxu0 0
    %5073 = vmatprep.subr.bf16.mxu0 0
    %5074 = vmatpush1.bf16.xpose.msra.mxu0 0
    %5075 = vmatprep.subr.bf16.mxu0 0
    %5076 = vmatpush1.bf16.xpose.msra.mxu0 0
    %5077 = vmatprep.subr.bf16.mxu0 0
    %5078 = vmatpush1.bf16.xpose.msra.mxu0 0
    %5079 = vmatprep.subr.bf16.mxu0 0
    %5080 = vmatpush1.bf16.xpose.msra.mxu0 0
    %5081 = vmatprep.subr.bf16.mxu0 0
    %5082 = vmatpush1.bf16.xpose.msra.mxu0 0
    %5083 = vmatprep.subr.bf16.mxu0 0
    %5084 = vmatpush1.bf16.xpose.msra.mxu0 0
    %5085 = vmatprep.subr.bf16.mxu0 0
    %5086 = vmatpush1.bf16.xpose.msra.mxu0 0
    %5087 = vmatprep.subr.bf16.mxu0 0
    %5088 = vmatpush1.bf16.xpose.msra.mxu0 0
    %5089 = vmatprep.subr.bf16.mxu0 0
    %5090 = vmatpush1.bf16.xpose.msra.mxu0 0
    %5091 = vmatprep.mubr.bf16.mxu0 0
    %5092 = vmatmul.mubr.bf16.gmra.mrb[0].mxu0 %v5054
    %v5093 = vpop.f32.mrb[0].mxu0
    %v5094 = vadd.f32 %v154, %v5093
    %v5095 = vpop.f32.mrb[0].mxu0
    %v5096 = vpop.f32.mrb[0].mxu0
    %v5097 = vpop.f32.mrb[0].mxu0
    %5098 = vdwg.mxu0
    %v5100 = vsel %vm490, %v5046, 0
    %5102 = vmatprep.subr.bf16.mxu0 0
    %5103 = vmatpush1.bf16.xpose.msra.mxu0 %v5100
    %5104 = vmatprep.subr.bf16.mxu0 0
    %5105 = vmatpush1.bf16.xpose.msra.mxu0 0
    %5106 = vmatprep.subr.bf16.mxu0 0
    %5107 = vmatpush1.bf16.xpose.msra.mxu0 0
    %5108 = vmatprep.subr.bf16.mxu0 0
    %5109 = vmatpush1.bf16.xpose.msra.mxu0 0
    %5110 = vmatprep.subr.bf16.mxu0 0
    %5111 = vmatpush1.bf16.xpose.msra.mxu0 0
    %5112 = vmatprep.subr.bf16.mxu0 0
    %5113 = vmatpush1.bf16.xpose.msra.mxu0 0
    %5114 = vmatprep.subr.bf16.mxu0 0
    %5115 = vmatpush1.bf16.xpose.msra.mxu0 0
    %5116 = vmatprep.subr.bf16.mxu0 0
    %5117 = vmatpush1.bf16.xpose.msra.mxu0 0
    %5118 = vmatprep.subr.bf16.mxu0 0
    %5119 = vmatpush1.bf16.xpose.msra.mxu0 0
    %5120 = vmatprep.subr.bf16.mxu0 0
    %5121 = vmatpush1.bf16.xpose.msra.mxu0 0
    %5122 = vmatprep.subr.bf16.mxu0 0
    %5123 = vmatpush1.bf16.xpose.msra.mxu0 0
    %5124 = vmatprep.subr.bf16.mxu0 0
    %5125 = vmatpush1.bf16.xpose.msra.mxu0 0
    %5126 = vmatprep.subr.bf16.mxu0 0
    %5127 = vmatpush1.bf16.xpose.msra.mxu0 0
    %5128 = vmatprep.subr.bf16.mxu0 0
    %5129 = vmatpush1.bf16.xpose.msra.mxu0 0
    %5130 = vmatprep.subr.bf16.mxu0 0
    %5131 = vmatpush1.bf16.xpose.msra.mxu0 0
    %5132 = vmatprep.subr.bf16.mxu0 0
    %5133 = vmatpush1.bf16.xpose.msra.mxu0 0
    %5134 = vmatprep.mubr.bf16.mxu0 0
    %5135 = vmatmul.mubr.bf16.gmra.mrb[0].mxu0 %v5054
    %v5136 = vpop.f32.mrb[0].mxu0
    %v5137 = vadd.f32 %v168, %v5136
    %v5138 = vpop.f32.mrb[0].mxu0
    %v5139 = vpop.f32.mrb[0].mxu0
    %v5140 = vpop.f32.mrb[0].mxu0
    %5141 = vdwg.mxu0
    %v5143 = vsel %vm490, %v5047, 0
    %5145 = vmatprep.subr.bf16.mxu0 0
    %5146 = vmatpush1.bf16.xpose.msra.mxu0 %v5143
    %5147 = vmatprep.subr.bf16.mxu0 0
    %5148 = vmatpush1.bf16.xpose.msra.mxu0 0
    %5149 = vmatprep.subr.bf16.mxu0 0
    %5150 = vmatpush1.bf16.xpose.msra.mxu0 0
    %5151 = vmatprep.subr.bf16.mxu0 0
    %5152 = vmatpush1.bf16.xpose.msra.mxu0 0
    %5153 = vmatprep.subr.bf16.mxu0 0
    %5154 = vmatpush1.bf16.xpose.msra.mxu0 0
    %5155 = vmatprep.subr.bf16.mxu0 0
    %5156 = vmatpush1.bf16.xpose.msra.mxu0 0
    %5157 = vmatprep.subr.bf16.mxu0 0
    %5158 = vmatpush1.bf16.xpose.msra.mxu0 0
    %5159 = vmatprep.subr.bf16.mxu0 0
    %5160 = vmatpush1.bf16.xpose.msra.mxu0 0
    %5161 = vmatprep.subr.bf16.mxu0 0
    %5162 = vmatpush1.bf16.xpose.msra.mxu0 0
    %5163 = vmatprep.subr.bf16.mxu0 0
    %5164 = vmatpush1.bf16.xpose.msra.mxu0 0
    %5165 = vmatprep.subr.bf16.mxu0 0
    %5166 = vmatpush1.bf16.xpose.msra.mxu0 0
    %5167 = vmatprep.subr.bf16.mxu0 0
    %5168 = vmatpush1.bf16.xpose.msra.mxu0 0
    %5169 = vmatprep.subr.bf16.mxu0 0
    %5170 = vmatpush1.bf16.xpose.msra.mxu0 0
    %5171 = vmatprep.subr.bf16.mxu0 0
    %5172 = vmatpush1.bf16.xpose.msra.mxu0 0
    %5173 = vmatprep.subr.bf16.mxu0 0
    %5174 = vmatpush1.bf16.xpose.msra.mxu0 0
    %5175 = vmatprep.subr.bf16.mxu0 0
    %5176 = vmatpush1.bf16.xpose.msra.mxu0 0
    %5177 = vmatprep.mubr.bf16.mxu0 0
    %5178 = vmatmul.mubr.bf16.gmra.mrb[0].mxu0 %v5054
    %v5179 = vpop.f32.mrb[0].mxu0
    %v5180 = vadd.f32 %v176, %v5179
    %v5181 = vpop.f32.mrb[0].mxu0
    %v5182 = vpop.f32.mrb[0].mxu0
    %v5183 = vpop.f32.mrb[0].mxu0
    %5184 = vdwg.mxu0
    %v5186 = vsel %vm490, %v5048, 0
    %5188 = vmatprep.subr.bf16.mxu0 0
    %5189 = vmatpush1.bf16.xpose.msra.mxu0 %v5186
    %5190 = vmatprep.subr.bf16.mxu0 0
    %5191 = vmatpush1.bf16.xpose.msra.mxu0 0
    %5192 = vmatprep.subr.bf16.mxu0 0
    %5193 = vmatpush1.bf16.xpose.msra.mxu0 0
    %5194 = vmatprep.subr.bf16.mxu0 0
    %5195 = vmatpush1.bf16.xpose.msra.mxu0 0
    %5196 = vmatprep.subr.bf16.mxu0 0
    %5197 = vmatpush1.bf16.xpose.msra.mxu0 0
    %5198 = vmatprep.subr.bf16.mxu0 0
    %5199 = vmatpush1.bf16.xpose.msra.mxu0 0
    %5200 = vmatprep.subr.bf16.mxu0 0
    %5201 = vmatpush1.bf16.xpose.msra.mxu0 0
    %5202 = vmatprep.subr.bf16.mxu0 0
    %5203 = vmatpush1.bf16.xpose.msra.mxu0 0
    %5204 = vmatprep.subr.bf16.mxu0 0
    %5205 = vmatpush1.bf16.xpose.msra.mxu0 0
    %5206 = vmatprep.subr.bf16.mxu0 0
    %5207 = vmatpush1.bf16.xpose.msra.mxu0 0
    %5208 = vmatprep.subr.bf16.mxu0 0
    %5209 = vmatpush1.bf16.xpose.msra.mxu0 0
    %5210 = vmatprep.subr.bf16.mxu0 0
    %5211 = vmatpush1.bf16.xpose.msra.mxu0 0
    %5212 = vmatprep.subr.bf16.mxu0 0
    %5213 = vmatpush1.bf16.xpose.msra.mxu0 0
    %5214 = vmatprep.subr.bf16.mxu0 0
    %5215 = vmatpush1.bf16.xpose.msra.mxu0 0
    %5216 = vmatprep.subr.bf16.mxu0 0
    %5217 = vmatpush1.bf16.xpose.msra.mxu0 0
    %5218 = vmatprep.subr.bf16.mxu0 0
    %5219 = vmatpush1.bf16.xpose.msra.mxu0 0
    %5220 = vmatprep.mubr.bf16.mxu0 0
    %5221 = vmatmul.mubr.bf16.gmra.mrb[0].mxu0 %v5054
    %v5222 = vpop.f32.mrb[0].mxu0
    %v5223 = vadd.f32 %v178, %v5222
    %v5224 = vpop.f32.mrb[0].mxu0
    %v5225 = vpop.f32.mrb[0].mxu0
    %v5226 = vpop.f32.mrb[0].mxu0
    %5227 = vdwg.mxu0
    %v5229 = vsel %vm490, %v5049, 0
    %5231 = vmatprep.subr.bf16.mxu0 0
    %5232 = vmatpush1.bf16.xpose.msra.mxu0 %v5229
    %5233 = vmatprep.subr.bf16.mxu0 0
    %5234 = vmatpush1.bf16.xpose.msra.mxu0 0
    %5235 = vmatprep.subr.bf16.mxu0 0
    %5236 = vmatpush1.bf16.xpose.msra.mxu0 0
    %5237 = vmatprep.subr.bf16.mxu0 0
    %5238 = vmatpush1.bf16.xpose.msra.mxu0 0
    %5239 = vmatprep.subr.bf16.mxu0 0
    %5240 = vmatpush1.bf16.xpose.msra.mxu0 0
    %5241 = vmatprep.subr.bf16.mxu0 0
    %5242 = vmatpush1.bf16.xpose.msra.mxu0 0
    %5243 = vmatprep.subr.bf16.mxu0 0
    %5244 = vmatpush1.bf16.xpose.msra.mxu0 0
    %5245 = vmatprep.subr.bf16.mxu0 0
    %5246 = vmatpush1.bf16.xpose.msra.mxu0 0
    %5247 = vmatprep.subr.bf16.mxu0 0
    %5248 = vmatpush1.bf16.xpose.msra.mxu0 0
    %5249 = vmatprep.subr.bf16.mxu0 0
    %5250 = vmatpush1.bf16.xpose.msra.mxu0 0
    %5251 = vmatprep.subr.bf16.mxu0 0
    %5252 = vmatpush1.bf16.xpose.msra.mxu0 0
    %5253 = vmatprep.subr.bf16.mxu0 0
    %5254 = vmatpush1.bf16.xpose.msra.mxu0 0
    %5255 = vmatprep.subr.bf16.mxu0 0
    %5256 = vmatpush1.bf16.xpose.msra.mxu0 0
    %5257 = vmatprep.subr.bf16.mxu0 0
    %5258 = vmatpush1.bf16.xpose.msra.mxu0 0
    %5259 = vmatprep.subr.bf16.mxu0 0
    %5260 = vmatpush1.bf16.xpose.msra.mxu0 0
    %5261 = vmatprep.subr.bf16.mxu0 0
    %5262 = vmatpush1.bf16.xpose.msra.mxu0 0
    %5263 = vmatprep.mubr.bf16.mxu0 0
    %5264 = vmatmul.mubr.bf16.gmra.mrb[0].mxu0 %v5054
    %v5265 = vpop.f32.mrb[0].mxu0
    %v5266 = vadd.f32 %v161, %v5265
    %v5267 = vpop.f32.mrb[0].mxu0
    %v5268 = vpop.f32.mrb[0].mxu0
    %v5269 = vpop.f32.mrb[0].mxu0
    %5270 = vdwg.mxu0
    %v5272 = vsel %vm490, %v5050, 0
    %5274 = vmatprep.subr.bf16.mxu0 0
    %5275 = vmatpush1.bf16.xpose.msra.mxu0 %v5272
    %5276 = vmatprep.subr.bf16.mxu0 0
    %5277 = vmatpush1.bf16.xpose.msra.mxu0 0
    %5278 = vmatprep.subr.bf16.mxu0 0
    %5279 = vmatpush1.bf16.xpose.msra.mxu0 0
    %5280 = vmatprep.subr.bf16.mxu0 0
    %5281 = vmatpush1.bf16.xpose.msra.mxu0 0
    %5282 = vmatprep.subr.bf16.mxu0 0
    %5283 = vmatpush1.bf16.xpose.msra.mxu0 0
    %5284 = vmatprep.subr.bf16.mxu0 0
    %5285 = vmatpush1.bf16.xpose.msra.mxu0 0
    %5286 = vmatprep.subr.bf16.mxu0 0
    %5287 = vmatpush1.bf16.xpose.msra.mxu0 0
    %5288 = vmatprep.subr.bf16.mxu0 0
    %5289 = vmatpush1.bf16.xpose.msra.mxu0 0
    %5290 = vmatprep.subr.bf16.mxu0 0
    %5291 = vmatpush1.bf16.xpose.msra.mxu0 0
    %5292 = vmatprep.subr.bf16.mxu0 0
    %5293 = vmatpush1.bf16.xpose.msra.mxu0 0
    %5294 = vmatprep.subr.bf16.mxu0 0
    %5295 = vmatpush1.bf16.xpose.msra.mxu0 0
    %5296 = vmatprep.subr.bf16.mxu0 0
    %5297 = vmatpush1.bf16.xpose.msra.mxu0 0
    %5298 = vmatprep.subr.bf16.mxu0 0
    %5299 = vmatpush1.bf16.xpose.msra.mxu0 0
    %5300 = vmatprep.subr.bf16.mxu0 0
    %5301 = vmatpush1.bf16.xpose.msra.mxu0 0
    %5302 = vmatprep.subr.bf16.mxu0 0
    %5303 = vmatpush1.bf16.xpose.msra.mxu0 0
    %5304 = vmatprep.subr.bf16.mxu0 0
    %5305 = vmatpush1.bf16.xpose.msra.mxu0 0
    %5306 = vmatprep.mubr.bf16.mxu0 0
    %5307 = vmatmul.mubr.bf16.gmra.mrb[0].mxu0 %v5054
    %v5308 = vpop.f32.mrb[0].mxu0
    %v5309 = vadd.f32 %v175, %v5308
    %v5310 = vpop.f32.mrb[0].mxu0
    %v5311 = vpop.f32.mrb[0].mxu0
    %v5312 = vpop.f32.mrb[0].mxu0
    %5313 = vdwg.mxu0
    %v5315 = vsel %vm490, %v5051, 0
    %5317 = vmatprep.subr.bf16.mxu0 0
    %5318 = vmatpush1.bf16.xpose.msra.mxu0 %v5315
    %5319 = vmatprep.subr.bf16.mxu0 0
    %5320 = vmatpush1.bf16.xpose.msra.mxu0 0
    %5321 = vmatprep.subr.bf16.mxu0 0
    %5322 = vmatpush1.bf16.xpose.msra.mxu0 0
    %5323 = vmatprep.subr.bf16.mxu0 0
    %5324 = vmatpush1.bf16.xpose.msra.mxu0 0
    %5325 = vmatprep.subr.bf16.mxu0 0
    %5326 = vmatpush1.bf16.xpose.msra.mxu0 0
    %5327 = vmatprep.subr.bf16.mxu0 0
    %5328 = vmatpush1.bf16.xpose.msra.mxu0 0
    %5329 = vmatprep.subr.bf16.mxu0 0
    %5330 = vmatpush1.bf16.xpose.msra.mxu0 0
    %5331 = vmatprep.subr.bf16.mxu0 0
    %5332 = vmatpush1.bf16.xpose.msra.mxu0 0
    %5333 = vmatprep.subr.bf16.mxu0 0
    %5334 = vmatpush1.bf16.xpose.msra.mxu0 0
    %5335 = vmatprep.subr.bf16.mxu0 0
    %5336 = vmatpush1.bf16.xpose.msra.mxu0 0
    %5337 = vmatprep.subr.bf16.mxu0 0
    %5338 = vmatpush1.bf16.xpose.msra.mxu0 0
    %5339 = vmatprep.subr.bf16.mxu0 0
    %5340 = vmatpush1.bf16.xpose.msra.mxu0 0
    %5341 = vmatprep.subr.bf16.mxu0 0
    %5342 = vmatpush1.bf16.xpose.msra.mxu0 0
    %5343 = vmatprep.subr.bf16.mxu0 0
    %5344 = vmatpush1.bf16.xpose.msra.mxu0 0
    %5345 = vmatprep.subr.bf16.mxu0 0
    %5346 = vmatpush1.bf16.xpose.msra.mxu0 0
    %5347 = vmatprep.subr.bf16.mxu0 0
    %5348 = vmatpush1.bf16.xpose.msra.mxu0 0
    %5349 = vmatprep.mubr.bf16.mxu0 0
    %5350 = vmatmul.mubr.bf16.gmra.mrb[0].mxu0 %v5054
    %v5351 = vpop.f32.mrb[0].mxu0
    %v5352 = vadd.f32 %v177, %v5351
    %v5353 = vpop.f32.mrb[0].mxu0
    %v5354 = vpop.f32.mrb[0].mxu0
    %v5355 = vpop.f32.mrb[0].mxu0
    %5356 = vdwg.mxu0
    %v5358 = vsel %vm490, %v5052, 0
    %5360 = vmatprep.subr.bf16.mxu0 0
    %5361 = vmatpush1.bf16.xpose.msra.mxu0 %v5358
    %5362 = vmatprep.subr.bf16.mxu0 0
    %5363 = vmatpush1.bf16.xpose.msra.mxu0 0
    %5364 = vmatprep.subr.bf16.mxu0 0
    %5365 = vmatpush1.bf16.xpose.msra.mxu0 0
    %5366 = vmatprep.subr.bf16.mxu0 0
    %5367 = vmatpush1.bf16.xpose.msra.mxu0 0
    %5368 = vmatprep.subr.bf16.mxu0 0
    %5369 = vmatpush1.bf16.xpose.msra.mxu0 0
    %5370 = vmatprep.subr.bf16.mxu0 0
    %5371 = vmatpush1.bf16.xpose.msra.mxu0 0
    %5372 = vmatprep.subr.bf16.mxu0 0
    %5373 = vmatpush1.bf16.xpose.msra.mxu0 0
    %5374 = vmatprep.subr.bf16.mxu0 0
    %5375 = vmatpush1.bf16.xpose.msra.mxu0 0
    %5376 = vmatprep.subr.bf16.mxu0 0
    %5377 = vmatpush1.bf16.xpose.msra.mxu0 0
    %5378 = vmatprep.subr.bf16.mxu0 0
    %5379 = vmatpush1.bf16.xpose.msra.mxu0 0
    %5380 = vmatprep.subr.bf16.mxu0 0
    %5381 = vmatpush1.bf16.xpose.msra.mxu0 0
    %5382 = vmatprep.subr.bf16.mxu0 0
    %5383 = vmatpush1.bf16.xpose.msra.mxu0 0
    %5384 = vmatprep.subr.bf16.mxu0 0
    %5385 = vmatpush1.bf16.xpose.msra.mxu0 0
    %5386 = vmatprep.subr.bf16.mxu0 0
    %5387 = vmatpush1.bf16.xpose.msra.mxu0 0
    %5388 = vmatprep.subr.bf16.mxu0 0
    %5389 = vmatpush1.bf16.xpose.msra.mxu0 0
    %5390 = vmatprep.subr.bf16.mxu0 0
    %5391 = vmatpush1.bf16.xpose.msra.mxu0 0
    %5392 = vmatprep.mubr.bf16.mxu0 0
    %5393 = vmatmul.mubr.bf16.gmra.mrb[0].mxu0 %v5054
    %v5394 = vpop.f32.mrb[0].mxu0
    %v5395 = vadd.f32 %v179, %v5394
    %v5396 = vpop.f32.mrb[0].mxu0
    %v5397 = vpop.f32.mrb[0].mxu0
    %v5398 = vpop.f32.mrb[0].mxu0
    %5399 = vdwg.mxu0
    %vm5400 = vcmask 57344
    %v5401 = vsel %vm5400, %v5094, -inf
    %5402 = vmax.xlane.f32.xlu0 %v5401
    %v5403 = vpop.xlane.xlu0 %5402
    %v5404 = vsel %vm5400, %v5137, -inf
    %5405 = vmax.xlane.f32.xlu0 %v5404
    %v5406 = vpop.xlane.xlu0 %5405
    %v5407 = vsel %vm5400, %v5180, -inf
    %5408 = vmax.xlane.f32.xlu0 %v5407
    %v5409 = vpop.xlane.xlu0 %5408
    %v5410 = vsel %vm5400, %v5223, -inf
    %5411 = vmax.xlane.f32.xlu0 %v5410
    %v5412 = vpop.xlane.xlu0 %5411
    %v5413 = vsel %vm5400, %v5266, -inf
    %5414 = vmax.xlane.f32.xlu0 %v5413
    %v5415 = vpop.xlane.xlu0 %5414
    %v5416 = vsel %vm5400, %v5309, -inf
    %5417 = vmax.xlane.f32.xlu0 %v5416
    %v5418 = vpop.xlane.xlu0 %5417
    %v5419 = vsel %vm5400, %v5352, -inf
    %5420 = vmax.xlane.f32.xlu0 %v5419
    %v5421 = vpop.xlane.xlu0 %5420
    %v5422 = vsel %vm5400, %v5395, -inf
    %5423 = vmax.xlane.f32.xlu0 %v5422
    %v5424 = vpop.xlane.xlu0 %5423
    %v5425 = vsub.f32 %v5094, %v5403
    %v5426 = vsub.f32 %v5137, %v5406
    %v5427 = vsub.f32 %v5180, %v5409
    %v5428 = vsub.f32 %v5223, %v5412
    %v5429 = vsub.f32 %v5266, %v5415
    %v5430 = vsub.f32 %v5309, %v5418
    %v5431 = vsub.f32 %v5352, %v5421
    %v5432 = vsub.f32 %v5395, %v5424
    %v5433 = vmul.f32 %v5425, 1.442695
    %v5434 = vpow.pop %v5433
    %v5435 = vmul.f32 %v5426, 1.442695
    %v5436 = vpow.pop %v5435
    %v5437 = vmul.f32 %v5427, 1.442695
    %v5438 = vpow.pop %v5437
    %v5439 = vmul.f32 %v5428, 1.442695
    %v5440 = vpow.pop %v5439
    %v5441 = vmul.f32 %v5429, 1.442695
    %v5442 = vpow.pop %v5441
    %v5443 = vmul.f32 %v5430, 1.442695
    %v5444 = vpow.pop %v5443
    %v5445 = vmul.f32 %v5431, 1.442695
    %v5446 = vpow.pop %v5445
    %v5447 = vmul.f32 %v5432, 1.442695
    %v5448 = vpow.pop %v5447
    %v5449 = vsel %vm5400, %v5434, 0.0
    %5450 = vadd.xlane.f32.xlu0 %v5449
    %v5451 = vpop.xlane.xlu0 %5450
    %v5452 = vsel %vm5400, %v5436, 0.0
    %5453 = vadd.xlane.f32.xlu0 %v5452
    %v5454 = vpop.xlane.xlu0 %5453
    %v5455 = vsel %vm5400, %v5438, 0.0
    %5456 = vadd.xlane.f32.xlu0 %v5455
    %v5457 = vpop.xlane.xlu0 %5456
    %v5458 = vsel %vm5400, %v5440, 0.0
    %5459 = vadd.xlane.f32.xlu0 %v5458
    %v5460 = vpop.xlane.xlu0 %5459
    %v5461 = vsel %vm5400, %v5442, 0.0
    %5462 = vadd.xlane.f32.xlu0 %v5461
    %v5463 = vpop.xlane.xlu0 %5462
    %v5464 = vsel %vm5400, %v5444, 0.0
    %5465 = vadd.xlane.f32.xlu0 %v5464
    %v5466 = vpop.xlane.xlu0 %5465
    %v5467 = vsel %vm5400, %v5446, 0.0
    %5468 = vadd.xlane.f32.xlu0 %v5467
    %v5469 = vpop.xlane.xlu0 %5468
    %v5470 = vsel %vm5400, %v5448, 0.0
    %5471 = vadd.xlane.f32.xlu0 %v5470
    %v5472 = vpop.xlane.xlu0 %5471
    %v5473 = vrcp.pop %v5451
    %v5474 = vrcp.pop %v5454
    %v5475 = vrcp.pop %v5457
    %v5476 = vrcp.pop %v5460
    %v5477 = vrcp.pop %v5463
    %v5478 = vrcp.pop %v5466
    %v5479 = vrcp.pop %v5469
    %v5480 = vrcp.pop %v5472
    %v5481 = vmul.f32 %v5434, %v5473
    %v5482 = vmul.f32 %v5436, %v5474
    %v5483 = vmul.f32 %v5438, %v5475
    %v5484 = vmul.f32 %v5440, %v5476
    %v5485 = vmul.f32 %v5442, %v5477
    %v5486 = vmul.f32 %v5444, %v5478
    %v5487 = vmul.f32 %v5446, %v5479
    %v5488 = vmul.f32 %v5448, %v5480
    %v5489 = vpack.c.bf16 %v5481, %v5481
    %v5490 = vpack.c.bf16 %v5482, %v5482
    %v5491 = vpack.c.bf16 %v5483, %v5483
    %v5492 = vpack.c.bf16 %v5484, %v5484
    %v5493 = vpack.c.bf16 %v5485, %v5485
    %v5494 = vpack.c.bf16 %v5486, %v5486
    %v5495 = vpack.c.bf16 %v5487, %v5487
    %v5496 = vpack.c.bf16 %v5488, %v5488
    %5498 = vrot.lane.b32.xlu0 %v5045, 96
    %v5499 = vpop.permute.xlu0 %5498
    %v5501 = vsel %vm490, %v5489, 0
    %v5504 = vsel %vm256, %v5499, 0
    %5506 = vmatprep.subr.bf16.mxu0 0
    %5507 = vmatpush1.bf16.msra.mxu0 %v5504
    %5508 = vmatprep.subr.bf16.mxu0 0
    %5509 = vmatpush1.bf16.msra.mxu0 0
    %5510 = vmatprep.subr.bf16.mxu0 0
    %5511 = vmatpush1.bf16.msra.mxu0 0
    %5512 = vmatprep.subr.bf16.mxu0 0
    %5513 = vmatpush1.bf16.msra.mxu0 0
    %5514 = vmatprep.subr.bf16.mxu0 0
    %5515 = vmatpush1.bf16.msra.mxu0 0
    %5516 = vmatprep.subr.bf16.mxu0 0
    %5517 = vmatpush1.bf16.msra.mxu0 0
    %5518 = vmatprep.subr.bf16.mxu0 0
    %5519 = vmatpush1.bf16.msra.mxu0 0
    %5520 = vmatprep.subr.bf16.mxu0 0
    %5521 = vmatpush1.bf16.msra.mxu0 0
    %5522 = vmatprep.subr.bf16.mxu0 0
    %5523 = vmatpush1.bf16.msra.mxu0 0
    %5524 = vmatprep.subr.bf16.mxu0 0
    %5525 = vmatpush1.bf16.msra.mxu0 0
    %5526 = vmatprep.subr.bf16.mxu0 0
    %5527 = vmatpush1.bf16.msra.mxu0 0
    %5528 = vmatprep.subr.bf16.mxu0 0
    %5529 = vmatpush1.bf16.msra.mxu0 0
    %5530 = vmatprep.subr.bf16.mxu0 0
    %5531 = vmatpush1.bf16.msra.mxu0 0
    %5532 = vmatprep.subr.bf16.mxu0 0
    %5533 = vmatpush1.bf16.msra.mxu0 0
    %5534 = vmatprep.subr.bf16.mxu0 0
    %5535 = vmatpush1.bf16.msra.mxu0 0
    %5536 = vmatprep.subr.bf16.mxu0 0
    %5537 = vmatpush1.bf16.msra.mxu0 0
    %5538 = vmatprep.mubr.bf16.mxu0 0
    %5539 = vmatmul.mubr.bf16.gmra.mrb[0].mxu0 %v5501
    %v5540 = vpop.f32.mrb[0].mxu0
    %v5541 = vadd.f32 0.0, %v5540
    %v5542 = vpop.f32.mrb[0].mxu0
    %v5543 = vpop.f32.mrb[0].mxu0
    %v5544 = vpop.f32.mrb[0].mxu0
    %5545 = vdwg.mxu0
    %5547 = vrot.lane.b32.xlu0 %v5046, 96
    %v5548 = vpop.permute.xlu0 %5547
    %v5550 = vsel %vm490, %v5490, 0
    %v5553 = vsel %vm256, %v5548, 0
    %5555 = vmatprep.subr.bf16.mxu0 0
    %5556 = vmatpush1.bf16.msra.mxu0 %v5553
    %5557 = vmatprep.subr.bf16.mxu0 0
    %5558 = vmatpush1.bf16.msra.mxu0 0
    %5559 = vmatprep.subr.bf16.mxu0 0
    %5560 = vmatpush1.bf16.msra.mxu0 0
    %5561 = vmatprep.subr.bf16.mxu0 0
    %5562 = vmatpush1.bf16.msra.mxu0 0
    %5563 = vmatprep.subr.bf16.mxu0 0
    %5564 = vmatpush1.bf16.msra.mxu0 0
    %5565 = vmatprep.subr.bf16.mxu0 0
    %5566 = vmatpush1.bf16.msra.mxu0 0
    %5567 = vmatprep.subr.bf16.mxu0 0
    %5568 = vmatpush1.bf16.msra.mxu0 0
    %5569 = vmatprep.subr.bf16.mxu0 0
    %5570 = vmatpush1.bf16.msra.mxu0 0
    %5571 = vmatprep.subr.bf16.mxu0 0
    %5572 = vmatpush1.bf16.msra.mxu0 0
    %5573 = vmatprep.subr.bf16.mxu0 0
    %5574 = vmatpush1.bf16.msra.mxu0 0
    %5575 = vmatprep.subr.bf16.mxu0 0
    %5576 = vmatpush1.bf16.msra.mxu0 0
    %5577 = vmatprep.subr.bf16.mxu0 0
    %5578 = vmatpush1.bf16.msra.mxu0 0
    %5579 = vmatprep.subr.bf16.mxu0 0
    %5580 = vmatpush1.bf16.msra.mxu0 0
    %5581 = vmatprep.subr.bf16.mxu0 0
    %5582 = vmatpush1.bf16.msra.mxu0 0
    %5583 = vmatprep.subr.bf16.mxu0 0
    %5584 = vmatpush1.bf16.msra.mxu0 0
    %5585 = vmatprep.subr.bf16.mxu0 0
    %5586 = vmatpush1.bf16.msra.mxu0 0
    %5587 = vmatprep.mubr.bf16.mxu0 0
    %5588 = vmatmul.mubr.bf16.gmra.mrb[0].mxu0 %v5550
    %v5589 = vpop.f32.mrb[0].mxu0
    %v5590 = vadd.f32 0.0, %v5589
    %v5591 = vpop.f32.mrb[0].mxu0
    %v5592 = vpop.f32.mrb[0].mxu0
    %v5593 = vpop.f32.mrb[0].mxu0
    %5594 = vdwg.mxu0
    %5596 = vrot.lane.b32.xlu0 %v5047, 96
    %v5597 = vpop.permute.xlu0 %5596
    %v5599 = vsel %vm490, %v5491, 0
    %v5602 = vsel %vm256, %v5597, 0
    %5604 = vmatprep.subr.bf16.mxu0 0
    %5605 = vmatpush1.bf16.msra.mxu0 %v5602
    %5606 = vmatprep.subr.bf16.mxu0 0
    %5607 = vmatpush1.bf16.msra.mxu0 0
    %5608 = vmatprep.subr.bf16.mxu0 0
    %5609 = vmatpush1.bf16.msra.mxu0 0
    %5610 = vmatprep.subr.bf16.mxu0 0
    %5611 = vmatpush1.bf16.msra.mxu0 0
    %5612 = vmatprep.subr.bf16.mxu0 0
    %5613 = vmatpush1.bf16.msra.mxu0 0
    %5614 = vmatprep.subr.bf16.mxu0 0
    %5615 = vmatpush1.bf16.msra.mxu0 0
    %5616 = vmatprep.subr.bf16.mxu0 0
    %5617 = vmatpush1.bf16.msra.mxu0 0
    %5618 = vmatprep.subr.bf16.mxu0 0
    %5619 = vmatpush1.bf16.msra.mxu0 0
    %5620 = vmatprep.subr.bf16.mxu0 0
    %5621 = vmatpush1.bf16.msra.mxu0 0
    %5622 = vmatprep.subr.bf16.mxu0 0
    %5623 = vmatpush1.bf16.msra.mxu0 0
    %5624 = vmatprep.subr.bf16.mxu0 0
    %5625 = vmatpush1.bf16.msra.mxu0 0
    %5626 = vmatprep.subr.bf16.mxu0 0
    %5627 = vmatpush1.bf16.msra.mxu0 0
    %5628 = vmatprep.subr.bf16.mxu0 0
    %5629 = vmatpush1.bf16.msra.mxu0 0
    %5630 = vmatprep.subr.bf16.mxu0 0
    %5631 = vmatpush1.bf16.msra.mxu0 0
    %5632 = vmatprep.subr.bf16.mxu0 0
    %5633 = vmatpush1.bf16.msra.mxu0 0
    %5634 = vmatprep.subr.bf16.mxu0 0
    %5635 = vmatpush1.bf16.msra.mxu0 0
    %5636 = vmatprep.mubr.bf16.mxu0 0
    %5637 = vmatmul.mubr.bf16.gmra.mrb[0].mxu0 %v5599
    %v5638 = vpop.f32.mrb[0].mxu0
    %v5639 = vadd.f32 0.0, %v5638
    %v5640 = vpop.f32.mrb[0].mxu0
    %v5641 = vpop.f32.mrb[0].mxu0
    %v5642 = vpop.f32.mrb[0].mxu0
    %5643 = vdwg.mxu0
    %5645 = vrot.lane.b32.xlu0 %v5048, 96
    %v5646 = vpop.permute.xlu0 %5645
    %v5648 = vsel %vm490, %v5492, 0
    %v5651 = vsel %vm256, %v5646, 0
    %5653 = vmatprep.subr.bf16.mxu0 0
    %5654 = vmatpush1.bf16.msra.mxu0 %v5651
    %5655 = vmatprep.subr.bf16.mxu0 0
    %5656 = vmatpush1.bf16.msra.mxu0 0
    %5657 = vmatprep.subr.bf16.mxu0 0
    %5658 = vmatpush1.bf16.msra.mxu0 0
    %5659 = vmatprep.subr.bf16.mxu0 0
    %5660 = vmatpush1.bf16.msra.mxu0 0
    %5661 = vmatprep.subr.bf16.mxu0 0
    %5662 = vmatpush1.bf16.msra.mxu0 0
    %5663 = vmatprep.subr.bf16.mxu0 0
    %5664 = vmatpush1.bf16.msra.mxu0 0
    %5665 = vmatprep.subr.bf16.mxu0 0
    %5666 = vmatpush1.bf16.msra.mxu0 0
    %5667 = vmatprep.subr.bf16.mxu0 0
    %5668 = vmatpush1.bf16.msra.mxu0 0
    %5669 = vmatprep.subr.bf16.mxu0 0
    %5670 = vmatpush1.bf16.msra.mxu0 0
    %5671 = vmatprep.subr.bf16.mxu0 0
    %5672 = vmatpush1.bf16.msra.mxu0 0
    %5673 = vmatprep.subr.bf16.mxu0 0
    %5674 = vmatpush1.bf16.msra.mxu0 0
    %5675 = vmatprep.subr.bf16.mxu0 0
    %5676 = vmatpush1.bf16.msra.mxu0 0
    %5677 = vmatprep.subr.bf16.mxu0 0
    %5678 = vmatpush1.bf16.msra.mxu0 0
    %5679 = vmatprep.subr.bf16.mxu0 0
    %5680 = vmatpush1.bf16.msra.mxu0 0
    %5681 = vmatprep.subr.bf16.mxu0 0
    %5682 = vmatpush1.bf16.msra.mxu0 0
    %5683 = vmatprep.subr.bf16.mxu0 0
    %5684 = vmatpush1.bf16.msra.mxu0 0
    %5685 = vmatprep.mubr.bf16.mxu0 0
    %5686 = vmatmul.mubr.bf16.gmra.mrb[0].mxu0 %v5648
    %v5687 = vpop.f32.mrb[0].mxu0
    %v5688 = vadd.f32 0.0, %v5687
    %v5689 = vpop.f32.mrb[0].mxu0
    %v5690 = vpop.f32.mrb[0].mxu0
    %v5691 = vpop.f32.mrb[0].mxu0
    %5692 = vdwg.mxu0
    %5694 = vrot.lane.b32.xlu0 %v5049, 96
    %v5695 = vpop.permute.xlu0 %5694
    %v5697 = vsel %vm490, %v5493, 0
    %v5700 = vsel %vm256, %v5695, 0
    %5702 = vmatprep.subr.bf16.mxu0 0
    %5703 = vmatpush1.bf16.msra.mxu0 %v5700
    %5704 = vmatprep.subr.bf16.mxu0 0
    %5705 = vmatpush1.bf16.msra.mxu0 0
    %5706 = vmatprep.subr.bf16.mxu0 0
    %5707 = vmatpush1.bf16.msra.mxu0 0
    %5708 = vmatprep.subr.bf16.mxu0 0
    %5709 = vmatpush1.bf16.msra.mxu0 0
    %5710 = vmatprep.subr.bf16.mxu0 0
    %5711 = vmatpush1.bf16.msra.mxu0 0
    %5712 = vmatprep.subr.bf16.mxu0 0
    %5713 = vmatpush1.bf16.msra.mxu0 0
    %5714 = vmatprep.subr.bf16.mxu0 0
    %5715 = vmatpush1.bf16.msra.mxu0 0
    %5716 = vmatprep.subr.bf16.mxu0 0
    %5717 = vmatpush1.bf16.msra.mxu0 0
    %5718 = vmatprep.subr.bf16.mxu0 0
    %5719 = vmatpush1.bf16.msra.mxu0 0
    %5720 = vmatprep.subr.bf16.mxu0 0
    %5721 = vmatpush1.bf16.msra.mxu0 0
    %5722 = vmatprep.subr.bf16.mxu0 0
    %5723 = vmatpush1.bf16.msra.mxu0 0
    %5724 = vmatprep.subr.bf16.mxu0 0
    %5725 = vmatpush1.bf16.msra.mxu0 0
    %5726 = vmatprep.subr.bf16.mxu0 0
    %5727 = vmatpush1.bf16.msra.mxu0 0
    %5728 = vmatprep.subr.bf16.mxu0 0
    %5729 = vmatpush1.bf16.msra.mxu0 0
    %5730 = vmatprep.subr.bf16.mxu0 0
    %5731 = vmatpush1.bf16.msra.mxu0 0
    %5732 = vmatprep.subr.bf16.mxu0 0
    %5733 = vmatpush1.bf16.msra.mxu0 0
    %5734 = vmatprep.mubr.bf16.mxu0 0
    %5735 = vmatmul.mubr.bf16.gmra.mrb[0].mxu0 %v5697
    %v5736 = vpop.f32.mrb[0].mxu0
    %v5737 = vadd.f32 0.0, %v5736
    %v5738 = vpop.f32.mrb[0].mxu0
    %v5739 = vpop.f32.mrb[0].mxu0
    %v5740 = vpop.f32.mrb[0].mxu0
    %5741 = vdwg.mxu0
    %5743 = vrot.lane.b32.xlu0 %v5050, 96
    %v5744 = vpop.permute.xlu0 %5743
    %v5746 = vsel %vm490, %v5494, 0
    %v5749 = vsel %vm256, %v5744, 0
    %5751 = vmatprep.subr.bf16.mxu0 0
    %5752 = vmatpush1.bf16.msra.mxu0 %v5749
    %5753 = vmatprep.subr.bf16.mxu0 0
    %5754 = vmatpush1.bf16.msra.mxu0 0
    %5755 = vmatprep.subr.bf16.mxu0 0
    %5756 = vmatpush1.bf16.msra.mxu0 0
    %5757 = vmatprep.subr.bf16.mxu0 0
    %5758 = vmatpush1.bf16.msra.mxu0 0
    %5759 = vmatprep.subr.bf16.mxu0 0
    %5760 = vmatpush1.bf16.msra.mxu0 0
    %5761 = vmatprep.subr.bf16.mxu0 0
    %5762 = vmatpush1.bf16.msra.mxu0 0
    %5763 = vmatprep.subr.bf16.mxu0 0
    %5764 = vmatpush1.bf16.msra.mxu0 0
    %5765 = vmatprep.subr.bf16.mxu0 0
    %5766 = vmatpush1.bf16.msra.mxu0 0
    %5767 = vmatprep.subr.bf16.mxu0 0
    %5768 = vmatpush1.bf16.msra.mxu0 0
    %5769 = vmatprep.subr.bf16.mxu0 0
    %5770 = vmatpush1.bf16.msra.mxu0 0
    %5771 = vmatprep.subr.bf16.mxu0 0
    %5772 = vmatpush1.bf16.msra.mxu0 0
    %5773 = vmatprep.subr.bf16.mxu0 0
    %5774 = vmatpush1.bf16.msra.mxu0 0
    %5775 = vmatprep.subr.bf16.mxu0 0
    %5776 = vmatpush1.bf16.msra.mxu0 0
    %5777 = vmatprep.subr.bf16.mxu0 0
    %5778 = vmatpush1.bf16.msra.mxu0 0
    %5779 = vmatprep.subr.bf16.mxu0 0
    %5780 = vmatpush1.bf16.msra.mxu0 0
    %5781 = vmatprep.subr.bf16.mxu0 0
    %5782 = vmatpush1.bf16.msra.mxu0 0
    %5783 = vmatprep.mubr.bf16.mxu0 0
    %5784 = vmatmul.mubr.bf16.gmra.mrb[0].mxu0 %v5746
    %v5785 = vpop.f32.mrb[0].mxu0
    %v5786 = vadd.f32 0.0, %v5785
    %v5787 = vpop.f32.mrb[0].mxu0
    %v5788 = vpop.f32.mrb[0].mxu0
    %v5789 = vpop.f32.mrb[0].mxu0
    %5790 = vdwg.mxu0
    %5792 = vrot.lane.b32.xlu0 %v5051, 96
    %v5793 = vpop.permute.xlu0 %5792
    %v5795 = vsel %vm490, %v5495, 0
    %v5798 = vsel %vm256, %v5793, 0
    %5800 = vmatprep.subr.bf16.mxu0 0
    %5801 = vmatpush1.bf16.msra.mxu0 %v5798
    %5802 = vmatprep.subr.bf16.mxu0 0
    %5803 = vmatpush1.bf16.msra.mxu0 0
    %5804 = vmatprep.subr.bf16.mxu0 0
    %5805 = vmatpush1.bf16.msra.mxu0 0
    %5806 = vmatprep.subr.bf16.mxu0 0
    %5807 = vmatpush1.bf16.msra.mxu0 0
    %5808 = vmatprep.subr.bf16.mxu0 0
    %5809 = vmatpush1.bf16.msra.mxu0 0
    %5810 = vmatprep.subr.bf16.mxu0 0
    %5811 = vmatpush1.bf16.msra.mxu0 0
    %5812 = vmatprep.subr.bf16.mxu0 0
    %5813 = vmatpush1.bf16.msra.mxu0 0
    %5814 = vmatprep.subr.bf16.mxu0 0
    %5815 = vmatpush1.bf16.msra.mxu0 0
    %5816 = vmatprep.subr.bf16.mxu0 0
    %5817 = vmatpush1.bf16.msra.mxu0 0
    %5818 = vmatprep.subr.bf16.mxu0 0
    %5819 = vmatpush1.bf16.msra.mxu0 0
    %5820 = vmatprep.subr.bf16.mxu0 0
    %5821 = vmatpush1.bf16.msra.mxu0 0
    %5822 = vmatprep.subr.bf16.mxu0 0
    %5823 = vmatpush1.bf16.msra.mxu0 0
    %5824 = vmatprep.subr.bf16.mxu0 0
    %5825 = vmatpush1.bf16.msra.mxu0 0
    %5826 = vmatprep.subr.bf16.mxu0 0
    %5827 = vmatpush1.bf16.msra.mxu0 0
    %5828 = vmatprep.subr.bf16.mxu0 0
    %5829 = vmatpush1.bf16.msra.mxu0 0
    %5830 = vmatprep.subr.bf16.mxu0 0
    %5831 = vmatpush1.bf16.msra.mxu0 0
    %5832 = vmatprep.mubr.bf16.mxu0 0
    %5833 = vmatmul.mubr.bf16.gmra.mrb[0].mxu0 %v5795
    %v5834 = vpop.f32.mrb[0].mxu0
    %v5835 = vadd.f32 0.0, %v5834
    %v5836 = vpop.f32.mrb[0].mxu0
    %v5837 = vpop.f32.mrb[0].mxu0
    %v5838 = vpop.f32.mrb[0].mxu0
    %5839 = vdwg.mxu0
    %5841 = vrot.lane.b32.xlu0 %v5052, 96
    %v5842 = vpop.permute.xlu0 %5841
    %v5844 = vsel %vm490, %v5496, 0
    %v5847 = vsel %vm256, %v5842, 0
    %5849 = vmatprep.subr.bf16.mxu0 0
    %5850 = vmatpush1.bf16.msra.mxu0 %v5847
    %5851 = vmatprep.subr.bf16.mxu0 0
    %5852 = vmatpush1.bf16.msra.mxu0 0
    %5853 = vmatprep.subr.bf16.mxu0 0
    %5854 = vmatpush1.bf16.msra.mxu0 0
    %5855 = vmatprep.subr.bf16.mxu0 0
    %5856 = vmatpush1.bf16.msra.mxu0 0
    %5857 = vmatprep.subr.bf16.mxu0 0
    %5858 = vmatpush1.bf16.msra.mxu0 0
    %5859 = vmatprep.subr.bf16.mxu0 0
    %5860 = vmatpush1.bf16.msra.mxu0 0
    %5861 = vmatprep.subr.bf16.mxu0 0
    %5862 = vmatpush1.bf16.msra.mxu0 0
    %5863 = vmatprep.subr.bf16.mxu0 0
    %5864 = vmatpush1.bf16.msra.mxu0 0
    %5865 = vmatprep.subr.bf16.mxu0 0
    %5866 = vmatpush1.bf16.msra.mxu0 0
    %5867 = vmatprep.subr.bf16.mxu0 0
    %5868 = vmatpush1.bf16.msra.mxu0 0
    %5869 = vmatprep.subr.bf16.mxu0 0
    %5870 = vmatpush1.bf16.msra.mxu0 0
    %5871 = vmatprep.subr.bf16.mxu0 0
    %5872 = vmatpush1.bf16.msra.mxu0 0
    %5873 = vmatprep.subr.bf16.mxu0 0
    %5874 = vmatpush1.bf16.msra.mxu0 0
    %5875 = vmatprep.subr.bf16.mxu0 0
    %5876 = vmatpush1.bf16.msra.mxu0 0
    %5877 = vmatprep.subr.bf16.mxu0 0
    %5878 = vmatpush1.bf16.msra.mxu0 0
    %5879 = vmatprep.subr.bf16.mxu0 0
    %5880 = vmatpush1.bf16.msra.mxu0 0
    %5881 = vmatprep.mubr.bf16.mxu0 0
    %5882 = vmatmul.mubr.bf16.gmra.mrb[0].mxu0 %v5844
    %v5883 = vpop.f32.mrb[0].mxu0
    %v5884 = vadd.f32 0.0, %v5883
    %v5885 = vpop.f32.mrb[0].mxu0
    %v5886 = vpop.f32.mrb[0].mxu0
    %v5887 = vpop.f32.mrb[0].mxu0
    %5888 = vdwg.mxu0
    %5890 = vrot.lane.b32.xlu0 %v5044, 120
    %v5891 = vpop.permute.xlu0 %5890
    %5892 = vrot.lane.b32.xlu0 %v5045, 120
    %v5893 = vpop.permute.xlu0 %5892
    %v5895 = vsel %vm490, %v5891, 0
    %v5898 = vsel %vm490, %v5893, 0
    %5900 = vmatprep.subr.bf16.mxu0 0
    %5901 = vmatpush1.bf16.xpose.msra.mxu0 %v5898
    %5902 = vmatprep.subr.bf16.mxu0 0
    %5903 = vmatpush1.bf16.xpose.msra.mxu0 0
    %5904 = vmatprep.subr.bf16.mxu0 0
    %5905 = vmatpush1.bf16.xpose.msra.mxu0 0
    %5906 = vmatprep.subr.bf16.mxu0 0
    %5907 = vmatpush1.bf16.xpose.msra.mxu0 0
    %5908 = vmatprep.subr.bf16.mxu0 0
    %5909 = vmatpush1.bf16.xpose.msra.mxu0 0
    %5910 = vmatprep.subr.bf16.mxu0 0
    %5911 = vmatpush1.bf16.xpose.msra.mxu0 0
    %5912 = vmatprep.subr.bf16.mxu0 0
    %5913 = vmatpush1.bf16.xpose.msra.mxu0 0
    %5914 = vmatprep.subr.bf16.mxu0 0
    %5915 = vmatpush1.bf16.xpose.msra.mxu0 0
    %5916 = vmatprep.subr.bf16.mxu0 0
    %5917 = vmatpush1.bf16.xpose.msra.mxu0 0
    %5918 = vmatprep.subr.bf16.mxu0 0
    %5919 = vmatpush1.bf16.xpose.msra.mxu0 0
    %5920 = vmatprep.subr.bf16.mxu0 0
    %5921 = vmatpush1.bf16.xpose.msra.mxu0 0
    %5922 = vmatprep.subr.bf16.mxu0 0
    %5923 = vmatpush1.bf16.xpose.msra.mxu0 0
    %5924 = vmatprep.subr.bf16.mxu0 0
    %5925 = vmatpush1.bf16.xpose.msra.mxu0 0
    %5926 = vmatprep.subr.bf16.mxu0 0
    %5927 = vmatpush1.bf16.xpose.msra.mxu0 0
    %5928 = vmatprep.subr.bf16.mxu0 0
    %5929 = vmatpush1.bf16.xpose.msra.mxu0 0
    %5930 = vmatprep.subr.bf16.mxu0 0
    %5931 = vmatpush1.bf16.xpose.msra.mxu0 0
    %5932 = vmatprep.mubr.bf16.mxu0 0
    %5933 = vmatmul.mubr.bf16.gmra.mrb[0].mxu0 %v5895
    %v5934 = vpop.f32.mrb[0].mxu0
    %v5935 = vadd.f32 %v154, %v5934
    %v5936 = vpop.f32.mrb[0].mxu0
    %v5937 = vpop.f32.mrb[0].mxu0
    %v5938 = vpop.f32.mrb[0].mxu0
    %5939 = vdwg.mxu0
    %5940 = vrot.lane.b32.xlu0 %v5046, 120
    %v5941 = vpop.permute.xlu0 %5940
    %v5943 = vsel %vm490, %v5941, 0
    %5945 = vmatprep.subr.bf16.mxu0 0
    %5946 = vmatpush1.bf16.xpose.msra.mxu0 %v5943
    %5947 = vmatprep.subr.bf16.mxu0 0
    %5948 = vmatpush1.bf16.xpose.msra.mxu0 0
    %5949 = vmatprep.subr.bf16.mxu0 0
    %5950 = vmatpush1.bf16.xpose.msra.mxu0 0
    %5951 = vmatprep.subr.bf16.mxu0 0
    %5952 = vmatpush1.bf16.xpose.msra.mxu0 0
    %5953 = vmatprep.subr.bf16.mxu0 0
    %5954 = vmatpush1.bf16.xpose.msra.mxu0 0
    %5955 = vmatprep.subr.bf16.mxu0 0
    %5956 = vmatpush1.bf16.xpose.msra.mxu0 0
    %5957 = vmatprep.subr.bf16.mxu0 0
    %5958 = vmatpush1.bf16.xpose.msra.mxu0 0
    %5959 = vmatprep.subr.bf16.mxu0 0
    %5960 = vmatpush1.bf16.xpose.msra.mxu0 0
    %5961 = vmatprep.subr.bf16.mxu0 0
    %5962 = vmatpush1.bf16.xpose.msra.mxu0 0
    %5963 = vmatprep.subr.bf16.mxu0 0
    %5964 = vmatpush1.bf16.xpose.msra.mxu0 0
    %5965 = vmatprep.subr.bf16.mxu0 0
    %5966 = vmatpush1.bf16.xpose.msra.mxu0 0
    %5967 = vmatprep.subr.bf16.mxu0 0
    %5968 = vmatpush1.bf16.xpose.msra.mxu0 0
    %5969 = vmatprep.subr.bf16.mxu0 0
    %5970 = vmatpush1.bf16.xpose.msra.mxu0 0
    %5971 = vmatprep.subr.bf16.mxu0 0
    %5972 = vmatpush1.bf16.xpose.msra.mxu0 0
    %5973 = vmatprep.subr.bf16.mxu0 0
    %5974 = vmatpush1.bf16.xpose.msra.mxu0 0
    %5975 = vmatprep.subr.bf16.mxu0 0
    %5976 = vmatpush1.bf16.xpose.msra.mxu0 0
    %5977 = vmatprep.mubr.bf16.mxu0 0
    %5978 = vmatmul.mubr.bf16.gmra.mrb[0].mxu0 %v5895
    %v5979 = vpop.f32.mrb[0].mxu0
    %v5980 = vadd.f32 %v168, %v5979
    %v5981 = vpop.f32.mrb[0].mxu0
    %v5982 = vpop.f32.mrb[0].mxu0
    %v5983 = vpop.f32.mrb[0].mxu0
    %5984 = vdwg.mxu0
    %5985 = vrot.lane.b32.xlu0 %v5047, 120
    %v5986 = vpop.permute.xlu0 %5985
    %v5988 = vsel %vm490, %v5986, 0
    %5990 = vmatprep.subr.bf16.mxu0 0
    %5991 = vmatpush1.bf16.xpose.msra.mxu0 %v5988
    %5992 = vmatprep.subr.bf16.mxu0 0
    %5993 = vmatpush1.bf16.xpose.msra.mxu0 0
    %5994 = vmatprep.subr.bf16.mxu0 0
    %5995 = vmatpush1.bf16.xpose.msra.mxu0 0
    %5996 = vmatprep.subr.bf16.mxu0 0
    %5997 = vmatpush1.bf16.xpose.msra.mxu0 0
    %5998 = vmatprep.subr.bf16.mxu0 0
    %5999 = vmatpush1.bf16.xpose.msra.mxu0 0
    %6000 = vmatprep.subr.bf16.mxu0 0
    %6001 = vmatpush1.bf16.xpose.msra.mxu0 0
    %6002 = vmatprep.subr.bf16.mxu0 0
    %6003 = vmatpush1.bf16.xpose.msra.mxu0 0
    %6004 = vmatprep.subr.bf16.mxu0 0
    %6005 = vmatpush1.bf16.xpose.msra.mxu0 0
    %6006 = vmatprep.subr.bf16.mxu0 0
    %6007 = vmatpush1.bf16.xpose.msra.mxu0 0
    %6008 = vmatprep.subr.bf16.mxu0 0
    %6009 = vmatpush1.bf16.xpose.msra.mxu0 0
    %6010 = vmatprep.subr.bf16.mxu0 0
    %6011 = vmatpush1.bf16.xpose.msra.mxu0 0
    %6012 = vmatprep.subr.bf16.mxu0 0
    %6013 = vmatpush1.bf16.xpose.msra.mxu0 0
    %6014 = vmatprep.subr.bf16.mxu0 0
    %6015 = vmatpush1.bf16.xpose.msra.mxu0 0
    %6016 = vmatprep.subr.bf16.mxu0 0
    %6017 = vmatpush1.bf16.xpose.msra.mxu0 0
    %6018 = vmatprep.subr.bf16.mxu0 0
    %6019 = vmatpush1.bf16.xpose.msra.mxu0 0
    %6020 = vmatprep.subr.bf16.mxu0 0
    %6021 = vmatpush1.bf16.xpose.msra.mxu0 0
    %6022 = vmatprep.mubr.bf16.mxu0 0
    %6023 = vmatmul.mubr.bf16.gmra.mrb[0].mxu0 %v5895
    %v6024 = vpop.f32.mrb[0].mxu0
    %v6025 = vadd.f32 %v176, %v6024
    %v6026 = vpop.f32.mrb[0].mxu0
    %v6027 = vpop.f32.mrb[0].mxu0
    %v6028 = vpop.f32.mrb[0].mxu0
    %6029 = vdwg.mxu0
    %6030 = vrot.lane.b32.xlu0 %v5048, 120
    %v6031 = vpop.permute.xlu0 %6030
    %v6033 = vsel %vm490, %v6031, 0
    %6035 = vmatprep.subr.bf16.mxu0 0
    %6036 = vmatpush1.bf16.xpose.msra.mxu0 %v6033
    %6037 = vmatprep.subr.bf16.mxu0 0
    %6038 = vmatpush1.bf16.xpose.msra.mxu0 0
    %6039 = vmatprep.subr.bf16.mxu0 0
    %6040 = vmatpush1.bf16.xpose.msra.mxu0 0
    %6041 = vmatprep.subr.bf16.mxu0 0
    %6042 = vmatpush1.bf16.xpose.msra.mxu0 0
    %6043 = vmatprep.subr.bf16.mxu0 0
    %6044 = vmatpush1.bf16.xpose.msra.mxu0 0
    %6045 = vmatprep.subr.bf16.mxu0 0
    %6046 = vmatpush1.bf16.xpose.msra.mxu0 0
    %6047 = vmatprep.subr.bf16.mxu0 0
    %6048 = vmatpush1.bf16.xpose.msra.mxu0 0
    %6049 = vmatprep.subr.bf16.mxu0 0
    %6050 = vmatpush1.bf16.xpose.msra.mxu0 0
    %6051 = vmatprep.subr.bf16.mxu0 0
    %6052 = vmatpush1.bf16.xpose.msra.mxu0 0
    %6053 = vmatprep.subr.bf16.mxu0 0
    %6054 = vmatpush1.bf16.xpose.msra.mxu0 0
    %6055 = vmatprep.subr.bf16.mxu0 0
    %6056 = vmatpush1.bf16.xpose.msra.mxu0 0
    %6057 = vmatprep.subr.bf16.mxu0 0
    %6058 = vmatpush1.bf16.xpose.msra.mxu0 0
    %6059 = vmatprep.subr.bf16.mxu0 0
    %6060 = vmatpush1.bf16.xpose.msra.mxu0 0
    %6061 = vmatprep.subr.bf16.mxu0 0
    %6062 = vmatpush1.bf16.xpose.msra.mxu0 0
    %6063 = vmatprep.subr.bf16.mxu0 0
    %6064 = vmatpush1.bf16.xpose.msra.mxu0 0
    %6065 = vmatprep.subr.bf16.mxu0 0
    %6066 = vmatpush1.bf16.xpose.msra.mxu0 0
    %6067 = vmatprep.mubr.bf16.mxu0 0
    %6068 = vmatmul.mubr.bf16.gmra.mrb[0].mxu0 %v5895
    %v6069 = vpop.f32.mrb[0].mxu0
    %v6070 = vadd.f32 %v178, %v6069
    %v6071 = vpop.f32.mrb[0].mxu0
    %v6072 = vpop.f32.mrb[0].mxu0
    %v6073 = vpop.f32.mrb[0].mxu0
    %6074 = vdwg.mxu0
    %6075 = vrot.lane.b32.xlu0 %v5049, 120
    %v6076 = vpop.permute.xlu0 %6075
    %v6078 = vsel %vm490, %v6076, 0
    %6080 = vmatprep.subr.bf16.mxu0 0
    %6081 = vmatpush1.bf16.xpose.msra.mxu0 %v6078
    %6082 = vmatprep.subr.bf16.mxu0 0
    %6083 = vmatpush1.bf16.xpose.msra.mxu0 0
    %6084 = vmatprep.subr.bf16.mxu0 0
    %6085 = vmatpush1.bf16.xpose.msra.mxu0 0
    %6086 = vmatprep.subr.bf16.mxu0 0
    %6087 = vmatpush1.bf16.xpose.msra.mxu0 0
    %6088 = vmatprep.subr.bf16.mxu0 0
    %6089 = vmatpush1.bf16.xpose.msra.mxu0 0
    %6090 = vmatprep.subr.bf16.mxu0 0
    %6091 = vmatpush1.bf16.xpose.msra.mxu0 0
    %6092 = vmatprep.subr.bf16.mxu0 0
    %6093 = vmatpush1.bf16.xpose.msra.mxu0 0
    %6094 = vmatprep.subr.bf16.mxu0 0
    %6095 = vmatpush1.bf16.xpose.msra.mxu0 0
    %6096 = vmatprep.subr.bf16.mxu0 0
    %6097 = vmatpush1.bf16.xpose.msra.mxu0 0
    %6098 = vmatprep.subr.bf16.mxu0 0
    %6099 = vmatpush1.bf16.xpose.msra.mxu0 0
    %6100 = vmatprep.subr.bf16.mxu0 0
    %6101 = vmatpush1.bf16.xpose.msra.mxu0 0
    %6102 = vmatprep.subr.bf16.mxu0 0
    %6103 = vmatpush1.bf16.xpose.msra.mxu0 0
    %6104 = vmatprep.subr.bf16.mxu0 0
    %6105 = vmatpush1.bf16.xpose.msra.mxu0 0
    %6106 = vmatprep.subr.bf16.mxu0 0
    %6107 = vmatpush1.bf16.xpose.msra.mxu0 0
    %6108 = vmatprep.subr.bf16.mxu0 0
    %6109 = vmatpush1.bf16.xpose.msra.mxu0 0
    %6110 = vmatprep.subr.bf16.mxu0 0
    %6111 = vmatpush1.bf16.xpose.msra.mxu0 0
    %6112 = vmatprep.mubr.bf16.mxu0 0
    %6113 = vmatmul.mubr.bf16.gmra.mrb[0].mxu0 %v5895
    %v6114 = vpop.f32.mrb[0].mxu0
    %v6115 = vadd.f32 %v161, %v6114
    %v6116 = vpop.f32.mrb[0].mxu0
    %v6117 = vpop.f32.mrb[0].mxu0
    %v6118 = vpop.f32.mrb[0].mxu0
    %6119 = vdwg.mxu0
    %6120 = vrot.lane.b32.xlu0 %v5050, 120
    %v6121 = vpop.permute.xlu0 %6120
    %v6123 = vsel %vm490, %v6121, 0
    %6125 = vmatprep.subr.bf16.mxu0 0
    %6126 = vmatpush1.bf16.xpose.msra.mxu0 %v6123
    %6127 = vmatprep.subr.bf16.mxu0 0
    %6128 = vmatpush1.bf16.xpose.msra.mxu0 0
    %6129 = vmatprep.subr.bf16.mxu0 0
    %6130 = vmatpush1.bf16.xpose.msra.mxu0 0
    %6131 = vmatprep.subr.bf16.mxu0 0
    %6132 = vmatpush1.bf16.xpose.msra.mxu0 0
    %6133 = vmatprep.subr.bf16.mxu0 0
    %6134 = vmatpush1.bf16.xpose.msra.mxu0 0
    %6135 = vmatprep.subr.bf16.mxu0 0
    %6136 = vmatpush1.bf16.xpose.msra.mxu0 0
    %6137 = vmatprep.subr.bf16.mxu0 0
    %6138 = vmatpush1.bf16.xpose.msra.mxu0 0
    %6139 = vmatprep.subr.bf16.mxu0 0
    %6140 = vmatpush1.bf16.xpose.msra.mxu0 0
    %6141 = vmatprep.subr.bf16.mxu0 0
    %6142 = vmatpush1.bf16.xpose.msra.mxu0 0
    %6143 = vmatprep.subr.bf16.mxu0 0
    %6144 = vmatpush1.bf16.xpose.msra.mxu0 0
    %6145 = vmatprep.subr.bf16.mxu0 0
    %6146 = vmatpush1.bf16.xpose.msra.mxu0 0
    %6147 = vmatprep.subr.bf16.mxu0 0
    %6148 = vmatpush1.bf16.xpose.msra.mxu0 0
    %6149 = vmatprep.subr.bf16.mxu0 0
    %6150 = vmatpush1.bf16.xpose.msra.mxu0 0
    %6151 = vmatprep.subr.bf16.mxu0 0
    %6152 = vmatpush1.bf16.xpose.msra.mxu0 0
    %6153 = vmatprep.subr.bf16.mxu0 0
    %6154 = vmatpush1.bf16.xpose.msra.mxu0 0
    %6155 = vmatprep.subr.bf16.mxu0 0
    %6156 = vmatpush1.bf16.xpose.msra.mxu0 0
    %6157 = vmatprep.mubr.bf16.mxu0 0
    %6158 = vmatmul.mubr.bf16.gmra.mrb[0].mxu0 %v5895
    %v6159 = vpop.f32.mrb[0].mxu0
    %v6160 = vadd.f32 %v175, %v6159
    %v6161 = vpop.f32.mrb[0].mxu0
    %v6162 = vpop.f32.mrb[0].mxu0
    %v6163 = vpop.f32.mrb[0].mxu0
    %6164 = vdwg.mxu0
    %6165 = vrot.lane.b32.xlu0 %v5051, 120
    %v6166 = vpop.permute.xlu0 %6165
    %v6168 = vsel %vm490, %v6166, 0
    %6170 = vmatprep.subr.bf16.mxu0 0
    %6171 = vmatpush1.bf16.xpose.msra.mxu0 %v6168
    %6172 = vmatprep.subr.bf16.mxu0 0
    %6173 = vmatpush1.bf16.xpose.msra.mxu0 0
    %6174 = vmatprep.subr.bf16.mxu0 0
    %6175 = vmatpush1.bf16.xpose.msra.mxu0 0
    %6176 = vmatprep.subr.bf16.mxu0 0
    %6177 = vmatpush1.bf16.xpose.msra.mxu0 0
    %6178 = vmatprep.subr.bf16.mxu0 0
    %6179 = vmatpush1.bf16.xpose.msra.mxu0 0
    %6180 = vmatprep.subr.bf16.mxu0 0
    %6181 = vmatpush1.bf16.xpose.msra.mxu0 0
    %6182 = vmatprep.subr.bf16.mxu0 0
    %6183 = vmatpush1.bf16.xpose.msra.mxu0 0
    %6184 = vmatprep.subr.bf16.mxu0 0
    %6185 = vmatpush1.bf16.xpose.msra.mxu0 0
    %6186 = vmatprep.subr.bf16.mxu0 0
    %6187 = vmatpush1.bf16.xpose.msra.mxu0 0
    %6188 = vmatprep.subr.bf16.mxu0 0
    %6189 = vmatpush1.bf16.xpose.msra.mxu0 0
    %6190 = vmatprep.subr.bf16.mxu0 0
    %6191 = vmatpush1.bf16.xpose.msra.mxu0 0
    %6192 = vmatprep.subr.bf16.mxu0 0
    %6193 = vmatpush1.bf16.xpose.msra.mxu0 0
    %6194 = vmatprep.subr.bf16.mxu0 0
    %6195 = vmatpush1.bf16.xpose.msra.mxu0 0
    %6196 = vmatprep.subr.bf16.mxu0 0
    %6197 = vmatpush1.bf16.xpose.msra.mxu0 0
    %6198 = vmatprep.subr.bf16.mxu0 0
    %6199 = vmatpush1.bf16.xpose.msra.mxu0 0
    %6200 = vmatprep.subr.bf16.mxu0 0
    %6201 = vmatpush1.bf16.xpose.msra.mxu0 0
    %6202 = vmatprep.mubr.bf16.mxu0 0
    %6203 = vmatmul.mubr.bf16.gmra.mrb[0].mxu0 %v5895
    %v6204 = vpop.f32.mrb[0].mxu0
    %v6205 = vadd.f32 %v177, %v6204
    %v6206 = vpop.f32.mrb[0].mxu0
    %v6207 = vpop.f32.mrb[0].mxu0
    %v6208 = vpop.f32.mrb[0].mxu0
    %6209 = vdwg.mxu0
    %6210 = vrot.lane.b32.xlu0 %v5052, 120
    %v6211 = vpop.permute.xlu0 %6210
    %v6213 = vsel %vm490, %v6211, 0
    %6215 = vmatprep.subr.bf16.mxu0 0
    %6216 = vmatpush1.bf16.xpose.msra.mxu0 %v6213
    %6217 = vmatprep.subr.bf16.mxu0 0
    %6218 = vmatpush1.bf16.xpose.msra.mxu0 0
    %6219 = vmatprep.subr.bf16.mxu0 0
    %6220 = vmatpush1.bf16.xpose.msra.mxu0 0
    %6221 = vmatprep.subr.bf16.mxu0 0
    %6222 = vmatpush1.bf16.xpose.msra.mxu0 0
    %6223 = vmatprep.subr.bf16.mxu0 0
    %6224 = vmatpush1.bf16.xpose.msra.mxu0 0
    %6225 = vmatprep.subr.bf16.mxu0 0
    %6226 = vmatpush1.bf16.xpose.msra.mxu0 0
    %6227 = vmatprep.subr.bf16.mxu0 0
    %6228 = vmatpush1.bf16.xpose.msra.mxu0 0
    %6229 = vmatprep.subr.bf16.mxu0 0
    %6230 = vmatpush1.bf16.xpose.msra.mxu0 0
    %6231 = vmatprep.subr.bf16.mxu0 0
    %6232 = vmatpush1.bf16.xpose.msra.mxu0 0
    %6233 = vmatprep.subr.bf16.mxu0 0
    %6234 = vmatpush1.bf16.xpose.msra.mxu0 0
    %6235 = vmatprep.subr.bf16.mxu0 0
    %6236 = vmatpush1.bf16.xpose.msra.mxu0 0
    %6237 = vmatprep.subr.bf16.mxu0 0
    %6238 = vmatpush1.bf16.xpose.msra.mxu0 0
    %6239 = vmatprep.subr.bf16.mxu0 0
    %6240 = vmatpush1.bf16.xpose.msra.mxu0 0
    %6241 = vmatprep.subr.bf16.mxu0 0
    %6242 = vmatpush1.bf16.xpose.msra.mxu0 0
    %6243 = vmatprep.subr.bf16.mxu0 0
    %6244 = vmatpush1.bf16.xpose.msra.mxu0 0
    %6245 = vmatprep.subr.bf16.mxu0 0
    %6246 = vmatpush1.bf16.xpose.msra.mxu0 0
    %6247 = vmatprep.mubr.bf16.mxu0 0
    %6248 = vmatmul.mubr.bf16.gmra.mrb[0].mxu0 %v5895
    %v6249 = vpop.f32.mrb[0].mxu0
    %v6250 = vadd.f32 %v179, %v6249
    %v6251 = vpop.f32.mrb[0].mxu0
    %v6252 = vpop.f32.mrb[0].mxu0
    %v6253 = vpop.f32.mrb[0].mxu0
    %6254 = vdwg.mxu0
    %v6255 = vsel %vm5400, %v5935, -inf
    %6256 = vmax.xlane.f32.xlu0 %v6255
    %v6257 = vpop.xlane.xlu0 %6256
    %v6258 = vsel %vm5400, %v5980, -inf
    %6259 = vmax.xlane.f32.xlu0 %v6258
    %v6260 = vpop.xlane.xlu0 %6259
    %v6261 = vsel %vm5400, %v6025, -inf
    %6262 = vmax.xlane.f32.xlu0 %v6261
    %v6263 = vpop.xlane.xlu0 %6262
    %v6264 = vsel %vm5400, %v6070, -inf
    %6265 = vmax.xlane.f32.xlu0 %v6264
    %v6266 = vpop.xlane.xlu0 %6265
    %v6267 = vsel %vm5400, %v6115, -inf
    %6268 = vmax.xlane.f32.xlu0 %v6267
    %v6269 = vpop.xlane.xlu0 %6268
    %v6270 = vsel %vm5400, %v6160, -inf
    %6271 = vmax.xlane.f32.xlu0 %v6270
    %v6272 = vpop.xlane.xlu0 %6271
    %v6273 = vsel %vm5400, %v6205, -inf
    %6274 = vmax.xlane.f32.xlu0 %v6273
    %v6275 = vpop.xlane.xlu0 %6274
    %v6276 = vsel %vm5400, %v6250, -inf
    %6277 = vmax.xlane.f32.xlu0 %v6276
    %v6278 = vpop.xlane.xlu0 %6277
    %v6279 = vsub.f32 %v5935, %v6257
    %v6280 = vsub.f32 %v5980, %v6260
    %v6281 = vsub.f32 %v6025, %v6263
    %v6282 = vsub.f32 %v6070, %v6266
    %v6283 = vsub.f32 %v6115, %v6269
    %v6284 = vsub.f32 %v6160, %v6272
    %v6285 = vsub.f32 %v6205, %v6275
    %v6286 = vsub.f32 %v6250, %v6278
    %v6287 = vmul.f32 %v6279, 1.442695
    %v6288 = vpow.pop %v6287
    %v6289 = vmul.f32 %v6280, 1.442695
    %v6290 = vpow.pop %v6289
    %v6291 = vmul.f32 %v6281, 1.442695
    %v6292 = vpow.pop %v6291
    %v6293 = vmul.f32 %v6282, 1.442695
    %v6294 = vpow.pop %v6293
    %v6295 = vmul.f32 %v6283, 1.442695
    %v6296 = vpow.pop %v6295
    %v6297 = vmul.f32 %v6284, 1.442695
    %v6298 = vpow.pop %v6297
    %v6299 = vmul.f32 %v6285, 1.442695
    %v6300 = vpow.pop %v6299
    %v6301 = vmul.f32 %v6286, 1.442695
    %v6302 = vpow.pop %v6301
    %v6303 = vsel %vm5400, %v6288, 0.0
    %6304 = vadd.xlane.f32.xlu0 %v6303
    %v6305 = vpop.xlane.xlu0 %6304
    %v6306 = vsel %vm5400, %v6290, 0.0
    %6307 = vadd.xlane.f32.xlu0 %v6306
    %v6308 = vpop.xlane.xlu0 %6307
    %v6309 = vsel %vm5400, %v6292, 0.0
    %6310 = vadd.xlane.f32.xlu0 %v6309
    %v6311 = vpop.xlane.xlu0 %6310
    %v6312 = vsel %vm5400, %v6294, 0.0
    %6313 = vadd.xlane.f32.xlu0 %v6312
    %v6314 = vpop.xlane.xlu0 %6313
    %v6315 = vsel %vm5400, %v6296, 0.0
    %6316 = vadd.xlane.f32.xlu0 %v6315
    %v6317 = vpop.xlane.xlu0 %6316
    %v6318 = vsel %vm5400, %v6298, 0.0
    %6319 = vadd.xlane.f32.xlu0 %v6318
    %v6320 = vpop.xlane.xlu0 %6319
    %v6321 = vsel %vm5400, %v6300, 0.0
    %6322 = vadd.xlane.f32.xlu0 %v6321
    %v6323 = vpop.xlane.xlu0 %6322
    %v6324 = vsel %vm5400, %v6302, 0.0
    %6325 = vadd.xlane.f32.xlu0 %v6324
    %v6326 = vpop.xlane.xlu0 %6325
    %v6327 = vrcp.pop %v6305
    %v6328 = vrcp.pop %v6308
    %v6329 = vrcp.pop %v6311
    %v6330 = vrcp.pop %v6314
    %v6331 = vrcp.pop %v6317
    %v6332 = vrcp.pop %v6320
    %v6333 = vrcp.pop %v6323
    %v6334 = vrcp.pop %v6326
    %v6335 = vmul.f32 %v6288, %v6327
    %v6336 = vmul.f32 %v6290, %v6328
    %v6337 = vmul.f32 %v6292, %v6329
    %v6338 = vmul.f32 %v6294, %v6330
    %v6339 = vmul.f32 %v6296, %v6331
    %v6340 = vmul.f32 %v6298, %v6332
    %v6341 = vmul.f32 %v6300, %v6333
    %v6342 = vmul.f32 %v6302, %v6334
    %v6343 = vpack.c.bf16 %v6335, %v6335
    %v6344 = vpack.c.bf16 %v6336, %v6336
    %v6345 = vpack.c.bf16 %v6337, %v6337
    %v6346 = vpack.c.bf16 %v6338, %v6338
    %v6347 = vpack.c.bf16 %v6339, %v6339
    %v6348 = vpack.c.bf16 %v6340, %v6340
    %v6349 = vpack.c.bf16 %v6341, %v6341
    %v6350 = vpack.c.bf16 %v6342, %v6342
    %6351 = vrot.lane.b32.xlu0 %v5045, 88
    %v6352 = vpop.permute.xlu0 %6351
    %v6354 = vsel %vm490, %v6343, 0
    %v6357 = vsel %vm256, %v6352, 0
    %6359 = vmatprep.subr.bf16.mxu0 0
    %6360 = vmatpush1.bf16.msra.mxu0 %v6357
    %6361 = vmatprep.subr.bf16.mxu0 0
    %6362 = vmatpush1.bf16.msra.mxu0 0
    %6363 = vmatprep.subr.bf16.mxu0 0
    %6364 = vmatpush1.bf16.msra.mxu0 0
    %6365 = vmatprep.subr.bf16.mxu0 0
    %6366 = vmatpush1.bf16.msra.mxu0 0
    %6367 = vmatprep.subr.bf16.mxu0 0
    %6368 = vmatpush1.bf16.msra.mxu0 0
    %6369 = vmatprep.subr.bf16.mxu0 0
    %6370 = vmatpush1.bf16.msra.mxu0 0
    %6371 = vmatprep.subr.bf16.mxu0 0
    %6372 = vmatpush1.bf16.msra.mxu0 0
    %6373 = vmatprep.subr.bf16.mxu0 0
    %6374 = vmatpush1.bf16.msra.mxu0 0
    %6375 = vmatprep.subr.bf16.mxu0 0
    %6376 = vmatpush1.bf16.msra.mxu0 0
    %6377 = vmatprep.subr.bf16.mxu0 0
    %6378 = vmatpush1.bf16.msra.mxu0 0
    %6379 = vmatprep.subr.bf16.mxu0 0
    %6380 = vmatpush1.bf16.msra.mxu0 0
    %6381 = vmatprep.subr.bf16.mxu0 0
    %6382 = vmatpush1.bf16.msra.mxu0 0
    %6383 = vmatprep.subr.bf16.mxu0 0
    %6384 = vmatpush1.bf16.msra.mxu0 0
    %6385 = vmatprep.subr.bf16.mxu0 0
    %6386 = vmatpush1.bf16.msra.mxu0 0
    %6387 = vmatprep.subr.bf16.mxu0 0
    %6388 = vmatpush1.bf16.msra.mxu0 0
    %6389 = vmatprep.subr.bf16.mxu0 0
    %6390 = vmatpush1.bf16.msra.mxu0 0
    %6391 = vmatprep.mubr.bf16.mxu0 0
    %6392 = vmatmul.mubr.bf16.gmra.mrb[0].mxu0 %v6354
    %v6393 = vpop.f32.mrb[0].mxu0
    %v6394 = vadd.f32 0.0, %v6393
    %v6395 = vpop.f32.mrb[0].mxu0
    %v6396 = vpop.f32.mrb[0].mxu0
    %v6397 = vpop.f32.mrb[0].mxu0
    %6398 = vdwg.mxu0
    %6399 = vrot.lane.b32.xlu0 %v5046, 88
    %v6400 = vpop.permute.xlu0 %6399
    %v6402 = vsel %vm490, %v6344, 0
    %v6405 = vsel %vm256, %v6400, 0
    %6407 = vmatprep.subr.bf16.mxu0 0
    %6408 = vmatpush1.bf16.msra.mxu0 %v6405
    %6409 = vmatprep.subr.bf16.mxu0 0
    %6410 = vmatpush1.bf16.msra.mxu0 0
    %6411 = vmatprep.subr.bf16.mxu0 0
    %6412 = vmatpush1.bf16.msra.mxu0 0
    %6413 = vmatprep.subr.bf16.mxu0 0
    %6414 = vmatpush1.bf16.msra.mxu0 0
    %6415 = vmatprep.subr.bf16.mxu0 0
    %6416 = vmatpush1.bf16.msra.mxu0 0
    %6417 = vmatprep.subr.bf16.mxu0 0
    %6418 = vmatpush1.bf16.msra.mxu0 0
    %6419 = vmatprep.subr.bf16.mxu0 0
    %6420 = vmatpush1.bf16.msra.mxu0 0
    %6421 = vmatprep.subr.bf16.mxu0 0
    %6422 = vmatpush1.bf16.msra.mxu0 0
    %6423 = vmatprep.subr.bf16.mxu0 0
    %6424 = vmatpush1.bf16.msra.mxu0 0
    %6425 = vmatprep.subr.bf16.mxu0 0
    %6426 = vmatpush1.bf16.msra.mxu0 0
    %6427 = vmatprep.subr.bf16.mxu0 0
    %6428 = vmatpush1.bf16.msra.mxu0 0
    %6429 = vmatprep.subr.bf16.mxu0 0
    %6430 = vmatpush1.bf16.msra.mxu0 0
    %6431 = vmatprep.subr.bf16.mxu0 0
    %6432 = vmatpush1.bf16.msra.mxu0 0
    %6433 = vmatprep.subr.bf16.mxu0 0
    %6434 = vmatpush1.bf16.msra.mxu0 0
    %6435 = vmatprep.subr.bf16.mxu0 0
    %6436 = vmatpush1.bf16.msra.mxu0 0
    %6437 = vmatprep.subr.bf16.mxu0 0
    %6438 = vmatpush1.bf16.msra.mxu0 0
    %6439 = vmatprep.mubr.bf16.mxu0 0
    %6440 = vmatmul.mubr.bf16.gmra.mrb[0].mxu0 %v6402
    %v6441 = vpop.f32.mrb[0].mxu0
    %v6442 = vadd.f32 0.0, %v6441
    %v6443 = vpop.f32.mrb[0].mxu0
    %v6444 = vpop.f32.mrb[0].mxu0
    %v6445 = vpop.f32.mrb[0].mxu0
    %6446 = vdwg.mxu0
    %6447 = vrot.lane.b32.xlu0 %v5047, 88
    %v6448 = vpop.permute.xlu0 %6447
    %v6450 = vsel %vm490, %v6345, 0
    %v6453 = vsel %vm256, %v6448, 0
    %6455 = vmatprep.subr.bf16.mxu0 0
    %6456 = vmatpush1.bf16.msra.mxu0 %v6453
    %6457 = vmatprep.subr.bf16.mxu0 0
    %6458 = vmatpush1.bf16.msra.mxu0 0
    %6459 = vmatprep.subr.bf16.mxu0 0
    %6460 = vmatpush1.bf16.msra.mxu0 0
    %6461 = vmatprep.subr.bf16.mxu0 0
    %6462 = vmatpush1.bf16.msra.mxu0 0
    %6463 = vmatprep.subr.bf16.mxu0 0
    %6464 = vmatpush1.bf16.msra.mxu0 0
    %6465 = vmatprep.subr.bf16.mxu0 0
    %6466 = vmatpush1.bf16.msra.mxu0 0
    %6467 = vmatprep.subr.bf16.mxu0 0
    %6468 = vmatpush1.bf16.msra.mxu0 0
    %6469 = vmatprep.subr.bf16.mxu0 0
    %6470 = vmatpush1.bf16.msra.mxu0 0
    %6471 = vmatprep.subr.bf16.mxu0 0
    %6472 = vmatpush1.bf16.msra.mxu0 0
    %6473 = vmatprep.subr.bf16.mxu0 0
    %6474 = vmatpush1.bf16.msra.mxu0 0
    %6475 = vmatprep.subr.bf16.mxu0 0
    %6476 = vmatpush1.bf16.msra.mxu0 0
    %6477 = vmatprep.subr.bf16.mxu0 0
    %6478 = vmatpush1.bf16.msra.mxu0 0
    %6479 = vmatprep.subr.bf16.mxu0 0
    %6480 = vmatpush1.bf16.msra.mxu0 0
    %6481 = vmatprep.subr.bf16.mxu0 0
    %6482 = vmatpush1.bf16.msra.mxu0 0
    %6483 = vmatprep.subr.bf16.mxu0 0
    %6484 = vmatpush1.bf16.msra.mxu0 0
    %6485 = vmatprep.subr.bf16.mxu0 0
    %6486 = vmatpush1.bf16.msra.mxu0 0
    %6487 = vmatprep.mubr.bf16.mxu0 0
    %6488 = vmatmul.mubr.bf16.gmra.mrb[0].mxu0 %v6450
    %v6489 = vpop.f32.mrb[0].mxu0
    %v6490 = vadd.f32 0.0, %v6489
    %v6491 = vpop.f32.mrb[0].mxu0
    %v6492 = vpop.f32.mrb[0].mxu0
    %v6493 = vpop.f32.mrb[0].mxu0
    %6494 = vdwg.mxu0
    %6495 = vrot.lane.b32.xlu0 %v5048, 88
    %v6496 = vpop.permute.xlu0 %6495
    %v6498 = vsel %vm490, %v6346, 0
    %v6501 = vsel %vm256, %v6496, 0
    %6503 = vmatprep.subr.bf16.mxu0 0
    %6504 = vmatpush1.bf16.msra.mxu0 %v6501
    %6505 = vmatprep.subr.bf16.mxu0 0
    %6506 = vmatpush1.bf16.msra.mxu0 0
    %6507 = vmatprep.subr.bf16.mxu0 0
    %6508 = vmatpush1.bf16.msra.mxu0 0
    %6509 = vmatprep.subr.bf16.mxu0 0
    %6510 = vmatpush1.bf16.msra.mxu0 0
    %6511 = vmatprep.subr.bf16.mxu0 0
    %6512 = vmatpush1.bf16.msra.mxu0 0
    %6513 = vmatprep.subr.bf16.mxu0 0
    %6514 = vmatpush1.bf16.msra.mxu0 0
    %6515 = vmatprep.subr.bf16.mxu0 0
    %6516 = vmatpush1.bf16.msra.mxu0 0
    %6517 = vmatprep.subr.bf16.mxu0 0
    %6518 = vmatpush1.bf16.msra.mxu0 0
    %6519 = vmatprep.subr.bf16.mxu0 0
    %6520 = vmatpush1.bf16.msra.mxu0 0
    %6521 = vmatprep.subr.bf16.mxu0 0
    %6522 = vmatpush1.bf16.msra.mxu0 0
    %6523 = vmatprep.subr.bf16.mxu0 0
    %6524 = vmatpush1.bf16.msra.mxu0 0
    %6525 = vmatprep.subr.bf16.mxu0 0
    %6526 = vmatpush1.bf16.msra.mxu0 0
    %6527 = vmatprep.subr.bf16.mxu0 0
    %6528 = vmatpush1.bf16.msra.mxu0 0
    %6529 = vmatprep.subr.bf16.mxu0 0
    %6530 = vmatpush1.bf16.msra.mxu0 0
    %6531 = vmatprep.subr.bf16.mxu0 0
    %6532 = vmatpush1.bf16.msra.mxu0 0
    %6533 = vmatprep.subr.bf16.mxu0 0
    %6534 = vmatpush1.bf16.msra.mxu0 0
    %6535 = vmatprep.mubr.bf16.mxu0 0
    %6536 = vmatmul.mubr.bf16.gmra.mrb[0].mxu0 %v6498
    %v6537 = vpop.f32.mrb[0].mxu0
    %v6538 = vadd.f32 0.0, %v6537
    %v6539 = vpop.f32.mrb[0].mxu0
    %v6540 = vpop.f32.mrb[0].mxu0
    %v6541 = vpop.f32.mrb[0].mxu0
    %6542 = vdwg.mxu0
    %6543 = vrot.lane.b32.xlu0 %v5049, 88
    %v6544 = vpop.permute.xlu0 %6543
    %v6546 = vsel %vm490, %v6347, 0
    %v6549 = vsel %vm256, %v6544, 0
    %6551 = vmatprep.subr.bf16.mxu0 0
    %6552 = vmatpush1.bf16.msra.mxu0 %v6549
    %6553 = vmatprep.subr.bf16.mxu0 0
    %6554 = vmatpush1.bf16.msra.mxu0 0
    %6555 = vmatprep.subr.bf16.mxu0 0
    %6556 = vmatpush1.bf16.msra.mxu0 0
    %6557 = vmatprep.subr.bf16.mxu0 0
    %6558 = vmatpush1.bf16.msra.mxu0 0
    %6559 = vmatprep.subr.bf16.mxu0 0
    %6560 = vmatpush1.bf16.msra.mxu0 0
    %6561 = vmatprep.subr.bf16.mxu0 0
    %6562 = vmatpush1.bf16.msra.mxu0 0
    %6563 = vmatprep.subr.bf16.mxu0 0
    %6564 = vmatpush1.bf16.msra.mxu0 0
    %6565 = vmatprep.subr.bf16.mxu0 0
    %6566 = vmatpush1.bf16.msra.mxu0 0
    %6567 = vmatprep.subr.bf16.mxu0 0
    %6568 = vmatpush1.bf16.msra.mxu0 0
    %6569 = vmatprep.subr.bf16.mxu0 0
    %6570 = vmatpush1.bf16.msra.mxu0 0
    %6571 = vmatprep.subr.bf16.mxu0 0
    %6572 = vmatpush1.bf16.msra.mxu0 0
    %6573 = vmatprep.subr.bf16.mxu0 0
    %6574 = vmatpush1.bf16.msra.mxu0 0
    %6575 = vmatprep.subr.bf16.mxu0 0
    %6576 = vmatpush1.bf16.msra.mxu0 0
    %6577 = vmatprep.subr.bf16.mxu0 0
    %6578 = vmatpush1.bf16.msra.mxu0 0
    %6579 = vmatprep.subr.bf16.mxu0 0
    %6580 = vmatpush1.bf16.msra.mxu0 0
    %6581 = vmatprep.subr.bf16.mxu0 0
    %6582 = vmatpush1.bf16.msra.mxu0 0
    %6583 = vmatprep.mubr.bf16.mxu0 0
    %6584 = vmatmul.mubr.bf16.gmra.mrb[0].mxu0 %v6546
    %v6585 = vpop.f32.mrb[0].mxu0
    %v6586 = vadd.f32 0.0, %v6585
    %v6587 = vpop.f32.mrb[0].mxu0
    %v6588 = vpop.f32.mrb[0].mxu0
    %v6589 = vpop.f32.mrb[0].mxu0
    %6590 = vdwg.mxu0
    %6591 = vrot.lane.b32.xlu0 %v5050, 88
    %v6592 = vpop.permute.xlu0 %6591
    %v6594 = vsel %vm490, %v6348, 0
    %v6597 = vsel %vm256, %v6592, 0
    %6599 = vmatprep.subr.bf16.mxu0 0
    %6600 = vmatpush1.bf16.msra.mxu0 %v6597
    %6601 = vmatprep.subr.bf16.mxu0 0
    %6602 = vmatpush1.bf16.msra.mxu0 0
    %6603 = vmatprep.subr.bf16.mxu0 0
    %6604 = vmatpush1.bf16.msra.mxu0 0
    %6605 = vmatprep.subr.bf16.mxu0 0
    %6606 = vmatpush1.bf16.msra.mxu0 0
    %6607 = vmatprep.subr.bf16.mxu0 0
    %6608 = vmatpush1.bf16.msra.mxu0 0
    %6609 = vmatprep.subr.bf16.mxu0 0
    %6610 = vmatpush1.bf16.msra.mxu0 0
    %6611 = vmatprep.subr.bf16.mxu0 0
    %6612 = vmatpush1.bf16.msra.mxu0 0
    %6613 = vmatprep.subr.bf16.mxu0 0
    %6614 = vmatpush1.bf16.msra.mxu0 0
    %6615 = vmatprep.subr.bf16.mxu0 0
    %6616 = vmatpush1.bf16.msra.mxu0 0
    %6617 = vmatprep.subr.bf16.mxu0 0
    %6618 = vmatpush1.bf16.msra.mxu0 0
    %6619 = vmatprep.subr.bf16.mxu0 0
    %6620 = vmatpush1.bf16.msra.mxu0 0
    %6621 = vmatprep.subr.bf16.mxu0 0
    %6622 = vmatpush1.bf16.msra.mxu0 0
    %6623 = vmatprep.subr.bf16.mxu0 0
    %6624 = vmatpush1.bf16.msra.mxu0 0
    %6625 = vmatprep.subr.bf16.mxu0 0
    %6626 = vmatpush1.bf16.msra.mxu0 0
    %6627 = vmatprep.subr.bf16.mxu0 0
    %6628 = vmatpush1.bf16.msra.mxu0 0
    %6629 = vmatprep.subr.bf16.mxu0 0
    %6630 = vmatpush1.bf16.msra.mxu0 0
    %6631 = vmatprep.mubr.bf16.mxu0 0
    %6632 = vmatmul.mubr.bf16.gmra.mrb[0].mxu0 %v6594
    %v6633 = vpop.f32.mrb[0].mxu0
    %v6634 = vadd.f32 0.0, %v6633
    %v6635 = vpop.f32.mrb[0].mxu0
    %v6636 = vpop.f32.mrb[0].mxu0
    %v6637 = vpop.f32.mrb[0].mxu0
    %6638 = vdwg.mxu0
    %6639 = vrot.lane.b32.xlu0 %v5051, 88
    %v6640 = vpop.permute.xlu0 %6639
    %v6642 = vsel %vm490, %v6349, 0
    %v6645 = vsel %vm256, %v6640, 0
    %6647 = vmatprep.subr.bf16.mxu0 0
    %6648 = vmatpush1.bf16.msra.mxu0 %v6645
    %6649 = vmatprep.subr.bf16.mxu0 0
    %6650 = vmatpush1.bf16.msra.mxu0 0
    %6651 = vmatprep.subr.bf16.mxu0 0
    %6652 = vmatpush1.bf16.msra.mxu0 0
    %6653 = vmatprep.subr.bf16.mxu0 0
    %6654 = vmatpush1.bf16.msra.mxu0 0
    %6655 = vmatprep.subr.bf16.mxu0 0
    %6656 = vmatpush1.bf16.msra.mxu0 0
    %6657 = vmatprep.subr.bf16.mxu0 0
    %6658 = vmatpush1.bf16.msra.mxu0 0
    %6659 = vmatprep.subr.bf16.mxu0 0
    %6660 = vmatpush1.bf16.msra.mxu0 0
    %6661 = vmatprep.subr.bf16.mxu0 0
    %6662 = vmatpush1.bf16.msra.mxu0 0
    %6663 = vmatprep.subr.bf16.mxu0 0
    %6664 = vmatpush1.bf16.msra.mxu0 0
    %6665 = vmatprep.subr.bf16.mxu0 0
    %6666 = vmatpush1.bf16.msra.mxu0 0
    %6667 = vmatprep.subr.bf16.mxu0 0
    %6668 = vmatpush1.bf16.msra.mxu0 0
    %6669 = vmatprep.subr.bf16.mxu0 0
    %6670 = vmatpush1.bf16.msra.mxu0 0
    %6671 = vmatprep.subr.bf16.mxu0 0
    %6672 = vmatpush1.bf16.msra.mxu0 0
    %6673 = vmatprep.subr.bf16.mxu0 0
    %6674 = vmatpush1.bf16.msra.mxu0 0
    %6675 = vmatprep.subr.bf16.mxu0 0
    %6676 = vmatpush1.bf16.msra.mxu0 0
    %6677 = vmatprep.subr.bf16.mxu0 0
    %6678 = vmatpush1.bf16.msra.mxu0 0
    %6679 = vmatprep.mubr.bf16.mxu0 0
    %6680 = vmatmul.mubr.bf16.gmra.mrb[0].mxu0 %v6642
    %v6681 = vpop.f32.mrb[0].mxu0
    %v6682 = vadd.f32 0.0, %v6681
    %v6683 = vpop.f32.mrb[0].mxu0
    %v6684 = vpop.f32.mrb[0].mxu0
    %v6685 = vpop.f32.mrb[0].mxu0
    %6686 = vdwg.mxu0
    %6687 = vrot.lane.b32.xlu0 %v5052, 88
    %v6688 = vpop.permute.xlu0 %6687
    %v6690 = vsel %vm490, %v6350, 0
    %v6693 = vsel %vm256, %v6688, 0
    %6695 = vmatprep.subr.bf16.mxu0 0
    %6696 = vmatpush1.bf16.msra.mxu0 %v6693
    %6697 = vmatprep.subr.bf16.mxu0 0
    %6698 = vmatpush1.bf16.msra.mxu0 0
    %6699 = vmatprep.subr.bf16.mxu0 0
    %6700 = vmatpush1.bf16.msra.mxu0 0
    %6701 = vmatprep.subr.bf16.mxu0 0
    %6702 = vmatpush1.bf16.msra.mxu0 0
    %6703 = vmatprep.subr.bf16.mxu0 0
    %6704 = vmatpush1.bf16.msra.mxu0 0
    %6705 = vmatprep.subr.bf16.mxu0 0
    %6706 = vmatpush1.bf16.msra.mxu0 0
    %6707 = vmatprep.subr.bf16.mxu0 0
    %6708 = vmatpush1.bf16.msra.mxu0 0
    %6709 = vmatprep.subr.bf16.mxu0 0
    %6710 = vmatpush1.bf16.msra.mxu0 0
    %6711 = vmatprep.subr.bf16.mxu0 0
    %6712 = vmatpush1.bf16.msra.mxu0 0
    %6713 = vmatprep.subr.bf16.mxu0 0
    %6714 = vmatpush1.bf16.msra.mxu0 0
    %6715 = vmatprep.subr.bf16.mxu0 0
    %6716 = vmatpush1.bf16.msra.mxu0 0
    %6717 = vmatprep.subr.bf16.mxu0 0
    %6718 = vmatpush1.bf16.msra.mxu0 0
    %6719 = vmatprep.subr.bf16.mxu0 0
    %6720 = vmatpush1.bf16.msra.mxu0 0
    %6721 = vmatprep.subr.bf16.mxu0 0
    %6722 = vmatpush1.bf16.msra.mxu0 0
    %6723 = vmatprep.subr.bf16.mxu0 0
    %6724 = vmatpush1.bf16.msra.mxu0 0
    %6725 = vmatprep.subr.bf16.mxu0 0
    %6726 = vmatpush1.bf16.msra.mxu0 0
    %6727 = vmatprep.mubr.bf16.mxu0 0
    %6728 = vmatmul.mubr.bf16.gmra.mrb[0].mxu0 %v6690
    %v6729 = vpop.f32.mrb[0].mxu0
    %v6730 = vadd.f32 0.0, %v6729
    %v6731 = vpop.f32.mrb[0].mxu0
    %v6732 = vpop.f32.mrb[0].mxu0
    %v6733 = vpop.f32.mrb[0].mxu0
    %6734 = vdwg.mxu0
    %6735 = vrot.lane.b32.xlu0 %v5044, 112
    %v6736 = vpop.permute.xlu0 %6735
    %6737 = vrot.lane.b32.xlu0 %v5045, 112
    %v6738 = vpop.permute.xlu0 %6737
    %v6740 = vsel %vm490, %v6736, 0
    %v6743 = vsel %vm490, %v6738, 0
    %6745 = vmatprep.subr.bf16.mxu0 0
    %6746 = vmatpush1.bf16.xpose.msra.mxu0 %v6743
    %6747 = vmatprep.subr.bf16.mxu0 0
    %6748 = vmatpush1.bf16.xpose.msra.mxu0 0
    %6749 = vmatprep.subr.bf16.mxu0 0
    %6750 = vmatpush1.bf16.xpose.msra.mxu0 0
    %6751 = vmatprep.subr.bf16.mxu0 0
    %6752 = vmatpush1.bf16.xpose.msra.mxu0 0
    %6753 = vmatprep.subr.bf16.mxu0 0
    %6754 = vmatpush1.bf16.xpose.msra.mxu0 0
    %6755 = vmatprep.subr.bf16.mxu0 0
    %6756 = vmatpush1.bf16.xpose.msra.mxu0 0
    %6757 = vmatprep.subr.bf16.mxu0 0
    %6758 = vmatpush1.bf16.xpose.msra.mxu0 0
    %6759 = vmatprep.subr.bf16.mxu0 0
    %6760 = vmatpush1.bf16.xpose.msra.mxu0 0
    %6761 = vmatprep.subr.bf16.mxu0 0
    %6762 = vmatpush1.bf16.xpose.msra.mxu0 0
    %6763 = vmatprep.subr.bf16.mxu0 0
    %6764 = vmatpush1.bf16.xpose.msra.mxu0 0
    %6765 = vmatprep.subr.bf16.mxu0 0
    %6766 = vmatpush1.bf16.xpose.msra.mxu0 0
    %6767 = vmatprep.subr.bf16.mxu0 0
    %6768 = vmatpush1.bf16.xpose.msra.mxu0 0
    %6769 = vmatprep.subr.bf16.mxu0 0
    %6770 = vmatpush1.bf16.xpose.msra.mxu0 0
    %6771 = vmatprep.subr.bf16.mxu0 0
    %6772 = vmatpush1.bf16.xpose.msra.mxu0 0
    %6773 = vmatprep.subr.bf16.mxu0 0
    %6774 = vmatpush1.bf16.xpose.msra.mxu0 0
    %6775 = vmatprep.subr.bf16.mxu0 0
    %6776 = vmatpush1.bf16.xpose.msra.mxu0 0
    %6777 = vmatprep.mubr.bf16.mxu0 0
    %6778 = vmatmul.mubr.bf16.gmra.mrb[0].mxu0 %v6740
    %v6779 = vpop.f32.mrb[0].mxu0
    %v6780 = vadd.f32 %v154, %v6779
    %v6781 = vpop.f32.mrb[0].mxu0
    %v6782 = vpop.f32.mrb[0].mxu0
    %v6783 = vpop.f32.mrb[0].mxu0
    %6784 = vdwg.mxu0
    %6785 = vrot.lane.b32.xlu0 %v5046, 112
    %v6786 = vpop.permute.xlu0 %6785
    %v6788 = vsel %vm490, %v6786, 0
    %6790 = vmatprep.subr.bf16.mxu0 0
    %6791 = vmatpush1.bf16.xpose.msra.mxu0 %v6788
    %6792 = vmatprep.subr.bf16.mxu0 0
    %6793 = vmatpush1.bf16.xpose.msra.mxu0 0
    %6794 = vmatprep.subr.bf16.mxu0 0
    %6795 = vmatpush1.bf16.xpose.msra.mxu0 0
    %6796 = vmatprep.subr.bf16.mxu0 0
    %6797 = vmatpush1.bf16.xpose.msra.mxu0 0
    %6798 = vmatprep.subr.bf16.mxu0 0
    %6799 = vmatpush1.bf16.xpose.msra.mxu0 0
    %6800 = vmatprep.subr.bf16.mxu0 0
    %6801 = vmatpush1.bf16.xpose.msra.mxu0 0
    %6802 = vmatprep.subr.bf16.mxu0 0
    %6803 = vmatpush1.bf16.xpose.msra.mxu0 0
    %6804 = vmatprep.subr.bf16.mxu0 0
    %6805 = vmatpush1.bf16.xpose.msra.mxu0 0
    %6806 = vmatprep.subr.bf16.mxu0 0
    %6807 = vmatpush1.bf16.xpose.msra.mxu0 0
    %6808 = vmatprep.subr.bf16.mxu0 0
    %6809 = vmatpush1.bf16.xpose.msra.mxu0 0
    %6810 = vmatprep.subr.bf16.mxu0 0
    %6811 = vmatpush1.bf16.xpose.msra.mxu0 0
    %6812 = vmatprep.subr.bf16.mxu0 0
    %6813 = vmatpush1.bf16.xpose.msra.mxu0 0
    %6814 = vmatprep.subr.bf16.mxu0 0
    %6815 = vmatpush1.bf16.xpose.msra.mxu0 0
    %6816 = vmatprep.subr.bf16.mxu0 0
    %6817 = vmatpush1.bf16.xpose.msra.mxu0 0
    %6818 = vmatprep.subr.bf16.mxu0 0
    %6819 = vmatpush1.bf16.xpose.msra.mxu0 0
    %6820 = vmatprep.subr.bf16.mxu0 0
    %6821 = vmatpush1.bf16.xpose.msra.mxu0 0
    %6822 = vmatprep.mubr.bf16.mxu0 0
    %6823 = vmatmul.mubr.bf16.gmra.mrb[0].mxu0 %v6740
    %v6824 = vpop.f32.mrb[0].mxu0
    %v6825 = vadd.f32 %v168, %v6824
    %v6826 = vpop.f32.mrb[0].mxu0
    %v6827 = vpop.f32.mrb[0].mxu0
    %v6828 = vpop.f32.mrb[0].mxu0
    %6829 = vdwg.mxu0
    %6830 = vrot.lane.b32.xlu0 %v5047, 112
    %v6831 = vpop.permute.xlu0 %6830
    %v6833 = vsel %vm490, %v6831, 0
    %6835 = vmatprep.subr.bf16.mxu0 0
    %6836 = vmatpush1.bf16.xpose.msra.mxu0 %v6833
    %6837 = vmatprep.subr.bf16.mxu0 0
    %6838 = vmatpush1.bf16.xpose.msra.mxu0 0
    %6839 = vmatprep.subr.bf16.mxu0 0
    %6840 = vmatpush1.bf16.xpose.msra.mxu0 0
    %6841 = vmatprep.subr.bf16.mxu0 0
    %6842 = vmatpush1.bf16.xpose.msra.mxu0 0
    %6843 = vmatprep.subr.bf16.mxu0 0
    %6844 = vmatpush1.bf16.xpose.msra.mxu0 0
    %6845 = vmatprep.subr.bf16.mxu0 0
    %6846 = vmatpush1.bf16.xpose.msra.mxu0 0
    %6847 = vmatprep.subr.bf16.mxu0 0
    %6848 = vmatpush1.bf16.xpose.msra.mxu0 0
    %6849 = vmatprep.subr.bf16.mxu0 0
    %6850 = vmatpush1.bf16.xpose.msra.mxu0 0
    %6851 = vmatprep.subr.bf16.mxu0 0
    %6852 = vmatpush1.bf16.xpose.msra.mxu0 0
    %6853 = vmatprep.subr.bf16.mxu0 0
    %6854 = vmatpush1.bf16.xpose.msra.mxu0 0
    %6855 = vmatprep.subr.bf16.mxu0 0
    %6856 = vmatpush1.bf16.xpose.msra.mxu0 0
    %6857 = vmatprep.subr.bf16.mxu0 0
    %6858 = vmatpush1.bf16.xpose.msra.mxu0 0
    %6859 = vmatprep.subr.bf16.mxu0 0
    %6860 = vmatpush1.bf16.xpose.msra.mxu0 0
    %6861 = vmatprep.subr.bf16.mxu0 0
    %6862 = vmatpush1.bf16.xpose.msra.mxu0 0
    %6863 = vmatprep.subr.bf16.mxu0 0
    %6864 = vmatpush1.bf16.xpose.msra.mxu0 0
    %6865 = vmatprep.subr.bf16.mxu0 0
    %6866 = vmatpush1.bf16.xpose.msra.mxu0 0
    %6867 = vmatprep.mubr.bf16.mxu0 0
    %6868 = vmatmul.mubr.bf16.gmra.mrb[0].mxu0 %v6740
    %v6869 = vpop.f32.mrb[0].mxu0
    %v6870 = vadd.f32 %v176, %v6869
    %v6871 = vpop.f32.mrb[0].mxu0
    %v6872 = vpop.f32.mrb[0].mxu0
    %v6873 = vpop.f32.mrb[0].mxu0
    %6874 = vdwg.mxu0
    %6875 = vrot.lane.b32.xlu0 %v5048, 112
    %v6876 = vpop.permute.xlu0 %6875
    %v6878 = vsel %vm490, %v6876, 0
    %6880 = vmatprep.subr.bf16.mxu0 0
    %6881 = vmatpush1.bf16.xpose.msra.mxu0 %v6878
    %6882 = vmatprep.subr.bf16.mxu0 0
    %6883 = vmatpush1.bf16.xpose.msra.mxu0 0
    %6884 = vmatprep.subr.bf16.mxu0 0
    %6885 = vmatpush1.bf16.xpose.msra.mxu0 0
    %6886 = vmatprep.subr.bf16.mxu0 0
    %6887 = vmatpush1.bf16.xpose.msra.mxu0 0
    %6888 = vmatprep.subr.bf16.mxu0 0
    %6889 = vmatpush1.bf16.xpose.msra.mxu0 0
    %6890 = vmatprep.subr.bf16.mxu0 0
    %6891 = vmatpush1.bf16.xpose.msra.mxu0 0
    %6892 = vmatprep.subr.bf16.mxu0 0
    %6893 = vmatpush1.bf16.xpose.msra.mxu0 0
    %6894 = vmatprep.subr.bf16.mxu0 0
    %6895 = vmatpush1.bf16.xpose.msra.mxu0 0
    %6896 = vmatprep.subr.bf16.mxu0 0
    %6897 = vmatpush1.bf16.xpose.msra.mxu0 0
    %6898 = vmatprep.subr.bf16.mxu0 0
    %6899 = vmatpush1.bf16.xpose.msra.mxu0 0
    %6900 = vmatprep.subr.bf16.mxu0 0
    %6901 = vmatpush1.bf16.xpose.msra.mxu0 0
    %6902 = vmatprep.subr.bf16.mxu0 0
    %6903 = vmatpush1.bf16.xpose.msra.mxu0 0
    %6904 = vmatprep.subr.bf16.mxu0 0
    %6905 = vmatpush1.bf16.xpose.msra.mxu0 0
    %6906 = vmatprep.subr.bf16.mxu0 0
    %6907 = vmatpush1.bf16.xpose.msra.mxu0 0
    %6908 = vmatprep.subr.bf16.mxu0 0
    %6909 = vmatpush1.bf16.xpose.msra.mxu0 0
    %6910 = vmatprep.subr.bf16.mxu0 0
    %6911 = vmatpush1.bf16.xpose.msra.mxu0 0
    %6912 = vmatprep.mubr.bf16.mxu0 0
    %6913 = vmatmul.mubr.bf16.gmra.mrb[0].mxu0 %v6740
    %v6914 = vpop.f32.mrb[0].mxu0
    %v6915 = vadd.f32 %v178, %v6914
    %v6916 = vpop.f32.mrb[0].mxu0
    %v6917 = vpop.f32.mrb[0].mxu0
    %v6918 = vpop.f32.mrb[0].mxu0
    %6919 = vdwg.mxu0
    %6920 = vrot.lane.b32.xlu0 %v5049, 112
    %v6921 = vpop.permute.xlu0 %6920
    %v6923 = vsel %vm490, %v6921, 0
    %6925 = vmatprep.subr.bf16.mxu0 0
    %6926 = vmatpush1.bf16.xpose.msra.mxu0 %v6923
    %6927 = vmatprep.subr.bf16.mxu0 0
    %6928 = vmatpush1.bf16.xpose.msra.mxu0 0
    %6929 = vmatprep.subr.bf16.mxu0 0
    %6930 = vmatpush1.bf16.xpose.msra.mxu0 0
    %6931 = vmatprep.subr.bf16.mxu0 0
    %6932 = vmatpush1.bf16.xpose.msra.mxu0 0
    %6933 = vmatprep.subr.bf16.mxu0 0
    %6934 = vmatpush1.bf16.xpose.msra.mxu0 0
    %6935 = vmatprep.subr.bf16.mxu0 0
    %6936 = vmatpush1.bf16.xpose.msra.mxu0 0
    %6937 = vmatprep.subr.bf16.mxu0 0
    %6938 = vmatpush1.bf16.xpose.msra.mxu0 0
    %6939 = vmatprep.subr.bf16.mxu0 0
    %6940 = vmatpush1.bf16.xpose.msra.mxu0 0
    %6941 = vmatprep.subr.bf16.mxu0 0
    %6942 = vmatpush1.bf16.xpose.msra.mxu0 0
    %6943 = vmatprep.subr.bf16.mxu0 0
    %6944 = vmatpush1.bf16.xpose.msra.mxu0 0
    %6945 = vmatprep.subr.bf16.mxu0 0
    %6946 = vmatpush1.bf16.xpose.msra.mxu0 0
    %6947 = vmatprep.subr.bf16.mxu0 0
    %6948 = vmatpush1.bf16.xpose.msra.mxu0 0
    %6949 = vmatprep.subr.bf16.mxu0 0
    %6950 = vmatpush1.bf16.xpose.msra.mxu0 0
    %6951 = vmatprep.subr.bf16.mxu0 0
    %6952 = vmatpush1.bf16.xpose.msra.mxu0 0
    %6953 = vmatprep.subr.bf16.mxu0 0
    %6954 = vmatpush1.bf16.xpose.msra.mxu0 0
    %6955 = vmatprep.subr.bf16.mxu0 0
    %6956 = vmatpush1.bf16.xpose.msra.mxu0 0
    %6957 = vmatprep.mubr.bf16.mxu0 0
    %6958 = vmatmul.mubr.bf16.gmra.mrb[0].mxu0 %v6740
    %v6959 = vpop.f32.mrb[0].mxu0
    %v6960 = vadd.f32 %v161, %v6959
    %v6961 = vpop.f32.mrb[0].mxu0
    %v6962 = vpop.f32.mrb[0].mxu0
    %v6963 = vpop.f32.mrb[0].mxu0
    %6964 = vdwg.mxu0
    %6965 = vrot.lane.b32.xlu0 %v5050, 112
    %v6966 = vpop.permute.xlu0 %6965
    %v6968 = vsel %vm490, %v6966, 0
    %6970 = vmatprep.subr.bf16.mxu0 0
    %6971 = vmatpush1.bf16.xpose.msra.mxu0 %v6968
    %6972 = vmatprep.subr.bf16.mxu0 0
    %6973 = vmatpush1.bf16.xpose.msra.mxu0 0
    %6974 = vmatprep.subr.bf16.mxu0 0
    %6975 = vmatpush1.bf16.xpose.msra.mxu0 0
    %6976 = vmatprep.subr.bf16.mxu0 0
    %6977 = vmatpush1.bf16.xpose.msra.mxu0 0
    %6978 = vmatprep.subr.bf16.mxu0 0
    %6979 = vmatpush1.bf16.xpose.msra.mxu0 0
    %6980 = vmatprep.subr.bf16.mxu0 0
    %6981 = vmatpush1.bf16.xpose.msra.mxu0 0
    %6982 = vmatprep.subr.bf16.mxu0 0
    %6983 = vmatpush1.bf16.xpose.msra.mxu0 0
    %6984 = vmatprep.subr.bf16.mxu0 0
    %6985 = vmatpush1.bf16.xpose.msra.mxu0 0
    %6986 = vmatprep.subr.bf16.mxu0 0
    %6987 = vmatpush1.bf16.xpose.msra.mxu0 0
    %6988 = vmatprep.subr.bf16.mxu0 0
    %6989 = vmatpush1.bf16.xpose.msra.mxu0 0
    %6990 = vmatprep.subr.bf16.mxu0 0
    %6991 = vmatpush1.bf16.xpose.msra.mxu0 0
    %6992 = vmatprep.subr.bf16.mxu0 0
    %6993 = vmatpush1.bf16.xpose.msra.mxu0 0
    %6994 = vmatprep.subr.bf16.mxu0 0
    %6995 = vmatpush1.bf16.xpose.msra.mxu0 0
    %6996 = vmatprep.subr.bf16.mxu0 0
    %6997 = vmatpush1.bf16.xpose.msra.mxu0 0
    %6998 = vmatprep.subr.bf16.mxu0 0
    %6999 = vmatpush1.bf16.xpose.msra.mxu0 0
    %7000 = vmatprep.subr.bf16.mxu0 0
    %7001 = vmatpush1.bf16.xpose.msra.mxu0 0
    %7002 = vmatprep.mubr.bf16.mxu0 0
    %7003 = vmatmul.mubr.bf16.gmra.mrb[0].mxu0 %v6740
    %v7004 = vpop.f32.mrb[0].mxu0
    %v7005 = vadd.f32 %v175, %v7004
    %v7006 = vpop.f32.mrb[0].mxu0
    %v7007 = vpop.f32.mrb[0].mxu0
    %v7008 = vpop.f32.mrb[0].mxu0
    %7009 = vdwg.mxu0
    %7010 = vrot.lane.b32.xlu0 %v5051, 112
    %v7011 = vpop.permute.xlu0 %7010
    %v7013 = vsel %vm490, %v7011, 0
    %7015 = vmatprep.subr.bf16.mxu0 0
    %7016 = vmatpush1.bf16.xpose.msra.mxu0 %v7013
    %7017 = vmatprep.subr.bf16.mxu0 0
    %7018 = vmatpush1.bf16.xpose.msra.mxu0 0
    %7019 = vmatprep.subr.bf16.mxu0 0
    %7020 = vmatpush1.bf16.xpose.msra.mxu0 0
    %7021 = vmatprep.subr.bf16.mxu0 0
    %7022 = vmatpush1.bf16.xpose.msra.mxu0 0
    %7023 = vmatprep.subr.bf16.mxu0 0
    %7024 = vmatpush1.bf16.xpose.msra.mxu0 0
    %7025 = vmatprep.subr.bf16.mxu0 0
    %7026 = vmatpush1.bf16.xpose.msra.mxu0 0
    %7027 = vmatprep.subr.bf16.mxu0 0
    %7028 = vmatpush1.bf16.xpose.msra.mxu0 0
    %7029 = vmatprep.subr.bf16.mxu0 0
    %7030 = vmatpush1.bf16.xpose.msra.mxu0 0
    %7031 = vmatprep.subr.bf16.mxu0 0
    %7032 = vmatpush1.bf16.xpose.msra.mxu0 0
    %7033 = vmatprep.subr.bf16.mxu0 0
    %7034 = vmatpush1.bf16.xpose.msra.mxu0 0
    %7035 = vmatprep.subr.bf16.mxu0 0
    %7036 = vmatpush1.bf16.xpose.msra.mxu0 0
    %7037 = vmatprep.subr.bf16.mxu0 0
    %7038 = vmatpush1.bf16.xpose.msra.mxu0 0
    %7039 = vmatprep.subr.bf16.mxu0 0
    %7040 = vmatpush1.bf16.xpose.msra.mxu0 0
    %7041 = vmatprep.subr.bf16.mxu0 0
    %7042 = vmatpush1.bf16.xpose.msra.mxu0 0
    %7043 = vmatprep.subr.bf16.mxu0 0
    %7044 = vmatpush1.bf16.xpose.msra.mxu0 0
    %7045 = vmatprep.subr.bf16.mxu0 0
    %7046 = vmatpush1.bf16.xpose.msra.mxu0 0
    %7047 = vmatprep.mubr.bf16.mxu0 0
    %7048 = vmatmul.mubr.bf16.gmra.mrb[0].mxu0 %v6740
    %v7049 = vpop.f32.mrb[0].mxu0
    %v7050 = vadd.f32 %v177, %v7049
    %v7051 = vpop.f32.mrb[0].mxu0
    %v7052 = vpop.f32.mrb[0].mxu0
    %v7053 = vpop.f32.mrb[0].mxu0
    %7054 = vdwg.mxu0
    %7055 = vrot.lane.b32.xlu0 %v5052, 112
    %v7056 = vpop.permute.xlu0 %7055
    %v7058 = vsel %vm490, %v7056, 0
    %7060 = vmatprep.subr.bf16.mxu0 0
    %7061 = vmatpush1.bf16.xpose.msra.mxu0 %v7058
    %7062 = vmatprep.subr.bf16.mxu0 0
    %7063 = vmatpush1.bf16.xpose.msra.mxu0 0
    %7064 = vmatprep.subr.bf16.mxu0 0
    %7065 = vmatpush1.bf16.xpose.msra.mxu0 0
    %7066 = vmatprep.subr.bf16.mxu0 0
    %7067 = vmatpush1.bf16.xpose.msra.mxu0 0
    %7068 = vmatprep.subr.bf16.mxu0 0
    %7069 = vmatpush1.bf16.xpose.msra.mxu0 0
    %7070 = vmatprep.subr.bf16.mxu0 0
    %7071 = vmatpush1.bf16.xpose.msra.mxu0 0
    %7072 = vmatprep.subr.bf16.mxu0 0
    %7073 = vmatpush1.bf16.xpose.msra.mxu0 0
    %7074 = vmatprep.subr.bf16.mxu0 0
    %7075 = vmatpush1.bf16.xpose.msra.mxu0 0
    %7076 = vmatprep.subr.bf16.mxu0 0
    %7077 = vmatpush1.bf16.xpose.msra.mxu0 0
    %7078 = vmatprep.subr.bf16.mxu0 0
    %7079 = vmatpush1.bf16.xpose.msra.mxu0 0
    %7080 = vmatprep.subr.bf16.mxu0 0
    %7081 = vmatpush1.bf16.xpose.msra.mxu0 0
    %7082 = vmatprep.subr.bf16.mxu0 0
    %7083 = vmatpush1.bf16.xpose.msra.mxu0 0
    %7084 = vmatprep.subr.bf16.mxu0 0
    %7085 = vmatpush1.bf16.xpose.msra.mxu0 0
    %7086 = vmatprep.subr.bf16.mxu0 0
    %7087 = vmatpush1.bf16.xpose.msra.mxu0 0
    %7088 = vmatprep.subr.bf16.mxu0 0
    %7089 = vmatpush1.bf16.xpose.msra.mxu0 0
    %7090 = vmatprep.subr.bf16.mxu0 0
    %7091 = vmatpush1.bf16.xpose.msra.mxu0 0
    %7092 = vmatprep.mubr.bf16.mxu0 0
    %7093 = vmatmul.mubr.bf16.gmra.mrb[0].mxu0 %v6740
    %v7094 = vpop.f32.mrb[0].mxu0
    %v7095 = vadd.f32 %v179, %v7094
    %v7096 = vpop.f32.mrb[0].mxu0
    %v7097 = vpop.f32.mrb[0].mxu0
    %v7098 = vpop.f32.mrb[0].mxu0
    %7099 = vdwg.mxu0
    %v7100 = vsel %vm5400, %v6780, -inf
    %7101 = vmax.xlane.f32.xlu0 %v7100
    %v7102 = vpop.xlane.xlu0 %7101
    %v7103 = vsel %vm5400, %v6825, -inf
    %7104 = vmax.xlane.f32.xlu0 %v7103
    %v7105 = vpop.xlane.xlu0 %7104
    %v7106 = vsel %vm5400, %v6870, -inf
    %7107 = vmax.xlane.f32.xlu0 %v7106
    %v7108 = vpop.xlane.xlu0 %7107
    %v7109 = vsel %vm5400, %v6915, -inf
    %7110 = vmax.xlane.f32.xlu0 %v7109
    %v7111 = vpop.xlane.xlu0 %7110
    %v7112 = vsel %vm5400, %v6960, -inf
    %7113 = vmax.xlane.f32.xlu0 %v7112
    %v7114 = vpop.xlane.xlu0 %7113
    %v7115 = vsel %vm5400, %v7005, -inf
    %7116 = vmax.xlane.f32.xlu0 %v7115
    %v7117 = vpop.xlane.xlu0 %7116
    %v7118 = vsel %vm5400, %v7050, -inf
    %7119 = vmax.xlane.f32.xlu0 %v7118
    %v7120 = vpop.xlane.xlu0 %7119
    %v7121 = vsel %vm5400, %v7095, -inf
    %7122 = vmax.xlane.f32.xlu0 %v7121
    %v7123 = vpop.xlane.xlu0 %7122
    %v7124 = vsub.f32 %v6780, %v7102
    %v7125 = vsub.f32 %v6825, %v7105
    %v7126 = vsub.f32 %v6870, %v7108
    %v7127 = vsub.f32 %v6915, %v7111
    %v7128 = vsub.f32 %v6960, %v7114
    %v7129 = vsub.f32 %v7005, %v7117
    %v7130 = vsub.f32 %v7050, %v7120
    %v7131 = vsub.f32 %v7095, %v7123
    %v7132 = vmul.f32 %v7124, 1.442695
    %v7133 = vpow.pop %v7132
    %v7134 = vmul.f32 %v7125, 1.442695
    %v7135 = vpow.pop %v7134
    %v7136 = vmul.f32 %v7126, 1.442695
    %v7137 = vpow.pop %v7136
    %v7138 = vmul.f32 %v7127, 1.442695
    %v7139 = vpow.pop %v7138
    %v7140 = vmul.f32 %v7128, 1.442695
    %v7141 = vpow.pop %v7140
    %v7142 = vmul.f32 %v7129, 1.442695
    %v7143 = vpow.pop %v7142
    %v7144 = vmul.f32 %v7130, 1.442695
    %v7145 = vpow.pop %v7144
    %v7146 = vmul.f32 %v7131, 1.442695
    %v7147 = vpow.pop %v7146
    %v7148 = vsel %vm5400, %v7133, 0.0
    %7149 = vadd.xlane.f32.xlu0 %v7148
    %v7150 = vpop.xlane.xlu0 %7149
    %v7151 = vsel %vm5400, %v7135, 0.0
    %7152 = vadd.xlane.f32.xlu0 %v7151
    %v7153 = vpop.xlane.xlu0 %7152
    %v7154 = vsel %vm5400, %v7137, 0.0
    %7155 = vadd.xlane.f32.xlu0 %v7154
    %v7156 = vpop.xlane.xlu0 %7155
    %v7157 = vsel %vm5400, %v7139, 0.0
    %7158 = vadd.xlane.f32.xlu0 %v7157
    %v7159 = vpop.xlane.xlu0 %7158
    %v7160 = vsel %vm5400, %v7141, 0.0
    %7161 = vadd.xlane.f32.xlu0 %v7160
    %v7162 = vpop.xlane.xlu0 %7161
    %v7163 = vsel %vm5400, %v7143, 0.0
    %7164 = vadd.xlane.f32.xlu0 %v7163
    %v7165 = vpop.xlane.xlu0 %7164
    %v7166 = vsel %vm5400, %v7145, 0.0
    %7167 = vadd.xlane.f32.xlu0 %v7166
    %v7168 = vpop.xlane.xlu0 %7167
    %v7169 = vsel %vm5400, %v7147, 0.0
    %7170 = vadd.xlane.f32.xlu0 %v7169
    %v7171 = vpop.xlane.xlu0 %7170
    %v7172 = vrcp.pop %v7150
    %v7173 = vrcp.pop %v7153
    %v7174 = vrcp.pop %v7156
    %v7175 = vrcp.pop %v7159
    %v7176 = vrcp.pop %v7162
    %v7177 = vrcp.pop %v7165
    %v7178 = vrcp.pop %v7168
    %v7179 = vrcp.pop %v7171
    %v7180 = vmul.f32 %v7133, %v7172
    %v7181 = vmul.f32 %v7135, %v7173
    %v7182 = vmul.f32 %v7137, %v7174
    %v7183 = vmul.f32 %v7139, %v7175
    %v7184 = vmul.f32 %v7141, %v7176
    %v7185 = vmul.f32 %v7143, %v7177
    %v7186 = vmul.f32 %v7145, %v7178
    %v7187 = vmul.f32 %v7147, %v7179
    %v7188 = vpack.c.bf16 %v7180, %v7180
    %v7189 = vpack.c.bf16 %v7181, %v7181
    %v7190 = vpack.c.bf16 %v7182, %v7182
    %v7191 = vpack.c.bf16 %v7183, %v7183
    %v7192 = vpack.c.bf16 %v7184, %v7184
    %v7193 = vpack.c.bf16 %v7185, %v7185
    %v7194 = vpack.c.bf16 %v7186, %v7186
    %v7195 = vpack.c.bf16 %v7187, %v7187
    %7196 = vrot.lane.b32.xlu0 %v5045, 80
    %v7197 = vpop.permute.xlu0 %7196
    %v7199 = vsel %vm490, %v7188, 0
    %v7202 = vsel %vm256, %v7197, 0
    %7204 = vmatprep.subr.bf16.mxu0 0
    %7205 = vmatpush1.bf16.msra.mxu0 %v7202
    %7206 = vmatprep.subr.bf16.mxu0 0
    %7207 = vmatpush1.bf16.msra.mxu0 0
    %7208 = vmatprep.subr.bf16.mxu0 0
    %7209 = vmatpush1.bf16.msra.mxu0 0
    %7210 = vmatprep.subr.bf16.mxu0 0
    %7211 = vmatpush1.bf16.msra.mxu0 0
    %7212 = vmatprep.subr.bf16.mxu0 0
    %7213 = vmatpush1.bf16.msra.mxu0 0
    %7214 = vmatprep.subr.bf16.mxu0 0
    %7215 = vmatpush1.bf16.msra.mxu0 0
    %7216 = vmatprep.subr.bf16.mxu0 0
    %7217 = vmatpush1.bf16.msra.mxu0 0
    %7218 = vmatprep.subr.bf16.mxu0 0
    %7219 = vmatpush1.bf16.msra.mxu0 0
    %7220 = vmatprep.subr.bf16.mxu0 0
    %7221 = vmatpush1.bf16.msra.mxu0 0
    %7222 = vmatprep.subr.bf16.mxu0 0
    %7223 = vmatpush1.bf16.msra.mxu0 0
    %7224 = vmatprep.subr.bf16.mxu0 0
    %7225 = vmatpush1.bf16.msra.mxu0 0
    %7226 = vmatprep.subr.bf16.mxu0 0
    %7227 = vmatpush1.bf16.msra.mxu0 0
    %7228 = vmatprep.subr.bf16.mxu0 0
    %7229 = vmatpush1.bf16.msra.mxu0 0
    %7230 = vmatprep.subr.bf16.mxu0 0
    %7231 = vmatpush1.bf16.msra.mxu0 0
    %7232 = vmatprep.subr.bf16.mxu0 0
    %7233 = vmatpush1.bf16.msra.mxu0 0
    %7234 = vmatprep.subr.bf16.mxu0 0
    %7235 = vmatpush1.bf16.msra.mxu0 0
    %7236 = vmatprep.mubr.bf16.mxu0 0
    %7237 = vmatmul.mubr.bf16.gmra.mrb[0].mxu0 %v7199
    %v7238 = vpop.f32.mrb[0].mxu0
    %v7239 = vadd.f32 0.0, %v7238
    %v7240 = vpop.f32.mrb[0].mxu0
    %v7241 = vpop.f32.mrb[0].mxu0
    %v7242 = vpop.f32.mrb[0].mxu0
    %7243 = vdwg.mxu0
    %7244 = vrot.lane.b32.xlu0 %v5046, 80
    %v7245 = vpop.permute.xlu0 %7244
    %v7247 = vsel %vm490, %v7189, 0
    %v7250 = vsel %vm256, %v7245, 0
    %7252 = vmatprep.subr.bf16.mxu0 0
    %7253 = vmatpush1.bf16.msra.mxu0 %v7250
    %7254 = vmatprep.subr.bf16.mxu0 0
    %7255 = vmatpush1.bf16.msra.mxu0 0
    %7256 = vmatprep.subr.bf16.mxu0 0
    %7257 = vmatpush1.bf16.msra.mxu0 0
    %7258 = vmatprep.subr.bf16.mxu0 0
    %7259 = vmatpush1.bf16.msra.mxu0 0
    %7260 = vmatprep.subr.bf16.mxu0 0
    %7261 = vmatpush1.bf16.msra.mxu0 0
    %7262 = vmatprep.subr.bf16.mxu0 0
    %7263 = vmatpush1.bf16.msra.mxu0 0
    %7264 = vmatprep.subr.bf16.mxu0 0
    %7265 = vmatpush1.bf16.msra.mxu0 0
    %7266 = vmatprep.subr.bf16.mxu0 0
    %7267 = vmatpush1.bf16.msra.mxu0 0
    %7268 = vmatprep.subr.bf16.mxu0 0
    %7269 = vmatpush1.bf16.msra.mxu0 0
    %7270 = vmatprep.subr.bf16.mxu0 0
    %7271 = vmatpush1.bf16.msra.mxu0 0
    %7272 = vmatprep.subr.bf16.mxu0 0
    %7273 = vmatpush1.bf16.msra.mxu0 0
    %7274 = vmatprep.subr.bf16.mxu0 0
    %7275 = vmatpush1.bf16.msra.mxu0 0
    %7276 = vmatprep.subr.bf16.mxu0 0
    %7277 = vmatpush1.bf16.msra.mxu0 0
    %7278 = vmatprep.subr.bf16.mxu0 0
    %7279 = vmatpush1.bf16.msra.mxu0 0
    %7280 = vmatprep.subr.bf16.mxu0 0
    %7281 = vmatpush1.bf16.msra.mxu0 0
    %7282 = vmatprep.subr.bf16.mxu0 0
    %7283 = vmatpush1.bf16.msra.mxu0 0
    %7284 = vmatprep.mubr.bf16.mxu0 0
    %7285 = vmatmul.mubr.bf16.gmra.mrb[0].mxu0 %v7247
    %v7286 = vpop.f32.mrb[0].mxu0
    %v7287 = vadd.f32 0.0, %v7286
    %v7288 = vpop.f32.mrb[0].mxu0
    %v7289 = vpop.f32.mrb[0].mxu0
    %v7290 = vpop.f32.mrb[0].mxu0
    %7291 = vdwg.mxu0
    %7292 = vrot.lane.b32.xlu0 %v5047, 80
    %v7293 = vpop.permute.xlu0 %7292
    %v7295 = vsel %vm490, %v7190, 0
    %v7298 = vsel %vm256, %v7293, 0
    %7300 = vmatprep.subr.bf16.mxu0 0
    %7301 = vmatpush1.bf16.msra.mxu0 %v7298
    %7302 = vmatprep.subr.bf16.mxu0 0
    %7303 = vmatpush1.bf16.msra.mxu0 0
    %7304 = vmatprep.subr.bf16.mxu0 0
    %7305 = vmatpush1.bf16.msra.mxu0 0
    %7306 = vmatprep.subr.bf16.mxu0 0
    %7307 = vmatpush1.bf16.msra.mxu0 0
    %7308 = vmatprep.subr.bf16.mxu0 0
    %7309 = vmatpush1.bf16.msra.mxu0 0
    %7310 = vmatprep.subr.bf16.mxu0 0
    %7311 = vmatpush1.bf16.msra.mxu0 0
    %7312 = vmatprep.subr.bf16.mxu0 0
    %7313 = vmatpush1.bf16.msra.mxu0 0
    %7314 = vmatprep.subr.bf16.mxu0 0
    %7315 = vmatpush1.bf16.msra.mxu0 0
    %7316 = vmatprep.subr.bf16.mxu0 0
    %7317 = vmatpush1.bf16.msra.mxu0 0
    %7318 = vmatprep.subr.bf16.mxu0 0
    %7319 = vmatpush1.bf16.msra.mxu0 0
    %7320 = vmatprep.subr.bf16.mxu0 0
    %7321 = vmatpush1.bf16.msra.mxu0 0
    %7322 = vmatprep.subr.bf16.mxu0 0
    %7323 = vmatpush1.bf16.msra.mxu0 0
    %7324 = vmatprep.subr.bf16.mxu0 0
    %7325 = vmatpush1.bf16.msra.mxu0 0
    %7326 = vmatprep.subr.bf16.mxu0 0
    %7327 = vmatpush1.bf16.msra.mxu0 0
    %7328 = vmatprep.subr.bf16.mxu0 0
    %7329 = vmatpush1.bf16.msra.mxu0 0
    %7330 = vmatprep.subr.bf16.mxu0 0
    %7331 = vmatpush1.bf16.msra.mxu0 0
    %7332 = vmatprep.mubr.bf16.mxu0 0
    %7333 = vmatmul.mubr.bf16.gmra.mrb[0].mxu0 %v7295
    %v7334 = vpop.f32.mrb[0].mxu0
    %v7335 = vadd.f32 0.0, %v7334
    %v7336 = vpop.f32.mrb[0].mxu0
    %v7337 = vpop.f32.mrb[0].mxu0
    %v7338 = vpop.f32.mrb[0].mxu0
    %7339 = vdwg.mxu0
    %7340 = vrot.lane.b32.xlu0 %v5048, 80
    %v7341 = vpop.permute.xlu0 %7340
    %v7343 = vsel %vm490, %v7191, 0
    %v7346 = vsel %vm256, %v7341, 0
    %7348 = vmatprep.subr.bf16.mxu0 0
    %7349 = vmatpush1.bf16.msra.mxu0 %v7346
    %7350 = vmatprep.subr.bf16.mxu0 0
    %7351 = vmatpush1.bf16.msra.mxu0 0
    %7352 = vmatprep.subr.bf16.mxu0 0
    %7353 = vmatpush1.bf16.msra.mxu0 0
    %7354 = vmatprep.subr.bf16.mxu0 0
    %7355 = vmatpush1.bf16.msra.mxu0 0
    %7356 = vmatprep.subr.bf16.mxu0 0
    %7357 = vmatpush1.bf16.msra.mxu0 0
    %7358 = vmatprep.subr.bf16.mxu0 0
    %7359 = vmatpush1.bf16.msra.mxu0 0
    %7360 = vmatprep.subr.bf16.mxu0 0
    %7361 = vmatpush1.bf16.msra.mxu0 0
    %7362 = vmatprep.subr.bf16.mxu0 0
    %7363 = vmatpush1.bf16.msra.mxu0 0
    %7364 = vmatprep.subr.bf16.mxu0 0
    %7365 = vmatpush1.bf16.msra.mxu0 0
    %7366 = vmatprep.subr.bf16.mxu0 0
    %7367 = vmatpush1.bf16.msra.mxu0 0
    %7368 = vmatprep.subr.bf16.mxu0 0
    %7369 = vmatpush1.bf16.msra.mxu0 0
    %7370 = vmatprep.subr.bf16.mxu0 0
    %7371 = vmatpush1.bf16.msra.mxu0 0
    %7372 = vmatprep.subr.bf16.mxu0 0
    %7373 = vmatpush1.bf16.msra.mxu0 0
    %7374 = vmatprep.subr.bf16.mxu0 0
    %7375 = vmatpush1.bf16.msra.mxu0 0
    %7376 = vmatprep.subr.bf16.mxu0 0
    %7377 = vmatpush1.bf16.msra.mxu0 0
    %7378 = vmatprep.subr.bf16.mxu0 0
    %7379 = vmatpush1.bf16.msra.mxu0 0
    %7380 = vmatprep.mubr.bf16.mxu0 0
    %7381 = vmatmul.mubr.bf16.gmra.mrb[0].mxu0 %v7343
    %v7382 = vpop.f32.mrb[0].mxu0
    %v7383 = vadd.f32 0.0, %v7382
    %v7384 = vpop.f32.mrb[0].mxu0
    %v7385 = vpop.f32.mrb[0].mxu0
    %v7386 = vpop.f32.mrb[0].mxu0
    %7387 = vdwg.mxu0
    %7388 = vrot.lane.b32.xlu0 %v5049, 80
    %v7389 = vpop.permute.xlu0 %7388
    %v7391 = vsel %vm490, %v7192, 0
    %v7394 = vsel %vm256, %v7389, 0
    %7396 = vmatprep.subr.bf16.mxu0 0
    %7397 = vmatpush1.bf16.msra.mxu0 %v7394
    %7398 = vmatprep.subr.bf16.mxu0 0
    %7399 = vmatpush1.bf16.msra.mxu0 0
    %7400 = vmatprep.subr.bf16.mxu0 0
    %7401 = vmatpush1.bf16.msra.mxu0 0
    %7402 = vmatprep.subr.bf16.mxu0 0
    %7403 = vmatpush1.bf16.msra.mxu0 0
    %7404 = vmatprep.subr.bf16.mxu0 0
    %7405 = vmatpush1.bf16.msra.mxu0 0
    %7406 = vmatprep.subr.bf16.mxu0 0
    %7407 = vmatpush1.bf16.msra.mxu0 0
    %7408 = vmatprep.subr.bf16.mxu0 0
    %7409 = vmatpush1.bf16.msra.mxu0 0
    %7410 = vmatprep.subr.bf16.mxu0 0
    %7411 = vmatpush1.bf16.msra.mxu0 0
    %7412 = vmatprep.subr.bf16.mxu0 0
    %7413 = vmatpush1.bf16.msra.mxu0 0
    %7414 = vmatprep.subr.bf16.mxu0 0
    %7415 = vmatpush1.bf16.msra.mxu0 0
    %7416 = vmatprep.subr.bf16.mxu0 0
    %7417 = vmatpush1.bf16.msra.mxu0 0
    %7418 = vmatprep.subr.bf16.mxu0 0
    %7419 = vmatpush1.bf16.msra.mxu0 0
    %7420 = vmatprep.subr.bf16.mxu0 0
    %7421 = vmatpush1.bf16.msra.mxu0 0
    %7422 = vmatprep.subr.bf16.mxu0 0
    %7423 = vmatpush1.bf16.msra.mxu0 0
    %7424 = vmatprep.subr.bf16.mxu0 0
    %7425 = vmatpush1.bf16.msra.mxu0 0
    %7426 = vmatprep.subr.bf16.mxu0 0
    %7427 = vmatpush1.bf16.msra.mxu0 0
    %7428 = vmatprep.mubr.bf16.mxu0 0
    %7429 = vmatmul.mubr.bf16.gmra.mrb[0].mxu0 %v7391
    %v7430 = vpop.f32.mrb[0].mxu0
    %v7431 = vadd.f32 0.0, %v7430
    %v7432 = vpop.f32.mrb[0].mxu0
    %v7433 = vpop.f32.mrb[0].mxu0
    %v7434 = vpop.f32.mrb[0].mxu0
    %7435 = vdwg.mxu0
    %7436 = vrot.lane.b32.xlu0 %v5050, 80
    %v7437 = vpop.permute.xlu0 %7436
    %v7439 = vsel %vm490, %v7193, 0
    %v7442 = vsel %vm256, %v7437, 0
    %7444 = vmatprep.subr.bf16.mxu0 0
    %7445 = vmatpush1.bf16.msra.mxu0 %v7442
    %7446 = vmatprep.subr.bf16.mxu0 0
    %7447 = vmatpush1.bf16.msra.mxu0 0
    %7448 = vmatprep.subr.bf16.mxu0 0
    %7449 = vmatpush1.bf16.msra.mxu0 0
    %7450 = vmatprep.subr.bf16.mxu0 0
    %7451 = vmatpush1.bf16.msra.mxu0 0
    %7452 = vmatprep.subr.bf16.mxu0 0
    %7453 = vmatpush1.bf16.msra.mxu0 0
    %7454 = vmatprep.subr.bf16.mxu0 0
    %7455 = vmatpush1.bf16.msra.mxu0 0
    %7456 = vmatprep.subr.bf16.mxu0 0
    %7457 = vmatpush1.bf16.msra.mxu0 0
    %7458 = vmatprep.subr.bf16.mxu0 0
    %7459 = vmatpush1.bf16.msra.mxu0 0
    %7460 = vmatprep.subr.bf16.mxu0 0
    %7461 = vmatpush1.bf16.msra.mxu0 0
    %7462 = vmatprep.subr.bf16.mxu0 0
    %7463 = vmatpush1.bf16.msra.mxu0 0
    %7464 = vmatprep.subr.bf16.mxu0 0
    %7465 = vmatpush1.bf16.msra.mxu0 0
    %7466 = vmatprep.subr.bf16.mxu0 0
    %7467 = vmatpush1.bf16.msra.mxu0 0
    %7468 = vmatprep.subr.bf16.mxu0 0
    %7469 = vmatpush1.bf16.msra.mxu0 0
    %7470 = vmatprep.subr.bf16.mxu0 0
    %7471 = vmatpush1.bf16.msra.mxu0 0
    %7472 = vmatprep.subr.bf16.mxu0 0
    %7473 = vmatpush1.bf16.msra.mxu0 0
    %7474 = vmatprep.subr.bf16.mxu0 0
    %7475 = vmatpush1.bf16.msra.mxu0 0
    %7476 = vmatprep.mubr.bf16.mxu0 0
    %7477 = vmatmul.mubr.bf16.gmra.mrb[0].mxu0 %v7439
    %v7478 = vpop.f32.mrb[0].mxu0
    %v7479 = vadd.f32 0.0, %v7478
    %v7480 = vpop.f32.mrb[0].mxu0
    %v7481 = vpop.f32.mrb[0].mxu0
    %v7482 = vpop.f32.mrb[0].mxu0
    %7483 = vdwg.mxu0
    %7484 = vrot.lane.b32.xlu0 %v5051, 80
    %v7485 = vpop.permute.xlu0 %7484
    %v7487 = vsel %vm490, %v7194, 0
    %v7490 = vsel %vm256, %v7485, 0
    %7492 = vmatprep.subr.bf16.mxu0 0
    %7493 = vmatpush1.bf16.msra.mxu0 %v7490
    %7494 = vmatprep.subr.bf16.mxu0 0
    %7495 = vmatpush1.bf16.msra.mxu0 0
    %7496 = vmatprep.subr.bf16.mxu0 0
    %7497 = vmatpush1.bf16.msra.mxu0 0
    %7498 = vmatprep.subr.bf16.mxu0 0
    %7499 = vmatpush1.bf16.msra.mxu0 0
    %7500 = vmatprep.subr.bf16.mxu0 0
    %7501 = vmatpush1.bf16.msra.mxu0 0
    %7502 = vmatprep.subr.bf16.mxu0 0
    %7503 = vmatpush1.bf16.msra.mxu0 0
    %7504 = vmatprep.subr.bf16.mxu0 0
    %7505 = vmatpush1.bf16.msra.mxu0 0
    %7506 = vmatprep.subr.bf16.mxu0 0
    %7507 = vmatpush1.bf16.msra.mxu0 0
    %7508 = vmatprep.subr.bf16.mxu0 0
    %7509 = vmatpush1.bf16.msra.mxu0 0
    %7510 = vmatprep.subr.bf16.mxu0 0
    %7511 = vmatpush1.bf16.msra.mxu0 0
    %7512 = vmatprep.subr.bf16.mxu0 0
    %7513 = vmatpush1.bf16.msra.mxu0 0
    %7514 = vmatprep.subr.bf16.mxu0 0
    %7515 = vmatpush1.bf16.msra.mxu0 0
    %7516 = vmatprep.subr.bf16.mxu0 0
    %7517 = vmatpush1.bf16.msra.mxu0 0
    %7518 = vmatprep.subr.bf16.mxu0 0
    %7519 = vmatpush1.bf16.msra.mxu0 0
    %7520 = vmatprep.subr.bf16.mxu0 0
    %7521 = vmatpush1.bf16.msra.mxu0 0
    %7522 = vmatprep.subr.bf16.mxu0 0
    %7523 = vmatpush1.bf16.msra.mxu0 0
    %7524 = vmatprep.mubr.bf16.mxu0 0
    %7525 = vmatmul.mubr.bf16.gmra.mrb[0].mxu0 %v7487
    %v7526 = vpop.f32.mrb[0].mxu0
    %v7527 = vadd.f32 0.0, %v7526
    %v7528 = vpop.f32.mrb[0].mxu0
    %v7529 = vpop.f32.mrb[0].mxu0
    %v7530 = vpop.f32.mrb[0].mxu0
    %7531 = vdwg.mxu0
    %7532 = vrot.lane.b32.xlu0 %v5052, 80
    %v7533 = vpop.permute.xlu0 %7532
    %v7535 = vsel %vm490, %v7195, 0
    %v7538 = vsel %vm256, %v7533, 0
    %7540 = vmatprep.subr.bf16.mxu0 0
    %7541 = vmatpush1.bf16.msra.mxu0 %v7538
    %7542 = vmatprep.subr.bf16.mxu0 0
    %7543 = vmatpush1.bf16.msra.mxu0 0
    %7544 = vmatprep.subr.bf16.mxu0 0
    %7545 = vmatpush1.bf16.msra.mxu0 0
    %7546 = vmatprep.subr.bf16.mxu0 0
    %7547 = vmatpush1.bf16.msra.mxu0 0
    %7548 = vmatprep.subr.bf16.mxu0 0
    %7549 = vmatpush1.bf16.msra.mxu0 0
    %7550 = vmatprep.subr.bf16.mxu0 0
    %7551 = vmatpush1.bf16.msra.mxu0 0
    %7552 = vmatprep.subr.bf16.mxu0 0
    %7553 = vmatpush1.bf16.msra.mxu0 0
    %7554 = vmatprep.subr.bf16.mxu0 0
    %7555 = vmatpush1.bf16.msra.mxu0 0
    %7556 = vmatprep.subr.bf16.mxu0 0
    %7557 = vmatpush1.bf16.msra.mxu0 0
    %7558 = vmatprep.subr.bf16.mxu0 0
    %7559 = vmatpush1.bf16.msra.mxu0 0
    %7560 = vmatprep.subr.bf16.mxu0 0
    %7561 = vmatpush1.bf16.msra.mxu0 0
    %7562 = vmatprep.subr.bf16.mxu0 0
    %7563 = vmatpush1.bf16.msra.mxu0 0
    %7564 = vmatprep.subr.bf16.mxu0 0
    %7565 = vmatpush1.bf16.msra.mxu0 0
    %7566 = vmatprep.subr.bf16.mxu0 0
    %7567 = vmatpush1.bf16.msra.mxu0 0
    %7568 = vmatprep.subr.bf16.mxu0 0
    %7569 = vmatpush1.bf16.msra.mxu0 0
    %7570 = vmatprep.subr.bf16.mxu0 0
    %7571 = vmatpush1.bf16.msra.mxu0 0
    %7572 = vmatprep.mubr.bf16.mxu0 0
    %7573 = vmatmul.mubr.bf16.gmra.mrb[0].mxu0 %v7535
    %v7574 = vpop.f32.mrb[0].mxu0
    %v7575 = vadd.f32 0.0, %v7574
    %v7576 = vpop.f32.mrb[0].mxu0
    %v7577 = vpop.f32.mrb[0].mxu0
    %v7578 = vpop.f32.mrb[0].mxu0
    %7579 = vdwg.mxu0
    %7580 = vrot.lane.b32.xlu0 %v5044, 104
    %v7581 = vpop.permute.xlu0 %7580
    %7582 = vrot.lane.b32.xlu0 %v5045, 104
    %v7583 = vpop.permute.xlu0 %7582
    %v7585 = vsel %vm490, %v7581, 0
    %v7588 = vsel %vm490, %v7583, 0
    %7590 = vmatprep.subr.bf16.mxu0 0
    %7591 = vmatpush1.bf16.xpose.msra.mxu0 %v7588
    %7592 = vmatprep.subr.bf16.mxu0 0
    %7593 = vmatpush1.bf16.xpose.msra.mxu0 0
    %7594 = vmatprep.subr.bf16.mxu0 0
    %7595 = vmatpush1.bf16.xpose.msra.mxu0 0
    %7596 = vmatprep.subr.bf16.mxu0 0
    %7597 = vmatpush1.bf16.xpose.msra.mxu0 0
    %7598 = vmatprep.subr.bf16.mxu0 0
    %7599 = vmatpush1.bf16.xpose.msra.mxu0 0
    %7600 = vmatprep.subr.bf16.mxu0 0
    %7601 = vmatpush1.bf16.xpose.msra.mxu0 0
    %7602 = vmatprep.subr.bf16.mxu0 0
    %7603 = vmatpush1.bf16.xpose.msra.mxu0 0
    %7604 = vmatprep.subr.bf16.mxu0 0
    %7605 = vmatpush1.bf16.xpose.msra.mxu0 0
    %7606 = vmatprep.subr.bf16.mxu0 0
    %7607 = vmatpush1.bf16.xpose.msra.mxu0 0
    %7608 = vmatprep.subr.bf16.mxu0 0
    %7609 = vmatpush1.bf16.xpose.msra.mxu0 0
    %7610 = vmatprep.subr.bf16.mxu0 0
    %7611 = vmatpush1.bf16.xpose.msra.mxu0 0
    %7612 = vmatprep.subr.bf16.mxu0 0
    %7613 = vmatpush1.bf16.xpose.msra.mxu0 0
    %7614 = vmatprep.subr.bf16.mxu0 0
    %7615 = vmatpush1.bf16.xpose.msra.mxu0 0
    %7616 = vmatprep.subr.bf16.mxu0 0
    %7617 = vmatpush1.bf16.xpose.msra.mxu0 0
    %7618 = vmatprep.subr.bf16.mxu0 0
    %7619 = vmatpush1.bf16.xpose.msra.mxu0 0
    %7620 = vmatprep.subr.bf16.mxu0 0
    %7621 = vmatpush1.bf16.xpose.msra.mxu0 0
    %7622 = vmatprep.mubr.bf16.mxu0 0
    %7623 = vmatmul.mubr.bf16.gmra.mrb[0].mxu0 %v7585
    %v7624 = vpop.f32.mrb[0].mxu0
    %v7625 = vadd.f32 %v154, %v7624
    %v7626 = vpop.f32.mrb[0].mxu0
    %v7627 = vpop.f32.mrb[0].mxu0
    %v7628 = vpop.f32.mrb[0].mxu0
    %7629 = vdwg.mxu0
    %7630 = vrot.lane.b32.xlu0 %v5046, 104
    %v7631 = vpop.permute.xlu0 %7630
    %v7633 = vsel %vm490, %v7631, 0
    %7635 = vmatprep.subr.bf16.mxu0 0
    %7636 = vmatpush1.bf16.xpose.msra.mxu0 %v7633
    %7637 = vmatprep.subr.bf16.mxu0 0
    %7638 = vmatpush1.bf16.xpose.msra.mxu0 0
    %7639 = vmatprep.subr.bf16.mxu0 0
    %7640 = vmatpush1.bf16.xpose.msra.mxu0 0
    %7641 = vmatprep.subr.bf16.mxu0 0
    %7642 = vmatpush1.bf16.xpose.msra.mxu0 0
    %7643 = vmatprep.subr.bf16.mxu0 0
    %7644 = vmatpush1.bf16.xpose.msra.mxu0 0
    %7645 = vmatprep.subr.bf16.mxu0 0
    %7646 = vmatpush1.bf16.xpose.msra.mxu0 0
    %7647 = vmatprep.subr.bf16.mxu0 0
    %7648 = vmatpush1.bf16.xpose.msra.mxu0 0
    %7649 = vmatprep.subr.bf16.mxu0 0
    %7650 = vmatpush1.bf16.xpose.msra.mxu0 0
    %7651 = vmatprep.subr.bf16.mxu0 0
    %7652 = vmatpush1.bf16.xpose.msra.mxu0 0
    %7653 = vmatprep.subr.bf16.mxu0 0
    %7654 = vmatpush1.bf16.xpose.msra.mxu0 0
    %7655 = vmatprep.subr.bf16.mxu0 0
    %7656 = vmatpush1.bf16.xpose.msra.mxu0 0
    %7657 = vmatprep.subr.bf16.mxu0 0
    %7658 = vmatpush1.bf16.xpose.msra.mxu0 0
    %7659 = vmatprep.subr.bf16.mxu0 0
    %7660 = vmatpush1.bf16.xpose.msra.mxu0 0
    %7661 = vmatprep.subr.bf16.mxu0 0
    %7662 = vmatpush1.bf16.xpose.msra.mxu0 0
    %7663 = vmatprep.subr.bf16.mxu0 0
    %7664 = vmatpush1.bf16.xpose.msra.mxu0 0
    %7665 = vmatprep.subr.bf16.mxu0 0
    %7666 = vmatpush1.bf16.xpose.msra.mxu0 0
    %7667 = vmatprep.mubr.bf16.mxu0 0
    %7668 = vmatmul.mubr.bf16.gmra.mrb[0].mxu0 %v7585
    %v7669 = vpop.f32.mrb[0].mxu0
    %v7670 = vadd.f32 %v168, %v7669
    %v7671 = vpop.f32.mrb[0].mxu0
    %v7672 = vpop.f32.mrb[0].mxu0
    %v7673 = vpop.f32.mrb[0].mxu0
    %7674 = vdwg.mxu0
    %7675 = vrot.lane.b32.xlu0 %v5047, 104
    %v7676 = vpop.permute.xlu0 %7675
    %v7678 = vsel %vm490, %v7676, 0
    %7680 = vmatprep.subr.bf16.mxu0 0
    %7681 = vmatpush1.bf16.xpose.msra.mxu0 %v7678
    %7682 = vmatprep.subr.bf16.mxu0 0
    %7683 = vmatpush1.bf16.xpose.msra.mxu0 0
    %7684 = vmatprep.subr.bf16.mxu0 0
    %7685 = vmatpush1.bf16.xpose.msra.mxu0 0
    %7686 = vmatprep.subr.bf16.mxu0 0
    %7687 = vmatpush1.bf16.xpose.msra.mxu0 0
    %7688 = vmatprep.subr.bf16.mxu0 0
    %7689 = vmatpush1.bf16.xpose.msra.mxu0 0
    %7690 = vmatprep.subr.bf16.mxu0 0
    %7691 = vmatpush1.bf16.xpose.msra.mxu0 0
    %7692 = vmatprep.subr.bf16.mxu0 0
    %7693 = vmatpush1.bf16.xpose.msra.mxu0 0
    %7694 = vmatprep.subr.bf16.mxu0 0
    %7695 = vmatpush1.bf16.xpose.msra.mxu0 0
    %7696 = vmatprep.subr.bf16.mxu0 0
    %7697 = vmatpush1.bf16.xpose.msra.mxu0 0
    %7698 = vmatprep.subr.bf16.mxu0 0
    %7699 = vmatpush1.bf16.xpose.msra.mxu0 0
    %7700 = vmatprep.subr.bf16.mxu0 0
    %7701 = vmatpush1.bf16.xpose.msra.mxu0 0
    %7702 = vmatprep.subr.bf16.mxu0 0
    %7703 = vmatpush1.bf16.xpose.msra.mxu0 0
    %7704 = vmatprep.subr.bf16.mxu0 0
    %7705 = vmatpush1.bf16.xpose.msra.mxu0 0
    %7706 = vmatprep.subr.bf16.mxu0 0
    %7707 = vmatpush1.bf16.xpose.msra.mxu0 0
    %7708 = vmatprep.subr.bf16.mxu0 0
    %7709 = vmatpush1.bf16.xpose.msra.mxu0 0
    %7710 = vmatprep.subr.bf16.mxu0 0
    %7711 = vmatpush1.bf16.xpose.msra.mxu0 0
    %7712 = vmatprep.mubr.bf16.mxu0 0
    %7713 = vmatmul.mubr.bf16.gmra.mrb[0].mxu0 %v7585
    %v7714 = vpop.f32.mrb[0].mxu0
    %v7715 = vadd.f32 %v176, %v7714
    %v7716 = vpop.f32.mrb[0].mxu0
    %v7717 = vpop.f32.mrb[0].mxu0
    %v7718 = vpop.f32.mrb[0].mxu0
    %7719 = vdwg.mxu0
    %7720 = vrot.lane.b32.xlu0 %v5048, 104
    %v7721 = vpop.permute.xlu0 %7720
    %v7723 = vsel %vm490, %v7721, 0
    %7725 = vmatprep.subr.bf16.mxu0 0
    %7726 = vmatpush1.bf16.xpose.msra.mxu0 %v7723
    %7727 = vmatprep.subr.bf16.mxu0 0
    %7728 = vmatpush1.bf16.xpose.msra.mxu0 0
    %7729 = vmatprep.subr.bf16.mxu0 0
    %7730 = vmatpush1.bf16.xpose.msra.mxu0 0
    %7731 = vmatprep.subr.bf16.mxu0 0
    %7732 = vmatpush1.bf16.xpose.msra.mxu0 0
    %7733 = vmatprep.subr.bf16.mxu0 0
    %7734 = vmatpush1.bf16.xpose.msra.mxu0 0
    %7735 = vmatprep.subr.bf16.mxu0 0
    %7736 = vmatpush1.bf16.xpose.msra.mxu0 0
    %7737 = vmatprep.subr.bf16.mxu0 0
    %7738 = vmatpush1.bf16.xpose.msra.mxu0 0
    %7739 = vmatprep.subr.bf16.mxu0 0
    %7740 = vmatpush1.bf16.xpose.msra.mxu0 0
    %7741 = vmatprep.subr.bf16.mxu0 0
    %7742 = vmatpush1.bf16.xpose.msra.mxu0 0
    %7743 = vmatprep.subr.bf16.mxu0 0
    %7744 = vmatpush1.bf16.xpose.msra.mxu0 0
    %7745 = vmatprep.subr.bf16.mxu0 0
    %7746 = vmatpush1.bf16.xpose.msra.mxu0 0
    %7747 = vmatprep.subr.bf16.mxu0 0
    %7748 = vmatpush1.bf16.xpose.msra.mxu0 0
    %7749 = vmatprep.subr.bf16.mxu0 0
    %7750 = vmatpush1.bf16.xpose.msra.mxu0 0
    %7751 = vmatprep.subr.bf16.mxu0 0
    %7752 = vmatpush1.bf16.xpose.msra.mxu0 0
    %7753 = vmatprep.subr.bf16.mxu0 0
    %7754 = vmatpush1.bf16.xpose.msra.mxu0 0
    %7755 = vmatprep.subr.bf16.mxu0 0
    %7756 = vmatpush1.bf16.xpose.msra.mxu0 0
    %7757 = vmatprep.mubr.bf16.mxu0 0
    %7758 = vmatmul.mubr.bf16.gmra.mrb[0].mxu0 %v7585
    %v7759 = vpop.f32.mrb[0].mxu0
    %v7760 = vadd.f32 %v178, %v7759
    %v7761 = vpop.f32.mrb[0].mxu0
    %v7762 = vpop.f32.mrb[0].mxu0
    %v7763 = vpop.f32.mrb[0].mxu0
    %7764 = vdwg.mxu0
    %7765 = vrot.lane.b32.xlu0 %v5049, 104
    %v7766 = vpop.permute.xlu0 %7765
    %v7768 = vsel %vm490, %v7766, 0
    %7770 = vmatprep.subr.bf16.mxu0 0
    %7771 = vmatpush1.bf16.xpose.msra.mxu0 %v7768
    %7772 = vmatprep.subr.bf16.mxu0 0
    %7773 = vmatpush1.bf16.xpose.msra.mxu0 0
    %7774 = vmatprep.subr.bf16.mxu0 0
    %7775 = vmatpush1.bf16.xpose.msra.mxu0 0
    %7776 = vmatprep.subr.bf16.mxu0 0
    %7777 = vmatpush1.bf16.xpose.msra.mxu0 0
    %7778 = vmatprep.subr.bf16.mxu0 0
    %7779 = vmatpush1.bf16.xpose.msra.mxu0 0
    %7780 = vmatprep.subr.bf16.mxu0 0
    %7781 = vmatpush1.bf16.xpose.msra.mxu0 0
    %7782 = vmatprep.subr.bf16.mxu0 0
    %7783 = vmatpush1.bf16.xpose.msra.mxu0 0
    %7784 = vmatprep.subr.bf16.mxu0 0
    %7785 = vmatpush1.bf16.xpose.msra.mxu0 0
    %7786 = vmatprep.subr.bf16.mxu0 0
    %7787 = vmatpush1.bf16.xpose.msra.mxu0 0
    %7788 = vmatprep.subr.bf16.mxu0 0
    %7789 = vmatpush1.bf16.xpose.msra.mxu0 0
    %7790 = vmatprep.subr.bf16.mxu0 0
    %7791 = vmatpush1.bf16.xpose.msra.mxu0 0
    %7792 = vmatprep.subr.bf16.mxu0 0
    %7793 = vmatpush1.bf16.xpose.msra.mxu0 0
    %7794 = vmatprep.subr.bf16.mxu0 0
    %7795 = vmatpush1.bf16.xpose.msra.mxu0 0
    %7796 = vmatprep.subr.bf16.mxu0 0
    %7797 = vmatpush1.bf16.xpose.msra.mxu0 0
    %7798 = vmatprep.subr.bf16.mxu0 0
    %7799 = vmatpush1.bf16.xpose.msra.mxu0 0
    %7800 = vmatprep.subr.bf16.mxu0 0
    %7801 = vmatpush1.bf16.xpose.msra.mxu0 0
    %7802 = vmatprep.mubr.bf16.mxu0 0
    %7803 = vmatmul.mubr.bf16.gmra.mrb[0].mxu0 %v7585
    %v7804 = vpop.f32.mrb[0].mxu0
    %v7805 = vadd.f32 %v161, %v7804
    %v7806 = vpop.f32.mrb[0].mxu0
    %v7807 = vpop.f32.mrb[0].mxu0
    %v7808 = vpop.f32.mrb[0].mxu0
    %7809 = vdwg.mxu0
    %7810 = vrot.lane.b32.xlu0 %v5050, 104
    %v7811 = vpop.permute.xlu0 %7810
    %v7813 = vsel %vm490, %v7811, 0
    %7815 = vmatprep.subr.bf16.mxu0 0
    %7816 = vmatpush1.bf16.xpose.msra.mxu0 %v7813
    %7817 = vmatprep.subr.bf16.mxu0 0
    %7818 = vmatpush1.bf16.xpose.msra.mxu0 0
    %7819 = vmatprep.subr.bf16.mxu0 0
    %7820 = vmatpush1.bf16.xpose.msra.mxu0 0
    %7821 = vmatprep.subr.bf16.mxu0 0
    %7822 = vmatpush1.bf16.xpose.msra.mxu0 0
    %7823 = vmatprep.subr.bf16.mxu0 0
    %7824 = vmatpush1.bf16.xpose.msra.mxu0 0
    %7825 = vmatprep.subr.bf16.mxu0 0
    %7826 = vmatpush1.bf16.xpose.msra.mxu0 0
    %7827 = vmatprep.subr.bf16.mxu0 0
    %7828 = vmatpush1.bf16.xpose.msra.mxu0 0
    %7829 = vmatprep.subr.bf16.mxu0 0
    %7830 = vmatpush1.bf16.xpose.msra.mxu0 0
    %7831 = vmatprep.subr.bf16.mxu0 0
    %7832 = vmatpush1.bf16.xpose.msra.mxu0 0
    %7833 = vmatprep.subr.bf16.mxu0 0
    %7834 = vmatpush1.bf16.xpose.msra.mxu0 0
    %7835 = vmatprep.subr.bf16.mxu0 0
    %7836 = vmatpush1.bf16.xpose.msra.mxu0 0
    %7837 = vmatprep.subr.bf16.mxu0 0
    %7838 = vmatpush1.bf16.xpose.msra.mxu0 0
    %7839 = vmatprep.subr.bf16.mxu0 0
    %7840 = vmatpush1.bf16.xpose.msra.mxu0 0
    %7841 = vmatprep.subr.bf16.mxu0 0
    %7842 = vmatpush1.bf16.xpose.msra.mxu0 0
    %7843 = vmatprep.subr.bf16.mxu0 0
    %7844 = vmatpush1.bf16.xpose.msra.mxu0 0
    %7845 = vmatprep.subr.bf16.mxu0 0
    %7846 = vmatpush1.bf16.xpose.msra.mxu0 0
    %7847 = vmatprep.mubr.bf16.mxu0 0
    %7848 = vmatmul.mubr.bf16.gmra.mrb[0].mxu0 %v7585
    %v7849 = vpop.f32.mrb[0].mxu0
    %v7850 = vadd.f32 %v175, %v7849
    %v7851 = vpop.f32.mrb[0].mxu0
    %v7852 = vpop.f32.mrb[0].mxu0
    %v7853 = vpop.f32.mrb[0].mxu0
    %7854 = vdwg.mxu0
    %7855 = vrot.lane.b32.xlu0 %v5051, 104
    %v7856 = vpop.permute.xlu0 %7855
    %v7858 = vsel %vm490, %v7856, 0
    %7860 = vmatprep.subr.bf16.mxu0 0
    %7861 = vmatpush1.bf16.xpose.msra.mxu0 %v7858
    %7862 = vmatprep.subr.bf16.mxu0 0
    %7863 = vmatpush1.bf16.xpose.msra.mxu0 0
    %7864 = vmatprep.subr.bf16.mxu0 0
    %7865 = vmatpush1.bf16.xpose.msra.mxu0 0
    %7866 = vmatprep.subr.bf16.mxu0 0
    %7867 = vmatpush1.bf16.xpose.msra.mxu0 0
    %7868 = vmatprep.subr.bf16.mxu0 0
    %7869 = vmatpush1.bf16.xpose.msra.mxu0 0
    %7870 = vmatprep.subr.bf16.mxu0 0
    %7871 = vmatpush1.bf16.xpose.msra.mxu0 0
    %7872 = vmatprep.subr.bf16.mxu0 0
    %7873 = vmatpush1.bf16.xpose.msra.mxu0 0
    %7874 = vmatprep.subr.bf16.mxu0 0
    %7875 = vmatpush1.bf16.xpose.msra.mxu0 0
    %7876 = vmatprep.subr.bf16.mxu0 0
    %7877 = vmatpush1.bf16.xpose.msra.mxu0 0
    %7878 = vmatprep.subr.bf16.mxu0 0
    %7879 = vmatpush1.bf16.xpose.msra.mxu0 0
    %7880 = vmatprep.subr.bf16.mxu0 0
    %7881 = vmatpush1.bf16.xpose.msra.mxu0 0
    %7882 = vmatprep.subr.bf16.mxu0 0
    %7883 = vmatpush1.bf16.xpose.msra.mxu0 0
    %7884 = vmatprep.subr.bf16.mxu0 0
    %7885 = vmatpush1.bf16.xpose.msra.mxu0 0
    %7886 = vmatprep.subr.bf16.mxu0 0
    %7887 = vmatpush1.bf16.xpose.msra.mxu0 0
    %7888 = vmatprep.subr.bf16.mxu0 0
    %7889 = vmatpush1.bf16.xpose.msra.mxu0 0
    %7890 = vmatprep.subr.bf16.mxu0 0
    %7891 = vmatpush1.bf16.xpose.msra.mxu0 0
    %7892 = vmatprep.mubr.bf16.mxu0 0
    %7893 = vmatmul.mubr.bf16.gmra.mrb[0].mxu0 %v7585
    %v7894 = vpop.f32.mrb[0].mxu0
    %v7895 = vadd.f32 %v177, %v7894
    %v7896 = vpop.f32.mrb[0].mxu0
    %v7897 = vpop.f32.mrb[0].mxu0
    %v7898 = vpop.f32.mrb[0].mxu0
    %7899 = vdwg.mxu0
    %7900 = vrot.lane.b32.xlu0 %v5052, 104
    %v7901 = vpop.permute.xlu0 %7900
    %v7903 = vsel %vm490, %v7901, 0
    %7905 = vmatprep.subr.bf16.mxu0 0
    %7906 = vmatpush1.bf16.xpose.msra.mxu0 %v7903
    %7907 = vmatprep.subr.bf16.mxu0 0
    %7908 = vmatpush1.bf16.xpose.msra.mxu0 0
    %7909 = vmatprep.subr.bf16.mxu0 0
    %7910 = vmatpush1.bf16.xpose.msra.mxu0 0
    %7911 = vmatprep.subr.bf16.mxu0 0
    %7912 = vmatpush1.bf16.xpose.msra.mxu0 0
    %7913 = vmatprep.subr.bf16.mxu0 0
    %7914 = vmatpush1.bf16.xpose.msra.mxu0 0
    %7915 = vmatprep.subr.bf16.mxu0 0
    %7916 = vmatpush1.bf16.xpose.msra.mxu0 0
    %7917 = vmatprep.subr.bf16.mxu0 0
    %7918 = vmatpush1.bf16.xpose.msra.mxu0 0
    %7919 = vmatprep.subr.bf16.mxu0 0
    %7920 = vmatpush1.bf16.xpose.msra.mxu0 0
    %7921 = vmatprep.subr.bf16.mxu0 0
    %7922 = vmatpush1.bf16.xpose.msra.mxu0 0
    %7923 = vmatprep.subr.bf16.mxu0 0
    %7924 = vmatpush1.bf16.xpose.msra.mxu0 0
    %7925 = vmatprep.subr.bf16.mxu0 0
    %7926 = vmatpush1.bf16.xpose.msra.mxu0 0
    %7927 = vmatprep.subr.bf16.mxu0 0
    %7928 = vmatpush1.bf16.xpose.msra.mxu0 0
    %7929 = vmatprep.subr.bf16.mxu0 0
    %7930 = vmatpush1.bf16.xpose.msra.mxu0 0
    %7931 = vmatprep.subr.bf16.mxu0 0
    %7932 = vmatpush1.bf16.xpose.msra.mxu0 0
    %7933 = vmatprep.subr.bf16.mxu0 0
    %7934 = vmatpush1.bf16.xpose.msra.mxu0 0
    %7935 = vmatprep.subr.bf16.mxu0 0
    %7936 = vmatpush1.bf16.xpose.msra.mxu0 0
    %7937 = vmatprep.mubr.bf16.mxu0 0
    %7938 = vmatmul.mubr.bf16.gmra.mrb[0].mxu0 %v7585
    %v7939 = vpop.f32.mrb[0].mxu0
    %v7940 = vadd.f32 %v179, %v7939
    %v7941 = vpop.f32.mrb[0].mxu0
    %v7942 = vpop.f32.mrb[0].mxu0
    %v7943 = vpop.f32.mrb[0].mxu0
    %7944 = vdwg.mxu0
    %v7945 = vsel %vm5400, %v7625, -inf
    %7946 = vmax.xlane.f32.xlu0 %v7945
    %v7947 = vpop.xlane.xlu0 %7946
    %v7948 = vsel %vm5400, %v7670, -inf
    %7949 = vmax.xlane.f32.xlu0 %v7948
    %v7950 = vpop.xlane.xlu0 %7949
    %v7951 = vsel %vm5400, %v7715, -inf
    %7952 = vmax.xlane.f32.xlu0 %v7951
    %v7953 = vpop.xlane.xlu0 %7952
    %v7954 = vsel %vm5400, %v7760, -inf
    %7955 = vmax.xlane.f32.xlu0 %v7954
    %v7956 = vpop.xlane.xlu0 %7955
    %v7957 = vsel %vm5400, %v7805, -inf
    %7958 = vmax.xlane.f32.xlu0 %v7957
    %v7959 = vpop.xlane.xlu0 %7958
    %v7960 = vsel %vm5400, %v7850, -inf
    %7961 = vmax.xlane.f32.xlu0 %v7960
    %v7962 = vpop.xlane.xlu0 %7961
    %v7963 = vsel %vm5400, %v7895, -inf
    %7964 = vmax.xlane.f32.xlu0 %v7963
    %v7965 = vpop.xlane.xlu0 %7964
    %v7966 = vsel %vm5400, %v7940, -inf
    %7967 = vmax.xlane.f32.xlu0 %v7966
    %v7968 = vpop.xlane.xlu0 %7967
    %v7969 = vsub.f32 %v7625, %v7947
    %v7970 = vsub.f32 %v7670, %v7950
    %v7971 = vsub.f32 %v7715, %v7953
    %v7972 = vsub.f32 %v7760, %v7956
    %v7973 = vsub.f32 %v7805, %v7959
    %v7974 = vsub.f32 %v7850, %v7962
    %v7975 = vsub.f32 %v7895, %v7965
    %v7976 = vsub.f32 %v7940, %v7968
    %v7977 = vmul.f32 %v7969, 1.442695
    %v7978 = vpow.pop %v7977
    %v7979 = vmul.f32 %v7970, 1.442695
    %v7980 = vpow.pop %v7979
    %v7981 = vmul.f32 %v7971, 1.442695
    %v7982 = vpow.pop %v7981
    %v7983 = vmul.f32 %v7972, 1.442695
    %v7984 = vpow.pop %v7983
    %v7985 = vmul.f32 %v7973, 1.442695
    %v7986 = vpow.pop %v7985
    %v7987 = vmul.f32 %v7974, 1.442695
    %v7988 = vpow.pop %v7987
    %v7989 = vmul.f32 %v7975, 1.442695
    %v7990 = vpow.pop %v7989
    %v7991 = vmul.f32 %v7976, 1.442695
    %v7992 = vpow.pop %v7991
    %v7993 = vsel %vm5400, %v7978, 0.0
    %7994 = vadd.xlane.f32.xlu0 %v7993
    %v7995 = vpop.xlane.xlu0 %7994
    %v7996 = vsel %vm5400, %v7980, 0.0
    %7997 = vadd.xlane.f32.xlu0 %v7996
    %v7998 = vpop.xlane.xlu0 %7997
    %v7999 = vsel %vm5400, %v7982, 0.0
    %8000 = vadd.xlane.f32.xlu0 %v7999
    %v8001 = vpop.xlane.xlu0 %8000
    %v8002 = vsel %vm5400, %v7984, 0.0
    %8003 = vadd.xlane.f32.xlu0 %v8002
    %v8004 = vpop.xlane.xlu0 %8003
    %v8005 = vsel %vm5400, %v7986, 0.0
    %8006 = vadd.xlane.f32.xlu0 %v8005
    %v8007 = vpop.xlane.xlu0 %8006
    %v8008 = vsel %vm5400, %v7988, 0.0
    %8009 = vadd.xlane.f32.xlu0 %v8008
    %v8010 = vpop.xlane.xlu0 %8009
    %v8011 = vsel %vm5400, %v7990, 0.0
    %8012 = vadd.xlane.f32.xlu0 %v8011
    %v8013 = vpop.xlane.xlu0 %8012
    %v8014 = vsel %vm5400, %v7992, 0.0
    %8015 = vadd.xlane.f32.xlu0 %v8014
    %v8016 = vpop.xlane.xlu0 %8015
    %v8017 = vrcp.pop %v7995
    %v8018 = vrcp.pop %v7998
    %v8019 = vrcp.pop %v8001
    %v8020 = vrcp.pop %v8004
    %v8021 = vrcp.pop %v8007
    %v8022 = vrcp.pop %v8010
    %v8023 = vrcp.pop %v8013
    %v8024 = vrcp.pop %v8016
    %v8025 = vmul.f32 %v7978, %v8017
    %v8026 = vmul.f32 %v7980, %v8018
    %v8027 = vmul.f32 %v7982, %v8019
    %v8028 = vmul.f32 %v7984, %v8020
    %v8029 = vmul.f32 %v7986, %v8021
    %v8030 = vmul.f32 %v7988, %v8022
    %v8031 = vmul.f32 %v7990, %v8023
    %v8032 = vmul.f32 %v7992, %v8024
    %v8033 = vpack.c.bf16 %v8025, %v8025
    %v8034 = vpack.c.bf16 %v8026, %v8026
    %v8035 = vpack.c.bf16 %v8027, %v8027
    %v8036 = vpack.c.bf16 %v8028, %v8028
    %v8037 = vpack.c.bf16 %v8029, %v8029
    %v8038 = vpack.c.bf16 %v8030, %v8030
    %v8039 = vpack.c.bf16 %v8031, %v8031
    %v8040 = vpack.c.bf16 %v8032, %v8032
    %8041 = vrot.lane.b32.xlu0 %v5045, 72
    %v8042 = vpop.permute.xlu0 %8041
    %v8044 = vsel %vm490, %v8033, 0
    %v8047 = vsel %vm256, %v8042, 0
    %8049 = vmatprep.subr.bf16.mxu0 0
    %8050 = vmatpush1.bf16.msra.mxu0 %v8047
    %8051 = vmatprep.subr.bf16.mxu0 0
    %8052 = vmatpush1.bf16.msra.mxu0 0
    %8053 = vmatprep.subr.bf16.mxu0 0
    %8054 = vmatpush1.bf16.msra.mxu0 0
    %8055 = vmatprep.subr.bf16.mxu0 0
    %8056 = vmatpush1.bf16.msra.mxu0 0
    %8057 = vmatprep.subr.bf16.mxu0 0
    %8058 = vmatpush1.bf16.msra.mxu0 0
    %8059 = vmatprep.subr.bf16.mxu0 0
    %8060 = vmatpush1.bf16.msra.mxu0 0
    %8061 = vmatprep.subr.bf16.mxu0 0
    %8062 = vmatpush1.bf16.msra.mxu0 0
    %8063 = vmatprep.subr.bf16.mxu0 0
    %8064 = vmatpush1.bf16.msra.mxu0 0
    %8065 = vmatprep.subr.bf16.mxu0 0
    %8066 = vmatpush1.bf16.msra.mxu0 0
    %8067 = vmatprep.subr.bf16.mxu0 0
    %8068 = vmatpush1.bf16.msra.mxu0 0
    %8069 = vmatprep.subr.bf16.mxu0 0
    %8070 = vmatpush1.bf16.msra.mxu0 0
    %8071 = vmatprep.subr.bf16.mxu0 0
    %8072 = vmatpush1.bf16.msra.mxu0 0
    %8073 = vmatprep.subr.bf16.mxu0 0
    %8074 = vmatpush1.bf16.msra.mxu0 0
    %8075 = vmatprep.subr.bf16.mxu0 0
    %8076 = vmatpush1.bf16.msra.mxu0 0
    %8077 = vmatprep.subr.bf16.mxu0 0
    %8078 = vmatpush1.bf16.msra.mxu0 0
    %8079 = vmatprep.subr.bf16.mxu0 0
    %8080 = vmatpush1.bf16.msra.mxu0 0
    %8081 = vmatprep.mubr.bf16.mxu0 0
    %8082 = vmatmul.mubr.bf16.gmra.mrb[0].mxu0 %v8044
    %v8083 = vpop.f32.mrb[0].mxu0
    %v8084 = vadd.f32 0.0, %v8083
    %v8085 = vpop.f32.mrb[0].mxu0
    %v8086 = vpop.f32.mrb[0].mxu0
    %v8087 = vpop.f32.mrb[0].mxu0
    %8088 = vdwg.mxu0
    %8089 = vrot.lane.b32.xlu0 %v5046, 72
    %v8090 = vpop.permute.xlu0 %8089
    %v8092 = vsel %vm490, %v8034, 0
    %v8095 = vsel %vm256, %v8090, 0
    %8097 = vmatprep.subr.bf16.mxu0 0
    %8098 = vmatpush1.bf16.msra.mxu0 %v8095
    %8099 = vmatprep.subr.bf16.mxu0 0
    %8100 = vmatpush1.bf16.msra.mxu0 0
    %8101 = vmatprep.subr.bf16.mxu0 0
    %8102 = vmatpush1.bf16.msra.mxu0 0
    %8103 = vmatprep.subr.bf16.mxu0 0
    %8104 = vmatpush1.bf16.msra.mxu0 0
    %8105 = vmatprep.subr.bf16.mxu0 0
    %8106 = vmatpush1.bf16.msra.mxu0 0
    %8107 = vmatprep.subr.bf16.mxu0 0
    %8108 = vmatpush1.bf16.msra.mxu0 0
    %8109 = vmatprep.subr.bf16.mxu0 0
    %8110 = vmatpush1.bf16.msra.mxu0 0
    %8111 = vmatprep.subr.bf16.mxu0 0
    %8112 = vmatpush1.bf16.msra.mxu0 0
    %8113 = vmatprep.subr.bf16.mxu0 0
    %8114 = vmatpush1.bf16.msra.mxu0 0
    %8115 = vmatprep.subr.bf16.mxu0 0
    %8116 = vmatpush1.bf16.msra.mxu0 0
    %8117 = vmatprep.subr.bf16.mxu0 0
    %8118 = vmatpush1.bf16.msra.mxu0 0
    %8119 = vmatprep.subr.bf16.mxu0 0
    %8120 = vmatpush1.bf16.msra.mxu0 0
    %8121 = vmatprep.subr.bf16.mxu0 0
    %8122 = vmatpush1.bf16.msra.mxu0 0
    %8123 = vmatprep.subr.bf16.mxu0 0
    %8124 = vmatpush1.bf16.msra.mxu0 0
    %8125 = vmatprep.subr.bf16.mxu0 0
    %8126 = vmatpush1.bf16.msra.mxu0 0
    %8127 = vmatprep.subr.bf16.mxu0 0
    %8128 = vmatpush1.bf16.msra.mxu0 0
    %8129 = vmatprep.mubr.bf16.mxu0 0
    %8130 = vmatmul.mubr.bf16.gmra.mrb[0].mxu0 %v8092
    %v8131 = vpop.f32.mrb[0].mxu0
    %v8132 = vadd.f32 0.0, %v8131
    %v8133 = vpop.f32.mrb[0].mxu0
    %v8134 = vpop.f32.mrb[0].mxu0
    %v8135 = vpop.f32.mrb[0].mxu0
    %8136 = vdwg.mxu0
    %8137 = vrot.lane.b32.xlu0 %v5047, 72
    %v8138 = vpop.permute.xlu0 %8137
    %v8140 = vsel %vm490, %v8035, 0
    %v8143 = vsel %vm256, %v8138, 0
    %8145 = vmatprep.subr.bf16.mxu0 0
    %8146 = vmatpush1.bf16.msra.mxu0 %v8143
    %8147 = vmatprep.subr.bf16.mxu0 0
    %8148 = vmatpush1.bf16.msra.mxu0 0
    %8149 = vmatprep.subr.bf16.mxu0 0
    %8150 = vmatpush1.bf16.msra.mxu0 0
    %8151 = vmatprep.subr.bf16.mxu0 0
    %8152 = vmatpush1.bf16.msra.mxu0 0
    %8153 = vmatprep.subr.bf16.mxu0 0
    %8154 = vmatpush1.bf16.msra.mxu0 0
    %8155 = vmatprep.subr.bf16.mxu0 0
    %8156 = vmatpush1.bf16.msra.mxu0 0
    %8157 = vmatprep.subr.bf16.mxu0 0
    %8158 = vmatpush1.bf16.msra.mxu0 0
    %8159 = vmatprep.subr.bf16.mxu0 0
    %8160 = vmatpush1.bf16.msra.mxu0 0
    %8161 = vmatprep.subr.bf16.mxu0 0
    %8162 = vmatpush1.bf16.msra.mxu0 0
    %8163 = vmatprep.subr.bf16.mxu0 0
    %8164 = vmatpush1.bf16.msra.mxu0 0
    %8165 = vmatprep.subr.bf16.mxu0 0
    %8166 = vmatpush1.bf16.msra.mxu0 0
    %8167 = vmatprep.subr.bf16.mxu0 0
    %8168 = vmatpush1.bf16.msra.mxu0 0
    %8169 = vmatprep.subr.bf16.mxu0 0
    %8170 = vmatpush1.bf16.msra.mxu0 0
    %8171 = vmatprep.subr.bf16.mxu0 0
    %8172 = vmatpush1.bf16.msra.mxu0 0
    %8173 = vmatprep.subr.bf16.mxu0 0
    %8174 = vmatpush1.bf16.msra.mxu0 0
    %8175 = vmatprep.subr.bf16.mxu0 0
    %8176 = vmatpush1.bf16.msra.mxu0 0
    %8177 = vmatprep.mubr.bf16.mxu0 0
    %8178 = vmatmul.mubr.bf16.gmra.mrb[0].mxu0 %v8140
    %v8179 = vpop.f32.mrb[0].mxu0
    %v8180 = vadd.f32 0.0, %v8179
    %v8181 = vpop.f32.mrb[0].mxu0
    %v8182 = vpop.f32.mrb[0].mxu0
    %v8183 = vpop.f32.mrb[0].mxu0
    %8184 = vdwg.mxu0
    %8185 = vrot.lane.b32.xlu0 %v5048, 72
    %v8186 = vpop.permute.xlu0 %8185
    %v8188 = vsel %vm490, %v8036, 0
    %v8191 = vsel %vm256, %v8186, 0
    %8193 = vmatprep.subr.bf16.mxu0 0
    %8194 = vmatpush1.bf16.msra.mxu0 %v8191
    %8195 = vmatprep.subr.bf16.mxu0 0
    %8196 = vmatpush1.bf16.msra.mxu0 0
    %8197 = vmatprep.subr.bf16.mxu0 0
    %8198 = vmatpush1.bf16.msra.mxu0 0
    %8199 = vmatprep.subr.bf16.mxu0 0
    %8200 = vmatpush1.bf16.msra.mxu0 0
    %8201 = vmatprep.subr.bf16.mxu0 0
    %8202 = vmatpush1.bf16.msra.mxu0 0
    %8203 = vmatprep.subr.bf16.mxu0 0
    %8204 = vmatpush1.bf16.msra.mxu0 0
    %8205 = vmatprep.subr.bf16.mxu0 0
    %8206 = vmatpush1.bf16.msra.mxu0 0
    %8207 = vmatprep.subr.bf16.mxu0 0
    %8208 = vmatpush1.bf16.msra.mxu0 0
    %8209 = vmatprep.subr.bf16.mxu0 0
    %8210 = vmatpush1.bf16.msra.mxu0 0
    %8211 = vmatprep.subr.bf16.mxu0 0
    %8212 = vmatpush1.bf16.msra.mxu0 0
    %8213 = vmatprep.subr.bf16.mxu0 0
    %8214 = vmatpush1.bf16.msra.mxu0 0
    %8215 = vmatprep.subr.bf16.mxu0 0
    %8216 = vmatpush1.bf16.msra.mxu0 0
    %8217 = vmatprep.subr.bf16.mxu0 0
    %8218 = vmatpush1.bf16.msra.mxu0 0
    %8219 = vmatprep.subr.bf16.mxu0 0
    %8220 = vmatpush1.bf16.msra.mxu0 0
    %8221 = vmatprep.subr.bf16.mxu0 0
    %8222 = vmatpush1.bf16.msra.mxu0 0
    %8223 = vmatprep.subr.bf16.mxu0 0
    %8224 = vmatpush1.bf16.msra.mxu0 0
    %8225 = vmatprep.mubr.bf16.mxu0 0
    %8226 = vmatmul.mubr.bf16.gmra.mrb[0].mxu0 %v8188
    %v8227 = vpop.f32.mrb[0].mxu0
    %v8228 = vadd.f32 0.0, %v8227
    %v8229 = vpop.f32.mrb[0].mxu0
    %v8230 = vpop.f32.mrb[0].mxu0
    %v8231 = vpop.f32.mrb[0].mxu0
    %8232 = vdwg.mxu0
    %8233 = vrot.lane.b32.xlu0 %v5049, 72
    %v8234 = vpop.permute.xlu0 %8233
    %v8236 = vsel %vm490, %v8037, 0
    %v8239 = vsel %vm256, %v8234, 0
    %8241 = vmatprep.subr.bf16.mxu0 0
    %8242 = vmatpush1.bf16.msra.mxu0 %v8239
    %8243 = vmatprep.subr.bf16.mxu0 0
    %8244 = vmatpush1.bf16.msra.mxu0 0
    %8245 = vmatprep.subr.bf16.mxu0 0
    %8246 = vmatpush1.bf16.msra.mxu0 0
    %8247 = vmatprep.subr.bf16.mxu0 0
    %8248 = vmatpush1.bf16.msra.mxu0 0
    %8249 = vmatprep.subr.bf16.mxu0 0
    %8250 = vmatpush1.bf16.msra.mxu0 0
    %8251 = vmatprep.subr.bf16.mxu0 0
    %8252 = vmatpush1.bf16.msra.mxu0 0
    %8253 = vmatprep.subr.bf16.mxu0 0
    %8254 = vmatpush1.bf16.msra.mxu0 0
    %8255 = vmatprep.subr.bf16.mxu0 0
    %8256 = vmatpush1.bf16.msra.mxu0 0
    %8257 = vmatprep.subr.bf16.mxu0 0
    %8258 = vmatpush1.bf16.msra.mxu0 0
    %8259 = vmatprep.subr.bf16.mxu0 0
    %8260 = vmatpush1.bf16.msra.mxu0 0
    %8261 = vmatprep.subr.bf16.mxu0 0
    %8262 = vmatpush1.bf16.msra.mxu0 0
    %8263 = vmatprep.subr.bf16.mxu0 0
    %8264 = vmatpush1.bf16.msra.mxu0 0
    %8265 = vmatprep.subr.bf16.mxu0 0
    %8266 = vmatpush1.bf16.msra.mxu0 0
    %8267 = vmatprep.subr.bf16.mxu0 0
    %8268 = vmatpush1.bf16.msra.mxu0 0
    %8269 = vmatprep.subr.bf16.mxu0 0
    %8270 = vmatpush1.bf16.msra.mxu0 0
    %8271 = vmatprep.subr.bf16.mxu0 0
    %8272 = vmatpush1.bf16.msra.mxu0 0
    %8273 = vmatprep.mubr.bf16.mxu0 0
    %8274 = vmatmul.mubr.bf16.gmra.mrb[0].mxu0 %v8236
    %v8275 = vpop.f32.mrb[0].mxu0
    %v8276 = vadd.f32 0.0, %v8275
    %v8277 = vpop.f32.mrb[0].mxu0
    %v8278 = vpop.f32.mrb[0].mxu0
    %v8279 = vpop.f32.mrb[0].mxu0
    %8280 = vdwg.mxu0
    %8281 = vrot.lane.b32.xlu0 %v5050, 72
    %v8282 = vpop.permute.xlu0 %8281
    %v8284 = vsel %vm490, %v8038, 0
    %v8287 = vsel %vm256, %v8282, 0
    %8289 = vmatprep.subr.bf16.mxu0 0
    %8290 = vmatpush1.bf16.msra.mxu0 %v8287
    %8291 = vmatprep.subr.bf16.mxu0 0
    %8292 = vmatpush1.bf16.msra.mxu0 0
    %8293 = vmatprep.subr.bf16.mxu0 0
    %8294 = vmatpush1.bf16.msra.mxu0 0
    %8295 = vmatprep.subr.bf16.mxu0 0
    %8296 = vmatpush1.bf16.msra.mxu0 0
    %8297 = vmatprep.subr.bf16.mxu0 0
    %8298 = vmatpush1.bf16.msra.mxu0 0
    %8299 = vmatprep.subr.bf16.mxu0 0
    %8300 = vmatpush1.bf16.msra.mxu0 0
    %8301 = vmatprep.subr.bf16.mxu0 0
    %8302 = vmatpush1.bf16.msra.mxu0 0
    %8303 = vmatprep.subr.bf16.mxu0 0
    %8304 = vmatpush1.bf16.msra.mxu0 0
    %8305 = vmatprep.subr.bf16.mxu0 0
    %8306 = vmatpush1.bf16.msra.mxu0 0
    %8307 = vmatprep.subr.bf16.mxu0 0
    %8308 = vmatpush1.bf16.msra.mxu0 0
    %8309 = vmatprep.subr.bf16.mxu0 0
    %8310 = vmatpush1.bf16.msra.mxu0 0
    %8311 = vmatprep.subr.bf16.mxu0 0
    %8312 = vmatpush1.bf16.msra.mxu0 0
    %8313 = vmatprep.subr.bf16.mxu0 0
    %8314 = vmatpush1.bf16.msra.mxu0 0
    %8315 = vmatprep.subr.bf16.mxu0 0
    %8316 = vmatpush1.bf16.msra.mxu0 0
    %8317 = vmatprep.subr.bf16.mxu0 0
    %8318 = vmatpush1.bf16.msra.mxu0 0
    %8319 = vmatprep.subr.bf16.mxu0 0
    %8320 = vmatpush1.bf16.msra.mxu0 0
    %8321 = vmatprep.mubr.bf16.mxu0 0
    %8322 = vmatmul.mubr.bf16.gmra.mrb[0].mxu0 %v8284
    %v8323 = vpop.f32.mrb[0].mxu0
    %v8324 = vadd.f32 0.0, %v8323
    %v8325 = vpop.f32.mrb[0].mxu0
    %v8326 = vpop.f32.mrb[0].mxu0
    %v8327 = vpop.f32.mrb[0].mxu0
    %8328 = vdwg.mxu0
    %8329 = vrot.lane.b32.xlu0 %v5051, 72
    %v8330 = vpop.permute.xlu0 %8329
    %v8332 = vsel %vm490, %v8039, 0
    %v8335 = vsel %vm256, %v8330, 0
    %8337 = vmatprep.subr.bf16.mxu0 0
    %8338 = vmatpush1.bf16.msra.mxu0 %v8335
    %8339 = vmatprep.subr.bf16.mxu0 0
    %8340 = vmatpush1.bf16.msra.mxu0 0
    %8341 = vmatprep.subr.bf16.mxu0 0
    %8342 = vmatpush1.bf16.msra.mxu0 0
    %8343 = vmatprep.subr.bf16.mxu0 0
    %8344 = vmatpush1.bf16.msra.mxu0 0
    %8345 = vmatprep.subr.bf16.mxu0 0
    %8346 = vmatpush1.bf16.msra.mxu0 0
    %8347 = vmatprep.subr.bf16.mxu0 0
    %8348 = vmatpush1.bf16.msra.mxu0 0
    %8349 = vmatprep.subr.bf16.mxu0 0
    %8350 = vmatpush1.bf16.msra.mxu0 0
    %8351 = vmatprep.subr.bf16.mxu0 0
    %8352 = vmatpush1.bf16.msra.mxu0 0
    %8353 = vmatprep.subr.bf16.mxu0 0
    %8354 = vmatpush1.bf16.msra.mxu0 0
    %8355 = vmatprep.subr.bf16.mxu0 0
    %8356 = vmatpush1.bf16.msra.mxu0 0
    %8357 = vmatprep.subr.bf16.mxu0 0
    %8358 = vmatpush1.bf16.msra.mxu0 0
    %8359 = vmatprep.subr.bf16.mxu0 0
    %8360 = vmatpush1.bf16.msra.mxu0 0
    %8361 = vmatprep.subr.bf16.mxu0 0
    %8362 = vmatpush1.bf16.msra.mxu0 0
    %8363 = vmatprep.subr.bf16.mxu0 0
    %8364 = vmatpush1.bf16.msra.mxu0 0
    %8365 = vmatprep.subr.bf16.mxu0 0
    %8366 = vmatpush1.bf16.msra.mxu0 0
    %8367 = vmatprep.subr.bf16.mxu0 0
    %8368 = vmatpush1.bf16.msra.mxu0 0
    %8369 = vmatprep.mubr.bf16.mxu0 0
    %8370 = vmatmul.mubr.bf16.gmra.mrb[0].mxu0 %v8332
    %v8371 = vpop.f32.mrb[0].mxu0
    %v8372 = vadd.f32 0.0, %v8371
    %v8373 = vpop.f32.mrb[0].mxu0
    %v8374 = vpop.f32.mrb[0].mxu0
    %v8375 = vpop.f32.mrb[0].mxu0
    %8376 = vdwg.mxu0
    %8377 = vrot.lane.b32.xlu0 %v5052, 72
    %v8378 = vpop.permute.xlu0 %8377
    %v8380 = vsel %vm490, %v8040, 0
    %v8383 = vsel %vm256, %v8378, 0
    %8385 = vmatprep.subr.bf16.mxu0 0
    %8386 = vmatpush1.bf16.msra.mxu0 %v8383
    %8387 = vmatprep.subr.bf16.mxu0 0
    %8388 = vmatpush1.bf16.msra.mxu0 0
    %8389 = vmatprep.subr.bf16.mxu0 0
    %8390 = vmatpush1.bf16.msra.mxu0 0
    %8391 = vmatprep.subr.bf16.mxu0 0
    %8392 = vmatpush1.bf16.msra.mxu0 0
    %8393 = vmatprep.subr.bf16.mxu0 0
    %8394 = vmatpush1.bf16.msra.mxu0 0
    %8395 = vmatprep.subr.bf16.mxu0 0
    %8396 = vmatpush1.bf16.msra.mxu0 0
    %8397 = vmatprep.subr.bf16.mxu0 0
    %8398 = vmatpush1.bf16.msra.mxu0 0
    %8399 = vmatprep.subr.bf16.mxu0 0
    %8400 = vmatpush1.bf16.msra.mxu0 0
    %8401 = vmatprep.subr.bf16.mxu0 0
    %8402 = vmatpush1.bf16.msra.mxu0 0
    %8403 = vmatprep.subr.bf16.mxu0 0
    %8404 = vmatpush1.bf16.msra.mxu0 0
    %8405 = vmatprep.subr.bf16.mxu0 0
    %8406 = vmatpush1.bf16.msra.mxu0 0
    %8407 = vmatprep.subr.bf16.mxu0 0
    %8408 = vmatpush1.bf16.msra.mxu0 0
    %8409 = vmatprep.subr.bf16.mxu0 0
    %8410 = vmatpush1.bf16.msra.mxu0 0
    %8411 = vmatprep.subr.bf16.mxu0 0
    %8412 = vmatpush1.bf16.msra.mxu0 0
    %8413 = vmatprep.subr.bf16.mxu0 0
    %8414 = vmatpush1.bf16.msra.mxu0 0
    %8415 = vmatprep.subr.bf16.mxu0 0
    %8416 = vmatpush1.bf16.msra.mxu0 0
    %8417 = vmatprep.mubr.bf16.mxu0 0
    %8418 = vmatmul.mubr.bf16.gmra.mrb[0].mxu0 %v8380
    %v8419 = vpop.f32.mrb[0].mxu0
    %v8420 = vadd.f32 0.0, %v8419
    %v8421 = vpop.f32.mrb[0].mxu0
    %v8422 = vpop.f32.mrb[0].mxu0
    %v8423 = vpop.f32.mrb[0].mxu0
    %8424 = vdwg.mxu0
    %8433 = vrot.lane.b32.xlu0 %v6394, 8
    %v8434 = vpop.permute.xlu0 %8433
    %8435 = vrot.lane.b32.xlu0 %v6442, 8
    %v8436 = vpop.permute.xlu0 %8435
    %8437 = vrot.lane.b32.xlu0 %v6490, 8
    %v8438 = vpop.permute.xlu0 %8437
    %8439 = vrot.lane.b32.xlu0 %v6538, 8
    %v8440 = vpop.permute.xlu0 %8439
    %8441 = vrot.lane.b32.xlu0 %v6586, 8
    %v8442 = vpop.permute.xlu0 %8441
    %8443 = vrot.lane.b32.xlu0 %v6634, 8
    %v8444 = vpop.permute.xlu0 %8443
    %8445 = vrot.lane.b32.xlu0 %v6682, 8
    %v8446 = vpop.permute.xlu0 %8445
    %8447 = vrot.lane.b32.xlu0 %v6730, 8
    %v8448 = vpop.permute.xlu0 %8447
    %8465 = vrot.lane.b32.xlu0 %v7239, 16
    %v8466 = vpop.permute.xlu0 %8465
    %8467 = vrot.lane.b32.xlu0 %v7287, 16
    %v8468 = vpop.permute.xlu0 %8467
    %8469 = vrot.lane.b32.xlu0 %v7335, 16
    %v8470 = vpop.permute.xlu0 %8469
    %8471 = vrot.lane.b32.xlu0 %v7383, 16
    %v8472 = vpop.permute.xlu0 %8471
    %8473 = vrot.lane.b32.xlu0 %v7431, 16
    %v8474 = vpop.permute.xlu0 %8473
    %8475 = vrot.lane.b32.xlu0 %v7479, 16
    %v8476 = vpop.permute.xlu0 %8475
    %8477 = vrot.lane.b32.xlu0 %v7527, 16
    %v8478 = vpop.permute.xlu0 %8477
    %8479 = vrot.lane.b32.xlu0 %v7575, 16
    %v8480 = vpop.permute.xlu0 %8479
    %8497 = vrot.lane.b32.xlu0 %v8084, 24
    %v8498 = vpop.permute.xlu0 %8497
    %8499 = vrot.lane.b32.xlu0 %v8132, 24
    %v8500 = vpop.permute.xlu0 %8499
    %8501 = vrot.lane.b32.xlu0 %v8180, 24
    %v8502 = vpop.permute.xlu0 %8501
    %8503 = vrot.lane.b32.xlu0 %v8228, 24
    %v8504 = vpop.permute.xlu0 %8503
    %8505 = vrot.lane.b32.xlu0 %v8276, 24
    %v8506 = vpop.permute.xlu0 %8505
    %8507 = vrot.lane.b32.xlu0 %v8324, 24
    %v8508 = vpop.permute.xlu0 %8507
    %8509 = vrot.lane.b32.xlu0 %v8372, 24
    %v8510 = vpop.permute.xlu0 %8509
    %8511 = vrot.lane.b32.xlu0 %v8420, 24
    %v8512 = vpop.permute.xlu0 %8511
    %v8521 = vsel %vm490, %v5541, %v8434
    %v8522 = vsel %vm490, %v5590, %v8436
    %v8523 = vsel %vm490, %v5639, %v8438
    %v8524 = vsel %vm490, %v5688, %v8440
    %v8525 = vsel %vm490, %v5737, %v8442
    %v8526 = vsel %vm490, %v5786, %v8444
    %v8527 = vsel %vm490, %v5835, %v8446
    %v8528 = vsel %vm490, %v5884, %v8448
    %vm8529 = vcmask 130048
    %v8530 = vsel %vm8529, %v8521, %v8466
    %v8531 = vsel %vm8529, %v8522, %v8468
    %v8532 = vsel %vm8529, %v8523, %v8470
    %v8533 = vsel %vm8529, %v8524, %v8472
    %v8534 = vsel %vm8529, %v8525, %v8474
    %v8535 = vsel %vm8529, %v8526, %v8476
    %v8536 = vsel %vm8529, %v8527, %v8478
    %v8537 = vsel %vm8529, %v8528, %v8480
    %v8538 = vsel %vm243, %v8530, %v8498
    %v8539 = vsel %vm243, %v8531, %v8500
    %v8540 = vsel %vm243, %v8532, %v8502
    %v8541 = vsel %vm243, %v8533, %v8504
    %v8542 = vsel %vm243, %v8534, %v8506
    %v8543 = vsel %vm243, %v8535, %v8508
    %v8544 = vsel %vm243, %v8536, %v8510
    %v8545 = vsel %vm243, %v8537, %v8512
    %v8546 = vadd.f32 %v4941, %v8538
    %v8547 = vadd.f32 %v4941, %v8539
    %v8548 = vadd.f32 %v4941, %v8540
    %v8549 = vadd.f32 %v4941, %v8541
    %v8550 = vadd.f32 %v4941, %v8542
    %v8551 = vadd.f32 %v4941, %v8543
    %v8552 = vadd.f32 %v4941, %v8544
    %v8553 = vadd.f32 %v4941, %v8545
    %v8562 = vrot.slane %v8547, 7
    %vm8563 = vcmask 1041409
    %v8564 = vsel %vm8563, %v8562, %v8546
    %v8565 = vrot.slane %v8548, 6
    %vm8566 = vcmask 1042434
    %v8567 = vsel %vm8566, %v8565, %v8564
    %v8568 = vrot.slane %v8549, 5
    %vm8569 = vcmask 1043459
    %v8570 = vsel %vm8569, %v8568, %v8567
    %v8571 = vrot.slane %v8550, 4
    %vm8572 = vcmask 1044484
    %v8573 = vsel %vm8572, %v8571, %v8570
    %v8574 = vrot.slane %v8551, 3
    %vm8575 = vcmask 1045509
    %v8576 = vsel %vm8575, %v8574, %v8573
    %v8577 = vrot.slane %v8552, 2
    %vm8578 = vcmask 1046534
    %v8579 = vsel %vm8578, %v8577, %v8576
    %v8580 = vrot.slane %v8553, 1
    %vm8581 = vcmask 1047559
    %v8582 = vsel %vm8581, %v8580, %v8579
    %v8584 = vsel %vm345, %v8582, 0.0
    %8585 = vadd.xlane.f32.xlu0 %v8584
    %v8586 = vpop.xlane.xlu0 %8585
    %v8587 = vmul.f32 %v8586, %v4412
    %v8589 = vrot.slane %v8587, 1
    %v8590 = vrot.slane %v8587, 2
    %v8591 = vrot.slane %v8587, 3
    %v8592 = vrot.slane %v8587, 4
    %v8593 = vrot.slane %v8587, 5
    %v8594 = vrot.slane %v8587, 6
    %v8595 = vrot.slane %v8587, 7
    %v8604 = vsub.f32 %v8546, %v8587
    %v8605 = vsub.f32 %v8547, %v8589
    %v8606 = vsub.f32 %v8548, %v8590
    %v8607 = vsub.f32 %v8549, %v8591
    %v8608 = vsub.f32 %v8550, %v8592
    %v8609 = vsub.f32 %v8551, %v8593
    %v8610 = vsub.f32 %v8552, %v8594
    %v8611 = vsub.f32 %v8553, %v8595
    %v8612 = vmul.f32 %v8604, %v8604
    %v8613 = vmul.f32 %v8605, %v8605
    %v8614 = vmul.f32 %v8606, %v8606
    %v8615 = vmul.f32 %v8607, %v8607
    %v8616 = vmul.f32 %v8608, %v8608
    %v8617 = vmul.f32 %v8609, %v8609
    %v8618 = vmul.f32 %v8610, %v8610
    %v8619 = vmul.f32 %v8611, %v8611
    %v8628 = vrot.slane %v8613, 7
    %v8629 = vsel %vm8563, %v8628, %v8612
    %v8630 = vrot.slane %v8614, 6
    %v8631 = vsel %vm8566, %v8630, %v8629
    %v8632 = vrot.slane %v8615, 5
    %v8633 = vsel %vm8569, %v8632, %v8631
    %v8634 = vrot.slane %v8616, 4
    %v8635 = vsel %vm8572, %v8634, %v8633
    %v8636 = vrot.slane %v8617, 3
    %v8637 = vsel %vm8575, %v8636, %v8635
    %v8638 = vrot.slane %v8618, 2
    %v8639 = vsel %vm8578, %v8638, %v8637
    %v8640 = vrot.slane %v8619, 1
    %v8641 = vsel %vm8581, %v8640, %v8639
    %v8643 = vsel %vm345, %v8641, 0.0
    %8644 = vadd.xlane.f32.xlu0 %v8643
    %v8645 = vpop.xlane.xlu0 %8644
    %v8646 = vmul.f32 %v8645, %v4412
    %v8647 = vadd.f32 %v8646, 1e-05
    %v8648 = vrsqrt.pop %v8647
    %v8650 = vrot.slane %v8648, 1
    %v8651 = vrot.slane %v8648, 2
    %v8652 = vrot.slane %v8648, 3
    %v8653 = vrot.slane %v8648, 4
    %v8654 = vrot.slane %v8648, 5
    %v8655 = vrot.slane %v8648, 6
    %v8656 = vrot.slane %v8648, 7
    %v8665 = vmul.f32 %v8604, %v8648
    %v8666 = vmul.f32 %v8605, %v8650
    %v8667 = vmul.f32 %v8606, %v8651
    %v8668 = vmul.f32 %v8607, %v8652
    %v8669 = vmul.f32 %v8608, %v8653
    %v8670 = vmul.f32 %v8609, %v8654
    %v8671 = vmul.f32 %v8610, %v8655
    %v8672 = vmul.f32 %v8611, %v8656
    %v8673 = vlaneseq
    %v8674 = vshrl.u32 %v8673, 7
    %v8675 = vsub.s32 4, %v8674
    %v8676 = vrot.slane %v70, %v8675
    %v8677 = vmul.f32 %v8665, %v8676
    %v8678 = vmul.f32 %v8666, %v8676
    %v8679 = vmul.f32 %v8667, %v8676
    %v8680 = vmul.f32 %v8668, %v8676
    %v8681 = vmul.f32 %v8669, %v8676
    %v8682 = vmul.f32 %v8670, %v8676
    %v8683 = vmul.f32 %v8671, %v8676
    %v8684 = vmul.f32 %v8672, %v8676
    %v8685 = vlaneseq
    %v8686 = vshrl.u32 %v8685, 7
    %v8687 = vsub.s32 5, %v8686
    %v8688 = vrot.slane %v70, %v8687
    %v8689 = vadd.f32 %v8677, %v8688
    %v8690 = vadd.f32 %v8678, %v8688
    %v8691 = vadd.f32 %v8679, %v8688
    %v8692 = vadd.f32 %v8680, %v8688
    %v8693 = vadd.f32 %v8681, %v8688
    %v8694 = vadd.f32 %v8682, %v8688
    %v8695 = vadd.f32 %v8683, %v8688
    %v8696 = vadd.f32 %v8684, %v8688
    %v8697 = vpack.c.bf16 %v8689, %v8689
    %v8698 = vpack.c.bf16 %v8690, %v8690
    %v8699 = vpack.c.bf16 %v8691, %v8691
    %v8700 = vpack.c.bf16 %v8692, %v8692
    %v8701 = vpack.c.bf16 %v8693, %v8693
    %v8702 = vpack.c.bf16 %v8694, %v8694
    %v8703 = vpack.c.bf16 %v8695, %v8695
    %v8704 = vpack.c.bf16 %v8696, %v8696
    %v8705 = vlaneseq
    %v8706 = vshrl.u32 %v8705, 7
    %v8707 = vsub.s32 3, %v8706
    %v8708 = vrot.slane %v70, %v8707
    %v8717 = vunpack.c.l.b16 %v8697
    %v8718 = vunpack.c.l.b16 %v8698
    %v8719 = vunpack.c.l.b16 %v8699
    %v8720 = vunpack.c.l.b16 %v8700
    %v8721 = vunpack.c.l.b16 %v8701
    %v8722 = vunpack.c.l.b16 %v8702
    %v8723 = vunpack.c.l.b16 %v8703
    %v8724 = vunpack.c.l.b16 %v8704
    %v8725 = vrot.slane %v8718, 7
    %v8726 = vsel %vm8563, %v8725, %v8717
    %v8727 = vrot.slane %v8719, 6
    %v8728 = vsel %vm8566, %v8727, %v8726
    %v8729 = vrot.slane %v8720, 5
    %v8730 = vsel %vm8569, %v8729, %v8728
    %v8731 = vrot.slane %v8721, 4
    %v8732 = vsel %vm8572, %v8731, %v8730
    %v8733 = vrot.slane %v8722, 3
    %v8734 = vsel %vm8575, %v8733, %v8732
    %v8735 = vrot.slane %v8723, 2
    %v8736 = vsel %vm8578, %v8735, %v8734
    %v8737 = vrot.slane %v8724, 1
    %v8738 = vsel %vm8581, %v8737, %v8736
    %v8739 = vpack.c.b16 %v8738, %v8738
    %v8744 = vunpack.c.l.b16 %v120
    %v8745 = vunpack.c.l.b16 %v121
    %v8746 = vunpack.c.l.b16 %v122
    %v8747 = vunpack.c.l.b16 %v123
    %v8748 = vpack.c.b16 %v8745, %v8744
    %v8749 = vpack.c.b16 %v8747, %v8746
    %v8753 = vsel %vm345, %v8739, 0
    %8755 = vmatprep.subr.bf16.mxu0 0
    %8756 = vmatpush1.bf16.msra.mxu0 %v8748
    %8757 = vmatprep.subr.bf16.mxu0 0
    %8758 = vmatpush1.bf16.msra.mxu0 %v8749
    %8759 = vmatprep.subr.bf16.mxu0 0
    %8760 = vmatpush1.bf16.msra.mxu0 0
    %8761 = vmatprep.subr.bf16.mxu0 0
    %8762 = vmatpush1.bf16.msra.mxu0 0
    %8763 = vmatprep.subr.bf16.mxu0 0
    %8764 = vmatpush1.bf16.msra.mxu0 0
    %8765 = vmatprep.subr.bf16.mxu0 0
    %8766 = vmatpush1.bf16.msra.mxu0 0
    %8767 = vmatprep.subr.bf16.mxu0 0
    %8768 = vmatpush1.bf16.msra.mxu0 0
    %8769 = vmatprep.subr.bf16.mxu0 0
    %8770 = vmatpush1.bf16.msra.mxu0 0
    %8771 = vmatprep.subr.bf16.mxu0 0
    %8772 = vmatpush1.bf16.msra.mxu0 0
    %8773 = vmatprep.subr.bf16.mxu0 0
    %8774 = vmatpush1.bf16.msra.mxu0 0
    %8775 = vmatprep.subr.bf16.mxu0 0
    %8776 = vmatpush1.bf16.msra.mxu0 0
    %8777 = vmatprep.subr.bf16.mxu0 0
    %8778 = vmatpush1.bf16.msra.mxu0 0
    %8779 = vmatprep.subr.bf16.mxu0 0
    %8780 = vmatpush1.bf16.msra.mxu0 0
    %8781 = vmatprep.subr.bf16.mxu0 0
    %8782 = vmatpush1.bf16.msra.mxu0 0
    %8783 = vmatprep.subr.bf16.mxu0 0
    %8784 = vmatpush1.bf16.msra.mxu0 0
    %8785 = vmatprep.subr.bf16.mxu0 0
    %8786 = vmatpush1.bf16.msra.mxu0 0
    %8787 = vmatprep.mubr.bf16.mxu0 0
    %8788 = vmatmul.mubr.bf16.gmra.mrb[0].mxu0 %v8753
    %v8789 = vpop.f32.mrb[0].mxu0
    %v8790 = vadd.f32 %v8708, %v8789
    %v8791 = vpop.f32.mrb[0].mxu0
    %v8792 = vpop.f32.mrb[0].mxu0
    %v8793 = vpop.f32.mrb[0].mxu0
    %8794 = vdwg.mxu0
    %v8795 = vmax.f32 %v8790, 0.0
    %v8797 = vrot.slane %v8795, 1
    %v8798 = vrot.slane %v8795, 2
    %v8799 = vrot.slane %v8795, 3
    %v8800 = vrot.slane %v8795, 4
    %v8801 = vrot.slane %v8795, 5
    %v8802 = vrot.slane %v8795, 6
    %v8803 = vrot.slane %v8795, 7
    %v8812 = vadd.f32 %v8689, %v8795
    %v8813 = vadd.f32 %v8690, %v8797
    %v8814 = vadd.f32 %v8691, %v8798
    %v8815 = vadd.f32 %v8692, %v8799
    %v8816 = vadd.f32 %v8693, %v8800
    %v8817 = vadd.f32 %v8694, %v8801
    %v8818 = vadd.f32 %v8695, %v8802
    %v8819 = vadd.f32 %v8696, %v8803
    %v8828 = vrot.slane %v8813, 7
    %v8829 = vsel %vm8563, %v8828, %v8812
    %v8830 = vrot.slane %v8814, 6
    %v8831 = vsel %vm8566, %v8830, %v8829
    %v8832 = vrot.slane %v8815, 5
    %v8833 = vsel %vm8569, %v8832, %v8831
    %v8834 = vrot.slane %v8816, 4
    %v8835 = vsel %vm8572, %v8834, %v8833
    %v8836 = vrot.slane %v8817, 3
    %v8837 = vsel %vm8575, %v8836, %v8835
    %v8838 = vrot.slane %v8818, 2
    %v8839 = vsel %vm8578, %v8838, %v8837
    %v8840 = vrot.slane %v8819, 1
    %v8841 = vsel %vm8581, %v8840, %v8839
    %v8843 = vsel %vm345, %v8841, 0.0
    %8844 = vadd.xlane.f32.xlu0 %v8843
    %v8845 = vpop.xlane.xlu0 %8844
    %v8846 = vmul.f32 %v8845, %v4412
    %v8848 = vrot.slane %v8846, 1
    %v8849 = vrot.slane %v8846, 2
    %v8850 = vrot.slane %v8846, 3
    %v8851 = vrot.slane %v8846, 4
    %v8852 = vrot.slane %v8846, 5
    %v8853 = vrot.slane %v8846, 6
    %v8854 = vrot.slane %v8846, 7
    %v8863 = vsub.f32 %v8812, %v8846
    %v8864 = vsub.f32 %v8813, %v8848
    %v8865 = vsub.f32 %v8814, %v8849
    %v8866 = vsub.f32 %v8815, %v8850
    %v8867 = vsub.f32 %v8816, %v8851
    %v8868 = vsub.f32 %v8817, %v8852
    %v8869 = vsub.f32 %v8818, %v8853
    %v8870 = vsub.f32 %v8819, %v8854
    %v8871 = vmul.f32 %v8863, %v8863
    %v8872 = vmul.f32 %v8864, %v8864
    %v8873 = vmul.f32 %v8865, %v8865
    %v8874 = vmul.f32 %v8866, %v8866
    %v8875 = vmul.f32 %v8867, %v8867
    %v8876 = vmul.f32 %v8868, %v8868
    %v8877 = vmul.f32 %v8869, %v8869
    %v8878 = vmul.f32 %v8870, %v8870
    %v8887 = vrot.slane %v8872, 7
    %v8888 = vsel %vm8563, %v8887, %v8871
    %v8889 = vrot.slane %v8873, 6
    %v8890 = vsel %vm8566, %v8889, %v8888
    %v8891 = vrot.slane %v8874, 5
    %v8892 = vsel %vm8569, %v8891, %v8890
    %v8893 = vrot.slane %v8875, 4
    %v8894 = vsel %vm8572, %v8893, %v8892
    %v8895 = vrot.slane %v8876, 3
    %v8896 = vsel %vm8575, %v8895, %v8894
    %v8897 = vrot.slane %v8877, 2
    %v8898 = vsel %vm8578, %v8897, %v8896
    %v8899 = vrot.slane %v8878, 1
    %v8900 = vsel %vm8581, %v8899, %v8898
    %v8902 = vsel %vm345, %v8900, 0.0
    %8903 = vadd.xlane.f32.xlu0 %v8902
    %v8904 = vpop.xlane.xlu0 %8903
    %v8905 = vmul.f32 %v8904, %v4412
    %v8906 = vadd.f32 %v8905, 1e-05
    %v8907 = vrsqrt.pop %v8906
    %v8909 = vrot.slane %v8907, 1
    %v8910 = vrot.slane %v8907, 2
    %v8911 = vrot.slane %v8907, 3
    %v8912 = vrot.slane %v8907, 4
    %v8913 = vrot.slane %v8907, 5
    %v8914 = vrot.slane %v8907, 6
    %v8915 = vrot.slane %v8907, 7
    %v8924 = vmul.f32 %v8863, %v8907
    %v8925 = vmul.f32 %v8864, %v8909
    %v8926 = vmul.f32 %v8865, %v8910
    %v8927 = vmul.f32 %v8866, %v8911
    %v8928 = vmul.f32 %v8867, %v8912
    %v8929 = vmul.f32 %v8868, %v8913
    %v8930 = vmul.f32 %v8869, %v8914
    %v8931 = vmul.f32 %v8870, %v8915
    %v8932 = vlaneseq
    %v8933 = vshrl.u32 %v8932, 7
    %v8934 = vsub.s32 6, %v8933
    %v8935 = vrot.slane %v70, %v8934
    %v8936 = vmul.f32 %v8924, %v8935
    %v8937 = vmul.f32 %v8925, %v8935
    %v8938 = vmul.f32 %v8926, %v8935
    %v8939 = vmul.f32 %v8927, %v8935
    %v8940 = vmul.f32 %v8928, %v8935
    %v8941 = vmul.f32 %v8929, %v8935
    %v8942 = vmul.f32 %v8930, %v8935
    %v8943 = vmul.f32 %v8931, %v8935
    %v8944 = vlaneseq
    %v8945 = vshrl.u32 %v8944, 7
    %v8946 = vsub.s32 7, %v8945
    %v8947 = vrot.slane %v70, %v8946
    %v8948 = vadd.f32 %v8936, %v8947
    %v8949 = vadd.f32 %v8937, %v8947
    %v8950 = vadd.f32 %v8938, %v8947
    %v8951 = vadd.f32 %v8939, %v8947
    %v8952 = vadd.f32 %v8940, %v8947
    %v8953 = vadd.f32 %v8941, %v8947
    %v8954 = vadd.f32 %v8942, %v8947
    %v8955 = vadd.f32 %v8943, %v8947
    %v8956 = vpack.c.bf16 %v8948, %v8948
    %v8957 = vpack.c.bf16 %v8949, %v8949
    %v8958 = vpack.c.bf16 %v8950, %v8950
    %v8959 = vpack.c.bf16 %v8951, %v8951
    %v8960 = vpack.c.bf16 %v8952, %v8952
    %v8961 = vpack.c.bf16 %v8953, %v8953
    %v8962 = vpack.c.bf16 %v8954, %v8954
    %v8963 = vpack.c.bf16 %v8955, %v8955
    %v8964 = vlaneseq
    %v8965 = vshrl.u32 %v8964, 7
    %v8966 = vsub.s32 0, %v8965
    %v8967 = vrot.slane %v71, %v8966
    %v8976 = vunpack.c.l.b16 %v8956
    %v8977 = vunpack.c.l.b16 %v8957
    %v8978 = vunpack.c.l.b16 %v8958
    %v8979 = vunpack.c.l.b16 %v8959
    %v8980 = vunpack.c.l.b16 %v8960
    %v8981 = vunpack.c.l.b16 %v8961
    %v8982 = vunpack.c.l.b16 %v8962
    %v8983 = vunpack.c.l.b16 %v8963
    %v8984 = vrot.slane %v8977, 7
    %v8985 = vsel %vm8563, %v8984, %v8976
    %v8986 = vrot.slane %v8978, 6
    %v8987 = vsel %vm8566, %v8986, %v8985
    %v8988 = vrot.slane %v8979, 5
    %v8989 = vsel %vm8569, %v8988, %v8987
    %v8990 = vrot.slane %v8980, 4
    %v8991 = vsel %vm8572, %v8990, %v8989
    %v8992 = vrot.slane %v8981, 3
    %v8993 = vsel %vm8575, %v8992, %v8991
    %v8994 = vrot.slane %v8982, 2
    %v8995 = vsel %vm8578, %v8994, %v8993
    %v8996 = vrot.slane %v8983, 1
    %v8997 = vsel %vm8581, %v8996, %v8995
    %v8998 = vpack.c.b16 %v8997, %v8997
    %v9003 = vunpack.c.l.b16 %v124
    %v9004 = vunpack.c.l.b16 %v125
    %v9005 = vunpack.c.l.b16 %v126
    %v9006 = vunpack.c.l.b16 %v127
    %v9007 = vpack.c.b16 %v9004, %v9003
    %v9008 = vpack.c.b16 %v9006, %v9005
    %v9012 = vsel %vm345, %v8998, 0
    %9014 = vmatprep.subr.bf16.mxu0 0
    %9015 = vmatpush1.bf16.msra.mxu0 %v9007
    %9016 = vmatprep.subr.bf16.mxu0 0
    %9017 = vmatpush1.bf16.msra.mxu0 %v9008
    %9018 = vmatprep.subr.bf16.mxu0 0
    %9019 = vmatpush1.bf16.msra.mxu0 0
    %9020 = vmatprep.subr.bf16.mxu0 0
    %9021 = vmatpush1.bf16.msra.mxu0 0
    %9022 = vmatprep.subr.bf16.mxu0 0
    %9023 = vmatpush1.bf16.msra.mxu0 0
    %9024 = vmatprep.subr.bf16.mxu0 0
    %9025 = vmatpush1.bf16.msra.mxu0 0
    %9026 = vmatprep.subr.bf16.mxu0 0
    %9027 = vmatpush1.bf16.msra.mxu0 0
    %9028 = vmatprep.subr.bf16.mxu0 0
    %9029 = vmatpush1.bf16.msra.mxu0 0
    %9030 = vmatprep.subr.bf16.mxu0 0
    %9031 = vmatpush1.bf16.msra.mxu0 0
    %9032 = vmatprep.subr.bf16.mxu0 0
    %9033 = vmatpush1.bf16.msra.mxu0 0
    %9034 = vmatprep.subr.bf16.mxu0 0
    %9035 = vmatpush1.bf16.msra.mxu0 0
    %9036 = vmatprep.subr.bf16.mxu0 0
    %9037 = vmatpush1.bf16.msra.mxu0 0
    %9038 = vmatprep.subr.bf16.mxu0 0
    %9039 = vmatpush1.bf16.msra.mxu0 0
    %9040 = vmatprep.subr.bf16.mxu0 0
    %9041 = vmatpush1.bf16.msra.mxu0 0
    %9042 = vmatprep.subr.bf16.mxu0 0
    %9043 = vmatpush1.bf16.msra.mxu0 0
    %9044 = vmatprep.subr.bf16.mxu0 0
    %9045 = vmatpush1.bf16.msra.mxu0 0
    %9046 = vmatprep.mubr.bf16.mxu0 0
    %9047 = vmatmul.mubr.bf16.gmra.mrb[0].mxu0 %v9012
    %v9048 = vpop.f32.mrb[0].mxu0
    %v9049 = vadd.f32 %v8967, %v9048
    %v9050 = vpop.f32.mrb[0].mxu0
    %v9051 = vpop.f32.mrb[0].mxu0
    %v9052 = vpop.f32.mrb[0].mxu0
    %9053 = vdwg.mxu0
    %9054 = vst [vmem:[#allocation7] sm:$0xff] %v9049
    // Predicated region
    $region58: #{tpu_custom_call.1} parent=1 // pred_check
      _
    $region59: #{tpu_custom_call.1} parent=1 // pred_check_branch
      %9056 = sbr.rel (0) target = $region61
    $region60: #{tpu_custom_call.1} parent=1 // pred_region
      %s9058 = ssub.s32 128, 128
      %9059 = vsyncadd [#allocation4], %s9058
      %s9061 = sshll.u32 [#allocation7], 4
      %s9062 = int_to_ptr.vmem [resolvable:$true] %s9061
      %9064 = dma.vmem_to_hbm [thread:$0]  %s9062, 128, %s12, [#allocation4]
    $region61: #{tpu_custom_call.1} parent=1 // pred_fallthru
      _
    // Predicated region
    $region62: #{tpu_custom_call.1} parent=1 // pred_check
      _
    $region63: #{tpu_custom_call.1} parent=1 // pred_check_branch
      %9066 = sbr.rel (0) target = $region65
    $region64: #{tpu_custom_call.1} parent=1 // pred_region
      %9067 = dma.done [#allocation4], 128
    $region65: #{tpu_custom_call.1} parent=1 // pred_fallthru
      _
    %9068 = vsyncpa [#allocation3], 1
    %9069 = vsyncpa [#allocation6], 1
    %9070 = vsyncpa [#allocation4], 1

</llo_original>
